<compile_context>
chip_gen: v7x
topology: tpu7x:2x2x1
jax: 0.10.0
libtpu: 0.0.40
codegen_flags: <defaults>
</compile_context>

<pallas_src>
import functools
import math

import jax
import jax.numpy as jnp
from jax.experimental import pallas as pl
from jax.experimental.pallas import tpu as pltpu


# ---------------------------------------------------------------------------
# tiling / budget helpers
# ---------------------------------------------------------------------------
@functools.lru_cache(maxsize=None)
def _vmem_limit_bytes() -> int:
    """Explicit scoped-VMEM budget (feedback): ~3/4 of physical, capped at 100 MiB
    (~96 MiB on 128-MiB v5e/v6e, ~48 MiB on 64-MiB v7x)."""
    try:
        cap = int(pltpu.get_tpu_info().vmem_capacity_bytes)
        return int(min(cap * 3 // 4, 100 * 1024 * 1024))
    except Exception:
        return 32 * 1024 * 1024


def _lane_tile(n: int, target: int) -> int:
    """Largest multiple of 128 <= target that divides n (avoids partial edge blocks)."""
    if n <= target:
        return n
    start = max(128, (target // 128) * 128)
    for t in range(start, 127, -128):
        if n % t == 0:
            return t
    return start


def _row_tile(n: int, target: int) -> int:
    if n <= target:
        return n
    start = max(8, (target // 8) * 8)
    for t in range(start, 7, -8):
        if n % t == 0:
            return t
    return start


def _kv_tile(n: int) -> int:
    for t in (1024, 512, 256, 128):
        if n % t == 0:
            return t
    return n


# ---------------------------------------------------------------------------
# Kernel 1: Modulation  — out[m] = silu(vec) @ Wm[m] + bm[m]
# ---------------------------------------------------------------------------
def _modulation_kernel(vec_ref, w_ref, b_ref, out_ref):
    # vec_ref: (B, D)  w_ref: (1, D, TND)  b_ref: (1, 1, TND)  out_ref: (1, B, 1, TND)
    v = vec_ref[...].astype(jnp.float32)
    v = (v * jax.nn.sigmoid(v)).astype(w_ref.dtype)          # silu -> weight dtype
    acc = jnp.dot(v, w_ref[0], preferred_element_type=jnp.float32)
    acc = acc + b_ref[0].astype(jnp.float32)
    out_ref[0, :, 0, :] = acc.astype(out_ref.dtype)


def modulation_forward(vec, w_mod, b_mod, *, tn_target=512):
    """vec: (B, D); w_mod: (3, D, D) pre-transposed; b_mod: (3, 1, D) -> (3, B, 1, D)."""
    B, D = vec.shape
    mult = w_mod.shape[0]
    tnd = _lane_tile(D, tn_target)
    bytes_acc = (vec.size * vec.dtype.itemsize + w_mod.size * w_mod.dtype.itemsize
                 + b_mod.size * b_mod.dtype.itemsize
                 + mult * B * D * vec.dtype.itemsize)
    return pl.pallas_call(
        _modulation_kernel,
        out_shape=jax.ShapeDtypeStruct((mult, B, 1, D), vec.dtype),
        grid=(mult, pl.cdiv(D, tnd)),
        in_specs=[
            pl.BlockSpec((B, D), lambda m, j: (0, 0)),
            pl.BlockSpec((1, D, tnd), lambda m, j: (m, 0, j)),
            pl.BlockSpec((1, 1, tnd), lambda m, j: (m, 0, j)),
        ],
        out_specs=pl.BlockSpec((1, B, 1, tnd), lambda m, j: (m, 0, 0, j)),
        compiler_params=pltpu.CompilerParams(
            dimension_semantics=("parallel", "parallel"),
            vmem_limit_bytes=_vmem_limit_bytes()),
        cost_estimate=pl.CostEstimate(
            flops=int(2 * B * D * mult * D),
            transcendentals=int(B * D),
            bytes_accessed=int(bytes_acc)),
    )(vec, w_mod, b_mod)


# ---------------------------------------------------------------------------
# Kernel 2: LayerNorm(no affine) + modulate + GEMM  (used for both the qkv and mlp
# halves of linear1 -> no strided last-dim slices downstream)
# ---------------------------------------------------------------------------
def _prenorm_linear_kernel(x_ref, scale_ref, shift_ref, w_ref, b_ref, out_ref, xm_buf):
    # x: (1, TL, D)  scale/shift: (1, 1, D)  w: (D, TN)  b: (1, TN)  out: (1, TL, TN)
    # LN + modulate computed ONCE per row tile (j == 0), cached in VMEM, reused across j.
    @pl.when(pl.program_id(2) == 0)
    def _():
        x = x_ref[0].astype(jnp.float32)
        mu = jnp.mean(x, axis=-1, keepdims=True)
        xc = x - mu
        var = jnp.mean(xc * xc, axis=-1, keepdims=True)
        xn = xc * jax.lax.rsqrt(var + 1e-6)
        sc = scale_ref[0].astype(jnp.float32)
        sh = shift_ref[0].astype(jnp.float32)
        xm_buf[...] = ((1.0 + sc) * xn + sh).astype(xm_buf.dtype)

    acc = jnp.dot(xm_buf[...], w_ref[...], preferred_element_type=jnp.float32)
    acc = acc + b_ref[...].astype(jnp.float32)
    out_ref[0] = acc.astype(out_ref.dtype)


def prenorm_modulate_linear(x, scale, shift, w_t, b, *, tl_target=512, tn_target=512):
    B, L, D = x.shape
    N = w_t.shape[1]
    tl = _row_tile(L, tl_target)
    tn = _lane_tile(N, tn_target)
    grid = (B, pl.cdiv(L, tl), pl.cdiv(N, tn))     # j innermost ("arbitrary": scratch carry)
    bytes_acc = (x.size * x.dtype.itemsize
                 + w_t.size * w_t.dtype.itemsize * pl.cdiv(B * L, tl)
                 + b.size * b.dtype.itemsize
                 + B * L * N * x.dtype.itemsize)
    return pl.pallas_call(
        _prenorm_linear_kernel,
        out_shape=jax.ShapeDtypeStruct((B, L, N), x.dtype),
        grid=grid,
        in_specs=[
            pl.BlockSpec((1, tl, D), lambda b_, i, j: (b_, i, 0)),
            pl.BlockSpec((1, 1, D), lambda b_, i, j: (b_, 0, 0)),
            pl.BlockSpec((1, 1, D), lambda b_, i, j: (b_, 0, 0)),
            pl.BlockSpec((D, tn), lambda b_, i, j: (0, j)),
            pl.BlockSpec((1, tn), lambda b_, i, j: (0, j)),
        ],
        out_specs=pl.BlockSpec((1, tl, tn), lambda b_, i, j: (b_, i, j)),
        scratch_shapes=[pltpu.VMEM((tl, D), w_t.dtype)],
        compiler_params=pltpu.CompilerParams(
            dimension_semantics=("parallel", "parallel", "arbitrary"),
            vmem_limit_bytes=_vmem_limit_bytes()),
        cost_estimate=pl.CostEstimate(
            flops=int(2 * B * L * D * N),
            transcendentals=int(B * L),
            bytes_accessed=int(bytes_acc)),
    )(x, scale, shift, w_t, b)


# ---------------------------------------------------------------------------
# Kernel 3: attention with fused QKNorm (RMSNorm) + RoPE, flash-style over KV tiles.
# q/k/v head slices are read directly from the (B, L, 3H) linear1 output.
# ---------------------------------------------------------------------------
def _attention_kernel(q_ref, k_ref, v_ref, qs_ref, ks_ref, cos_ref, sin_ref, rot_ref,
                      o_ref, q_buf, m_buf, l_buf, acc_buf, *, sm_scale, kv_tile):
    kv = pl.program_id(2)

    def _norm_rope(x32, gamma, c, s):
        # RMSNorm over the head dim, then RoPE: out = cos*x + sin*(x @ R), where R is the
        # pairwise (even,odd) -> (-odd, even) rotation — avoids the (..., 2, 2) layout.
        rrms = jax.lax.rsqrt(jnp.mean(x32 * x32, axis=-1, keepdims=True) + 1e-6)
        xn = x32 * rrms * gamma
        xrot = jnp.dot(xn, rot_ref[...], preferred_element_type=jnp.float32)
        return c * xn + s * xrot

    @pl.when(kv == 0)
    def _():
        q32 = q_ref[0].astype(jnp.float32)
        qr = _norm_rope(q32, qs_ref[...].astype(jnp.float32),
                        cos_ref[...].astype(jnp.float32),
                        sin_ref[...].astype(jnp.float32))
        q_buf[...] = (qr * sm_scale).astype(q_buf.dtype)
        m_buf[...] = jnp.full_like(m_buf, -jnp.inf)
        l_buf[...] = jnp.zeros_like(l_buf)
        acc_buf[...] = jnp.zeros_like(acc_buf)

    row0 = pl.multiple_of(kv * kv_tile, kv_tile)
    c_k = cos_ref[pl.ds(row0, kv_tile), :].astype(jnp.float32)
    s_k = sin_ref[pl.ds(row0, kv_tile), :].astype(jnp.float32)
    kr = _norm_rope(k_ref[0].astype(jnp.float32),
                    ks_ref[...].astype(jnp.float32), c_k, s_k)

    q = q_buf[...]
    s = jnp.dot(q, kr.astype(q.dtype).T, preferred_element_type=jnp.float32)  # (L, tkv)

    m_prev = m_buf[...]
    m_new = jnp.maximum(m_prev, jnp.max(s, axis=-1, keepdims=True))
    alpha = jnp.exp(m_prev - m_new)
    p = jnp.exp(s - m_new)
    l_buf[...] = alpha * l_buf[...] + jnp.sum(p, axis=-1, keepdims=True)
    acc_buf[...] = alpha * acc_buf[...] + jnp.dot(
        p.astype(v_ref.dtype), v_ref[0], preferred_element_type=jnp.float32)
    m_buf[...] = m_new

    @pl.when(kv == pl.num_programs(2) - 1)
    def _():
        inv = pl.reciprocal(l_buf[...], approx=True)          # EUP slot, not VALU
        o_ref[0] = (acc_buf[...] * inv).astype(o_ref.dtype)


def attention_fused(qkv, q_scale, k_scale, cos, sin, rot, *, num_heads):
    # TODO(synk): also tile the q rows and pack 2 heads per grid step (2*Dh = 256 lanes
    # on the PV matmul) for very long sequences / v6e-v7x MXU width.
    B, L, threeH = qkv.shape
    H = threeH // 3
    Hn = num_heads
    Dh = H // Hn
    tkv = _kv_tile(L)
    kernel = functools.partial(_attention_kernel,
                               sm_scale=1.0 / math.sqrt(Dh), kv_tile=tkv)
    return pl.pallas_call(
        kernel,
        out_shape=jax.ShapeDtypeStruct((B, L, H), qkv.dtype),
        grid=(B, Hn, L // tkv),
        in_specs=[
            pl.BlockSpec((1, L, Dh), lambda b, h, kv: (b, 0, h)),            # q slice
            pl.BlockSpec((1, tkv, Dh), lambda b, h, kv: (b, kv, Hn + h)),    # k slice
            pl.BlockSpec((1, tkv, Dh), lambda b, h, kv: (b, kv, 2 * Hn + h)),  # v slice
            pl.BlockSpec((1, Dh), lambda b, h, kv: (0, 0)),                  # q_scale
            pl.BlockSpec((1, Dh), lambda b, h, kv: (0, 0)),                  # k_scale
            pl.BlockSpec((L, Dh), lambda b, h, kv: (0, 0)),                  # cos
            pl.BlockSpec((L, Dh), lambda b, h, kv: (0, 0)),                  # sin
            pl.BlockSpec((Dh, Dh), lambda b, h, kv: (0, 0)),                 # rope rot
        ],
        out_specs=pl.BlockSpec((1, L, Dh), lambda b, h, kv: (b, 0, h)),
        scratch_shapes=[
            pltpu.VMEM((L, Dh), qkv.dtype),          # scaled, normed, roped q
            pltpu.VMEM((L, 1), jnp.float32),         # running max
            pltpu.VMEM((L, 1), jnp.float32),         # running denom
            pltpu.VMEM((L, Dh), jnp.float32),        # running numerator
        ],
        compiler_params=pltpu.CompilerParams(
            dimension_semantics=("parallel", "parallel", "arbitrary"),
            vmem_limit_bytes=_vmem_limit_bytes()),
    )(qkv, qkv, qkv, q_scale, k_scale, cos, sin, rot)


# ---------------------------------------------------------------------------
# Kernel 4: gelu_tanh(mlp) (hoisted) + linear2(attn | gelu) + residual gate
# ---------------------------------------------------------------------------
_GELU_C = math.sqrt(2.0 / math.pi)


def _gelu_linear2_kernel(attn_ref, mlp_ref, x_ref, gate_ref,
                         w2a_ref, w2b_ref, b2_ref, out_ref, g_buf):
    # attn: (1, TL, H)  mlp: (1, TL, M)  x: (1, TL, TN)  gate: (1, 1, TN)
    # w2a: (H, TN)  w2b: (M, TN)  b2: (1, TN)  out: (1, TL, TN)  g_buf: (TL, M)
    @pl.when(pl.program_id(2) == 0)
    def _():
        m = mlp_ref[0].astype(jnp.float32)
        g = 0.5 * m * (1.0 + jnp.tanh(_GELU_C * (m + 0.044715 * m * m * m)))
        g_buf[...] = g.astype(g_buf.dtype)           # tanh computed once per row tile

    acc = jnp.dot(attn_ref[0].astype(w2a_ref.dtype), w2a_ref[...],
                  preferred_element_type=jnp.float32)
    acc = acc + jnp.dot(g_buf[...], w2b_ref[...], preferred_element_type=jnp.float32)
    acc = acc + b2_ref[...].astype(jnp.float32)
    gate = gate_ref[0].astype(jnp.float32)
    out_ref[0] = (x_ref[0].astype(jnp.float32) + gate * acc).astype(out_ref.dtype)


def gelu_linear2_residual(attn, mlp, x, gate, w2a_t, w2b_t, b2,
                          *, tl_target=512, tn_target=256):
    B, L, H = x.shape
    M = mlp.shape[-1]
    tl = _row_tile(L, tl_target)
    tn = _lane_tile(H, tn_target)
    grid = (B, pl.cdiv(L, tl), pl.cdiv(H, tn))      # j innermost ("arbitrary": g_buf carry)
    bytes_acc = (attn.size * attn.dtype.itemsize + mlp.size * mlp.dtype.itemsize
                 + x.size * x.dtype.itemsize
                 + (w2a_t.size * w2a_t.dtype.itemsize
                    + w2b_t.size * w2b_t.dtype.itemsize) * pl.cdiv(B * L, tl)
                 + b2.size * b2.dtype.itemsize + B * L * H * x.dtype.itemsize)
    return pl.pallas_call(
        _gelu_linear2_kernel,
        out_shape=jax.ShapeDtypeStruct((B, L, H), x.dtype),
        grid=grid,
        in_specs=[
            pl.BlockSpec((1, tl, H), lambda b, i, j: (b, i, 0)),
            pl.BlockSpec((1, tl, M), lambda b, i, j: (b, i, 0)),
            pl.BlockSpec((1, tl, tn), lambda b, i, j: (b, i, j)),
            pl.BlockSpec((1, 1, tn), lambda b, i, j: (b, 0, j)),
            pl.BlockSpec((H, tn), lambda b, i, j: (0, j)),
            pl.BlockSpec((M, tn), lambda b, i, j: (0, j)),
            pl.BlockSpec((1, tn), lambda b, i, j: (0, j)),
        ],
        out_specs=pl.BlockSpec((1, tl, tn), lambda b, i, j: (b, i, j)),
        scratch_shapes=[pltpu.VMEM((tl, M), w2b_t.dtype)],
        compiler_params=pltpu.CompilerParams(
            dimension_semantics=("parallel", "parallel", "arbitrary"),
            vmem_limit_bytes=_vmem_limit_bytes()),
        cost_estimate=pl.CostEstimate(
            flops=int(2 * B * L * (H + M) * H),
            transcendentals=int(B * L * M),
            bytes_accessed=int(bytes_acc)),
    )(attn, mlp, x, gate, w2a_t, w2b_t, b2)


# ---------------------------------------------------------------------------
# RoPE tables (tiny, lane-dense) derived once per call from the module's `pe` input
# ---------------------------------------------------------------------------
def _rope_tables(pe, L, Dh):
    pe = pe.reshape(L, Dh // 2, 2, 2).astype(jnp.float32)
    cos = jnp.repeat(pe[:, :, 0, 0], 2, axis=-1)          # (L, Dh) [c0,c0,c1,c1,...]
    sin = jnp.repeat(pe[:, :, 1, 0], 2, axis=-1)          # (L, Dh)
    i = jnp.arange(Dh)
    row, col = i[:, None], i[None, :]
    rot = (jnp.where((col == row + 1) & (row % 2 == 0), 1.0, 0.0)
           + jnp.where((col == row - 1) & (row % 2 == 1), -1.0, 0.0))
    return cos, sin, rot.astype(jnp.float32)


def rope_freqs(pos, dim, theta=10000.0):
    scale = jnp.arange(0, dim, 2, dtype=jnp.float32) / dim
    omega = 1.0 / (theta ** scale)
    out = pos[..., None] * omega
    cos, sin = jnp.cos(out), jnp.sin(out)
    out = jnp.stack([cos, -sin, sin, cos], axis=-1)
    return out.reshape(*out.shape[:-1], 2, 2)             # (..., L, dim//2, 2, 2)


# ---------------------------------------------------------------------------
# parameter layout prep (done ONCE at load time) — bf16 weight path supported
# ---------------------------------------------------------------------------
def prepare_params(tp, *, hidden_size, compute_dtype=jnp.bfloat16):
    H = hidden_size
    wd = compute_dtype
    f32 = jnp.float32
    return {
        "mod_w_t": jnp.transpose(tp["mod_w"].reshape(3, H, H), (0, 2, 1)).astype(wd),
        "mod_b": tp["mod_b"].reshape(3, 1, H).astype(f32),
        "w1_qkv_t": tp["w1"][:3 * H].T.astype(wd),         # (D, 3H)
        "w1_mlp_t": tp["w1"][3 * H:].T.astype(wd),         # (D, M)
        "b1_qkv": tp["b1"][:3 * H].reshape(1, -1).astype(f32),
        "b1_mlp": tp["b1"][3 * H:].reshape(1, -1).astype(f32),
        "w2a_t": tp["w2"].T[:H].astype(wd),                # (H, H)   attn half
        "w2b_t": tp["w2"].T[H:].astype(wd),                # (M, H)   mlp half
        "b2": tp["b2"].reshape(1, -1).astype(f32),
        "q_scale": tp["q_scale"].reshape(1, -1).astype(f32),
        "k_scale": tp["k_scale"].reshape(1, -1).astype(f32),
    }


# ---------------------------------------------------------------------------
# SingleStreamBlock forward
# ---------------------------------------------------------------------------
def single_stream_block_forward(x, vec, pe, p, *, num_heads):
    B, L, H = x.shape
    Dh = H // num_heads

    # 1) modulation (double=False -> 3 chunks): (3, B, 1, H) contiguous slabs
    mod = modulation_forward(vec, p["mod_w_t"], p["mod_b"])
    shift, scale, gate = mod[0], mod[1], mod[2]

    # 2) pre_norm + modulate + linear1, split into the qkv and mlp halves (no slicing)
    qkv = prenorm_modulate_linear(x, scale, shift, p["w1_qkv_t"], p["b1_qkv"])
    mlp = prenorm_modulate_linear(x, scale, shift, p["w1_mlp_t"], p["b1_mlp"])

    # 3+4) attention with fused QKNorm + RoPE, head split done via BlockSpec index maps
    cos, sin, rot = _rope_tables(pe, L, Dh)
    attn = attention_fused(qkv, p["q_scale"], p["k_scale"], cos, sin, rot,
                           num_heads=num_heads)

    # 5) linear2(attn | gelu_tanh(mlp)) + residual gate
    return gelu_linear2_residual(attn, mlp, x, gate, p["w2a_t"], p["w2b_t"], p["b2"])


# ---------------------------------------------------------------------------
# pure-JAX reference (mirrors the PyTorch module op-for-op)
# ---------------------------------------------------------------------------
def _rms_norm_ref(x, scale, eps=1e-6):
    x32 = x.astype(jnp.float32)
    rrms = jax.lax.rsqrt(jnp.mean(x32 * x32, axis=-1, keepdims=True) + eps)
    return (x32 * rrms).astype(x.dtype) * scale


def _apply_rope_ref(xq, xk, pe):
    def rot(x):
        x_ = x.astype(jnp.float32).reshape(*x.shape[:-1], -1, 1, 2)
        out = pe[..., 0] * x_[..., 0] + pe[..., 1] * x_[..., 1]
        return out.reshape(x.shape).astype(x.dtype)
    return rot(xq), rot(xk)


def reference_forward(x, vec, pe, tp, *, num_heads):
    B, L, H = x.shape
    Dh = H // num_heads
    silu = vec * jax.nn.sigmoid(vec)
    mod = (silu @ tp["mod_w"].T + tp["mod_b"])[:, None, :]
    shift, scale, gate = jnp.split(mod, 3, axis=-1)
    mu = jnp.mean(x, axis=-1, keepdims=True)
    var = jnp.mean((x - mu) ** 2, axis=-1, keepdims=True)
    xn = (x - mu) / jnp.sqrt(var + 1e-6)
    x_mod = (1 + scale) * xn + shift
    h = x_mod @ tp["w1"].T + tp["b1"]
    qkv, mlp = h[..., :3 * H], h[..., 3 * H:]
    qkv = qkv.reshape(B, L, 3, num_heads, Dh).transpose(2, 0, 3, 1, 4)
    q, k, v = qkv[0], qkv[1], qkv[2]
    q = _rms_norm_ref(q, tp["q_scale"]).astype(v.dtype)
    k = _rms_norm_ref(k, tp["k_scale"]).astype(v.dtype)
    q, k = _apply_rope_ref(q, k, pe)
    s = jnp.einsum("bhqd,bhkd->bhqk", q, k) / math.sqrt(Dh)
    p = jax.nn.softmax(s.astype(jnp.float32), axis=-1).astype(v.dtype)
    attn = jnp.einsum("bhqk,bhkd->bhqd", p, v).transpose(0, 2, 1, 3).reshape(B, L, H)
    c = math.sqrt(2.0 / math.pi)
    g = 0.5 * mlp * (1.0 + jnp.tanh(c * (mlp + 0.044715 * mlp ** 3)))
    out = jnp.concatenate([attn, g], axis=-1) @ tp["w2"].T + tp["b2"]
    return x + gate * out


if __name__ == "__main__":
    # Small but TPU-realistic shapes: full 128-wide heads so head slices / RoPE tables
    # land on native lane tiling.
    B, L, H = 2, 16, 256
    num_heads = 2
    Dh = H // num_heads
    mlp_hidden = int(H * 4.0)

    key = jax.random.PRNGKey(0)
    ks = jax.random.split(key, 8)
    f32 = jnp.float32

    x = jax.random.normal(ks[0], (B, L, H), dtype=f32)
    vec = jax.random.normal(ks[1], (B, H), dtype=f32)

    def uinit(k, shape, fan_in):
        bound = 1.0 / math.sqrt(fan_in)
        return jax.random.uniform(k, shape, minval=-bound, maxval=bound, dtype=f32)

    # PyTorch-layout parameters (nn.Linear: (out, in) weights, (out,) biases)
    tp = {
        "mod_w": uinit(ks[2], (3 * H, H), H),
        "mod_b": uinit(ks[3], (3 * H,), H),
        "w1": uinit(ks[4], (3 * H + mlp_hidden, H), H),
        "b1": uinit(ks[5], (3 * H + mlp_hidden,), H),
        "w2": uinit(ks[6], (H, H + mlp_hidden), H + mlp_hidden),
        "b2": uinit(ks[7], (H,), H + mlp_hidden),
        "q_scale": jnp.ones((Dh,), f32),
        "k_scale": jnp.ones((Dh,), f32),
    }

    pe = rope_freqs(jnp.arange(L, dtype=f32), Dh)[None, None]   # (1, 1, L, Dh//2, 2, 2)
    ref = reference_forward(x, vec, pe, tp, num_heads=num_heads)

    fwd = jax.jit(functools.partial(single_stream_block_forward, num_heads=num_heads))

    # f32-weight path: strict numerics check against the op-for-op reference
    params_f32 = prepare_params(tp, hidden_size=H, compute_dtype=jnp.float32)
    out = jax.block_until_ready(fwd(x, vec, pe, params_f32))
    assert out.shape == (B, L, H)
    err = float(jnp.max(jnp.abs(out - ref)))
    assert err < 2e-2, f"f32 path max abs err {err}"

    # bf16-weight path (the perf configuration): loose check, exercises bf16 GEMMs
    params_bf16 = prepare_params(tp, hidden_size=H, compute_dtype=jnp.bfloat16)
    out_bf16 = jax.block_until_ready(fwd(x, vec, pe, params_bf16))
    err_bf16 = float(jnp.max(jnp.abs(out_bf16.astype(f32) - ref)))
    assert err_bf16 < 1.5e-1, f"bf16 path max abs err {err_bf16}"

    print("KERNEL_OK")
</pallas_src>

<mosaic_0001>
module attributes {stable_mosaic.version = 11 : i64} {
  func.func @_modulation_kernel(%arg0: i32, %arg1: i32, %arg2: memref<2x256xf32, #tpu.memory_space<vmem>>, %arg3: memref<1x256x256xf32, #tpu.memory_space<vmem>>, %arg4: memref<1x1x256xf32, #tpu.memory_space<vmem>>, %arg5: memref<1x2x1x256xf32, #tpu.memory_space<vmem>>) attributes {dimension_semantics = [#tpu.dimension_semantics<parallel>, #tpu.dimension_semantics<parallel>], iteration_bounds = array<i64: 3, 1>, scalar_prefetch = 0 : i64, scratch_operands = 0 : i64, tpu.core_type = #tpu.core_type<tc>, window_params = [{pipeline_mode = #tpu.pipeline_mode<synchronous>, transform_indices = @transform_0, window_bounds = array<i64: 2, 256>}, {transform_indices = @transform_1, window_bounds = array<i64: 1, 256, 256>}, {transform_indices = @transform_2, window_bounds = array<i64: 1, 1, 256>}, {transform_indices = @transform_3, window_bounds = array<i64: 1, 2, 1, 256>}]} {
    %c0 = arith.constant 0 : index
    %c0_0 = arith.constant 0 : index
    %0 = vector.load %arg2[%c0, %c0_0] : memref<2x256xf32, #tpu.memory_space<vmem>>, vector<2x256xf32>
    %1 = arith.negf %0 : vector<2x256xf32>
    %2 = math.exp %1 : vector<2x256xf32>
    %cst = arith.constant 1.000000e+00 : f32
    %3 = vector.broadcast %cst : f32 to vector<2x256xf32>
    %4 = arith.addf %3, %2 : vector<2x256xf32>
    %5 = arith.divf %3, %4 : vector<2x256xf32>
    %6 = arith.mulf %0, %5 : vector<2x256xf32>
    %c0_1 = arith.constant 0 : index
    %c0_2 = arith.constant 0 : index
    %c0_3 = arith.constant 0 : index
    %7 = vector.load %arg3[%c0_1, %c0_2, %c0_3] : memref<1x256x256xf32, #tpu.memory_space<vmem>>, vector<1x256x256xf32>
    %8 = vector.shape_cast %7 : vector<1x256x256xf32> to vector<256x256xf32>
    %cst_4 = arith.constant dense<0.000000e+00> : vector<2x256xf32>
    %9 = tpu.matmul %6, %8, %cst_4 {dimension_numbers = #tpu.dot_dimension_numbers<[1], [0], [0], [1], [0, 0, 1, 1], [], []>} : vector<2x256xf32>, vector<256x256xf32>, vector<2x256xf32> -> vector<2x256xf32>
    %c0_5 = arith.constant 0 : index
    %c0_6 = arith.constant 0 : index
    %c0_7 = arith.constant 0 : index
    %10 = vector.load %arg4[%c0_5, %c0_6, %c0_7] : memref<1x1x256xf32, #tpu.memory_space<vmem>>, vector<1x1x256xf32>
    %11 = vector.shape_cast %10 : vector<1x1x256xf32> to vector<1x256xf32>
    %12 = vector.broadcast %11 : vector<1x256xf32> to vector<2x256xf32>
    %13 = arith.addf %9, %12 : vector<2x256xf32>
    %c0_8 = arith.constant 0 : index
    %c0_9 = arith.constant 0 : index
    %c0_10 = arith.constant 0 : index
    %c0_11 = arith.constant 0 : index
    %14 = vector.load %arg5[%c0_8, %c0_9, %c0_10, %c0_11] : memref<1x2x1x256xf32, #tpu.memory_space<vmem>>, vector<1x2x1x256xf32>
    %15 = vector.shape_cast %14 : vector<1x2x1x256xf32> to vector<2x256xf32>
    %16 = vector.shape_cast %13 : vector<2x256xf32> to vector<1x2x1x256xf32>
    tpu.vector_store %arg5[%c0_8, %c0_9, %c0_10, %c0_11], %16 {strides = array<i32>} : memref<1x2x1x256xf32, #tpu.memory_space<vmem>>, vector<1x2x1x256xf32>,
    return
  }
  func.func @transform_0(%arg0: i32, %arg1: i32) -> (i32, i32) {
    %c0_i32 = arith.constant 0 : i32
    %c0_i32_0 = arith.constant 0 : i32
    %c0_i32_1 = arith.constant 0 : i32
    return %c0_i32, %c0_i32_0 : i32, i32
  }
  func.func @transform_1(%arg0: i32, %arg1: i32) -> (i32, i32, i32) {
    %c0_i32 = arith.constant 0 : i32
    %c0_i32_0 = arith.constant 0 : i32
    return %arg0, %c0_i32, %arg1 : i32, i32, i32
  }
  func.func @transform_2(%arg0: i32, %arg1: i32) -> (i32, i32, i32) {
    %c0_i32 = arith.constant 0 : i32
    %c0_i32_0 = arith.constant 0 : i32
    return %arg0, %c0_i32, %arg1 : i32, i32, i32
  }
  func.func @transform_3(%arg0: i32, %arg1: i32) -> (i32, i32, i32, i32) {
    %c0_i32 = arith.constant 0 : i32
    %c0_i32_0 = arith.constant 0 : i32
    %c0_i32_1 = arith.constant 0 : i32
    return %arg0, %c0_i32, %c0_i32_0, %arg1 : i32, i32, i32, i32
  }
}

module attributes {stable_mosaic.version = 11 : i64} {
  func.func @_prenorm_linear_kernel(%arg0: i32, %arg1: i32, %arg2: i32, %arg3: memref<1x16x256xf32, #tpu.memory_space<vmem>>, %arg4: memref<1x1x256xf32, #tpu.memory_space<vmem>>, %arg5: memref<1x1x256xf32, #tpu.memory_space<vmem>>, %arg6: memref<256x384xf32, #tpu.memory_space<vmem>>, %arg7: memref<1x384xf32, #tpu.memory_space<vmem>>, %arg8: memref<1x16x384xf32, #tpu.memory_space<vmem>>, %arg9: memref<16x256xf32, #tpu.memory_space<vmem>>) attributes {dimension_semantics = [#tpu.dimension_semantics<parallel>, #tpu.dimension_semantics<parallel>, #tpu.dimension_semantics<arbitrary>], iteration_bounds = array<i64: 2, 1, 2>, scalar_prefetch = 0 : i64, scratch_operands = 1 : i64, tpu.core_type = #tpu.core_type<tc>, window_params = [{transform_indices = @transform_0, window_bounds = array<i64: 1, 16, 256>}, {transform_indices = @transform_1, window_bounds = array<i64: 1, 1, 256>}, {transform_indices = @transform_2, window_bounds = array<i64: 1, 1, 256>}, {transform_indices = @transform_3, window_bounds = array<i64: 256, 384>}, {transform_indices = @transform_4, window_bounds = array<i64: 1, 384>}, {transform_indices = @transform_5, window_bounds = array<i64: 1, 16, 384>}]} {
    %c0_i32 = arith.constant 0 : i32
    %0 = arith.cmpi eq, %arg2, %c0_i32 : i32
    %1 = arith.extui %0 : i1 to i32
    %c0_i32_0 = arith.constant 0 : i32
    %2 = arith.cmpi ne, %1, %c0_i32_0 : i32
    scf.if %2 {
      %c0_9 = arith.constant 0 : index
      %c0_10 = arith.constant 0 : index
      %c0_11 = arith.constant 0 : index
      %12 = vector.load %arg3[%c0_9, %c0_10, %c0_11] : memref<1x16x256xf32, #tpu.memory_space<vmem>>, vector<1x16x256xf32>
      %13 = vector.shape_cast %12 : vector<1x16x256xf32> to vector<16x256xf32>
      %cst_12 = arith.constant dense<0.000000e+00> : vector<16xf32>
      %14 = vector.multi_reduction <add>, %13, %cst_12 [1] : vector<16x256xf32> to vector<16xf32>
      %15 = vector.shape_cast %14 : vector<16xf32> to vector<16x1xf32>
      %cst_13 = arith.constant 2.560000e+02 : f32
      %16 = vector.broadcast %cst_13 : f32 to vector<16x1xf32>
      %17 = arith.divf %15, %16 : vector<16x1xf32>
      %18 = vector.broadcast %17 : vector<16x1xf32> to vector<16x256xf32>
      %19 = arith.subf %13, %18 : vector<16x256xf32>
      %20 = arith.mulf %19, %19 : vector<16x256xf32>
      %cst_14 = arith.constant dense<0.000000e+00> : vector<16xf32>
      %21 = vector.multi_reduction <add>, %20, %cst_14 [1] : vector<16x256xf32> to vector<16xf32>
      %22 = vector.shape_cast %21 : vector<16xf32> to vector<16x1xf32>
      %cst_15 = arith.constant 2.560000e+02 : f32
      %23 = vector.broadcast %cst_15 : f32 to vector<16x1xf32>
      %24 = arith.divf %22, %23 : vector<16x1xf32>
      %cst_16 = arith.constant 9.99999997E-7 : f32
      %25 = vector.broadcast %cst_16 : f32 to vector<16x1xf32>
      %26 = arith.addf %24, %25 : vector<16x1xf32>
      %27 = math.rsqrt %26 : vector<16x1xf32>
      %28 = vector.broadcast %27 : vector<16x1xf32> to vector<16x256xf32>
      %29 = arith.mulf %19, %28 : vector<16x256xf32>
      %c0_17 = arith.constant 0 : index
      %c0_18 = arith.constant 0 : index
      %c0_19 = arith.constant 0 : index
      %30 = vector.load %arg4[%c0_17, %c0_18, %c0_19] : memref<1x1x256xf32, #tpu.memory_space<vmem>>, vector<1x1x256xf32>
      %31 = vector.shape_cast %30 : vector<1x1x256xf32> to vector<1x256xf32>
      %c0_20 = arith.constant 0 : index
      %c0_21 = arith.constant 0 : index
      %c0_22 = arith.constant 0 : index
      %32 = vector.load %arg5[%c0_20, %c0_21, %c0_22] : memref<1x1x256xf32, #tpu.memory_space<vmem>>, vector<1x1x256xf32>
      %33 = vector.shape_cast %32 : vector<1x1x256xf32> to vector<1x256xf32>
      %cst_23 = arith.constant 1.000000e+00 : f32
      %34 = vector.broadcast %cst_23 : f32 to vector<1x256xf32>
      %35 = arith.addf %34, %31 : vector<1x256xf32>
      %36 = vector.broadcast %35 : vector<1x256xf32> to vector<16x256xf32>
      %37 = arith.mulf %36, %29 : vector<16x256xf32>
      %38 = vector.broadcast %33 : vector<1x256xf32> to vector<16x256xf32>
      %39 = arith.addf %37, %38 : vector<16x256xf32>
      %c0_24 = arith.constant 0 : index
      %c0_25 = arith.constant 0 : index
      %40 = vector.load %arg9[%c0_24, %c0_25] : memref<16x256xf32, #tpu.memory_space<vmem>>, vector<16x256xf32>
      tpu.vector_store %arg9[%c0_24, %c0_25], %39 {strides = array<i32>} : memref<16x256xf32, #tpu.memory_space<vmem>>, vector<16x256xf32>,
    } else {
    }
    %c0 = arith.constant 0 : index
    %c0_1 = arith.constant 0 : index
    %3 = vector.load %arg9[%c0, %c0_1] : memref<16x256xf32, #tpu.memory_space<vmem>>, vector<16x256xf32>
    %c0_2 = arith.constant 0 : index
    %c0_3 = arith.constant 0 : index
    %4 = vector.load %arg6[%c0_2, %c0_3] : memref<256x384xf32, #tpu.memory_space<vmem>>, vector<256x384xf32>
    %cst = arith.constant dense<0.000000e+00> : vector<16x384xf32>
    %5 = tpu.matmul %3, %4, %cst {dimension_numbers = #tpu.dot_dimension_numbers<[1], [0], [0], [1], [0, 0, 1, 1], [], []>} : vector<16x256xf32>, vector<256x384xf32>, vector<16x384xf32> -> vector<16x384xf32>
    %c0_4 = arith.constant 0 : index
    %c0_5 = arith.constant 0 : index
    %6 = vector.load %arg7[%c0_4, %c0_5] : memref<1x384xf32, #tpu.memory_space<vmem>>, vector<1x384xf32>
    %7 = vector.broadcast %6 : vector<1x384xf32> to vector<16x384xf32>
    %8 = arith.addf %5, %7 : vector<16x384xf32>
    %c0_6 = arith.constant 0 : index
    %c0_7 = arith.constant 0 : index
    %c0_8 = arith.constant 0 : index
    %9 = vector.load %arg8[%c0_6, %c0_7, %c0_8] : memref<1x16x384xf32, #tpu.memory_space<vmem>>, vector<1x16x384xf32>
    %10 = vector.shape_cast %9 : vector<1x16x384xf32> to vector<16x384xf32>
    %11 = vector.shape_cast %8 : vector<16x384xf32> to vector<1x16x384xf32>
    tpu.vector_store %arg8[%c0_6, %c0_7, %c0_8], %11 {strides = array<i32>} : memref<1x16x384xf32, #tpu.memory_space<vmem>>, vector<1x16x384xf32>,
    return
  }
  func.func @transform_0(%arg0: i32, %arg1: i32, %arg2: i32) -> (i32, i32, i32) {
    %c0_i32 = arith.constant 0 : i32
    %c0_i32_0 = arith.constant 0 : i32
    return %arg0, %arg1, %c0_i32 : i32, i32, i32
  }
  func.func @transform_1(%arg0: i32, %arg1: i32, %arg2: i32) -> (i32, i32, i32) {
    %c0_i32 = arith.constant 0 : i32
    %c0_i32_0 = arith.constant 0 : i32
    %c0_i32_1 = arith.constant 0 : i32
    return %arg0, %c0_i32, %c0_i32_0 : i32, i32, i32
  }
  func.func @transform_2(%arg0: i32, %arg1: i32, %arg2: i32) -> (i32, i32, i32) {
    %c0_i32 = arith.constant 0 : i32
    %c0_i32_0 = arith.constant 0 : i32
    %c0_i32_1 = arith.constant 0 : i32
    return %arg0, %c0_i32, %c0_i32_0 : i32, i32, i32
  }
  func.func @transform_3(%arg0: i32, %arg1: i32, %arg2: i32) -> (i32, i32) {
    %c0_i32 = arith.constant 0 : i32
    %c0_i32_0 = arith.constant 0 : i32
    return %c0_i32, %arg2 : i32, i32
  }
  func.func @transform_4(%arg0: i32, %arg1: i32, %arg2: i32) -> (i32, i32) {
    %c0_i32 = arith.constant 0 : i32
    %c0_i32_0 = arith.constant 0 : i32
    return %c0_i32, %arg2 : i32, i32
  }
  func.func @transform_5(%arg0: i32, %arg1: i32, %arg2: i32) -> (i32, i32, i32) {
    %c0_i32 = arith.constant 0 : i32
    return %arg0, %arg1, %arg2 : i32, i32, i32
  }
}

module attributes {stable_mosaic.version = 11 : i64} {
  func.func @_attention_kernel(%arg0: i32, %arg1: i32, %arg2: i32, %arg3: memref<1x16x128xf32, #tpu.memory_space<vmem>>, %arg4: memref<1x16x128xf32, #tpu.memory_space<vmem>>, %arg5: memref<1x16x128xf32, #tpu.memory_space<vmem>>, %arg6: memref<1x128xf32, #tpu.memory_space<vmem>>, %arg7: memref<1x128xf32, #tpu.memory_space<vmem>>, %arg8: memref<16x128xf32, #tpu.memory_space<vmem>>, %arg9: memref<16x128xf32, #tpu.memory_space<vmem>>, %arg10: memref<128x128xf32, #tpu.memory_space<vmem>>, %arg11: memref<1x16x128xf32, #tpu.memory_space<vmem>>, %arg12: memref<16x128xf32, #tpu.memory_space<vmem>>, %arg13: memref<16x1xf32, #tpu.memory_space<vmem>>, %arg14: memref<16x1xf32, #tpu.memory_space<vmem>>, %arg15: memref<16x128xf32, #tpu.memory_space<vmem>>) attributes {dimension_semantics = [#tpu.dimension_semantics<parallel>, #tpu.dimension_semantics<parallel>, #tpu.dimension_semantics<arbitrary>], iteration_bounds = array<i64: 2, 2, 1>, scalar_prefetch = 0 : i64, scratch_operands = 4 : i64, tpu.core_type = #tpu.core_type<tc>, window_params = [{transform_indices = @transform_0, window_bounds = array<i64: 1, 16, 128>}, {transform_indices = @transform_1, window_bounds = array<i64: 1, 16, 128>}, {transform_indices = @transform_2, window_bounds = array<i64: 1, 16, 128>}, {pipeline_mode = #tpu.pipeline_mode<synchronous>, transform_indices = @transform_3, window_bounds = array<i64: 1, 128>}, {pipeline_mode = #tpu.pipeline_mode<synchronous>, transform_indices = @transform_4, window_bounds = array<i64: 1, 128>}, {pipeline_mode = #tpu.pipeline_mode<synchronous>, transform_indices = @transform_5, window_bounds = array<i64: 16, 128>}, {pipeline_mode = #tpu.pipeline_mode<synchronous>, transform_indices = @transform_6, window_bounds = array<i64: 16, 128>}, {pipeline_mode = #tpu.pipeline_mode<synchronous>, transform_indices = @transform_7, window_bounds = array<i64: 128, 128>}, {transform_indices = @transform_8, window_bounds = array<i64: 1, 16, 128>}]} {
    %c0_i32 = arith.constant 0 : i32
    %0 = arith.cmpi eq, %arg2, %c0_i32 : i32
    %1 = arith.extui %0 : i1 to i32
    %c0_i32_0 = arith.constant 0 : i32
    %2 = arith.cmpi ne, %1, %c0_i32_0 : i32
    scf.if %2 {
      %c0_35 = arith.constant 0 : index
      %c0_36 = arith.constant 0 : index
      %c0_37 = arith.constant 0 : index
      %59 = vector.load %arg3[%c0_35, %c0_36, %c0_37] : memref<1x16x128xf32, #tpu.memory_space<vmem>>, vector<1x16x128xf32>
      %60 = vector.shape_cast %59 : vector<1x16x128xf32> to vector<16x128xf32>
      %c0_38 = arith.constant 0 : index
      %c0_39 = arith.constant 0 : index
      %61 = vector.load %arg6[%c0_38, %c0_39] : memref<1x128xf32, #tpu.memory_space<vmem>>, vector<1x128xf32>
      %c0_40 = arith.constant 0 : index
      %c0_41 = arith.constant 0 : index
      %62 = vector.load %arg8[%c0_40, %c0_41] : memref<16x128xf32, #tpu.memory_space<vmem>>, vector<16x128xf32>
      %c0_42 = arith.constant 0 : index
      %c0_43 = arith.constant 0 : index
      %63 = vector.load %arg9[%c0_42, %c0_43] : memref<16x128xf32, #tpu.memory_space<vmem>>, vector<16x128xf32>
      %64 = arith.mulf %60, %60 : vector<16x128xf32>
      %cst_44 = arith.constant dense<0.000000e+00> : vector<16xf32>
      %65 = vector.multi_reduction <add>, %64, %cst_44 [1] : vector<16x128xf32> to vector<16xf32>
      %66 = vector.shape_cast %65 : vector<16xf32> to vector<16x1xf32>
      %cst_45 = arith.constant 1.280000e+02 : f32
      %67 = vector.broadcast %cst_45 : f32 to vector<16x1xf32>
      %68 = arith.divf %66, %67 : vector<16x1xf32>
      %cst_46 = arith.constant 9.99999997E-7 : f32
      %69 = vector.broadcast %cst_46 : f32 to vector<16x1xf32>
      %70 = arith.addf %68, %69 : vector<16x1xf32>
      %71 = math.rsqrt %70 : vector<16x1xf32>
      %72 = vector.broadcast %71 : vector<16x1xf32> to vector<16x128xf32>
      %73 = arith.mulf %60, %72 : vector<16x128xf32>
      %74 = vector.broadcast %61 : vector<1x128xf32> to vector<16x128xf32>
      %75 = arith.mulf %73, %74 : vector<16x128xf32>
      %c0_47 = arith.constant 0 : index
      %c0_48 = arith.constant 0 : index
      %76 = vector.load %arg10[%c0_47, %c0_48] : memref<128x128xf32, #tpu.memory_space<vmem>>, vector<128x128xf32>
      %cst_49 = arith.constant dense<0.000000e+00> : vector<16x128xf32>
      %77 = tpu.matmul %75, %76, %cst_49 {dimension_numbers = #tpu.dot_dimension_numbers<[1], [0], [0], [1], [0, 0, 1, 1], [], []>} : vector<16x128xf32>, vector<128x128xf32>, vector<16x128xf32> -> vector<16x128xf32>
      %78 = arith.mulf %62, %75 : vector<16x128xf32>
      %79 = arith.mulf %63, %77 : vector<16x128xf32>
      %80 = arith.addf %78, %79 : vector<16x128xf32>
      %cst_50 = arith.constant 0.0883883461 : f32
      %81 = vector.broadcast %cst_50 : f32 to vector<16x128xf32>
      %82 = arith.mulf %80, %81 : vector<16x128xf32>
      %c0_51 = arith.constant 0 : index
      %c0_52 = arith.constant 0 : index
      %83 = vector.load %arg12[%c0_51, %c0_52] : memref<16x128xf32, #tpu.memory_space<vmem>>, vector<16x128xf32>
      tpu.vector_store %arg12[%c0_51, %c0_52], %82 {strides = array<i32>} : memref<16x128xf32, #tpu.memory_space<vmem>>, vector<16x128xf32>,
      %cst_53 = arith.constant 0xFF800000 : f32
      %84 = vector.broadcast %cst_53 : f32 to vector<16x1xf32>
      %c0_54 = arith.constant 0 : index
      %c0_55 = arith.constant 0 : index
      %85 = vector.load %arg13[%c0_54, %c0_55] : memref<16x1xf32, #tpu.memory_space<vmem>>, vector<16x1xf32>
      tpu.vector_store %arg13[%c0_54, %c0_55], %84 {strides = array<i32>} : memref<16x1xf32, #tpu.memory_space<vmem>>, vector<16x1xf32>,
      %cst_56 = arith.constant 0.000000e+00 : f32
      %86 = vector.broadcast %cst_56 : f32 to vector<16x1xf32>
      %c0_57 = arith.constant 0 : index
      %c0_58 = arith.constant 0 : index
      %87 = vector.load %arg14[%c0_57, %c0_58] : memref<16x1xf32, #tpu.memory_space<vmem>>, vector<16x1xf32>
      tpu.vector_store %arg14[%c0_57, %c0_58], %86 {strides = array<i32>} : memref<16x1xf32, #tpu.memory_space<vmem>>, vector<16x1xf32>,
      %cst_59 = arith.constant 0.000000e+00 : f32
      %88 = vector.broadcast %cst_59 : f32 to vector<16x128xf32>
      %c0_60 = arith.constant 0 : index
      %c0_61 = arith.constant 0 : index
      %89 = vector.load %arg15[%c0_60, %c0_61] : memref<16x128xf32, #tpu.memory_space<vmem>>, vector<16x128xf32>
      tpu.vector_store %arg15[%c0_60, %c0_61], %88 {strides = array<i32>} : memref<16x128xf32, #tpu.memory_space<vmem>>, vector<16x128xf32>,
    } else {
    }
    %c16_i32 = arith.constant 16 : i32
    %3 = arith.muli %arg2, %c16_i32 : i32
    %4 = tpu.assume_multiple %3, 16 : i32
    %5 = arith.index_cast %4 : i32 to index
    %c0 = arith.constant 0 : index
    %6 = vector.load %arg8[%5, %c0] : memref<16x128xf32, #tpu.memory_space<vmem>>, vector<16x128xf32>
    %7 = arith.index_cast %4 : i32 to index
    %c0_1 = arith.constant 0 : index
    %8 = vector.load %arg9[%7, %c0_1] : memref<16x128xf32, #tpu.memory_space<vmem>>, vector<16x128xf32>
    %c0_2 = arith.constant 0 : index
    %c0_3 = arith.constant 0 : index
    %c0_4 = arith.constant 0 : index
    %9 = vector.load %arg4[%c0_2, %c0_3, %c0_4] : memref<1x16x128xf32, #tpu.memory_space<vmem>>, vector<1x16x128xf32>
    %10 = vector.shape_cast %9 : vector<1x16x128xf32> to vector<16x128xf32>
    %c0_5 = arith.constant 0 : index
    %c0_6 = arith.constant 0 : index
    %11 = vector.load %arg7[%c0_5, %c0_6] : memref<1x128xf32, #tpu.memory_space<vmem>>, vector<1x128xf32>
    %12 = arith.mulf %10, %10 : vector<16x128xf32>
    %cst = arith.constant dense<0.000000e+00> : vector<16xf32>
    %13 = vector.multi_reduction <add>, %12, %cst [1] : vector<16x128xf32> to vector<16xf32>
    %14 = vector.shape_cast %13 : vector<16xf32> to vector<16x1xf32>
    %cst_7 = arith.constant 1.280000e+02 : f32
    %15 = vector.broadcast %cst_7 : f32 to vector<16x1xf32>
    %16 = arith.divf %14, %15 : vector<16x1xf32>
    %cst_8 = arith.constant 9.99999997E-7 : f32
    %17 = vector.broadcast %cst_8 : f32 to vector<16x1xf32>
    %18 = arith.addf %16, %17 : vector<16x1xf32>
    %19 = math.rsqrt %18 : vector<16x1xf32>
    %20 = vector.broadcast %19 : vector<16x1xf32> to vector<16x128xf32>
    %21 = arith.mulf %10, %20 : vector<16x128xf32>
    %22 = vector.broadcast %11 : vector<1x128xf32> to vector<16x128xf32>
    %23 = arith.mulf %21, %22 : vector<16x128xf32>
    %c0_9 = arith.constant 0 : index
    %c0_10 = arith.constant 0 : index
    %24 = vector.load %arg10[%c0_9, %c0_10] : memref<128x128xf32, #tpu.memory_space<vmem>>, vector<128x128xf32>
    %cst_11 = arith.constant dense<0.000000e+00> : vector<16x128xf32>
    %25 = tpu.matmul %23, %24, %cst_11 {dimension_numbers = #tpu.dot_dimension_numbers<[1], [0], [0], [1], [0, 0, 1, 1], [], []>} : vector<16x128xf32>, vector<128x128xf32>, vector<16x128xf32> -> vector<16x128xf32>
    %26 = arith.mulf %6, %23 : vector<16x128xf32>
    %27 = arith.mulf %8, %25 : vector<16x128xf32>
    %28 = arith.addf %26, %27 : vector<16x128xf32>
    %c0_12 = arith.constant 0 : index
    %c0_13 = arith.constant 0 : index
    %29 = vector.load %arg12[%c0_12, %c0_13] : memref<16x128xf32, #tpu.memory_space<vmem>>, vector<16x128xf32>
    %30 = tpu.transpose %28, [1, 0] : vector<16x128xf32> -> vector<128x16xf32>
    %cst_14 = arith.constant dense<0.000000e+00> : vector<16x16xf32>
    %31 = tpu.matmul %29, %30, %cst_14 {dimension_numbers = #tpu.dot_dimension_numbers<[1], [0], [0], [1], [0, 0, 1, 1], [], []>} : vector<16x128xf32>, vector<128x16xf32>, vector<16x16xf32> -> vector<16x16xf32>
    %c0_15 = arith.constant 0 : index
    %c0_16 = arith.constant 0 : index
    %32 = vector.load %arg13[%c0_15, %c0_16] : memref<16x1xf32, #tpu.memory_space<vmem>>, vector<16x1xf32>
    %cst_17 = arith.constant dense<0xFF800000> : vector<16xf32>
    %33 = vector.multi_reduction <maximumf>, %31, %cst_17 [1] : vector<16x16xf32> to vector<16xf32>
    %34 = vector.shape_cast %33 : vector<16xf32> to vector<16x1xf32>
    %35 = arith.maximumf %32, %34 : vector<16x1xf32>
    %36 = arith.subf %32, %35 : vector<16x1xf32>
    %37 = math.exp %36 : vector<16x1xf32>
    %38 = vector.broadcast %35 : vector<16x1xf32> to vector<16x16xf32>
    %39 = arith.subf %31, %38 : vector<16x16xf32>
    %40 = math.exp %39 : vector<16x16xf32>
    %c0_18 = arith.constant 0 : index
    %c0_19 = arith.constant 0 : index
    %41 = vector.load %arg14[%c0_18, %c0_19] : memref<16x1xf32, #tpu.memory_space<vmem>>, vector<16x1xf32>
    %42 = arith.mulf %37, %41 : vector<16x1xf32>
    %cst_20 = arith.constant dense<0.000000e+00> : vector<16xf32>
    %43 = vector.multi_reduction <add>, %40, %cst_20 [1] : vector<16x16xf32> to vector<16xf32>
    %44 = vector.shape_cast %43 : vector<16xf32> to vector<16x1xf32>
    %45 = arith.addf %42, %44 : vector<16x1xf32>
    %c0_21 = arith.constant 0 : index
    %c0_22 = arith.constant 0 : index
    %46 = vector.load %arg14[%c0_21, %c0_22] : memref<16x1xf32, #tpu.memory_space<vmem>>, vector<16x1xf32>
    tpu.vector_store %arg14[%c0_21, %c0_22], %45 {strides = array<i32>} : memref<16x1xf32, #tpu.memory_space<vmem>>, vector<16x1xf32>,
    %c0_23 = arith.constant 0 : index
    %c0_24 = arith.constant 0 : index
    %47 = vector.load %arg15[%c0_23, %c0_24] : memref<16x128xf32, #tpu.memory_space<vmem>>, vector<16x128xf32>
    %48 = vector.broadcast %37 : vector<16x1xf32> to vector<16x128xf32>
    %49 = arith.mulf %48, %47 : vector<16x128xf32>
    %c0_25 = arith.constant 0 : index
    %c0_26 = arith.constant 0 : index
    %c0_27 = arith.constant 0 : index
    %50 = vector.load %arg5[%c0_25, %c0_26, %c0_27] : memref<1x16x128xf32, #tpu.memory_space<vmem>>, vector<1x16x128xf32>
    %51 = vector.shape_cast %50 : vector<1x16x128xf32> to vector<16x128xf32>
    %cst_28 = arith.constant dense<0.000000e+00> : vector<16x128xf32>
    %52 = tpu.matmul %40, %51, %cst_28 {dimension_numbers = #tpu.dot_dimension_numbers<[1], [0], [0], [1], [0, 0, 1, 1], [], []>} : vector<16x16xf32>, vector<16x128xf32>, vector<16x128xf32> -> vector<16x128xf32>
    %53 = arith.addf %49, %52 : vector<16x128xf32>
    %c0_29 = arith.constant 0 : index
    %c0_30 = arith.constant 0 : index
    %54 = vector.load %arg15[%c0_29, %c0_30] : memref<16x128xf32, #tpu.memory_space<vmem>>, vector<16x128xf32>
    tpu.vector_store %arg15[%c0_29, %c0_30], %53 {strides = array<i32>} : memref<16x128xf32, #tpu.memory_space<vmem>>, vector<16x128xf32>,
    %c0_31 = arith.constant 0 : index
    %c0_32 = arith.constant 0 : index
    %55 = vector.load %arg13[%c0_31, %c0_32] : memref<16x1xf32, #tpu.memory_space<vmem>>, vector<16x1xf32>
    tpu.vector_store %arg13[%c0_31, %c0_32], %35 {strides = array<i32>} : memref<16x1xf32, #tpu.memory_space<vmem>>, vector<16x1xf32>,
    %c0_i32_33 = arith.constant 0 : i32
    %56 = arith.cmpi eq, %arg2, %c0_i32_33 : i32
    %57 = arith.extui %56 : i1 to i32
    %c0_i32_34 = arith.constant 0 : i32
    %58 = arith.cmpi ne, %57, %c0_i32_34 : i32
    scf.if %58 {
      %c0_35 = arith.constant 0 : index
      %c0_36 = arith.constant 0 : index
      %59 = vector.load %arg14[%c0_35, %c0_36] : memref<16x1xf32, #tpu.memory_space<vmem>>, vector<16x1xf32>
      %60 = tpu.reciprocal %59 {approx = true} : vector<16x1xf32> -> vector<16x1xf32>
      %c0_37 = arith.constant 0 : index
      %c0_38 = arith.constant 0 : index
      %61 = vector.load %arg15[%c0_37, %c0_38] : memref<16x128xf32, #tpu.memory_space<vmem>>, vector<16x128xf32>
      %62 = vector.broadcast %60 : vector<16x1xf32> to vector<16x128xf32>
      %63 = arith.mulf %61, %62 : vector<16x128xf32>
      %c0_39 = arith.constant 0 : index
      %c0_40 = arith.constant 0 : index
      %c0_41 = arith.constant 0 : index
      %64 = vector.load %arg11[%c0_39, %c0_40, %c0_41] : memref<1x16x128xf32, #tpu.memory_space<vmem>>, vector<1x16x128xf32>
      %65 = vector.shape_cast %64 : vector<1x16x128xf32> to vector<16x128xf32>
      %66 = vector.shape_cast %63 : vector<16x128xf32> to vector<1x16x128xf32>
      tpu.vector_store %arg11[%c0_39, %c0_40, %c0_41], %66 {strides = array<i32>} : memref<1x16x128xf32, #tpu.memory_space<vmem>>, vector<1x16x128xf32>,
    } else {
    }
    return
  }
  func.func @transform_0(%arg0: i32, %arg1: i32, %arg2: i32) -> (i32, i32, i32) {
    %c0_i32 = arith.constant 0 : i32
    %c0_i32_0 = arith.constant 0 : i32
    return %arg0, %c0_i32, %arg1 : i32, i32, i32
  }
  func.func @transform_1(%arg0: i32, %arg1: i32, %arg2: i32) -> (i32, i32, i32) {
    %c2_i32 = arith.constant 2 : i32
    %0 = arith.addi %c2_i32, %arg1 : i32
    %c0_i32 = arith.constant 0 : i32
    return %arg0, %arg2, %0 : i32, i32, i32
  }
  func.func @transform_2(%arg0: i32, %arg1: i32, %arg2: i32) -> (i32, i32, i32) {
    %c4_i32 = arith.constant 4 : i32
    %0 = arith.addi %c4_i32, %arg1 : i32
    %c0_i32 = arith.constant 0 : i32
    return %arg0, %arg2, %0 : i32, i32, i32
  }
  func.func @transform_3(%arg0: i32, %arg1: i32, %arg2: i32) -> (i32, i32) {
    %c0_i32 = arith.constant 0 : i32
    %c0_i32_0 = arith.constant 0 : i32
    %c0_i32_1 = arith.constant 0 : i32
    return %c0_i32, %c0_i32_0 : i32, i32
  }
  func.func @transform_4(%arg0: i32, %arg1: i32, %arg2: i32) -> (i32, i32) {
    %c0_i32 = arith.constant 0 : i32
    %c0_i32_0 = arith.constant 0 : i32
    %c0_i32_1 = arith.constant 0 : i32
    return %c0_i32, %c0_i32_0 : i32, i32
  }
  func.func @transform_5(%arg0: i32, %arg1: i32, %arg2: i32) -> (i32, i32) {
    %c0_i32 = arith.constant 0 : i32
    %c0_i32_0 = arith.constant 0 : i32
    %c0_i32_1 = arith.constant 0 : i32
    return %c0_i32, %c0_i32_0 : i32, i32
  }
  func.func @transform_6(%arg0: i32, %arg1: i32, %arg2: i32) -> (i32, i32) {
    %c0_i32 = arith.constant 0 : i32
    %c0_i32_0 = arith.constant 0 : i32
    %c0_i32_1 = arith.constant 0 : i32
    return %c0_i32, %c0_i32_0 : i32, i32
  }
  func.func @transform_7(%arg0: i32, %arg1: i32, %arg2: i32) -> (i32, i32) {
    %c0_i32 = arith.constant 0 : i32
    %c0_i32_0 = arith.constant 0 : i32
    %c0_i32_1 = arith.constant 0 : i32
    return %c0_i32, %c0_i32_0 : i32, i32
  }
  func.func @transform_8(%arg0: i32, %arg1: i32, %arg2: i32) -> (i32, i32, i32) {
    %c0_i32 = arith.constant 0 : i32
    %c0_i32_0 = arith.constant 0 : i32
    return %arg0, %c0_i32, %arg1 : i32, i32, i32
  }
}

module attributes {stable_mosaic.version = 11 : i64} {
  func.func @_prenorm_linear_kernel(%arg0: i32, %arg1: i32, %arg2: i32, %arg3: memref<1x16x256xf32, #tpu.memory_space<vmem>>, %arg4: memref<1x1x256xf32, #tpu.memory_space<vmem>>, %arg5: memref<1x1x256xf32, #tpu.memory_space<vmem>>, %arg6: memref<256x512xf32, #tpu.memory_space<vmem>>, %arg7: memref<1x512xf32, #tpu.memory_space<vmem>>, %arg8: memref<1x16x512xf32, #tpu.memory_space<vmem>>, %arg9: memref<16x256xf32, #tpu.memory_space<vmem>>) attributes {dimension_semantics = [#tpu.dimension_semantics<parallel>, #tpu.dimension_semantics<parallel>, #tpu.dimension_semantics<arbitrary>], iteration_bounds = array<i64: 2, 1, 2>, scalar_prefetch = 0 : i64, scratch_operands = 1 : i64, tpu.core_type = #tpu.core_type<tc>, window_params = [{transform_indices = @transform_0, window_bounds = array<i64: 1, 16, 256>}, {transform_indices = @transform_1, window_bounds = array<i64: 1, 1, 256>}, {transform_indices = @transform_2, window_bounds = array<i64: 1, 1, 256>}, {transform_indices = @transform_3, window_bounds = array<i64: 256, 512>}, {transform_indices = @transform_4, window_bounds = array<i64: 1, 512>}, {transform_indices = @transform_5, window_bounds = array<i64: 1, 16, 512>}]} {
    %c0_i32 = arith.constant 0 : i32
    %0 = arith.cmpi eq, %arg2, %c0_i32 : i32
    %1 = arith.extui %0 : i1 to i32
    %c0_i32_0 = arith.constant 0 : i32
    %2 = arith.cmpi ne, %1, %c0_i32_0 : i32
    scf.if %2 {
      %c0_9 = arith.constant 0 : index
      %c0_10 = arith.constant 0 : index
      %c0_11 = arith.constant 0 : index
      %12 = vector.load %arg3[%c0_9, %c0_10, %c0_11] : memref<1x16x256xf32, #tpu.memory_space<vmem>>, vector<1x16x256xf32>
      %13 = vector.shape_cast %12 : vector<1x16x256xf32> to vector<16x256xf32>
      %cst_12 = arith.constant dense<0.000000e+00> : vector<16xf32>
      %14 = vector.multi_reduction <add>, %13, %cst_12 [1] : vector<16x256xf32> to vector<16xf32>
      %15 = vector.shape_cast %14 : vector<16xf32> to vector<16x1xf32>
      %cst_13 = arith.constant 2.560000e+02 : f32
      %16 = vector.broadcast %cst_13 : f32 to vector<16x1xf32>
      %17 = arith.divf %15, %16 : vector<16x1xf32>
      %18 = vector.broadcast %17 : vector<16x1xf32> to vector<16x256xf32>
      %19 = arith.subf %13, %18 : vector<16x256xf32>
      %20 = arith.mulf %19, %19 : vector<16x256xf32>
      %cst_14 = arith.constant dense<0.000000e+00> : vector<16xf32>
      %21 = vector.multi_reduction <add>, %20, %cst_14 [1] : vector<16x256xf32> to vector<16xf32>
      %22 = vector.shape_cast %21 : vector<16xf32> to vector<16x1xf32>
      %cst_15 = arith.constant 2.560000e+02 : f32
      %23 = vector.broadcast %cst_15 : f32 to vector<16x1xf32>
      %24 = arith.divf %22, %23 : vector<16x1xf32>
      %cst_16 = arith.constant 9.99999997E-7 : f32
      %25 = vector.broadcast %cst_16 : f32 to vector<16x1xf32>
      %26 = arith.addf %24, %25 : vector<16x1xf32>
      %27 = math.rsqrt %26 : vector<16x1xf32>
      %28 = vector.broadcast %27 : vector<16x1xf32> to vector<16x256xf32>
      %29 = arith.mulf %19, %28 : vector<16x256xf32>
      %c0_17 = arith.constant 0 : index
      %c0_18 = arith.constant 0 : index
      %c0_19 = arith.constant 0 : index
      %30 = vector.load %arg4[%c0_17, %c0_18, %c0_19] : memref<1x1x256xf32, #tpu.memory_space<vmem>>, vector<1x1x256xf32>
      %31 = vector.shape_cast %30 : vector<1x1x256xf32> to vector<1x256xf32>
      %c0_20 = arith.constant 0 : index
      %c0_21 = arith.constant 0 : index
      %c0_22 = arith.constant 0 : index
      %32 = vector.load %arg5[%c0_20, %c0_21, %c0_22] : memref<1x1x256xf32, #tpu.memory_space<vmem>>, vector<1x1x256xf32>
      %33 = vector.shape_cast %32 : vector<1x1x256xf32> to vector<1x256xf32>
      %cst_23 = arith.constant 1.000000e+00 : f32
      %34 = vector.broadcast %cst_23 : f32 to vector<1x256xf32>
      %35 = arith.addf %34, %31 : vector<1x256xf32>
      %36 = vector.broadcast %35 : vector<1x256xf32> to vector<16x256xf32>
      %37 = arith.mulf %36, %29 : vector<16x256xf32>
      %38 = vector.broadcast %33 : vector<1x256xf32> to vector<16x256xf32>
      %39 = arith.addf %37, %38 : vector<16x256xf32>
      %c0_24 = arith.constant 0 : index
      %c0_25 = arith.constant 0 : index
      %40 = vector.load %arg9[%c0_24, %c0_25] : memref<16x256xf32, #tpu.memory_space<vmem>>, vector<16x256xf32>
      tpu.vector_store %arg9[%c0_24, %c0_25], %39 {strides = array<i32>} : memref<16x256xf32, #tpu.memory_space<vmem>>, vector<16x256xf32>,
    } else {
    }
    %c0 = arith.constant 0 : index
    %c0_1 = arith.constant 0 : index
    %3 = vector.load %arg9[%c0, %c0_1] : memref<16x256xf32, #tpu.memory_space<vmem>>, vector<16x256xf32>
    %c0_2 = arith.constant 0 : index
    %c0_3 = arith.constant 0 : index
    %4 = vector.load %arg6[%c0_2, %c0_3] : memref<256x512xf32, #tpu.memory_space<vmem>>, vector<256x512xf32>
    %cst = arith.constant dense<0.000000e+00> : vector<16x512xf32>
    %5 = tpu.matmul %3, %4, %cst {dimension_numbers = #tpu.dot_dimension_numbers<[1], [0], [0], [1], [0, 0, 1, 1], [], []>} : vector<16x256xf32>, vector<256x512xf32>, vector<16x512xf32> -> vector<16x512xf32>
    %c0_4 = arith.constant 0 : index
    %c0_5 = arith.constant 0 : index
    %6 = vector.load %arg7[%c0_4, %c0_5] : memref<1x512xf32, #tpu.memory_space<vmem>>, vector<1x512xf32>
    %7 = vector.broadcast %6 : vector<1x512xf32> to vector<16x512xf32>
    %8 = arith.addf %5, %7 : vector<16x512xf32>
    %c0_6 = arith.constant 0 : index
    %c0_7 = arith.constant 0 : index
    %c0_8 = arith.constant 0 : index
    %9 = vector.load %arg8[%c0_6, %c0_7, %c0_8] : memref<1x16x512xf32, #tpu.memory_space<vmem>>, vector<1x16x512xf32>
    %10 = vector.shape_cast %9 : vector<1x16x512xf32> to vector<16x512xf32>
    %11 = vector.shape_cast %8 : vector<16x512xf32> to vector<1x16x512xf32>
    tpu.vector_store %arg8[%c0_6, %c0_7, %c0_8], %11 {strides = array<i32>} : memref<1x16x512xf32, #tpu.memory_space<vmem>>, vector<1x16x512xf32>,
    return
  }
  func.func @transform_0(%arg0: i32, %arg1: i32, %arg2: i32) -> (i32, i32, i32) {
    %c0_i32 = arith.constant 0 : i32
    %c0_i32_0 = arith.constant 0 : i32
    return %arg0, %arg1, %c0_i32 : i32, i32, i32
  }
  func.func @transform_1(%arg0: i32, %arg1: i32, %arg2: i32) -> (i32, i32, i32) {
    %c0_i32 = arith.constant 0 : i32
    %c0_i32_0 = arith.constant 0 : i32
    %c0_i32_1 = arith.constant 0 : i32
    return %arg0, %c0_i32, %c0_i32_0 : i32, i32, i32
  }
  func.func @transform_2(%arg0: i32, %arg1: i32, %arg2: i32) -> (i32, i32, i32) {
    %c0_i32 = arith.constant 0 : i32
    %c0_i32_0 = arith.constant 0 : i32
    %c0_i32_1 = arith.constant 0 : i32
    return %arg0, %c0_i32, %c0_i32_0 : i32, i32, i32
  }
  func.func @transform_3(%arg0: i32, %arg1: i32, %arg2: i32) -> (i32, i32) {
    %c0_i32 = arith.constant 0 : i32
    %c0_i32_0 = arith.constant 0 : i32
    return %c0_i32, %arg2 : i32, i32
  }
  func.func @transform_4(%arg0: i32, %arg1: i32, %arg2: i32) -> (i32, i32) {
    %c0_i32 = arith.constant 0 : i32
    %c0_i32_0 = arith.constant 0 : i32
    return %c0_i32, %arg2 : i32, i32
  }
  func.func @transform_5(%arg0: i32, %arg1: i32, %arg2: i32) -> (i32, i32, i32) {
    %c0_i32 = arith.constant 0 : i32
    return %arg0, %arg1, %arg2 : i32, i32, i32
  }
}

module attributes {stable_mosaic.version = 11 : i64} {
  func.func @_gelu_linear2_kernel(%arg0: i32, %arg1: i32, %arg2: i32, %arg3: memref<1x16x256xf32, #tpu.memory_space<vmem>>, %arg4: memref<1x16x1024xf32, #tpu.memory_space<vmem>>, %arg5: memref<1x16x256xf32, #tpu.memory_space<vmem>>, %arg6: memref<1x1x256xf32, #tpu.memory_space<vmem>>, %arg7: memref<256x256xf32, #tpu.memory_space<vmem>>, %arg8: memref<1024x256xf32, #tpu.memory_space<vmem>>, %arg9: memref<1x256xf32, #tpu.memory_space<vmem>>, %arg10: memref<1x16x256xf32, #tpu.memory_space<vmem>>, %arg11: memref<16x1024xf32, #tpu.memory_space<vmem>>) attributes {dimension_semantics = [#tpu.dimension_semantics<parallel>, #tpu.dimension_semantics<parallel>, #tpu.dimension_semantics<arbitrary>], iteration_bounds = array<i64: 2, 1, 1>, scalar_prefetch = 0 : i64, scratch_operands = 1 : i64, tpu.core_type = #tpu.core_type<tc>, window_params = [{transform_indices = @transform_0, window_bounds = array<i64: 1, 16, 256>}, {transform_indices = @transform_1, window_bounds = array<i64: 1, 16, 1024>}, {transform_indices = @transform_2, window_bounds = array<i64: 1, 16, 256>}, {transform_indices = @transform_3, window_bounds = array<i64: 1, 1, 256>}, {transform_indices = @transform_4, window_bounds = array<i64: 256, 256>}, {transform_indices = @transform_5, window_bounds = array<i64: 1024, 256>}, {transform_indices = @transform_6, window_bounds = array<i64: 1, 256>}, {transform_indices = @transform_7, window_bounds = array<i64: 1, 16, 256>}]} {
    %c0_i32 = arith.constant 0 : i32
    %0 = arith.cmpi eq, %arg2, %c0_i32 : i32
    %1 = arith.extui %0 : i1 to i32
    %c0_i32_0 = arith.constant 0 : i32
    %2 = arith.cmpi ne, %1, %c0_i32_0 : i32
    scf.if %2 {
      %c0_21 = arith.constant 0 : index
      %c0_22 = arith.constant 0 : index
      %c0_23 = arith.constant 0 : index
      %24 = vector.load %arg4[%c0_21, %c0_22, %c0_23] : memref<1x16x1024xf32, #tpu.memory_space<vmem>>, vector<1x16x1024xf32>
      %25 = vector.shape_cast %24 : vector<1x16x1024xf32> to vector<16x1024xf32>
      %cst_24 = arith.constant 5.000000e-01 : f32
      %26 = vector.broadcast %cst_24 : f32 to vector<16x1024xf32>
      %27 = arith.mulf %26, %25 : vector<16x1024xf32>
      %cst_25 = arith.constant 4.471500e-02 : f32
      %28 = vector.broadcast %cst_25 : f32 to vector<16x1024xf32>
      %29 = arith.mulf %28, %25 : vector<16x1024xf32>
      %30 = arith.mulf %29, %25 : vector<16x1024xf32>
      %31 = arith.mulf %30, %25 : vector<16x1024xf32>
      %32 = arith.addf %25, %31 : vector<16x1024xf32>
      %cst_26 = arith.constant 0.797884583 : f32
      %33 = vector.broadcast %cst_26 : f32 to vector<16x1024xf32>
      %34 = arith.mulf %33, %32 : vector<16x1024xf32>
      %35 = math.tanh %34 : vector<16x1024xf32>
      %cst_27 = arith.constant 1.000000e+00 : f32
      %36 = vector.broadcast %cst_27 : f32 to vector<16x1024xf32>
      %37 = arith.addf %36, %35 : vector<16x1024xf32>
      %38 = arith.mulf %27, %37 : vector<16x1024xf32>
      %c0_28 = arith.constant 0 : index
      %c0_29 = arith.constant 0 : index
      %39 = vector.load %arg11[%c0_28, %c0_29] : memref<16x1024xf32, #tpu.memory_space<vmem>>, vector<16x1024xf32>
      tpu.vector_store %arg11[%c0_28, %c0_29], %38 {strides = array<i32>} : memref<16x1024xf32, #tpu.memory_space<vmem>>, vector<16x1024xf32>,
    } else {
    }
    %c0 = arith.constant 0 : index
    %c0_1 = arith.constant 0 : index
    %c0_2 = arith.constant 0 : index
    %3 = vector.load %arg3[%c0, %c0_1, %c0_2] : memref<1x16x256xf32, #tpu.memory_space<vmem>>, vector<1x16x256xf32>
    %4 = vector.shape_cast %3 : vector<1x16x256xf32> to vector<16x256xf32>
    %c0_3 = arith.constant 0 : index
    %c0_4 = arith.constant 0 : index
    %5 = vector.load %arg7[%c0_3, %c0_4] : memref<256x256xf32, #tpu.memory_space<vmem>>, vector<256x256xf32>
    %cst = arith.constant dense<0.000000e+00> : vector<16x256xf32>
    %6 = tpu.matmul %4, %5, %cst {dimension_numbers = #tpu.dot_dimension_numbers<[1], [0], [0], [1], [0, 0, 1, 1], [], []>} : vector<16x256xf32>, vector<256x256xf32>, vector<16x256xf32> -> vector<16x256xf32>
    %c0_5 = arith.constant 0 : index
    %c0_6 = arith.constant 0 : index
    %7 = vector.load %arg11[%c0_5, %c0_6] : memref<16x1024xf32, #tpu.memory_space<vmem>>, vector<16x1024xf32>
    %c0_7 = arith.constant 0 : index
    %c0_8 = arith.constant 0 : index
    %8 = vector.load %arg8[%c0_7, %c0_8] : memref<1024x256xf32, #tpu.memory_space<vmem>>, vector<1024x256xf32>
    %cst_9 = arith.constant dense<0.000000e+00> : vector<16x256xf32>
    %9 = tpu.matmul %7, %8, %cst_9 {dimension_numbers = #tpu.dot_dimension_numbers<[1], [0], [0], [1], [0, 0, 1, 1], [], []>} : vector<16x1024xf32>, vector<1024x256xf32>, vector<16x256xf32> -> vector<16x256xf32>
    %10 = arith.addf %6, %9 : vector<16x256xf32>
    %c0_10 = arith.constant 0 : index
    %c0_11 = arith.constant 0 : index
    %11 = vector.load %arg9[%c0_10, %c0_11] : memref<1x256xf32, #tpu.memory_space<vmem>>, vector<1x256xf32>
    %12 = vector.broadcast %11 : vector<1x256xf32> to vector<16x256xf32>
    %13 = arith.addf %10, %12 : vector<16x256xf32>
    %c0_12 = arith.constant 0 : index
    %c0_13 = arith.constant 0 : index
    %c0_14 = arith.constant 0 : index
    %14 = vector.load %arg6[%c0_12, %c0_13, %c0_14] : memref<1x1x256xf32, #tpu.memory_space<vmem>>, vector<1x1x256xf32>
    %15 = vector.shape_cast %14 : vector<1x1x256xf32> to vector<1x256xf32>
    %c0_15 = arith.constant 0 : index
    %c0_16 = arith.constant 0 : index
    %c0_17 = arith.constant 0 : index
    %16 = vector.load %arg5[%c0_15, %c0_16, %c0_17] : memref<1x16x256xf32, #tpu.memory_space<vmem>>, vector<1x16x256xf32>
    %17 = vector.shape_cast %16 : vector<1x16x256xf32> to vector<16x256xf32>
    %18 = vector.broadcast %15 : vector<1x256xf32> to vector<16x256xf32>
    %19 = arith.mulf %18, %13 : vector<16x256xf32>
    %20 = arith.addf %17, %19 : vector<16x256xf32>
    %c0_18 = arith.constant 0 : index
    %c0_19 = arith.constant 0 : index
    %c0_20 = arith.constant 0 : index
    %21 = vector.load %arg10[%c0_18, %c0_19, %c0_20] : memref<1x16x256xf32, #tpu.memory_space<vmem>>, vector<1x16x256xf32>
    %22 = vector.shape_cast %21 : vector<1x16x256xf32> to vector<16x256xf32>
    %23 = vector.shape_cast %20 : vector<16x256xf32> to vector<1x16x256xf32>
    tpu.vector_store %arg10[%c0_18, %c0_19, %c0_20], %23 {strides = array<i32>} : memref<1x16x256xf32, #tpu.memory_space<vmem>>, vector<1x16x256xf32>,
    return
  }
  func.func @transform_0(%arg0: i32, %arg1: i32, %arg2: i32) -> (i32, i32, i32) {
    %c0_i32 = arith.constant 0 : i32
    %c0_i32_0 = arith.constant 0 : i32
    return %arg0, %arg1, %c0_i32 : i32, i32, i32
  }
  func.func @transform_1(%arg0: i32, %arg1: i32, %arg2: i32) -> (i32, i32, i32) {
    %c0_i32 = arith.constant 0 : i32
    %c0_i32_0 = arith.constant 0 : i32
    return %arg0, %arg1, %c0_i32 : i32, i32, i32
  }
  func.func @transform_2(%arg0: i32, %arg1: i32, %arg2: i32) -> (i32, i32, i32) {
    %c0_i32 = arith.constant 0 : i32
    return %arg0, %arg1, %arg2 : i32, i32, i32
  }
  func.func @transform_3(%arg0: i32, %arg1: i32, %arg2: i32) -> (i32, i32, i32) {
    %c0_i32 = arith.constant 0 : i32
    %c0_i32_0 = arith.constant 0 : i32
    return %arg0, %c0_i32, %arg2 : i32, i32, i32
  }
  func.func @transform_4(%arg0: i32, %arg1: i32, %arg2: i32) -> (i32, i32) {
    %c0_i32 = arith.constant 0 : i32
    %c0_i32_0 = arith.constant 0 : i32
    return %c0_i32, %arg2 : i32, i32
  }
  func.func @transform_5(%arg0: i32, %arg1: i32, %arg2: i32) -> (i32, i32) {
    %c0_i32 = arith.constant 0 : i32
    %c0_i32_0 = arith.constant 0 : i32
    return %c0_i32, %arg2 : i32, i32
  }
  func.func @transform_6(%arg0: i32, %arg1: i32, %arg2: i32) -> (i32, i32) {
    %c0_i32 = arith.constant 0 : i32
    %c0_i32_0 = arith.constant 0 : i32
    return %c0_i32, %arg2 : i32, i32
  }
  func.func @transform_7(%arg0: i32, %arg1: i32, %arg2: i32) -> (i32, i32, i32) {
    %c0_i32 = arith.constant 0 : i32
    return %arg0, %arg1, %arg2 : i32, i32, i32
  }
}

</mosaic_0001>

<llo_original>
// kernel: single_stream_block_forward.5
$region0: #{single_stream_block_forward.5}
  #allocation0 [shape = 'u32[]', space=smem, size = 0x4, offset = 0x4, fixed_abs, tag = 'smem constant byte address 0x4 - core index']
  #allocation1 [shape = 'u32[144,128]{1,0:T(1,128)}', space=vmem, size = 0x12000, scoped, tag = 'internal scratch']
  %s0 = inlined_call_operand.hbm [shape: f32[2,256], index: 0, kind: input, shape index: {}]
  %s1 = inlined_call_operand.hbm [shape: f32[3,256,256], index: 1, kind: input, shape index: {}]
  %s2 = inlined_call_operand.hbm [shape: f32[3,1,256], index: 2, kind: input, shape index: {}]
  %s3 = inlined_call_operand.vmem [shape: f32[3,2,1,256], index: 3, kind: output, shape index: {}]
  %s4 = sld [smem:[#allocation0]]
  $region57: #{single_stream_block_forward.5} parent=0
    _
  %s6 = ssub.s32 1, %s4
  %s7 = scalar_select 0, %s6, %s4
  $region1: #{single_stream_block_forward.5} parent=0
    #allocation2 [shape = 'u8[2048]{0}', space=vmem, size = 0x800, scoped, tag = 'input window, operand 0, single buffered']
    #allocation3 [shape = 's32[2]{0}', space=sflag, size = 0x8, scoped, tag = 'scoped memory for single_stream_block_forward.5']
    #allocation4 [shape = 'u8[524288]{0}', space=vmem, size = 0x80000, scoped, tag = 'input window, operand 1']
    #allocation5 [shape = 's32[2]{0}', space=sflag, size = 0x8, scoped, tag = 'scoped memory for single_stream_block_forward.5']
    #allocation6 [shape = 'u8[2048]{0}', space=vmem, size = 0x800, scoped, tag = 'input window, operand 2']
    %8 = vsyncpa [#allocation3], 0
    %9 = vsyncpa [#allocation5], 0
    %s10 = scalar_lea.sflag [#allocation5], 1
    %11 = vsyncpa %s10, 0
    loop: start=0, step=1, limit=5
    $region2: #{single_stream_block_forward.5} parent=1 // loop_pre_header
      _
    $region3: #{single_stream_block_forward.5} parent=1 // loop_header
      %s13 = sphi 0, %s17
      %p14 = scmp.ge.s32.totalorder %s13, 5
      %s20 = sphi 0, %s32
      %s21 = sphi 0, %s28
      %s22 = sphi 0, %s20
      %s23 = sphi 0, %s21
      %s24 = sphi 0, %s22
      %s25 = sphi 0, %s23
      %s33 = sphi 0, %s33
      %s35 = sphi 0, %s33
      %s36 = sphi 0, %s35
      %s50 = sphi 0, %s36
      %s58 = sphi 0, %s60
      %s61 = sphi 0, %s58
      %s62 = sphi 0, %s61
      %s78 = sphi 0, %s62
      %s86 = sphi 0, %s88
      %s89 = sphi 0, %s86
      %s90 = sphi 0, %s89
      %s106 = sphi 0, %s90
      %s114 = sphi 0, %s116
      %s117 = sphi 0, %s114
      %s118 = sphi 0, %s117
      %s134 = sphi 0, %s118
    $region4: #{single_stream_block_forward.5} parent=1 // loop_header_branch
      %16 = sbr.rel (%p14) target = $region8
    $region5: #{single_stream_block_forward.5} parent=1 // loop_body
      %s18 = ssub.s32 %s13, 1
      %s19 = ssub.s32 %s13, 2
      %s26 = sadd.s32 1, %s21
      %p27 = scmp.ge.s32.totalorder %s26, 1
      %s28 = scalar_select %p27, 0, %s26
      %s29 = sadd.s32 1, %s20
      %s30 = scalar_select %p27, %s29, %s20
      %p31 = scmp.ge.s32.totalorder %s30, 3
      %s32 = scalar_select %p31, 0, %s30
      %s34 = sadd.s32 %s33, 1
      %p37 = scmp.eq.s32.totalorder %s13, 2
      %p38 = scmp.ne.s32.totalorder %s33, %s35
      %p39 = scmp.eq.s32.totalorder %s13, 0
      %p40 = por %p38, %p39
      %p41 = scmp.ne.s32.totalorder %s33, %s35
      %p42 = scmp.eq.s32.totalorder %s18, 2
      %p43 = por %p41, %p42
      %p44 = scmp.ne.s32.totalorder %s35, %s36
      %p45 = scmp.eq.s32.totalorder %s18, 0
      %p46 = por %p44, %p45
      %p47 = scmp.ne.s32.totalorder %s35, %s36
      %p48 = scmp.eq.s32.totalorder %s19, 2
      %p49 = por %p47, %p48
      %p51 = scmp.ne.s32.totalorder %s36, %s50
      %p52 = scmp.eq.s32.totalorder %s19, 0
      %p53 = por %p51, %p52
      %s54 = ssub.s32 %s20, %s32
      %s55 = ssub.s32 %s21, %s28
      %s56 = sor.u32 %s54, %s55
      %p57 = scmp.eq.s32.totalorder %s56, 0
      %s59 = sadd.s32 %s58, 1
      %s60 = scalar_select %p57, %s58, %s59
      %p63 = pneg %p57
      %p64 = scmp.eq.s32.totalorder %s13, 2
      %p65 = por %p63, %p64
      %p66 = scmp.ne.s32.totalorder %s58, %s61
      %p67 = scmp.eq.s32.totalorder %s13, 0
      %p68 = por %p66, %p67
      %p69 = scmp.ne.s32.totalorder %s58, %s61
      %p70 = scmp.eq.s32.totalorder %s18, 2
      %p71 = por %p69, %p70
      %p72 = scmp.ne.s32.totalorder %s61, %s62
      %p73 = scmp.eq.s32.totalorder %s18, 0
      %p74 = por %p72, %p73
      %p75 = scmp.ne.s32.totalorder %s61, %s62
      %p76 = scmp.eq.s32.totalorder %s19, 2
      %p77 = por %p75, %p76
      %p79 = scmp.ne.s32.totalorder %s62, %s78
      %p80 = scmp.eq.s32.totalorder %s19, 0
      %p81 = por %p79, %p80
      %s82 = ssub.s32 %s20, %s32
      %s83 = ssub.s32 %s21, %s28
      %s84 = sor.u32 %s82, %s83
      %p85 = scmp.eq.s32.totalorder %s84, 0
      %s87 = sadd.s32 %s86, 1
      %s88 = scalar_select %p85, %s86, %s87
      %p91 = pneg %p85
      %p92 = scmp.eq.s32.totalorder %s13, 2
      %p93 = por %p91, %p92
      %p94 = scmp.ne.s32.totalorder %s86, %s89
      %p95 = scmp.eq.s32.totalorder %s13, 0
      %p96 = por %p94, %p95
      %p97 = scmp.ne.s32.totalorder %s86, %s89
      %p98 = scmp.eq.s32.totalorder %s18, 2
      %p99 = por %p97, %p98
      %p100 = scmp.ne.s32.totalorder %s89, %s90
      %p101 = scmp.eq.s32.totalorder %s18, 0
      %p102 = por %p100, %p101
      %p103 = scmp.ne.s32.totalorder %s89, %s90
      %p104 = scmp.eq.s32.totalorder %s19, 2
      %p105 = por %p103, %p104
      %p107 = scmp.ne.s32.totalorder %s90, %s106
      %p108 = scmp.eq.s32.totalorder %s19, 0
      %p109 = por %p107, %p108
      %s110 = ssub.s32 %s20, %s32
      %s111 = ssub.s32 %s21, %s28
      %s112 = sor.u32 %s110, %s111
      %p113 = scmp.eq.s32.totalorder %s112, 0
      %s115 = sadd.s32 %s114, 1
      %s116 = scalar_select %p113, %s114, %s115
      %p119 = pneg %p113
      %p120 = scmp.eq.s32.totalorder %s13, 2
      %p121 = por %p119, %p120
      %p122 = scmp.ne.s32.totalorder %s114, %s117
      %p123 = scmp.eq.s32.totalorder %s13, 0
      %p124 = por %p122, %p123
      %p125 = scmp.ne.s32.totalorder %s114, %s117
      %p126 = scmp.eq.s32.totalorder %s18, 2
      %p127 = por %p125, %p126
      %p128 = scmp.ne.s32.totalorder %s117, %s118
      %p129 = scmp.eq.s32.totalorder %s18, 0
      %p130 = por %p128, %p129
      %p131 = scmp.ne.s32.totalorder %s117, %s118
      %p132 = scmp.eq.s32.totalorder %s19, 2
      %p133 = por %p131, %p132
      %p135 = scmp.ne.s32.totalorder %s118, %s134
      %p136 = scmp.eq.s32.totalorder %s19, 0
      %p137 = por %p135, %p136
      %p138 = scmp.le.s32.totalorder 1, %s13
      %p139 = scmp.lt.s32.totalorder %s13, 4
      %p140 = pnand %p138, %p139
      %p141 = pneg %p140
      // Predicated region
      $region9: #{single_stream_block_forward.5} parent=5 // pred_check
        _
      $region10: #{single_stream_block_forward.5} parent=5 // pred_check_branch
        %143 = sbr.rel (%p140) target = $region12
      $region11: #{single_stream_block_forward.5} parent=5 // pred_region
        %s144 = ssub.s32 %s13, 1
        // Predicated region
        $region13: #{single_stream_block_forward.5} parent=11 // pred_check
          %p145 = pneg %p46
        $region14: #{single_stream_block_forward.5} parent=11 // pred_check_branch
          %147 = sbr.rel (%p145) target = $region16
        $region15: #{single_stream_block_forward.5} parent=11 // pred_region
          %s149 = ssub.s32 64, 64
          %150 = vsyncadd [#allocation3], %s149
          %s152 = sshll.u32 [#allocation2], 4
          %s153 = int_to_ptr.vmem [resolvable:$true] %s152
          %155 = dma.hbm_to_vmem [thread:$0]  %s0, 64, %s153, [#allocation3]
        $region16: #{single_stream_block_forward.5} parent=11 // pred_fallthru
          _
      $region12: #{single_stream_block_forward.5} parent=5 // pred_fallthru
        _
      %p156 = scmp.lt.s32.totalorder %s13, 3
      // Predicated region
      $region17: #{single_stream_block_forward.5} parent=5 // pred_check
        %p157 = pneg %p156
      $region18: #{single_stream_block_forward.5} parent=5 // pred_check_branch
        %159 = sbr.rel (%p157) target = $region20
      $region19: #{single_stream_block_forward.5} parent=5 // pred_region
        // Predicated region
        $region21: #{single_stream_block_forward.5} parent=19 // pred_check
          %p160 = pneg %p68
        $region22: #{single_stream_block_forward.5} parent=19 // pred_check_branch
          %162 = sbr.rel (%p160) target = $region24
        $region23: #{single_stream_block_forward.5} parent=19 // pred_region
          %s163 = sand.u32 %s13, 1
          %s164 = scalar_lea.sflag [#allocation5], %s163
          %s165 = sand.u32 %s58, 1
          %s166 = smul.addr %s165, 512
          %s167 = scalar_lea.vmem [#allocation4], %s166
          %s168 = smul.u32 2, %s21
          %s170 = ssub.s32 8192, 8192
          %171 = vsyncadd %s164, %s170
          %s172 = smul.addr %s20, 64
          %s173 = sadd.s32 %s168, %s172
          %s174 = smul.addr %s173, 128
          %s175 = scalar_lea.hbm %s1, %s174
          %s176 = sshll.u32 %s167, 4
          %s177 = int_to_ptr.vmem [resolvable:$true] %s176
          %182 = dma.hbm_to_vmem [thread:$0]  %s175, 8192, %s177, %s164, 256, 256, 16
        $region24: #{single_stream_block_forward.5} parent=19 // pred_fallthru
          _
        // Predicated region
        $region25: #{single_stream_block_forward.5} parent=19 // pred_check
          %p183 = pneg %p96
        $region26: #{single_stream_block_forward.5} parent=19 // pred_check_branch
          %185 = sbr.rel (%p183) target = $region28
        $region27: #{single_stream_block_forward.5} parent=19 // pred_region
          %s186 = sand.u32 %s13, 1
          %s187 = scalar_lea.sflag [#allocation5], %s186
          %s188 = sand.u32 %s86, 1
          %s189 = smul.addr %s188, 2
          %s190 = scalar_lea.vmem [#allocation6], %s189
          %s191 = smul.u32 2, %s21
          %s193 = ssub.s32 32, 32
          %194 = vsyncadd %s187, %s193
          %s195 = smul.addr %s20, 2
          %s196 = sadd.s32 %s191, %s195
          %s197 = smul.addr %s196, 16
          %s198 = scalar_lea.hbm %s2, %s197
          %s200 = sshll.u32 %s190, 4
          %s201 = int_to_ptr.vmem [resolvable:$true] %s200
          %203 = dma.hbm_to_vmem [thread:$0]  %s198, 32, %s201, %s187
        $region28: #{single_stream_block_forward.5} parent=19 // pred_fallthru
          _
      $region20: #{single_stream_block_forward.5} parent=5 // pred_fallthru
        _
      %p204 = scmp.le.s32.totalorder 1, %s13
      %p205 = scmp.lt.s32.totalorder %s13, 4
      %p206 = pnand %p204, %p205
      %p207 = pneg %p206
      // Predicated region
      $region29: #{single_stream_block_forward.5} parent=5 // pred_check
        _
      $region30: #{single_stream_block_forward.5} parent=5 // pred_check_branch
        %209 = sbr.rel (%p206) target = $region32
      $region31: #{single_stream_block_forward.5} parent=5 // pred_region
        %s210 = ssub.s32 %s13, 1
        // Predicated region
        $region33: #{single_stream_block_forward.5} parent=31 // pred_check
          %p211 = pneg %p46
        $region34: #{single_stream_block_forward.5} parent=31 // pred_check_branch
          %213 = sbr.rel (%p211) target = $region36
        $region35: #{single_stream_block_forward.5} parent=31 // pred_region
          %214 = dma.done [#allocation3], 64
        $region36: #{single_stream_block_forward.5} parent=31 // pred_fallthru
          _
        %s215 = sand.u32 %s18, 1
        %s216 = scalar_lea.sflag [#allocation5], %s215
        %s217 = sand.u32 %s61, 1
        %s218 = smul.addr %s217, 512
        %s219 = scalar_lea.vmem [#allocation4], %s218
        // Predicated region
        $region37: #{single_stream_block_forward.5} parent=31 // pred_check
          %p220 = pneg %p74
        $region38: #{single_stream_block_forward.5} parent=31 // pred_check_branch
          %222 = sbr.rel (%p220) target = $region40
        $region39: #{single_stream_block_forward.5} parent=31 // pred_region
          %223 = dma.done %s216, 8192
        $region40: #{single_stream_block_forward.5} parent=31 // pred_fallthru
          _
        %s224 = sand.u32 %s18, 1
        %s225 = scalar_lea.sflag [#allocation5], %s224
        %s226 = sand.u32 %s89, 1
        %s227 = smul.addr %s226, 2
        %s228 = scalar_lea.vmem [#allocation6], %s227
        // Predicated region
        $region41: #{single_stream_block_forward.5} parent=31 // pred_check
          %p229 = pneg %p102
        $region42: #{single_stream_block_forward.5} parent=31 // pred_check_branch
          %231 = sbr.rel (%p229) target = $region44
        $region43: #{single_stream_block_forward.5} parent=31 // pred_region
          %232 = dma.done %s225, 32
        $region44: #{single_stream_block_forward.5} parent=31 // pred_fallthru
          _
        %p233 = pneg %p46
        %p234 = pneg %p43
        %s235 = sand.u32 %s18, 1
        %s236 = scalar_lea.sflag [#allocation5], %s235
        %s237 = sand.u32 %s61, 1
        %s238 = smul.addr %s237, 512
        %s239 = scalar_lea.vmem [#allocation4], %s238
        %p240 = pneg %p74
        %p241 = pneg %p71
        %s242 = sand.u32 %s18, 1
        %s243 = scalar_lea.sflag [#allocation5], %s242
        %s244 = sand.u32 %s89, 1
        %s245 = smul.addr %s244, 2
        %s246 = scalar_lea.vmem [#allocation6], %s245
        %p247 = pneg %p102
        %p248 = pneg %p99
        %p249 = pneg %p130
        %p250 = pneg %p127
        %s251 = smul.u32 2, %s23
        %p252 = scmp.lt.s32.totalorder %s22, 2
        %s253 = scalar_select %p252, %s22, 2
        %p254 = scmp.lt.s32.totalorder %s251, 1
        %s255 = scalar_select %p254, %s251, 1
        %s256 = smul.addr %s253, 4
        %s257 = sadd.s32 %s255, %s256
        %s258 = scalar_lea.vmem %s3, %s257
        %s259 = smul.u32 2, %s23
        %s260 = smul.u32 2, %s23
        %s261 = smul.u32 2, %s23
        %p262 = scmp.lt.s32.totalorder %s22, 2
        %s263 = scalar_select %p262, %s22, 2
        %p264 = scmp.lt.s32.totalorder %s261, 1
        %s265 = scalar_select %p264, %s261, 1
        %s266 = smul.addr %s263, 4
        %s267 = sadd.s32 %s265, %s266
        %s268 = scalar_lea.vmem %s3, %s267
        %s269 = smul.u32 2, %s23
        %v270 = vld [vmem:[#allocation2] sm:$0xf]
        %v271 = vxor.u32 %v270, 2147483648
        %v272 = vmul.f32 %v271, 1.442695
        %v273 = vpow.pop %v272
        %v274 = vadd.f32 %v273, 1.0
        %v275 = vrcp.pop %v274
        %v276 = vmul.f32 1.0, %v275
        %v277 = vmul.f32 %v270, %v276
        %v278 = vld [vmem:[%s219] sm:$0xff]
        %v279 = vld [vmem:[%s219 + $0x8] sm:$0xff]
        %v280 = vld [vmem:[%s219 + $0x10] sm:$0xff]
        %v281 = vld [vmem:[%s219 + $0x18] sm:$0xff]
        %v282 = vld [vmem:[%s219 + $0x20] sm:$0xff]
        %v283 = vld [vmem:[%s219 + $0x28] sm:$0xff]
        %v284 = vld [vmem:[%s219 + $0x30] sm:$0xff]
        %v285 = vld [vmem:[%s219 + $0x38] sm:$0xff]
        %v286 = vld [vmem:[%s219 + $0x40] sm:$0xff]
        %v287 = vld [vmem:[%s219 + $0x48] sm:$0xff]
        %v288 = vld [vmem:[%s219 + $0x50] sm:$0xff]
        %v289 = vld [vmem:[%s219 + $0x58] sm:$0xff]
        %v290 = vld [vmem:[%s219 + $0x60] sm:$0xff]
        %v291 = vld [vmem:[%s219 + $0x68] sm:$0xff]
        %v292 = vld [vmem:[%s219 + $0x70] sm:$0xff]
        %v293 = vld [vmem:[%s219 + $0x78] sm:$0xff]
        %v294 = vld [vmem:[%s219 + $0x80] sm:$0xff]
        %v295 = vld [vmem:[%s219 + $0x88] sm:$0xff]
        %v296 = vld [vmem:[%s219 + $0x90] sm:$0xff]
        %v297 = vld [vmem:[%s219 + $0x98] sm:$0xff]
        %v298 = vld [vmem:[%s219 + $0xa0] sm:$0xff]
        %v299 = vld [vmem:[%s219 + $0xa8] sm:$0xff]
        %v300 = vld [vmem:[%s219 + $0xb0] sm:$0xff]
        %v301 = vld [vmem:[%s219 + $0xb8] sm:$0xff]
        %v302 = vld [vmem:[%s219 + $0xc0] sm:$0xff]
        %v303 = vld [vmem:[%s219 + $0xc8] sm:$0xff]
        %v304 = vld [vmem:[%s219 + $0xd0] sm:$0xff]
        %v305 = vld [vmem:[%s219 + $0xd8] sm:$0xff]
        %v306 = vld [vmem:[%s219 + $0xe0] sm:$0xff]
        %v307 = vld [vmem:[%s219 + $0xe8] sm:$0xff]
        %v308 = vld [vmem:[%s219 + $0xf0] sm:$0xff]
        %v309 = vld [vmem:[%s219 + $0xf8] sm:$0xff]
        %v310 = vld [vmem:[%s219 + $0x100] sm:$0xff]
        %v311 = vld [vmem:[%s219 + $0x108] sm:$0xff]
        %v312 = vld [vmem:[%s219 + $0x110] sm:$0xff]
        %v313 = vld [vmem:[%s219 + $0x118] sm:$0xff]
        %v314 = vld [vmem:[%s219 + $0x120] sm:$0xff]
        %v315 = vld [vmem:[%s219 + $0x128] sm:$0xff]
        %v316 = vld [vmem:[%s219 + $0x130] sm:$0xff]
        %v317 = vld [vmem:[%s219 + $0x138] sm:$0xff]
        %v318 = vld [vmem:[%s219 + $0x140] sm:$0xff]
        %v319 = vld [vmem:[%s219 + $0x148] sm:$0xff]
        %v320 = vld [vmem:[%s219 + $0x150] sm:$0xff]
        %v321 = vld [vmem:[%s219 + $0x158] sm:$0xff]
        %v322 = vld [vmem:[%s219 + $0x160] sm:$0xff]
        %v323 = vld [vmem:[%s219 + $0x168] sm:$0xff]
        %v324 = vld [vmem:[%s219 + $0x170] sm:$0xff]
        %v325 = vld [vmem:[%s219 + $0x178] sm:$0xff]
        %v326 = vld [vmem:[%s219 + $0x180] sm:$0xff]
        %v327 = vld [vmem:[%s219 + $0x188] sm:$0xff]
        %v328 = vld [vmem:[%s219 + $0x190] sm:$0xff]
        %v329 = vld [vmem:[%s219 + $0x198] sm:$0xff]
        %v330 = vld [vmem:[%s219 + $0x1a0] sm:$0xff]
        %v331 = vld [vmem:[%s219 + $0x1a8] sm:$0xff]
        %v332 = vld [vmem:[%s219 + $0x1b0] sm:$0xff]
        %v333 = vld [vmem:[%s219 + $0x1b8] sm:$0xff]
        %v334 = vld [vmem:[%s219 + $0x1c0] sm:$0xff]
        %v335 = vld [vmem:[%s219 + $0x1c8] sm:$0xff]
        %v336 = vld [vmem:[%s219 + $0x1d0] sm:$0xff]
        %v337 = vld [vmem:[%s219 + $0x1d8] sm:$0xff]
        %v338 = vld [vmem:[%s219 + $0x1e0] sm:$0xff]
        %v339 = vld [vmem:[%s219 + $0x1e8] sm:$0xff]
        %v340 = vld [vmem:[%s219 + $0x1f0] sm:$0xff]
        %v341 = vld [vmem:[%s219 + $0x1f8] sm:$0xff]
        %v342 = vld [vmem:[%s228] sm:$0x3]
        %v344 = vlaneseq
        %v345 = vshrl.u32 %v344, 7
        %v346 = vsub.s32 0, %v345
        %v347 = vrot.slane %v342, %v346
        %v348 = vlaneseq
        %v349 = vshrl.u32 %v348, 7
        %v350 = vsub.s32 1, %v349
        %v351 = vrot.slane %v342, %v350
        %v356 = vunpack.c.l.s4 1983009808
        %v357 = vunpack.c.0.s8 %v356
        %v358 = vlaneseq
        %v359 = vshrl.u32 %v358, 7
        %v360 = vsub.s32 %v357, %v359
        %v361 = vrot.slane %v277, %v360
        %v362 = vcombine.high %v361, %v361
        %365 = vmatprep.subr.mxu0 %v279
        %366 = vmatpush1.msra.mxu0 %v278
        %367 = vmatprep.subr.mxu0 %v281
        %368 = vmatpush1.msra.mxu0 %v280
        %369 = vmatprep.subr.mxu0 %v283
        %370 = vmatpush1.msra.mxu0 %v282
        %371 = vmatprep.subr.mxu0 %v285
        %372 = vmatpush1.msra.mxu0 %v284
        %373 = vmatprep.subr.mxu0 %v287
        %374 = vmatpush1.msra.mxu0 %v286
        %375 = vmatprep.subr.mxu0 %v289
        %376 = vmatpush1.msra.mxu0 %v288
        %377 = vmatprep.subr.mxu0 %v291
        %378 = vmatpush1.msra.mxu0 %v290
        %379 = vmatprep.subr.mxu0 %v293
        %380 = vmatpush1.msra.mxu0 %v292
        %381 = vmatprep.subr.mxu0 %v295
        %382 = vmatpush1.msra.mxu0 %v294
        %383 = vmatprep.subr.mxu0 %v297
        %384 = vmatpush1.msra.mxu0 %v296
        %385 = vmatprep.subr.mxu0 %v299
        %386 = vmatpush1.msra.mxu0 %v298
        %387 = vmatprep.subr.mxu0 %v301
        %388 = vmatpush1.msra.mxu0 %v300
        %389 = vmatprep.subr.mxu0 %v303
        %390 = vmatpush1.msra.mxu0 %v302
        %391 = vmatprep.subr.mxu0 %v305
        %392 = vmatpush1.msra.mxu0 %v304
        %393 = vmatprep.subr.mxu0 %v307
        %394 = vmatpush1.msra.mxu0 %v306
        %395 = vmatprep.subr.mxu0 %v309
        %396 = vmatpush1.msra.mxu0 %v308
        %397 = vmatprep.subr.mxu0 %v311
        %398 = vmatpush1.msra.mxu0 %v310
        %399 = vmatprep.subr.mxu0 %v313
        %400 = vmatpush1.msra.mxu0 %v312
        %401 = vmatprep.subr.mxu0 %v315
        %402 = vmatpush1.msra.mxu0 %v314
        %403 = vmatprep.subr.mxu0 %v317
        %404 = vmatpush1.msra.mxu0 %v316
        %405 = vmatprep.subr.mxu0 %v319
        %406 = vmatpush1.msra.mxu0 %v318
        %407 = vmatprep.subr.mxu0 %v321
        %408 = vmatpush1.msra.mxu0 %v320
        %409 = vmatprep.subr.mxu0 %v323
        %410 = vmatpush1.msra.mxu0 %v322
        %411 = vmatprep.subr.mxu0 %v325
        %412 = vmatpush1.msra.mxu0 %v324
        %413 = vmatprep.subr.mxu0 %v327
        %414 = vmatpush1.msra.mxu0 %v326
        %415 = vmatprep.subr.mxu0 %v329
        %416 = vmatpush1.msra.mxu0 %v328
        %417 = vmatprep.subr.mxu0 %v331
        %418 = vmatpush1.msra.mxu0 %v330
        %419 = vmatprep.subr.mxu0 %v333
        %420 = vmatpush1.msra.mxu0 %v332
        %421 = vmatprep.subr.mxu0 %v335
        %422 = vmatpush1.msra.mxu0 %v334
        %423 = vmatprep.subr.mxu0 %v337
        %424 = vmatpush1.msra.mxu0 %v336
        %425 = vmatprep.subr.mxu0 %v339
        %426 = vmatpush1.msra.mxu0 %v338
        %427 = vmatprep.subr.mxu0 %v341
        %428 = vmatpush1.msra.mxu0 %v340
        %429 = vmatprep.mubr.f32.mxu0 %v362
        %430 = vmatmul.mubr.f32.gmra.mrb[0].mxu0 %v361
        %v431 = vpop.f32.mrb[0].mxu0
        %v432 = vadd.f32 %v347, %v431
        %v433 = vpop.f32.mrb[0].mxu0
        %v434 = vadd.f32 %v351, %v433
        %435 = vdwg.mxu0
        %v438 = vcombine.low %v432, %v434
        %v440 = vunpack.c.l.s4 1966171168
        %v441 = vunpack.c.0.s8 %v440
        %v442 = vlaneseq
        %v443 = vshrl.u32 %v442, 7
        %v444 = vsub.s32 %v441, %v443
        %v445 = vrot.slane %v438, %v444
        %v446 = vcombine.high %v445, %v445
        %v448 = vunpack.c.l.s4 1966171168
        %v449 = vunpack.c.0.s8 %v448
        %v450 = vlaneseq
        %v451 = vshrl.u32 %v450, 7
        %v452 = vsub.s32 %v449, %v451
        %v453 = vrot.slane %v445, %v452
        %v455 = vunpack.c.l.s4 1966171168
        %v456 = vunpack.c.0.s8 %v455
        %v457 = vlaneseq
        %v458 = vshrl.u32 %v457, 7
        %v459 = vsub.s32 %v456, %v458
        %v460 = vrot.slane %v446, %v459
        %v463 = vlaneseq
        %vm464 = vcmp.ge.s32.totalorder %v463, 0
        %vm465 = vcmp.lt.s32.totalorder %v463, 256
        %vm466 = vmand %vm464, %vm465
        %467 = vst.msk [vmem:[%s268] sm:$0x3] %vm466, %v453
        %468 = vst.msk [vmem:[%s268 + $0x2] sm:$0x3] %vm466, %v460
        %s469 = smul.u32 2, %s23
        %p470 = scmp.lt.s32.totalorder %s22, 2
        %s471 = scalar_select %p470, %s22, 2
        %p472 = scmp.lt.s32.totalorder %s469, 1
        %s473 = scalar_select %p472, %s469, 1
        %s474 = smul.addr %s471, 4
        %s475 = sadd.s32 %s473, %s474
        %s476 = scalar_lea.vmem %s3, %s475
        // Predicated region
        $region45: #{single_stream_block_forward.5} parent=31 // pred_check
          %p477 = pneg %p127
        $region46: #{single_stream_block_forward.5} parent=31 // pred_check_branch
          %479 = sbr.rel (%p477) target = $region48
        $region47: #{single_stream_block_forward.5} parent=31 // pred_region
          %s480 = smul.u32 2, %s23
        $region48: #{single_stream_block_forward.5} parent=31 // pred_fallthru
          _
      $region32: #{single_stream_block_forward.5} parent=5 // pred_fallthru
        _
      %p481 = scmp.le.s32.totalorder 2, %s13
      // Predicated region
      $region49: #{single_stream_block_forward.5} parent=5 // pred_check
        %p482 = pneg %p481
      $region50: #{single_stream_block_forward.5} parent=5 // pred_check_branch
        %484 = sbr.rel (%p482) target = $region52
      $region51: #{single_stream_block_forward.5} parent=5 // pred_region
        %s485 = ssub.s32 %s13, 2
        // Predicated region
        $region53: #{single_stream_block_forward.5} parent=51 // pred_check
          %p486 = pneg %p133
        $region54: #{single_stream_block_forward.5} parent=51 // pred_check_branch
          %488 = sbr.rel (%p486) target = $region56
        $region55: #{single_stream_block_forward.5} parent=51 // pred_region
          %s489 = smul.u32 2, %s25
          %p490 = scmp.lt.s32.totalorder %s24, 2
          %s491 = scalar_select %p490, %s24, 2
          %p492 = scmp.lt.s32.totalorder %s489, 1
          %s493 = scalar_select %p492, %s489, 1
          %s494 = smul.addr %s491, 4
          %s495 = sadd.s32 %s493, %s494
          %s496 = scalar_lea.vmem %s3, %s495
        $region56: #{single_stream_block_forward.5} parent=51 // pred_fallthru
          _
      $region52: #{single_stream_block_forward.5} parent=5 // pred_fallthru
        _
    $region6: #{single_stream_block_forward.5} parent=1 // loop_footer
      %s17 = sadd.s32 1, %s13
    $region7: #{single_stream_block_forward.5} parent=1 // loop_footer_branch
      %12 = sbr.rel target = $region3
    $region8: #{single_stream_block_forward.5} parent=1 // loop_exit
      _
    %497 = vsyncpa [#allocation3], 1
    %s498 = scalar_lea.sflag [#allocation3], 1
    %499 = vsyncpa %s498, 1
    %500 = vsyncpa [#allocation5], 1
    %s501 = scalar_lea.sflag [#allocation5], 1
    %502 = vsyncpa %s501, 1

// kernel: single_stream_block_forward.6
$region0: #{single_stream_block_forward.6}
  #allocation0 [shape = 'u32[]', space=smem, size = 0x4, offset = 0x4, fixed_abs, tag = 'smem constant byte address 0x4 - core index']
  #allocation1 [shape = 'u32[144,128]{1,0:T(1,128)}', space=vmem, size = 0x12000, scoped, tag = 'internal scratch']
  #allocation2 [shape = 'f32[16,256]{1,0:T(8,128)}', space=vmem, size = 0x4000, scoped, tag = 'scratch operand']
  %s0 = inlined_call_operand.vmem [shape: f32[2,16,256], index: 0, kind: input, shape index: {}]
  %s1 = inlined_call_operand.vmem [shape: f32[2,1,256], index: 1, kind: input, shape index: {}]
  %s2 = inlined_call_operand.vmem [shape: f32[2,1,256], index: 2, kind: input, shape index: {}]
  %s3 = inlined_call_operand.vmem [shape: f32[256,768], index: 3, kind: input, shape index: {}]
  %s4 = inlined_call_operand.vmem [shape: f32[1,768], index: 4, kind: input, shape index: {}]
  %s5 = inlined_call_operand.vmem [shape: f32[2,16,768], index: 5, kind: output, shape index: {}]
  %s6 = sld [smem:[#allocation0]]
  $region99: #{single_stream_block_forward.6} parent=0
    _
  %s8 = ssub.s32 1, %s6
  %s9 = scalar_select 0, %s8, %s6
  $region1: #{single_stream_block_forward.6} parent=0
    #allocation3 [shape = 'u8[786432]{0}', space=vmem, size = 0xc0000, scoped, tag = 'input window, operand 3']
    #allocation4 [shape = 'u8[49152]{0}', space=vmem, size = 0xc000, scoped, tag = 'output window, operand 0']
    loop: start=0, step=1, limit=6
    $region2: #{single_stream_block_forward.6} parent=1 // loop_pre_header
      _
    $region3: #{single_stream_block_forward.6} parent=1 // loop_header
      %s11 = sphi 0, %s15
      %p12 = scmp.ge.s32.totalorder %s11, 6
      %s18 = sphi 0, %s37
      %s19 = sphi 0, %s33
      %s20 = sphi 0, %s29
      %s21 = sphi 0, %s18
      %s22 = sphi 0, %s19
      %s23 = sphi 0, %s20
      %s24 = sphi 0, %s21
      %s25 = sphi 0, %s22
      %s26 = sphi 0, %s23
      %s42 = sphi 0, %s44
      %s45 = sphi 0, %s42
      %s46 = sphi 0, %s45
      %s62 = sphi 0, %s46
      %s68 = sphi 0, %s70
      %s71 = sphi 0, %s68
      %s72 = sphi 0, %s71
      %s88 = sphi 0, %s72
      %s94 = sphi 0, %s96
      %s97 = sphi 0, %s94
      %s98 = sphi 0, %s97
      %s114 = sphi 0, %s98
      %s120 = sphi 0, %s122
      %s123 = sphi 0, %s120
      %s124 = sphi 0, %s123
      %s140 = sphi 0, %s124
      %s146 = sphi 0, %s148
      %s149 = sphi 0, %s146
      %s150 = sphi 0, %s149
      %s166 = sphi 0, %s150
      %s176 = sphi 0, %s178
      %s179 = sphi 0, %s176
      %s180 = sphi 0, %s179
      %s196 = sphi 0, %s180
    $region4: #{single_stream_block_forward.6} parent=1 // loop_header_branch
      %14 = sbr.rel (%p12) target = $region8
    $region5: #{single_stream_block_forward.6} parent=1 // loop_body
      %s16 = ssub.s32 %s11, 1
      %s17 = ssub.s32 %s11, 2
      %s27 = sadd.s32 1, %s20
      %p28 = scmp.ge.s32.totalorder %s27, 2
      %s29 = scalar_select %p28, 0, %s27
      %s30 = sadd.s32 1, %s19
      %s31 = scalar_select %p28, %s30, %s19
      %p32 = scmp.ge.s32.totalorder %s31, 1
      %s33 = scalar_select %p32, 0, %s31
      %s34 = sadd.s32 1, %s18
      %s35 = scalar_select %p32, %s34, %s18
      %p36 = scmp.ge.s32.totalorder %s35, 2
      %s37 = scalar_select %p36, 0, %s35
      %s38 = ssub.s32 %s18, %s37
      %s39 = ssub.s32 %s19, %s33
      %s40 = sor.u32 %s38, %s39
      %p41 = scmp.eq.s32.totalorder %s40, 0
      %s43 = sadd.s32 %s42, 1
      %s44 = scalar_select %p41, %s42, %s43
      %p47 = pneg %p41
      %p48 = scmp.eq.s32.totalorder %s11, 3
      %p49 = por %p47, %p48
      %p50 = scmp.ne.s32.totalorder %s42, %s45
      %p51 = scmp.eq.s32.totalorder %s11, 0
      %p52 = por %p50, %p51
      %p53 = scmp.ne.s32.totalorder %s42, %s45
      %p54 = scmp.eq.s32.totalorder %s16, 3
      %p55 = por %p53, %p54
      %p56 = scmp.ne.s32.totalorder %s45, %s46
      %p57 = scmp.eq.s32.totalorder %s16, 0
      %p58 = por %p56, %p57
      %p59 = scmp.ne.s32.totalorder %s45, %s46
      %p60 = scmp.eq.s32.totalorder %s17, 3
      %p61 = por %p59, %p60
      %p63 = scmp.ne.s32.totalorder %s46, %s62
      %p64 = scmp.eq.s32.totalorder %s17, 0
      %p65 = por %p63, %p64
      %s66 = ssub.s32 %s18, %s37
      %p67 = scmp.eq.s32.totalorder %s66, 0
      %s69 = sadd.s32 %s68, 1
      %s70 = scalar_select %p67, %s68, %s69
      %p73 = pneg %p67
      %p74 = scmp.eq.s32.totalorder %s11, 3
      %p75 = por %p73, %p74
      %p76 = scmp.ne.s32.totalorder %s68, %s71
      %p77 = scmp.eq.s32.totalorder %s11, 0
      %p78 = por %p76, %p77
      %p79 = scmp.ne.s32.totalorder %s68, %s71
      %p80 = scmp.eq.s32.totalorder %s16, 3
      %p81 = por %p79, %p80
      %p82 = scmp.ne.s32.totalorder %s71, %s72
      %p83 = scmp.eq.s32.totalorder %s16, 0
      %p84 = por %p82, %p83
      %p85 = scmp.ne.s32.totalorder %s71, %s72
      %p86 = scmp.eq.s32.totalorder %s17, 3
      %p87 = por %p85, %p86
      %p89 = scmp.ne.s32.totalorder %s72, %s88
      %p90 = scmp.eq.s32.totalorder %s17, 0
      %p91 = por %p89, %p90
      %s92 = ssub.s32 %s18, %s37
      %p93 = scmp.eq.s32.totalorder %s92, 0
      %s95 = sadd.s32 %s94, 1
      %s96 = scalar_select %p93, %s94, %s95
      %p99 = pneg %p93
      %p100 = scmp.eq.s32.totalorder %s11, 3
      %p101 = por %p99, %p100
      %p102 = scmp.ne.s32.totalorder %s94, %s97
      %p103 = scmp.eq.s32.totalorder %s11, 0
      %p104 = por %p102, %p103
      %p105 = scmp.ne.s32.totalorder %s94, %s97
      %p106 = scmp.eq.s32.totalorder %s16, 3
      %p107 = por %p105, %p106
      %p108 = scmp.ne.s32.totalorder %s97, %s98
      %p109 = scmp.eq.s32.totalorder %s16, 0
      %p110 = por %p108, %p109
      %p111 = scmp.ne.s32.totalorder %s97, %s98
      %p112 = scmp.eq.s32.totalorder %s17, 3
      %p113 = por %p111, %p112
      %p115 = scmp.ne.s32.totalorder %s98, %s114
      %p116 = scmp.eq.s32.totalorder %s17, 0
      %p117 = por %p115, %p116
      %s118 = ssub.s32 %s20, %s29
      %p119 = scmp.eq.s32.totalorder %s118, 0
      %s121 = sadd.s32 %s120, 1
      %s122 = scalar_select %p119, %s120, %s121
      %p125 = pneg %p119
      %p126 = scmp.eq.s32.totalorder %s11, 3
      %p127 = por %p125, %p126
      %p128 = scmp.ne.s32.totalorder %s120, %s123
      %p129 = scmp.eq.s32.totalorder %s11, 0
      %p130 = por %p128, %p129
      %p131 = scmp.ne.s32.totalorder %s120, %s123
      %p132 = scmp.eq.s32.totalorder %s16, 3
      %p133 = por %p131, %p132
      %p134 = scmp.ne.s32.totalorder %s123, %s124
      %p135 = scmp.eq.s32.totalorder %s16, 0
      %p136 = por %p134, %p135
      %p137 = scmp.ne.s32.totalorder %s123, %s124
      %p138 = scmp.eq.s32.totalorder %s17, 3
      %p139 = por %p137, %p138
      %p141 = scmp.ne.s32.totalorder %s124, %s140
      %p142 = scmp.eq.s32.totalorder %s17, 0
      %p143 = por %p141, %p142
      %s144 = ssub.s32 %s20, %s29
      %p145 = scmp.eq.s32.totalorder %s144, 0
      %s147 = sadd.s32 %s146, 1
      %s148 = scalar_select %p145, %s146, %s147
      %p151 = pneg %p145
      %p152 = scmp.eq.s32.totalorder %s11, 3
      %p153 = por %p151, %p152
      %p154 = scmp.ne.s32.totalorder %s146, %s149
      %p155 = scmp.eq.s32.totalorder %s11, 0
      %p156 = por %p154, %p155
      %p157 = scmp.ne.s32.totalorder %s146, %s149
      %p158 = scmp.eq.s32.totalorder %s16, 3
      %p159 = por %p157, %p158
      %p160 = scmp.ne.s32.totalorder %s149, %s150
      %p161 = scmp.eq.s32.totalorder %s16, 0
      %p162 = por %p160, %p161
      %p163 = scmp.ne.s32.totalorder %s149, %s150
      %p164 = scmp.eq.s32.totalorder %s17, 3
      %p165 = por %p163, %p164
      %p167 = scmp.ne.s32.totalorder %s150, %s166
      %p168 = scmp.eq.s32.totalorder %s17, 0
      %p169 = por %p167, %p168
      %s170 = ssub.s32 %s18, %s37
      %s171 = ssub.s32 %s19, %s33
      %s172 = sor.u32 %s170, %s171
      %s173 = ssub.s32 %s20, %s29
      %s174 = sor.u32 %s172, %s173
      %p175 = scmp.eq.s32.totalorder %s174, 0
      %s177 = sadd.s32 %s176, 1
      %s178 = scalar_select %p175, %s176, %s177
      %p181 = pneg %p175
      %p182 = scmp.eq.s32.totalorder %s11, 3
      %p183 = por %p181, %p182
      %p184 = scmp.ne.s32.totalorder %s176, %s179
      %p185 = scmp.eq.s32.totalorder %s11, 0
      %p186 = por %p184, %p185
      %p187 = scmp.ne.s32.totalorder %s176, %s179
      %p188 = scmp.eq.s32.totalorder %s16, 3
      %p189 = por %p187, %p188
      %p190 = scmp.ne.s32.totalorder %s179, %s180
      %p191 = scmp.eq.s32.totalorder %s16, 0
      %p192 = por %p190, %p191
      %p193 = scmp.ne.s32.totalorder %s179, %s180
      %p194 = scmp.eq.s32.totalorder %s17, 3
      %p195 = por %p193, %p194
      %p197 = scmp.ne.s32.totalorder %s180, %s196
      %p198 = scmp.eq.s32.totalorder %s17, 0
      %p199 = por %p197, %p198
      %p200 = scmp.le.s32.totalorder 1, %s11
      %p201 = scmp.lt.s32.totalorder %s11, 5
      %p202 = pnand %p200, %p201
      %p203 = pneg %p202
      // Predicated region
      $region9: #{single_stream_block_forward.6} parent=5 // pred_check
        _
      $region10: #{single_stream_block_forward.6} parent=5 // pred_check_branch
        %205 = sbr.rel (%p202) target = $region12
      $region11: #{single_stream_block_forward.6} parent=5 // pred_region
        %s206 = ssub.s32 %s11, 1
      $region12: #{single_stream_block_forward.6} parent=5 // pred_fallthru
        _
      %p207 = scmp.lt.s32.totalorder %s11, 4
      // Predicated region
      $region13: #{single_stream_block_forward.6} parent=5 // pred_check
        %p208 = pneg %p207
      $region14: #{single_stream_block_forward.6} parent=5 // pred_check_branch
        %210 = sbr.rel (%p208) target = $region16
      $region15: #{single_stream_block_forward.6} parent=5 // pred_region
        // Predicated region
        $region17: #{single_stream_block_forward.6} parent=15 // pred_check
          %p211 = pneg %p52
        $region18: #{single_stream_block_forward.6} parent=15 // pred_check_branch
          %213 = sbr.rel (%p211) target = $region20
        $region19: #{single_stream_block_forward.6} parent=15 // pred_region
          %s214 = smul.u32 2, %s19
          %p215 = scmp.lt.s32.totalorder %s18, 1
          %s216 = scalar_select %p215, %s18, 1
          %p217 = scmp.lt.s32.totalorder %s214, 1
          %s218 = scalar_select %p217, %s214, 1
          %s219 = smul.addr %s218, 2
          %s220 = smul.addr %s216, 4
          %s221 = sadd.s32 %s219, %s220
          %s222 = smul.addr %s221, 8
          %s223 = scalar_lea.vmem %s0, %s222
          %s224 = smul.u32 2, %s19
        $region20: #{single_stream_block_forward.6} parent=15 // pred_fallthru
          _
        // Predicated region
        $region21: #{single_stream_block_forward.6} parent=15 // pred_check
          %p225 = pneg %p78
        $region22: #{single_stream_block_forward.6} parent=15 // pred_check_branch
          %227 = sbr.rel (%p225) target = $region24
        $region23: #{single_stream_block_forward.6} parent=15 // pred_region
          %p228 = scmp.lt.s32.totalorder %s18, 1
          %s229 = scalar_select %p228, %s18, 1
          %s230 = smul.addr %s229, 2
          %s231 = scalar_lea.vmem %s1, %s230
        $region24: #{single_stream_block_forward.6} parent=15 // pred_fallthru
          _
        // Predicated region
        $region25: #{single_stream_block_forward.6} parent=15 // pred_check
          %p232 = pneg %p104
        $region26: #{single_stream_block_forward.6} parent=15 // pred_check_branch
          %234 = sbr.rel (%p232) target = $region28
        $region27: #{single_stream_block_forward.6} parent=15 // pred_region
          %p235 = scmp.lt.s32.totalorder %s18, 1
          %s236 = scalar_select %p235, %s18, 1
          %s237 = smul.addr %s236, 2
          %s238 = scalar_lea.vmem %s2, %s237
        $region28: #{single_stream_block_forward.6} parent=15 // pred_fallthru
          _
        // Predicated region
        $region29: #{single_stream_block_forward.6} parent=15 // pred_check
          %p239 = pneg %p130
        $region30: #{single_stream_block_forward.6} parent=15 // pred_check_branch
          %241 = sbr.rel (%p239) target = $region32
        $region31: #{single_stream_block_forward.6} parent=15 // pred_region
          %s242 = sand.u32 %s120, 1
          %s243 = sand.u32 %s120, 1
          %s244 = smul.addr %s243, 768
          %s245 = scalar_lea.vmem [#allocation3], %s244
          %s246 = smul.u32 3, %s20
          %s247 = smul.addr %s246, 8
          %s248 = scalar_lea.vmem %s3, %s247
          // Predicated region
          $region33: #{single_stream_block_forward.6} parent=31 // pred_check
            _
          $region34: #{single_stream_block_forward.6} parent=31 // pred_check_branch
            %250 = sbr.rel (0) target = $region36
          $region35: #{single_stream_block_forward.6} parent=31 // pred_region
            // Predicated region
            $region37: #{single_stream_block_forward.6} parent=35 // pred_check
              _
            $region38: #{single_stream_block_forward.6} parent=35 // pred_check_branch
              %252 = sbr.rel (0) target = $region40
            $region39: #{single_stream_block_forward.6} parent=35 // pred_region
              loop: start=0, step=1, limit=1
              $region41: #{single_stream_block_forward.6} parent=39 // loop_pre_header
                _
              $region42: #{single_stream_block_forward.6} parent=39 // loop_header
                %s254 = sphi 0, %s258
                %p255 = scmp.ge.s32.totalorder %s254, 1
                %s259 = sphi %s248, %s248
                %s260 = sphi %s245, %s245
              $region43: #{single_stream_block_forward.6} parent=39 // loop_header_branch
                %257 = sbr.rel (%p255) target = $region47
              $region44: #{single_stream_block_forward.6} parent=39 // loop_body
                %v261 = vld [vmem:[%s259] sm:$0xff]
                %262 = vst [vmem:[%s260] sm:$0xff] %v261
                %v263 = vld [vmem:[%s259 + $0x8] sm:$0xff]
                %264 = vst [vmem:[%s260 + $0x8] sm:$0xff] %v263
                %v265 = vld [vmem:[%s259 + $0x10] sm:$0xff]
                %266 = vst [vmem:[%s260 + $0x10] sm:$0xff] %v265
                %v267 = vld [vmem:[%s259 + $0x30] sm:$0xff]
                %268 = vst [vmem:[%s260 + $0x18] sm:$0xff] %v267
                %v269 = vld [vmem:[%s259 + $0x38] sm:$0xff]
                %270 = vst [vmem:[%s260 + $0x20] sm:$0xff] %v269
                %v271 = vld [vmem:[%s259 + $0x40] sm:$0xff]
                %272 = vst [vmem:[%s260 + $0x28] sm:$0xff] %v271
                %v273 = vld [vmem:[%s259 + $0x60] sm:$0xff]
                %274 = vst [vmem:[%s260 + $0x30] sm:$0xff] %v273
                %v275 = vld [vmem:[%s259 + $0x68] sm:$0xff]
                %276 = vst [vmem:[%s260 + $0x38] sm:$0xff] %v275
                %v277 = vld [vmem:[%s259 + $0x70] sm:$0xff]
                %278 = vst [vmem:[%s260 + $0x40] sm:$0xff] %v277
                %v279 = vld [vmem:[%s259 + $0x90] sm:$0xff]
                %280 = vst [vmem:[%s260 + $0x48] sm:$0xff] %v279
                %v281 = vld [vmem:[%s259 + $0x98] sm:$0xff]
                %282 = vst [vmem:[%s260 + $0x50] sm:$0xff] %v281
                %v283 = vld [vmem:[%s259 + $0xa0] sm:$0xff]
                %284 = vst [vmem:[%s260 + $0x58] sm:$0xff] %v283
                %v285 = vld [vmem:[%s259 + $0xc0] sm:$0xff]
                %286 = vst [vmem:[%s260 + $0x60] sm:$0xff] %v285
                %v287 = vld [vmem:[%s259 + $0xc8] sm:$0xff]
                %288 = vst [vmem:[%s260 + $0x68] sm:$0xff] %v287
                %v289 = vld [vmem:[%s259 + $0xd0] sm:$0xff]
                %290 = vst [vmem:[%s260 + $0x70] sm:$0xff] %v289
                %v291 = vld [vmem:[%s259 + $0xf0] sm:$0xff]
                %292 = vst [vmem:[%s260 + $0x78] sm:$0xff] %v291
                %v293 = vld [vmem:[%s259 + $0xf8] sm:$0xff]
                %294 = vst [vmem:[%s260 + $0x80] sm:$0xff] %v293
                %v295 = vld [vmem:[%s259 + $0x100] sm:$0xff]
                %296 = vst [vmem:[%s260 + $0x88] sm:$0xff] %v295
                %v297 = vld [vmem:[%s259 + $0x120] sm:$0xff]
                %298 = vst [vmem:[%s260 + $0x90] sm:$0xff] %v297
                %v299 = vld [vmem:[%s259 + $0x128] sm:$0xff]
                %300 = vst [vmem:[%s260 + $0x98] sm:$0xff] %v299
                %v301 = vld [vmem:[%s259 + $0x130] sm:$0xff]
                %302 = vst [vmem:[%s260 + $0xa0] sm:$0xff] %v301
                %v303 = vld [vmem:[%s259 + $0x150] sm:$0xff]
                %304 = vst [vmem:[%s260 + $0xa8] sm:$0xff] %v303
                %v305 = vld [vmem:[%s259 + $0x158] sm:$0xff]
                %306 = vst [vmem:[%s260 + $0xb0] sm:$0xff] %v305
                %v307 = vld [vmem:[%s259 + $0x160] sm:$0xff]
                %308 = vst [vmem:[%s260 + $0xb8] sm:$0xff] %v307
                %v309 = vld [vmem:[%s259 + $0x180] sm:$0xff]
                %310 = vst [vmem:[%s260 + $0xc0] sm:$0xff] %v309
                %v311 = vld [vmem:[%s259 + $0x188] sm:$0xff]
                %312 = vst [vmem:[%s260 + $0xc8] sm:$0xff] %v311
                %v313 = vld [vmem:[%s259 + $0x190] sm:$0xff]
                %314 = vst [vmem:[%s260 + $0xd0] sm:$0xff] %v313
                %v315 = vld [vmem:[%s259 + $0x1b0] sm:$0xff]
                %316 = vst [vmem:[%s260 + $0xd8] sm:$0xff] %v315
                %v317 = vld [vmem:[%s259 + $0x1b8] sm:$0xff]
                %318 = vst [vmem:[%s260 + $0xe0] sm:$0xff] %v317
                %v319 = vld [vmem:[%s259 + $0x1c0] sm:$0xff]
                %320 = vst [vmem:[%s260 + $0xe8] sm:$0xff] %v319
                %v321 = vld [vmem:[%s259 + $0x1e0] sm:$0xff]
                %322 = vst [vmem:[%s260 + $0xf0] sm:$0xff] %v321
                %v323 = vld [vmem:[%s259 + $0x1e8] sm:$0xff]
                %324 = vst [vmem:[%s260 + $0xf8] sm:$0xff] %v323
                %v325 = vld [vmem:[%s259 + $0x1f0] sm:$0xff]
                %326 = vst [vmem:[%s260 + $0x100] sm:$0xff] %v325
                %v327 = vld [vmem:[%s259 + $0x210] sm:$0xff]
                %328 = vst [vmem:[%s260 + $0x108] sm:$0xff] %v327
                %v329 = vld [vmem:[%s259 + $0x218] sm:$0xff]
                %330 = vst [vmem:[%s260 + $0x110] sm:$0xff] %v329
                %v331 = vld [vmem:[%s259 + $0x220] sm:$0xff]
                %332 = vst [vmem:[%s260 + $0x118] sm:$0xff] %v331
                %v333 = vld [vmem:[%s259 + $0x240] sm:$0xff]
                %334 = vst [vmem:[%s260 + $0x120] sm:$0xff] %v333
                %v335 = vld [vmem:[%s259 + $0x248] sm:$0xff]
                %336 = vst [vmem:[%s260 + $0x128] sm:$0xff] %v335
                %v337 = vld [vmem:[%s259 + $0x250] sm:$0xff]
                %338 = vst [vmem:[%s260 + $0x130] sm:$0xff] %v337
                %v339 = vld [vmem:[%s259 + $0x270] sm:$0xff]
                %340 = vst [vmem:[%s260 + $0x138] sm:$0xff] %v339
                %v341 = vld [vmem:[%s259 + $0x278] sm:$0xff]
                %342 = vst [vmem:[%s260 + $0x140] sm:$0xff] %v341
                %v343 = vld [vmem:[%s259 + $0x280] sm:$0xff]
                %344 = vst [vmem:[%s260 + $0x148] sm:$0xff] %v343
                %v345 = vld [vmem:[%s259 + $0x2a0] sm:$0xff]
                %346 = vst [vmem:[%s260 + $0x150] sm:$0xff] %v345
                %v347 = vld [vmem:[%s259 + $0x2a8] sm:$0xff]
                %348 = vst [vmem:[%s260 + $0x158] sm:$0xff] %v347
                %v349 = vld [vmem:[%s259 + $0x2b0] sm:$0xff]
                %350 = vst [vmem:[%s260 + $0x160] sm:$0xff] %v349
                %v351 = vld [vmem:[%s259 + $0x2d0] sm:$0xff]
                %352 = vst [vmem:[%s260 + $0x168] sm:$0xff] %v351
                %v353 = vld [vmem:[%s259 + $0x2d8] sm:$0xff]
                %354 = vst [vmem:[%s260 + $0x170] sm:$0xff] %v353
                %v355 = vld [vmem:[%s259 + $0x2e0] sm:$0xff]
                %356 = vst [vmem:[%s260 + $0x178] sm:$0xff] %v355
                %v357 = vld [vmem:[%s259 + $0x300] sm:$0xff]
                %358 = vst [vmem:[%s260 + $0x180] sm:$0xff] %v357
                %v359 = vld [vmem:[%s259 + $0x308] sm:$0xff]
                %360 = vst [vmem:[%s260 + $0x188] sm:$0xff] %v359
                %v361 = vld [vmem:[%s259 + $0x310] sm:$0xff]
                %362 = vst [vmem:[%s260 + $0x190] sm:$0xff] %v361
                %v363 = vld [vmem:[%s259 + $0x330] sm:$0xff]
                %364 = vst [vmem:[%s260 + $0x198] sm:$0xff] %v363
                %v365 = vld [vmem:[%s259 + $0x338] sm:$0xff]
                %366 = vst [vmem:[%s260 + $0x1a0] sm:$0xff] %v365
                %v367 = vld [vmem:[%s259 + $0x340] sm:$0xff]
                %368 = vst [vmem:[%s260 + $0x1a8] sm:$0xff] %v367
                %v369 = vld [vmem:[%s259 + $0x360] sm:$0xff]
                %370 = vst [vmem:[%s260 + $0x1b0] sm:$0xff] %v369
                %v371 = vld [vmem:[%s259 + $0x368] sm:$0xff]
                %372 = vst [vmem:[%s260 + $0x1b8] sm:$0xff] %v371
                %v373 = vld [vmem:[%s259 + $0x370] sm:$0xff]
                %374 = vst [vmem:[%s260 + $0x1c0] sm:$0xff] %v373
                %v375 = vld [vmem:[%s259 + $0x390] sm:$0xff]
                %376 = vst [vmem:[%s260 + $0x1c8] sm:$0xff] %v375
                %v377 = vld [vmem:[%s259 + $0x398] sm:$0xff]
                %378 = vst [vmem:[%s260 + $0x1d0] sm:$0xff] %v377
                %v379 = vld [vmem:[%s259 + $0x3a0] sm:$0xff]
                %380 = vst [vmem:[%s260 + $0x1d8] sm:$0xff] %v379
                %v381 = vld [vmem:[%s259 + $0x3c0] sm:$0xff]
                %382 = vst [vmem:[%s260 + $0x1e0] sm:$0xff] %v381
                %v383 = vld [vmem:[%s259 + $0x3c8] sm:$0xff]
                %384 = vst [vmem:[%s260 + $0x1e8] sm:$0xff] %v383
                %v385 = vld [vmem:[%s259 + $0x3d0] sm:$0xff]
                %386 = vst [vmem:[%s260 + $0x1f0] sm:$0xff] %v385
                %v387 = vld [vmem:[%s259 + $0x3f0] sm:$0xff]
                %388 = vst [vmem:[%s260 + $0x1f8] sm:$0xff] %v387
                %v389 = vld [vmem:[%s259 + $0x3f8] sm:$0xff]
                %390 = vst [vmem:[%s260 + $0x200] sm:$0xff] %v389
                %v391 = vld [vmem:[%s259 + $0x400] sm:$0xff]
                %392 = vst [vmem:[%s260 + $0x208] sm:$0xff] %v391
                %v393 = vld [vmem:[%s259 + $0x420] sm:$0xff]
                %394 = vst [vmem:[%s260 + $0x210] sm:$0xff] %v393
                %v395 = vld [vmem:[%s259 + $0x428] sm:$0xff]
                %396 = vst [vmem:[%s260 + $0x218] sm:$0xff] %v395
                %v397 = vld [vmem:[%s259 + $0x430] sm:$0xff]
                %398 = vst [vmem:[%s260 + $0x220] sm:$0xff] %v397
                %v399 = vld [vmem:[%s259 + $0x450] sm:$0xff]
                %400 = vst [vmem:[%s260 + $0x228] sm:$0xff] %v399
                %v401 = vld [vmem:[%s259 + $0x458] sm:$0xff]
                %402 = vst [vmem:[%s260 + $0x230] sm:$0xff] %v401
                %v403 = vld [vmem:[%s259 + $0x460] sm:$0xff]
                %404 = vst [vmem:[%s260 + $0x238] sm:$0xff] %v403
                %v405 = vld [vmem:[%s259 + $0x480] sm:$0xff]
                %406 = vst [vmem:[%s260 + $0x240] sm:$0xff] %v405
                %v407 = vld [vmem:[%s259 + $0x488] sm:$0xff]
                %408 = vst [vmem:[%s260 + $0x248] sm:$0xff] %v407
                %v409 = vld [vmem:[%s259 + $0x490] sm:$0xff]
                %410 = vst [vmem:[%s260 + $0x250] sm:$0xff] %v409
                %v411 = vld [vmem:[%s259 + $0x4b0] sm:$0xff]
                %412 = vst [vmem:[%s260 + $0x258] sm:$0xff] %v411
                %v413 = vld [vmem:[%s259 + $0x4b8] sm:$0xff]
                %414 = vst [vmem:[%s260 + $0x260] sm:$0xff] %v413
                %v415 = vld [vmem:[%s259 + $0x4c0] sm:$0xff]
                %416 = vst [vmem:[%s260 + $0x268] sm:$0xff] %v415
                %v417 = vld [vmem:[%s259 + $0x4e0] sm:$0xff]
                %418 = vst [vmem:[%s260 + $0x270] sm:$0xff] %v417
                %v419 = vld [vmem:[%s259 + $0x4e8] sm:$0xff]
                %420 = vst [vmem:[%s260 + $0x278] sm:$0xff] %v419
                %v421 = vld [vmem:[%s259 + $0x4f0] sm:$0xff]
                %422 = vst [vmem:[%s260 + $0x280] sm:$0xff] %v421
                %v423 = vld [vmem:[%s259 + $0x510] sm:$0xff]
                %424 = vst [vmem:[%s260 + $0x288] sm:$0xff] %v423
                %v425 = vld [vmem:[%s259 + $0x518] sm:$0xff]
                %426 = vst [vmem:[%s260 + $0x290] sm:$0xff] %v425
                %v427 = vld [vmem:[%s259 + $0x520] sm:$0xff]
                %428 = vst [vmem:[%s260 + $0x298] sm:$0xff] %v427
                %v429 = vld [vmem:[%s259 + $0x540] sm:$0xff]
                %430 = vst [vmem:[%s260 + $0x2a0] sm:$0xff] %v429
                %v431 = vld [vmem:[%s259 + $0x548] sm:$0xff]
                %432 = vst [vmem:[%s260 + $0x2a8] sm:$0xff] %v431
                %v433 = vld [vmem:[%s259 + $0x550] sm:$0xff]
                %434 = vst [vmem:[%s260 + $0x2b0] sm:$0xff] %v433
                %v435 = vld [vmem:[%s259 + $0x570] sm:$0xff]
                %436 = vst [vmem:[%s260 + $0x2b8] sm:$0xff] %v435
                %v437 = vld [vmem:[%s259 + $0x578] sm:$0xff]
                %438 = vst [vmem:[%s260 + $0x2c0] sm:$0xff] %v437
                %v439 = vld [vmem:[%s259 + $0x580] sm:$0xff]
                %440 = vst [vmem:[%s260 + $0x2c8] sm:$0xff] %v439
                %v441 = vld [vmem:[%s259 + $0x5a0] sm:$0xff]
                %442 = vst [vmem:[%s260 + $0x2d0] sm:$0xff] %v441
                %v443 = vld [vmem:[%s259 + $0x5a8] sm:$0xff]
                %444 = vst [vmem:[%s260 + $0x2d8] sm:$0xff] %v443
                %v445 = vld [vmem:[%s259 + $0x5b0] sm:$0xff]
                %446 = vst [vmem:[%s260 + $0x2e0] sm:$0xff] %v445
                %v447 = vld [vmem:[%s259 + $0x5d0] sm:$0xff]
                %448 = vst [vmem:[%s260 + $0x2e8] sm:$0xff] %v447
                %v449 = vld [vmem:[%s259 + $0x5d8] sm:$0xff]
                %450 = vst [vmem:[%s260 + $0x2f0] sm:$0xff] %v449
                %v451 = vld [vmem:[%s259 + $0x5e0] sm:$0xff]
                %452 = vst [vmem:[%s260 + $0x2f8] sm:$0xff] %v451
              $region45: #{single_stream_block_forward.6} parent=39 // loop_footer
                %s258 = sadd.s32 1, %s254
              $region46: #{single_stream_block_forward.6} parent=39 // loop_footer_branch
                %253 = sbr.rel target = $region42
              $region47: #{single_stream_block_forward.6} parent=39 // loop_exit
                _
            $region40: #{single_stream_block_forward.6} parent=35 // pred_fallthru
              _
            // Predicated region
            $region48: #{single_stream_block_forward.6} parent=35 // pred_check
              _
            $region49: #{single_stream_block_forward.6} parent=35 // pred_check_branch
              %454 = sbr.rel target = $region51
            $region50: #{single_stream_block_forward.6} parent=35 // pred_region
              _
            $region51: #{single_stream_block_forward.6} parent=35 // pred_fallthru
              _
          $region36: #{single_stream_block_forward.6} parent=31 // pred_fallthru
            _
          %455 = vnop
        $region32: #{single_stream_block_forward.6} parent=15 // pred_fallthru
          _
        // Predicated region
        $region52: #{single_stream_block_forward.6} parent=15 // pred_check
          %p456 = pneg %p156
        $region53: #{single_stream_block_forward.6} parent=15 // pred_check_branch
          %458 = sbr.rel (%p456) target = $region55
        $region54: #{single_stream_block_forward.6} parent=15 // pred_region
          %s459 = smul.u32 3, %s20
          %p460 = scmp.lt.s32.totalorder %s459, 5
          %s461 = scalar_select %p460, %s459, 5
          %s462 = scalar_lea.vmem %s4, %s461
          %s463 = smul.u32 3, %s20
        $region55: #{single_stream_block_forward.6} parent=15 // pred_fallthru
          _
      $region16: #{single_stream_block_forward.6} parent=5 // pred_fallthru
        _
      %p464 = scmp.le.s32.totalorder 1, %s11
      %p465 = scmp.lt.s32.totalorder %s11, 5
      %p466 = pnand %p464, %p465
      %p467 = pneg %p466
      // Predicated region
      $region56: #{single_stream_block_forward.6} parent=5 // pred_check
        _
      $region57: #{single_stream_block_forward.6} parent=5 // pred_check_branch
        %469 = sbr.rel (%p466) target = $region59
      $region58: #{single_stream_block_forward.6} parent=5 // pred_region
        %s470 = ssub.s32 %s11, 1
        %s471 = sand.u32 %s123, 1
        %s472 = sand.u32 %s123, 1
        %s473 = smul.addr %s472, 768
        %s474 = scalar_lea.vmem [#allocation3], %s473
        // Predicated region
        $region60: #{single_stream_block_forward.6} parent=58 // pred_check
          %p475 = pneg %p136
        $region61: #{single_stream_block_forward.6} parent=58 // pred_check_branch
          %477 = sbr.rel (%p475) target = $region63
        $region62: #{single_stream_block_forward.6} parent=58 // pred_region
          _
        $region63: #{single_stream_block_forward.6} parent=58 // pred_fallthru
          _
        %s478 = smul.u32 2, %s22
        %p479 = scmp.lt.s32.totalorder %s21, 1
        %s480 = scalar_select %p479, %s21, 1
        %p481 = scmp.lt.s32.totalorder %s478, 1
        %s482 = scalar_select %p481, %s478, 1
        %s483 = smul.addr %s482, 2
        %s484 = smul.addr %s480, 4
        %s485 = sadd.s32 %s483, %s484
        %s486 = smul.addr %s485, 8
        %s487 = scalar_lea.vmem %s0, %s486
        %p488 = pneg %p58
        %p489 = pneg %p55
        %p490 = scmp.lt.s32.totalorder %s21, 1
        %s491 = scalar_select %p490, %s21, 1
        %s492 = smul.addr %s491, 2
        %s493 = scalar_lea.vmem %s1, %s492
        %p494 = pneg %p84
        %p495 = pneg %p81
        %p496 = scmp.lt.s32.totalorder %s21, 1
        %s497 = scalar_select %p496, %s21, 1
        %s498 = smul.addr %s497, 2
        %s499 = scalar_lea.vmem %s2, %s498
        %p500 = pneg %p110
        %p501 = pneg %p107
        %s502 = sand.u32 %s123, 1
        %s503 = sand.u32 %s123, 1
        %s504 = smul.addr %s503, 768
        %s505 = scalar_lea.vmem [#allocation3], %s504
        %p506 = pneg %p136
        %p507 = pneg %p133
        %s508 = smul.u32 3, %s23
        %p509 = scmp.lt.s32.totalorder %s508, 5
        %s510 = scalar_select %p509, %s508, 5
        %s511 = scalar_lea.vmem %s4, %s510
        %p512 = pneg %p162
        %p513 = pneg %p159
        %p514 = pneg %p192
        %p515 = pneg %p189
        %s516 = sand.u32 %s179, 1
        %s517 = sand.u32 %s179, 1
        %s518 = smul.addr %s517, 48
        %s519 = scalar_lea.vmem [#allocation4], %s518
        %s520 = smul.u32 2, %s22
        %p521 = scmp.lt.s32.totalorder %s21, 1
        %s522 = scalar_select %p521, %s21, 1
        %p523 = scmp.lt.s32.totalorder %s520, 1
        %s524 = scalar_select %p523, %s520, 1
        %s525 = smul.addr %s524, 2
        %s526 = smul.addr %s522, 4
        %s527 = sadd.s32 %s525, %s526
        %s528 = smul.addr %s527, 8
        %s529 = scalar_lea.vmem %s0, %s528
        %s530 = smul.u32 2, %s22
        %p531 = scmp.lt.s32.totalorder %s21, 1
        %s532 = scalar_select %p531, %s21, 1
        %s533 = smul.addr %s532, 2
        %s534 = scalar_lea.vmem %s1, %s533
        %p535 = scmp.lt.s32.totalorder %s21, 1
        %s536 = scalar_select %p535, %s21, 1
        %s537 = smul.addr %s536, 2
        %s538 = scalar_lea.vmem %s2, %s537
        %s539 = smul.u32 3, %s23
        %s540 = smul.u32 3, %s23
        %p541 = scmp.lt.s32.totalorder %s540, 5
        %s542 = scalar_select %p541, %s540, 5
        %s543 = scalar_lea.vmem %s4, %s542
        %s544 = smul.u32 3, %s23
        %s545 = smul.u32 2, %s22
        %s546 = smul.u32 3, %s23
        %p547 = scmp.eq.s32.totalorder %s23, 0
        // Predicated region
        $region64: #{single_stream_block_forward.6} parent=58 // pred_check
          %p548 = pneg %p547
        $region65: #{single_stream_block_forward.6} parent=58 // pred_check_branch
          %550 = sbr.rel (%p548) target = $region67
        $region66: #{single_stream_block_forward.6} parent=58 // pred_region
          %v551 = vld [vmem:[%s529] sm:$0xff]
          %v552 = vld [vmem:[%s529 + $0x8] sm:$0xff]
          %v553 = vld [vmem:[%s529 + $0x10] sm:$0xff]
          %v554 = vld [vmem:[%s529 + $0x18] sm:$0xff]
          %v555 = vadd.f32 %v551, %v552
          %556 = vadd.xlane.f32.xlu0 %v555
          %v557 = vpop.xlane.xlu0 %556
          %v558 = vadd.f32 %v553, %v554
          %559 = vadd.xlane.f32.xlu0 %v558
          %v560 = vpop.xlane.xlu0 %559
          %v561 = vrcp.pop 256.0
          %v562 = vmul.f32 %v557, %v561
          %v563 = vmul.f32 %v560, %v561
          %v564 = vsub.f32 %v551, %v562
          %v565 = vsub.f32 %v552, %v562
          %v566 = vsub.f32 %v553, %v563
          %v567 = vsub.f32 %v554, %v563
          %v568 = vmul.f32 %v564, %v564
          %v569 = vmul.f32 %v565, %v565
          %v570 = vmul.f32 %v566, %v566
          %v571 = vmul.f32 %v567, %v567
          %v572 = vadd.f32 %v568, %v569
          %573 = vadd.xlane.f32.xlu0 %v572
          %v574 = vpop.xlane.xlu0 %573
          %v575 = vadd.f32 %v570, %v571
          %576 = vadd.xlane.f32.xlu0 %v575
          %v577 = vpop.xlane.xlu0 %576
          %v578 = vmul.f32 %v574, %v561
          %v579 = vmul.f32 %v577, %v561
          %v580 = vadd.f32 %v578, 1e-06
          %v581 = vadd.f32 %v579, 1e-06
          %v582 = vrsqrt.pop %v580
          %v583 = vrsqrt.pop %v581
          %v584 = vmul.f32 %v564, %v582
          %v585 = vmul.f32 %v565, %v582
          %v586 = vmul.f32 %v566, %v583
          %v587 = vmul.f32 %v567, %v583
          %v588 = vld [vmem:[%s534] sm:$0x3]
          %v589 = vld [vmem:[%s538] sm:$0x3]
          %v590 = vadd.f32 %v588, 1.0
          %v592 = vlaneseq
          %v593 = vshrl.u32 %v592, 7
          %v594 = vsub.s32 0, %v593
          %v595 = vrot.slane %v590, %v594
          %v596 = vlaneseq
          %v597 = vshrl.u32 %v596, 7
          %v598 = vsub.s32 1, %v597
          %v599 = vrot.slane %v590, %v598
          %v602 = vmul.f32 %v595, %v584
          %v603 = vmul.f32 %v599, %v585
          %v604 = vmul.f32 %v595, %v586
          %v605 = vmul.f32 %v599, %v587
          %v607 = vlaneseq
          %v608 = vshrl.u32 %v607, 7
          %v609 = vsub.s32 0, %v608
          %v610 = vrot.slane %v589, %v609
          %v611 = vlaneseq
          %v612 = vshrl.u32 %v611, 7
          %v613 = vsub.s32 1, %v612
          %v614 = vrot.slane %v589, %v613
          %v617 = vadd.f32 %v602, %v610
          %v618 = vadd.f32 %v603, %v614
          %v619 = vadd.f32 %v604, %v610
          %v620 = vadd.f32 %v605, %v614
          %621 = vst [vmem:[#allocation2] sm:$0xff] %v617
          %622 = vst [vmem:[#allocation2 + $0x8] sm:$0xff] %v618
          %623 = vst [vmem:[#allocation2 + $0x10] sm:$0xff] %v619
          %624 = vst [vmem:[#allocation2 + $0x18] sm:$0xff] %v620
        $region67: #{single_stream_block_forward.6} parent=58 // pred_fallthru
          _
        %v625 = vld [vmem:[#allocation2] sm:$0xff]
        %v626 = vld [vmem:[#allocation2 + $0x8] sm:$0xff]
        %v627 = vld [vmem:[#allocation2 + $0x10] sm:$0xff]
        %v628 = vld [vmem:[#allocation2 + $0x18] sm:$0xff]
        %v629 = vld [vmem:[%s474] sm:$0xff]
        %v630 = vld [vmem:[%s474 + $0x8] sm:$0xff]
        %v631 = vld [vmem:[%s474 + $0x10] sm:$0xff]
        %v632 = vld [vmem:[%s474 + $0x18] sm:$0xff]
        %v633 = vld [vmem:[%s474 + $0x20] sm:$0xff]
        %v634 = vld [vmem:[%s474 + $0x28] sm:$0xff]
        %v635 = vld [vmem:[%s474 + $0x30] sm:$0xff]
        %v636 = vld [vmem:[%s474 + $0x38] sm:$0xff]
        %v637 = vld [vmem:[%s474 + $0x40] sm:$0xff]
        %v638 = vld [vmem:[%s474 + $0x48] sm:$0xff]
        %v639 = vld [vmem:[%s474 + $0x50] sm:$0xff]
        %v640 = vld [vmem:[%s474 + $0x58] sm:$0xff]
        %v641 = vld [vmem:[%s474 + $0x60] sm:$0xff]
        %v642 = vld [vmem:[%s474 + $0x68] sm:$0xff]
        %v643 = vld [vmem:[%s474 + $0x70] sm:$0xff]
        %v644 = vld [vmem:[%s474 + $0x78] sm:$0xff]
        %v645 = vld [vmem:[%s474 + $0x80] sm:$0xff]
        %v646 = vld [vmem:[%s474 + $0x88] sm:$0xff]
        %v647 = vld [vmem:[%s474 + $0x90] sm:$0xff]
        %v648 = vld [vmem:[%s474 + $0x98] sm:$0xff]
        %v649 = vld [vmem:[%s474 + $0xa0] sm:$0xff]
        %v650 = vld [vmem:[%s474 + $0xa8] sm:$0xff]
        %v651 = vld [vmem:[%s474 + $0xb0] sm:$0xff]
        %v652 = vld [vmem:[%s474 + $0xb8] sm:$0xff]
        %v653 = vld [vmem:[%s474 + $0xc0] sm:$0xff]
        %v654 = vld [vmem:[%s474 + $0xc8] sm:$0xff]
        %v655 = vld [vmem:[%s474 + $0xd0] sm:$0xff]
        %v656 = vld [vmem:[%s474 + $0xd8] sm:$0xff]
        %v657 = vld [vmem:[%s474 + $0xe0] sm:$0xff]
        %v658 = vld [vmem:[%s474 + $0xe8] sm:$0xff]
        %v659 = vld [vmem:[%s474 + $0xf0] sm:$0xff]
        %v660 = vld [vmem:[%s474 + $0xf8] sm:$0xff]
        %v661 = vld [vmem:[%s474 + $0x100] sm:$0xff]
        %v662 = vld [vmem:[%s474 + $0x108] sm:$0xff]
        %v663 = vld [vmem:[%s474 + $0x110] sm:$0xff]
        %v664 = vld [vmem:[%s474 + $0x118] sm:$0xff]
        %v665 = vld [vmem:[%s474 + $0x120] sm:$0xff]
        %v666 = vld [vmem:[%s474 + $0x128] sm:$0xff]
        %v667 = vld [vmem:[%s474 + $0x130] sm:$0xff]
        %v668 = vld [vmem:[%s474 + $0x138] sm:$0xff]
        %v669 = vld [vmem:[%s474 + $0x140] sm:$0xff]
        %v670 = vld [vmem:[%s474 + $0x148] sm:$0xff]
        %v671 = vld [vmem:[%s474 + $0x150] sm:$0xff]
        %v672 = vld [vmem:[%s474 + $0x158] sm:$0xff]
        %v673 = vld [vmem:[%s474 + $0x160] sm:$0xff]
        %v674 = vld [vmem:[%s474 + $0x168] sm:$0xff]
        %v675 = vld [vmem:[%s474 + $0x170] sm:$0xff]
        %v676 = vld [vmem:[%s474 + $0x178] sm:$0xff]
        %v677 = vld [vmem:[%s474 + $0x180] sm:$0xff]
        %v678 = vld [vmem:[%s474 + $0x188] sm:$0xff]
        %v679 = vld [vmem:[%s474 + $0x190] sm:$0xff]
        %v680 = vld [vmem:[%s474 + $0x198] sm:$0xff]
        %v681 = vld [vmem:[%s474 + $0x1a0] sm:$0xff]
        %v682 = vld [vmem:[%s474 + $0x1a8] sm:$0xff]
        %v683 = vld [vmem:[%s474 + $0x1b0] sm:$0xff]
        %v684 = vld [vmem:[%s474 + $0x1b8] sm:$0xff]
        %v685 = vld [vmem:[%s474 + $0x1c0] sm:$0xff]
        %v686 = vld [vmem:[%s474 + $0x1c8] sm:$0xff]
        %v687 = vld [vmem:[%s474 + $0x1d0] sm:$0xff]
        %v688 = vld [vmem:[%s474 + $0x1d8] sm:$0xff]
        %v689 = vld [vmem:[%s474 + $0x1e0] sm:$0xff]
        %v690 = vld [vmem:[%s474 + $0x1e8] sm:$0xff]
        %v691 = vld [vmem:[%s474 + $0x1f0] sm:$0xff]
        %v692 = vld [vmem:[%s474 + $0x1f8] sm:$0xff]
        %v693 = vld [vmem:[%s474 + $0x200] sm:$0xff]
        %v694 = vld [vmem:[%s474 + $0x208] sm:$0xff]
        %v695 = vld [vmem:[%s474 + $0x210] sm:$0xff]
        %v696 = vld [vmem:[%s474 + $0x218] sm:$0xff]
        %v697 = vld [vmem:[%s474 + $0x220] sm:$0xff]
        %v698 = vld [vmem:[%s474 + $0x228] sm:$0xff]
        %v699 = vld [vmem:[%s474 + $0x230] sm:$0xff]
        %v700 = vld [vmem:[%s474 + $0x238] sm:$0xff]
        %v701 = vld [vmem:[%s474 + $0x240] sm:$0xff]
        %v702 = vld [vmem:[%s474 + $0x248] sm:$0xff]
        %v703 = vld [vmem:[%s474 + $0x250] sm:$0xff]
        %v704 = vld [vmem:[%s474 + $0x258] sm:$0xff]
        %v705 = vld [vmem:[%s474 + $0x260] sm:$0xff]
        %v706 = vld [vmem:[%s474 + $0x268] sm:$0xff]
        %v707 = vld [vmem:[%s474 + $0x270] sm:$0xff]
        %v708 = vld [vmem:[%s474 + $0x278] sm:$0xff]
        %v709 = vld [vmem:[%s474 + $0x280] sm:$0xff]
        %v710 = vld [vmem:[%s474 + $0x288] sm:$0xff]
        %v711 = vld [vmem:[%s474 + $0x290] sm:$0xff]
        %v712 = vld [vmem:[%s474 + $0x298] sm:$0xff]
        %v713 = vld [vmem:[%s474 + $0x2a0] sm:$0xff]
        %v714 = vld [vmem:[%s474 + $0x2a8] sm:$0xff]
        %v715 = vld [vmem:[%s474 + $0x2b0] sm:$0xff]
        %v716 = vld [vmem:[%s474 + $0x2b8] sm:$0xff]
        %v717 = vld [vmem:[%s474 + $0x2c0] sm:$0xff]
        %v718 = vld [vmem:[%s474 + $0x2c8] sm:$0xff]
        %v719 = vld [vmem:[%s474 + $0x2d0] sm:$0xff]
        %v720 = vld [vmem:[%s474 + $0x2d8] sm:$0xff]
        %v721 = vld [vmem:[%s474 + $0x2e0] sm:$0xff]
        %v722 = vld [vmem:[%s474 + $0x2e8] sm:$0xff]
        %v723 = vld [vmem:[%s474 + $0x2f0] sm:$0xff]
        %v724 = vld [vmem:[%s474 + $0x2f8] sm:$0xff]
        %v725 = vld [vmem:[%s543] sm:$0x7]
        %v727 = vlaneseq
        %v728 = vshrl.u32 %v727, 7
        %v729 = vsub.s32 0, %v728
        %v730 = vrot.slane %v725, %v729
        %v731 = vlaneseq
        %v732 = vshrl.u32 %v731, 7
        %v733 = vsub.s32 1, %v732
        %v734 = vrot.slane %v725, %v733
        %v735 = vlaneseq
        %v736 = vshrl.u32 %v735, 7
        %v737 = vsub.s32 2, %v736
        %v738 = vrot.slane %v725, %v737
        %742 = vmatprep.subr.mxu0 %v630
        %743 = vmatpush1.msra.mxu0 %v629
        %744 = vmatprep.subr.mxu0 %v633
        %745 = vmatpush1.msra.mxu0 %v632
        %746 = vmatprep.subr.mxu0 %v636
        %747 = vmatpush1.msra.mxu0 %v635
        %748 = vmatprep.subr.mxu0 %v639
        %749 = vmatpush1.msra.mxu0 %v638
        %750 = vmatprep.subr.mxu0 %v642
        %751 = vmatpush1.msra.mxu0 %v641
        %752 = vmatprep.subr.mxu0 %v645
        %753 = vmatpush1.msra.mxu0 %v644
        %754 = vmatprep.subr.mxu0 %v648
        %755 = vmatpush1.msra.mxu0 %v647
        %756 = vmatprep.subr.mxu0 %v651
        %757 = vmatpush1.msra.mxu0 %v650
        %758 = vmatprep.subr.mxu0 %v654
        %759 = vmatpush1.msra.mxu0 %v653
        %760 = vmatprep.subr.mxu0 %v657
        %761 = vmatpush1.msra.mxu0 %v656
        %762 = vmatprep.subr.mxu0 %v660
        %763 = vmatpush1.msra.mxu0 %v659
        %764 = vmatprep.subr.mxu0 %v663
        %765 = vmatpush1.msra.mxu0 %v662
        %766 = vmatprep.subr.mxu0 %v666
        %767 = vmatpush1.msra.mxu0 %v665
        %768 = vmatprep.subr.mxu0 %v669
        %769 = vmatpush1.msra.mxu0 %v668
        %770 = vmatprep.subr.mxu0 %v672
        %771 = vmatpush1.msra.mxu0 %v671
        %772 = vmatprep.subr.mxu0 %v675
        %773 = vmatpush1.msra.mxu0 %v674
        %774 = vmatprep.subr.mxu0 %v678
        %775 = vmatpush1.msra.mxu0 %v677
        %776 = vmatprep.subr.mxu0 %v681
        %777 = vmatpush1.msra.mxu0 %v680
        %778 = vmatprep.subr.mxu0 %v684
        %779 = vmatpush1.msra.mxu0 %v683
        %780 = vmatprep.subr.mxu0 %v687
        %781 = vmatpush1.msra.mxu0 %v686
        %782 = vmatprep.subr.mxu0 %v690
        %783 = vmatpush1.msra.mxu0 %v689
        %784 = vmatprep.subr.mxu0 %v693
        %785 = vmatpush1.msra.mxu0 %v692
        %786 = vmatprep.subr.mxu0 %v696
        %787 = vmatpush1.msra.mxu0 %v695
        %788 = vmatprep.subr.mxu0 %v699
        %789 = vmatpush1.msra.mxu0 %v698
        %790 = vmatprep.subr.mxu0 %v702
        %791 = vmatpush1.msra.mxu0 %v701
        %792 = vmatprep.subr.mxu0 %v705
        %793 = vmatpush1.msra.mxu0 %v704
        %794 = vmatprep.subr.mxu0 %v708
        %795 = vmatpush1.msra.mxu0 %v707
        %796 = vmatprep.subr.mxu0 %v711
        %797 = vmatpush1.msra.mxu0 %v710
        %798 = vmatprep.subr.mxu0 %v714
        %799 = vmatpush1.msra.mxu0 %v713
        %800 = vmatprep.subr.mxu0 %v717
        %801 = vmatpush1.msra.mxu0 %v716
        %802 = vmatprep.subr.mxu0 %v720
        %803 = vmatpush1.msra.mxu0 %v719
        %804 = vmatprep.subr.mxu0 %v723
        %805 = vmatpush1.msra.mxu0 %v722
        %806 = vmatprep.mubr.f32.mxu0 %v626
        %807 = vmatmul.mubr.f32.gmra.mrb[0].mxu0 %v625
        %v808 = vpop.f32.mrb[0].mxu0
        %v809 = vadd.f32 %v730, %v808
        %v810 = vpop.f32.mrb[0].mxu0
        %v811 = vadd.f32 %v734, %v810
        %812 = vmatprep.mubr.f32.mxu0 %v628
        %813 = vmatmul.mubr.f32.gmra.mrb[0].mxu0 %v627
        %v814 = vpop.f32.mrb[0].mxu0
        %v815 = vadd.f32 %v730, %v814
        %v816 = vpop.f32.mrb[0].mxu0
        %v817 = vadd.f32 %v734, %v816
        %818 = vdwg.mxu0
        %819 = vmatprep.subr.mxu0 0.0
        %820 = vmatpush1.msra.mxu0 %v631
        %821 = vmatprep.subr.mxu0 0.0
        %822 = vmatpush1.msra.mxu0 %v634
        %823 = vmatprep.subr.mxu0 0.0
        %824 = vmatpush1.msra.mxu0 %v637
        %825 = vmatprep.subr.mxu0 0.0
        %826 = vmatpush1.msra.mxu0 %v640
        %827 = vmatprep.subr.mxu0 0.0
        %828 = vmatpush1.msra.mxu0 %v643
        %829 = vmatprep.subr.mxu0 0.0
        %830 = vmatpush1.msra.mxu0 %v646
        %831 = vmatprep.subr.mxu0 0.0
        %832 = vmatpush1.msra.mxu0 %v649
        %833 = vmatprep.subr.mxu0 0.0
        %834 = vmatpush1.msra.mxu0 %v652
        %835 = vmatprep.subr.mxu0 0.0
        %836 = vmatpush1.msra.mxu0 %v655
        %837 = vmatprep.subr.mxu0 0.0
        %838 = vmatpush1.msra.mxu0 %v658
        %839 = vmatprep.subr.mxu0 0.0
        %840 = vmatpush1.msra.mxu0 %v661
        %841 = vmatprep.subr.mxu0 0.0
        %842 = vmatpush1.msra.mxu0 %v664
        %843 = vmatprep.subr.mxu0 0.0
        %844 = vmatpush1.msra.mxu0 %v667
        %845 = vmatprep.subr.mxu0 0.0
        %846 = vmatpush1.msra.mxu0 %v670
        %847 = vmatprep.subr.mxu0 0.0
        %848 = vmatpush1.msra.mxu0 %v673
        %849 = vmatprep.subr.mxu0 0.0
        %850 = vmatpush1.msra.mxu0 %v676
        %851 = vmatprep.subr.mxu0 0.0
        %852 = vmatpush1.msra.mxu0 %v679
        %853 = vmatprep.subr.mxu0 0.0
        %854 = vmatpush1.msra.mxu0 %v682
        %855 = vmatprep.subr.mxu0 0.0
        %856 = vmatpush1.msra.mxu0 %v685
        %857 = vmatprep.subr.mxu0 0.0
        %858 = vmatpush1.msra.mxu0 %v688
        %859 = vmatprep.subr.mxu0 0.0
        %860 = vmatpush1.msra.mxu0 %v691
        %861 = vmatprep.subr.mxu0 0.0
        %862 = vmatpush1.msra.mxu0 %v694
        %863 = vmatprep.subr.mxu0 0.0
        %864 = vmatpush1.msra.mxu0 %v697
        %865 = vmatprep.subr.mxu0 0.0
        %866 = vmatpush1.msra.mxu0 %v700
        %867 = vmatprep.subr.mxu0 0.0
        %868 = vmatpush1.msra.mxu0 %v703
        %869 = vmatprep.subr.mxu0 0.0
        %870 = vmatpush1.msra.mxu0 %v706
        %871 = vmatprep.subr.mxu0 0.0
        %872 = vmatpush1.msra.mxu0 %v709
        %873 = vmatprep.subr.mxu0 0.0
        %874 = vmatpush1.msra.mxu0 %v712
        %875 = vmatprep.subr.mxu0 0.0
        %876 = vmatpush1.msra.mxu0 %v715
        %877 = vmatprep.subr.mxu0 0.0
        %878 = vmatpush1.msra.mxu0 %v718
        %879 = vmatprep.subr.mxu0 0.0
        %880 = vmatpush1.msra.mxu0 %v721
        %881 = vmatprep.subr.mxu0 0.0
        %882 = vmatpush1.msra.mxu0 %v724
        %883 = vmatprep.mubr.f32.mxu0 %v626
        %884 = vmatmul.mubr.f32.gmra.mrb[0].mxu0 %v625
        %v885 = vpop.f32.mrb[0].mxu0
        %v886 = vadd.f32 %v738, %v885
        %v887 = vpop.f32.mrb[0].mxu0
        %888 = vmatprep.mubr.f32.mxu0 %v628
        %889 = vmatmul.mubr.f32.gmra.mrb[0].mxu0 %v627
        %v890 = vpop.f32.mrb[0].mxu0
        %v891 = vadd.f32 %v738, %v890
        %v892 = vpop.f32.mrb[0].mxu0
        %893 = vdwg.mxu0
        %894 = vst [vmem:[%s519] sm:$0xff] %v809
        %895 = vst [vmem:[%s519 + $0x8] sm:$0xff] %v811
        %896 = vst [vmem:[%s519 + $0x10] sm:$0xff] %v886
        %897 = vst [vmem:[%s519 + $0x18] sm:$0xff] %v815
        %898 = vst [vmem:[%s519 + $0x20] sm:$0xff] %v817
        %899 = vst [vmem:[%s519 + $0x28] sm:$0xff] %v891
        %s900 = sand.u32 %s179, 1
        %s901 = sand.u32 %s179, 1
        %s902 = smul.addr %s901, 48
        %s903 = scalar_lea.vmem [#allocation4], %s902
        // Predicated region
        $region68: #{single_stream_block_forward.6} parent=58 // pred_check
          %p904 = pneg %p189
        $region69: #{single_stream_block_forward.6} parent=58 // pred_check_branch
          %906 = sbr.rel (%p904) target = $region71
        $region70: #{single_stream_block_forward.6} parent=58 // pred_region
          %s907 = smul.u32 2, %s22
          %s908 = smul.u32 3, %s23
          %s909 = smul.addr %s907, 6
          %s910 = sadd.s32 %s908, %s909
          %s911 = smul.addr %s21, 12
          %s912 = sadd.s32 %s910, %s911
          %s913 = smul.addr %s912, 8
          %s914 = scalar_lea.vmem %s5, %s913
          // Predicated region
          $region72: #{single_stream_block_forward.6} parent=70 // pred_check
            _
          $region73: #{single_stream_block_forward.6} parent=70 // pred_check_branch
            %916 = sbr.rel (0) target = $region75
          $region74: #{single_stream_block_forward.6} parent=70 // pred_region
            // Predicated region
            $region76: #{single_stream_block_forward.6} parent=74 // pred_check
              _
            $region77: #{single_stream_block_forward.6} parent=74 // pred_check_branch
              %918 = sbr.rel (0) target = $region79
            $region78: #{single_stream_block_forward.6} parent=74 // pred_region
              loop: start=0, step=1, limit=1
              $region80: #{single_stream_block_forward.6} parent=78 // loop_pre_header
                _
              $region81: #{single_stream_block_forward.6} parent=78 // loop_header
                %s920 = sphi 0, %s924
                %p921 = scmp.ge.s32.totalorder %s920, 1
                %s925 = sphi %s903, %s903
                %s926 = sphi %s914, %s914
              $region82: #{single_stream_block_forward.6} parent=78 // loop_header_branch
                %923 = sbr.rel (%p921) target = $region86
              $region83: #{single_stream_block_forward.6} parent=78 // loop_body
                %v927 = vld [vmem:[%s925] sm:$0xff]
                %928 = vst [vmem:[%s926] sm:$0xff] %v927
                %v929 = vld [vmem:[%s925 + $0x8] sm:$0xff]
                %930 = vst [vmem:[%s926 + $0x8] sm:$0xff] %v929
                %v931 = vld [vmem:[%s925 + $0x10] sm:$0xff]
                %932 = vst [vmem:[%s926 + $0x10] sm:$0xff] %v931
                %v933 = vld [vmem:[%s925 + $0x18] sm:$0xff]
                %934 = vst [vmem:[%s926 + $0x30] sm:$0xff] %v933
                %v935 = vld [vmem:[%s925 + $0x20] sm:$0xff]
                %936 = vst [vmem:[%s926 + $0x38] sm:$0xff] %v935
                %v937 = vld [vmem:[%s925 + $0x28] sm:$0xff]
                %938 = vst [vmem:[%s926 + $0x40] sm:$0xff] %v937
              $region84: #{single_stream_block_forward.6} parent=78 // loop_footer
                %s924 = sadd.s32 1, %s920
              $region85: #{single_stream_block_forward.6} parent=78 // loop_footer_branch
                %919 = sbr.rel target = $region81
              $region86: #{single_stream_block_forward.6} parent=78 // loop_exit
                _
            $region79: #{single_stream_block_forward.6} parent=74 // pred_fallthru
              _
            // Predicated region
            $region87: #{single_stream_block_forward.6} parent=74 // pred_check
              _
            $region88: #{single_stream_block_forward.6} parent=74 // pred_check_branch
              %940 = sbr.rel target = $region90
            $region89: #{single_stream_block_forward.6} parent=74 // pred_region
              _
            $region90: #{single_stream_block_forward.6} parent=74 // pred_fallthru
              _
          $region75: #{single_stream_block_forward.6} parent=70 // pred_fallthru
            _
          %941 = vnop
        $region71: #{single_stream_block_forward.6} parent=58 // pred_fallthru
          _
      $region59: #{single_stream_block_forward.6} parent=5 // pred_fallthru
        _
      %p942 = scmp.le.s32.totalorder 2, %s11
      // Predicated region
      $region91: #{single_stream_block_forward.6} parent=5 // pred_check
        %p943 = pneg %p942
      $region92: #{single_stream_block_forward.6} parent=5 // pred_check_branch
        %945 = sbr.rel (%p943) target = $region94
      $region93: #{single_stream_block_forward.6} parent=5 // pred_region
        %s946 = ssub.s32 %s11, 2
        // Predicated region
        $region95: #{single_stream_block_forward.6} parent=93 // pred_check
          %p947 = pneg %p195
        $region96: #{single_stream_block_forward.6} parent=93 // pred_check_branch
          %949 = sbr.rel (%p947) target = $region98
        $region97: #{single_stream_block_forward.6} parent=93 // pred_region
          %s950 = sand.u32 %s180, 1
          %s951 = sand.u32 %s180, 1
          %s952 = smul.addr %s951, 48
          %s953 = scalar_lea.vmem [#allocation4], %s952
        $region98: #{single_stream_block_forward.6} parent=93 // pred_fallthru
          _
      $region94: #{single_stream_block_forward.6} parent=5 // pred_fallthru
        _
    $region6: #{single_stream_block_forward.6} parent=1 // loop_footer
      %s15 = sadd.s32 1, %s11
    $region7: #{single_stream_block_forward.6} parent=1 // loop_footer_branch
      %10 = sbr.rel target = $region3
    $region8: #{single_stream_block_forward.6} parent=1 // loop_exit
      _

// kernel: single_stream_block_forward.8
$region0: #{single_stream_block_forward.8}
  #allocation0 [shape = 'u32[]', space=smem, size = 0x4, offset = 0x4, fixed_abs, tag = 'smem constant byte address 0x4 - core index']
  #allocation1 [shape = 'u32[144,128]{1,0:T(1,128)}', space=vmem, size = 0x12000, scoped, tag = 'internal scratch']
  #allocation2 [shape = 'f32[16,128]{1,0:T(8,128)}', space=vmem, size = 0x2000, scoped, tag = 'scratch operand']
  #allocation3 [shape = 'f32[16,1]{1,0:T(8,128)}', space=vmem, size = 0x2000, scoped, tag = 'scratch operand']
  #allocation4 [shape = 'f32[16,1]{1,0:T(8,128)}', space=vmem, size = 0x2000, scoped, tag = 'scratch operand']
  #allocation5 [shape = 'f32[16,128]{1,0:T(8,128)}', space=vmem, size = 0x2000, scoped, tag = 'scratch operand']
  %s0 = inlined_call_operand.vmem [shape: f32[2,16,768], index: 0, kind: input, shape index: {}, may-alias: {0,1,2}]
  %s1 = inlined_call_operand.vmem [shape: f32[2,16,768], index: 1, kind: input, shape index: {}, may-alias: {0,1,2}]
  %s2 = inlined_call_operand.vmem [shape: f32[2,16,768], index: 2, kind: input, shape index: {}, may-alias: {0,1,2}]
  %s3 = inlined_call_operand.vmem [shape: f32[1,128], index: 3, kind: input, shape index: {}]
  %s4 = inlined_call_operand.vmem [shape: f32[1,128], index: 4, kind: input, shape index: {}]
  %s5 = inlined_call_operand.vmem [shape: f32[16,128], index: 5, kind: input, shape index: {}]
  %s6 = inlined_call_operand.vmem [shape: f32[16,128], index: 6, kind: input, shape index: {}]
  %s7 = inlined_call_operand.vmem [shape: f32[128,128], index: 7, kind: input, shape index: {}]
  %s8 = inlined_call_operand.vmem [shape: f32[2,16,256], index: 8, kind: output, shape index: {}]
  %s9 = sld [smem:[#allocation0]]
  $region221: #{single_stream_block_forward.8} parent=0
    _
  %s11 = ssub.s32 1, %s9
  %s12 = scalar_select 0, %s11, %s9
  $region1: #{single_stream_block_forward.8} parent=0
    #allocation6 [shape = 'u8[16384]{0}', space=vmem, size = 0x4000, scoped, tag = 'input window, operand 0']
    #allocation7 [shape = 'u8[16384]{0}', space=vmem, size = 0x4000, scoped, tag = 'input window, operand 1']
    #allocation8 [shape = 'u8[16384]{0}', space=vmem, size = 0x4000, scoped, tag = 'input window, operand 2']
    #allocation9 [shape = 'u8[16384]{0}', space=vmem, size = 0x4000, scoped, tag = 'output window, operand 0']
    loop: start=0, step=1, limit=6
    $region2: #{single_stream_block_forward.8} parent=1 // loop_pre_header
      _
    $region3: #{single_stream_block_forward.8} parent=1 // loop_header
      %s14 = sphi 0, %s18
      %p15 = scmp.ge.s32.totalorder %s14, 6
      %s21 = sphi 0, %s40
      %s22 = sphi 0, %s36
      %s23 = sphi 0, %s32
      %s24 = sphi 0, %s21
      %s25 = sphi 0, %s22
      %s26 = sphi 0, %s23
      %s27 = sphi 0, %s24
      %s28 = sphi 0, %s25
      %s29 = sphi 0, %s26
      %s45 = sphi 0, %s47
      %s48 = sphi 0, %s45
      %s49 = sphi 0, %s48
      %s65 = sphi 0, %s49
      %s77 = sphi 0, %s79
      %s80 = sphi 0, %s77
      %s81 = sphi 0, %s80
      %s97 = sphi 0, %s81
      %s109 = sphi 0, %s111
      %s112 = sphi 0, %s109
      %s113 = sphi 0, %s112
      %s129 = sphi 0, %s113
      %s133 = sphi 0, %s133
      %s135 = sphi 0, %s133
      %s136 = sphi 0, %s135
      %s150 = sphi 0, %s136
      %s154 = sphi 0, %s154
      %s156 = sphi 0, %s154
      %s157 = sphi 0, %s156
      %s171 = sphi 0, %s157
      %s175 = sphi 0, %s175
      %s177 = sphi 0, %s175
      %s178 = sphi 0, %s177
      %s192 = sphi 0, %s178
      %s196 = sphi 0, %s196
      %s198 = sphi 0, %s196
      %s199 = sphi 0, %s198
      %s213 = sphi 0, %s199
      %s217 = sphi 0, %s217
      %s219 = sphi 0, %s217
      %s220 = sphi 0, %s219
      %s234 = sphi 0, %s220
      %s242 = sphi 0, %s244
      %s245 = sphi 0, %s242
      %s246 = sphi 0, %s245
      %s262 = sphi 0, %s246
    $region4: #{single_stream_block_forward.8} parent=1 // loop_header_branch
      %17 = sbr.rel (%p15) target = $region8
    $region5: #{single_stream_block_forward.8} parent=1 // loop_body
      %s19 = ssub.s32 %s14, 1
      %s20 = ssub.s32 %s14, 2
      %s30 = sadd.s32 1, %s23
      %p31 = scmp.ge.s32.totalorder %s30, 1
      %s32 = scalar_select %p31, 0, %s30
      %s33 = sadd.s32 1, %s22
      %s34 = scalar_select %p31, %s33, %s22
      %p35 = scmp.ge.s32.totalorder %s34, 2
      %s36 = scalar_select %p35, 0, %s34
      %s37 = sadd.s32 1, %s21
      %s38 = scalar_select %p35, %s37, %s21
      %p39 = scmp.ge.s32.totalorder %s38, 2
      %s40 = scalar_select %p39, 0, %s38
      %s41 = ssub.s32 %s21, %s40
      %s42 = ssub.s32 %s22, %s36
      %s43 = sor.u32 %s41, %s42
      %p44 = scmp.eq.s32.totalorder %s43, 0
      %s46 = sadd.s32 %s45, 1
      %s47 = scalar_select %p44, %s45, %s46
      %p50 = pneg %p44
      %p51 = scmp.eq.s32.totalorder %s14, 3
      %p52 = por %p50, %p51
      %p53 = scmp.ne.s32.totalorder %s45, %s48
      %p54 = scmp.eq.s32.totalorder %s14, 0
      %p55 = por %p53, %p54
      %p56 = scmp.ne.s32.totalorder %s45, %s48
      %p57 = scmp.eq.s32.totalorder %s19, 3
      %p58 = por %p56, %p57
      %p59 = scmp.ne.s32.totalorder %s48, %s49
      %p60 = scmp.eq.s32.totalorder %s19, 0
      %p61 = por %p59, %p60
      %p62 = scmp.ne.s32.totalorder %s48, %s49
      %p63 = scmp.eq.s32.totalorder %s20, 3
      %p64 = por %p62, %p63
      %p66 = scmp.ne.s32.totalorder %s49, %s65
      %p67 = scmp.eq.s32.totalorder %s20, 0
      %p68 = por %p66, %p67
      %s69 = sadd.s32 %s22, 2
      %s70 = sadd.s32 %s36, 2
      %s71 = ssub.s32 %s21, %s40
      %s72 = ssub.s32 %s23, %s32
      %s73 = sor.u32 %s71, %s72
      %s74 = ssub.s32 %s69, %s70
      %s75 = sor.u32 %s73, %s74
      %p76 = scmp.eq.s32.totalorder %s75, 0
      %s78 = sadd.s32 %s77, 1
      %s79 = scalar_select %p76, %s77, %s78
      %p82 = pneg %p76
      %p83 = scmp.eq.s32.totalorder %s14, 3
      %p84 = por %p82, %p83
      %p85 = scmp.ne.s32.totalorder %s77, %s80
      %p86 = scmp.eq.s32.totalorder %s14, 0
      %p87 = por %p85, %p86
      %p88 = scmp.ne.s32.totalorder %s77, %s80
      %p89 = scmp.eq.s32.totalorder %s19, 3
      %p90 = por %p88, %p89
      %p91 = scmp.ne.s32.totalorder %s80, %s81
      %p92 = scmp.eq.s32.totalorder %s19, 0
      %p93 = por %p91, %p92
      %p94 = scmp.ne.s32.totalorder %s80, %s81
      %p95 = scmp.eq.s32.totalorder %s20, 3
      %p96 = por %p94, %p95
      %p98 = scmp.ne.s32.totalorder %s81, %s97
      %p99 = scmp.eq.s32.totalorder %s20, 0
      %p100 = por %p98, %p99
      %s101 = sadd.s32 %s22, 4
      %s102 = sadd.s32 %s36, 4
      %s103 = ssub.s32 %s21, %s40
      %s104 = ssub.s32 %s23, %s32
      %s105 = sor.u32 %s103, %s104
      %s106 = ssub.s32 %s101, %s102
      %s107 = sor.u32 %s105, %s106
      %p108 = scmp.eq.s32.totalorder %s107, 0
      %s110 = sadd.s32 %s109, 1
      %s111 = scalar_select %p108, %s109, %s110
      %p114 = pneg %p108
      %p115 = scmp.eq.s32.totalorder %s14, 3
      %p116 = por %p114, %p115
      %p117 = scmp.ne.s32.totalorder %s109, %s112
      %p118 = scmp.eq.s32.totalorder %s14, 0
      %p119 = por %p117, %p118
      %p120 = scmp.ne.s32.totalorder %s109, %s112
      %p121 = scmp.eq.s32.totalorder %s19, 3
      %p122 = por %p120, %p121
      %p123 = scmp.ne.s32.totalorder %s112, %s113
      %p124 = scmp.eq.s32.totalorder %s19, 0
      %p125 = por %p123, %p124
      %p126 = scmp.ne.s32.totalorder %s112, %s113
      %p127 = scmp.eq.s32.totalorder %s20, 3
      %p128 = por %p126, %p127
      %p130 = scmp.ne.s32.totalorder %s113, %s129
      %p131 = scmp.eq.s32.totalorder %s20, 0
      %p132 = por %p130, %p131
      %s134 = sadd.s32 %s133, 1
      %p137 = scmp.eq.s32.totalorder %s14, 3
      %p138 = scmp.ne.s32.totalorder %s133, %s135
      %p139 = scmp.eq.s32.totalorder %s14, 0
      %p140 = por %p138, %p139
      %p141 = scmp.ne.s32.totalorder %s133, %s135
      %p142 = scmp.eq.s32.totalorder %s19, 3
      %p143 = por %p141, %p142
      %p144 = scmp.ne.s32.totalorder %s135, %s136
      %p145 = scmp.eq.s32.totalorder %s19, 0
      %p146 = por %p144, %p145
      %p147 = scmp.ne.s32.totalorder %s135, %s136
      %p148 = scmp.eq.s32.totalorder %s20, 3
      %p149 = por %p147, %p148
      %p151 = scmp.ne.s32.totalorder %s136, %s150
      %p152 = scmp.eq.s32.totalorder %s20, 0
      %p153 = por %p151, %p152
      %s155 = sadd.s32 %s154, 1
      %p158 = scmp.eq.s32.totalorder %s14, 3
      %p159 = scmp.ne.s32.totalorder %s154, %s156
      %p160 = scmp.eq.s32.totalorder %s14, 0
      %p161 = por %p159, %p160
      %p162 = scmp.ne.s32.totalorder %s154, %s156
      %p163 = scmp.eq.s32.totalorder %s19, 3
      %p164 = por %p162, %p163
      %p165 = scmp.ne.s32.totalorder %s156, %s157
      %p166 = scmp.eq.s32.totalorder %s19, 0
      %p167 = por %p165, %p166
      %p168 = scmp.ne.s32.totalorder %s156, %s157
      %p169 = scmp.eq.s32.totalorder %s20, 3
      %p170 = por %p168, %p169
      %p172 = scmp.ne.s32.totalorder %s157, %s171
      %p173 = scmp.eq.s32.totalorder %s20, 0
      %p174 = por %p172, %p173
      %s176 = sadd.s32 %s175, 1
      %p179 = scmp.eq.s32.totalorder %s14, 3
      %p180 = scmp.ne.s32.totalorder %s175, %s177
      %p181 = scmp.eq.s32.totalorder %s14, 0
      %p182 = por %p180, %p181
      %p183 = scmp.ne.s32.totalorder %s175, %s177
      %p184 = scmp.eq.s32.totalorder %s19, 3
      %p185 = por %p183, %p184
      %p186 = scmp.ne.s32.totalorder %s177, %s178
      %p187 = scmp.eq.s32.totalorder %s19, 0
      %p188 = por %p186, %p187
      %p189 = scmp.ne.s32.totalorder %s177, %s178
      %p190 = scmp.eq.s32.totalorder %s20, 3
      %p191 = por %p189, %p190
      %p193 = scmp.ne.s32.totalorder %s178, %s192
      %p194 = scmp.eq.s32.totalorder %s20, 0
      %p195 = por %p193, %p194
      %s197 = sadd.s32 %s196, 1
      %p200 = scmp.eq.s32.totalorder %s14, 3
      %p201 = scmp.ne.s32.totalorder %s196, %s198
      %p202 = scmp.eq.s32.totalorder %s14, 0
      %p203 = por %p201, %p202
      %p204 = scmp.ne.s32.totalorder %s196, %s198
      %p205 = scmp.eq.s32.totalorder %s19, 3
      %p206 = por %p204, %p205
      %p207 = scmp.ne.s32.totalorder %s198, %s199
      %p208 = scmp.eq.s32.totalorder %s19, 0
      %p209 = por %p207, %p208
      %p210 = scmp.ne.s32.totalorder %s198, %s199
      %p211 = scmp.eq.s32.totalorder %s20, 3
      %p212 = por %p210, %p211
      %p214 = scmp.ne.s32.totalorder %s199, %s213
      %p215 = scmp.eq.s32.totalorder %s20, 0
      %p216 = por %p214, %p215
      %s218 = sadd.s32 %s217, 1
      %p221 = scmp.eq.s32.totalorder %s14, 3
      %p222 = scmp.ne.s32.totalorder %s217, %s219
      %p223 = scmp.eq.s32.totalorder %s14, 0
      %p224 = por %p222, %p223
      %p225 = scmp.ne.s32.totalorder %s217, %s219
      %p226 = scmp.eq.s32.totalorder %s19, 3
      %p227 = por %p225, %p226
      %p228 = scmp.ne.s32.totalorder %s219, %s220
      %p229 = scmp.eq.s32.totalorder %s19, 0
      %p230 = por %p228, %p229
      %p231 = scmp.ne.s32.totalorder %s219, %s220
      %p232 = scmp.eq.s32.totalorder %s20, 3
      %p233 = por %p231, %p232
      %p235 = scmp.ne.s32.totalorder %s220, %s234
      %p236 = scmp.eq.s32.totalorder %s20, 0
      %p237 = por %p235, %p236
      %s238 = ssub.s32 %s21, %s40
      %s239 = ssub.s32 %s22, %s36
      %s240 = sor.u32 %s238, %s239
      %p241 = scmp.eq.s32.totalorder %s240, 0
      %s243 = sadd.s32 %s242, 1
      %s244 = scalar_select %p241, %s242, %s243
      %p247 = pneg %p241
      %p248 = scmp.eq.s32.totalorder %s14, 3
      %p249 = por %p247, %p248
      %p250 = scmp.ne.s32.totalorder %s242, %s245
      %p251 = scmp.eq.s32.totalorder %s14, 0
      %p252 = por %p250, %p251
      %p253 = scmp.ne.s32.totalorder %s242, %s245
      %p254 = scmp.eq.s32.totalorder %s19, 3
      %p255 = por %p253, %p254
      %p256 = scmp.ne.s32.totalorder %s245, %s246
      %p257 = scmp.eq.s32.totalorder %s19, 0
      %p258 = por %p256, %p257
      %p259 = scmp.ne.s32.totalorder %s245, %s246
      %p260 = scmp.eq.s32.totalorder %s20, 3
      %p261 = por %p259, %p260
      %p263 = scmp.ne.s32.totalorder %s246, %s262
      %p264 = scmp.eq.s32.totalorder %s20, 0
      %p265 = por %p263, %p264
      %p266 = scmp.le.s32.totalorder 1, %s14
      %p267 = scmp.lt.s32.totalorder %s14, 5
      %p268 = pnand %p266, %p267
      %p269 = pneg %p268
      // Predicated region
      $region9: #{single_stream_block_forward.8} parent=5 // pred_check
        _
      $region10: #{single_stream_block_forward.8} parent=5 // pred_check_branch
        %271 = sbr.rel (%p268) target = $region12
      $region11: #{single_stream_block_forward.8} parent=5 // pred_region
        %s272 = ssub.s32 %s14, 1
        // Predicated region
        $region13: #{single_stream_block_forward.8} parent=11 // pred_check
          %p273 = pneg %p146
        $region14: #{single_stream_block_forward.8} parent=11 // pred_check_branch
          %275 = sbr.rel (%p273) target = $region16
        $region15: #{single_stream_block_forward.8} parent=11 // pred_region
          _
        $region16: #{single_stream_block_forward.8} parent=11 // pred_fallthru
          _
        // Predicated region
        $region17: #{single_stream_block_forward.8} parent=11 // pred_check
          %p276 = pneg %p167
        $region18: #{single_stream_block_forward.8} parent=11 // pred_check_branch
          %278 = sbr.rel (%p276) target = $region20
        $region19: #{single_stream_block_forward.8} parent=11 // pred_region
          _
        $region20: #{single_stream_block_forward.8} parent=11 // pred_fallthru
          _
        // Predicated region
        $region21: #{single_stream_block_forward.8} parent=11 // pred_check
          %p279 = pneg %p188
        $region22: #{single_stream_block_forward.8} parent=11 // pred_check_branch
          %281 = sbr.rel (%p279) target = $region24
        $region23: #{single_stream_block_forward.8} parent=11 // pred_region
          _
        $region24: #{single_stream_block_forward.8} parent=11 // pred_fallthru
          _
        // Predicated region
        $region25: #{single_stream_block_forward.8} parent=11 // pred_check
          %p282 = pneg %p209
        $region26: #{single_stream_block_forward.8} parent=11 // pred_check_branch
          %284 = sbr.rel (%p282) target = $region28
        $region27: #{single_stream_block_forward.8} parent=11 // pred_region
          _
        $region28: #{single_stream_block_forward.8} parent=11 // pred_fallthru
          _
        // Predicated region
        $region29: #{single_stream_block_forward.8} parent=11 // pred_check
          %p285 = pneg %p230
        $region30: #{single_stream_block_forward.8} parent=11 // pred_check_branch
          %287 = sbr.rel (%p285) target = $region32
        $region31: #{single_stream_block_forward.8} parent=11 // pred_region
          _
        $region32: #{single_stream_block_forward.8} parent=11 // pred_fallthru
          _
      $region12: #{single_stream_block_forward.8} parent=5 // pred_fallthru
        _
      %p288 = scmp.lt.s32.totalorder %s14, 4
      // Predicated region
      $region33: #{single_stream_block_forward.8} parent=5 // pred_check
        %p289 = pneg %p288
      $region34: #{single_stream_block_forward.8} parent=5 // pred_check_branch
        %291 = sbr.rel (%p289) target = $region36
      $region35: #{single_stream_block_forward.8} parent=5 // pred_region
        // Predicated region
        $region37: #{single_stream_block_forward.8} parent=35 // pred_check
          %p292 = pneg %p55
        $region38: #{single_stream_block_forward.8} parent=35 // pred_check_branch
          %294 = sbr.rel (%p292) target = $region40
        $region39: #{single_stream_block_forward.8} parent=35 // pred_region
          %s295 = sand.u32 %s45, 1
          %s296 = sand.u32 %s45, 1
          %s297 = smul.addr %s296, 16
          %s298 = scalar_lea.vmem [#allocation6], %s297
          %s299 = smul.addr %s21, 12
          %s300 = sadd.s32 %s22, %s299
          %s301 = smul.addr %s300, 8
          %s302 = scalar_lea.vmem %s0, %s301
          // Predicated region
          $region41: #{single_stream_block_forward.8} parent=39 // pred_check
            _
          $region42: #{single_stream_block_forward.8} parent=39 // pred_check_branch
            %304 = sbr.rel (0) target = $region44
          $region43: #{single_stream_block_forward.8} parent=39 // pred_region
            // Predicated region
            $region45: #{single_stream_block_forward.8} parent=43 // pred_check
              _
            $region46: #{single_stream_block_forward.8} parent=43 // pred_check_branch
              %306 = sbr.rel (0) target = $region48
            $region47: #{single_stream_block_forward.8} parent=43 // pred_region
              // Predicated region
              $region60: #{single_stream_block_forward.8} parent=47 // pred_check
                _
              $region61: #{single_stream_block_forward.8} parent=47 // pred_check_branch
                %323 = sbr.rel (0) target = $region63
              $region62: #{single_stream_block_forward.8} parent=47 // pred_region
                loop: start=0, step=1, limit=1
                $region64: #{single_stream_block_forward.8} parent=62 // loop_pre_header
                  _
                $region65: #{single_stream_block_forward.8} parent=62 // loop_header
                  %s325 = sphi 0, %s329
                  %p326 = scmp.ge.s32.totalorder %s325, 1
                  %s330 = sphi %s302, %s302
                  %s331 = sphi %s298, %s298
                $region66: #{single_stream_block_forward.8} parent=62 // loop_header_branch
                  %328 = sbr.rel (%p326) target = $region70
                $region67: #{single_stream_block_forward.8} parent=62 // loop_body
                  %v332 = vld [vmem:[%s330] sm:$0xff]
                  %333 = vst [vmem:[%s331] sm:$0xff] %v332
                  %v334 = vld [vmem:[%s330 + $0x30] sm:$0xff]
                  %335 = vst [vmem:[%s331 + $0x8] sm:$0xff] %v334
                $region68: #{single_stream_block_forward.8} parent=62 // loop_footer
                  %s329 = sadd.s32 1, %s325
                $region69: #{single_stream_block_forward.8} parent=62 // loop_footer_branch
                  %324 = sbr.rel target = $region65
                $region70: #{single_stream_block_forward.8} parent=62 // loop_exit
                  _
              $region63: #{single_stream_block_forward.8} parent=47 // pred_fallthru
                _
              // Predicated region
              $region71: #{single_stream_block_forward.8} parent=47 // pred_check
                _
              $region72: #{single_stream_block_forward.8} parent=47 // pred_check_branch
                %337 = sbr.rel target = $region74
              $region73: #{single_stream_block_forward.8} parent=47 // pred_region
                _
              $region74: #{single_stream_block_forward.8} parent=47 // pred_fallthru
                _
            $region48: #{single_stream_block_forward.8} parent=43 // pred_fallthru
              _
            // Predicated region
            $region49: #{single_stream_block_forward.8} parent=43 // pred_check
              _
            $region50: #{single_stream_block_forward.8} parent=43 // pred_check_branch
              %308 = sbr.rel target = $region52
            $region51: #{single_stream_block_forward.8} parent=43 // pred_region
              loop: start=0, step=1, limit=1
              $region53: #{single_stream_block_forward.8} parent=51 // loop_pre_header
                _
              $region54: #{single_stream_block_forward.8} parent=51 // loop_header
                %s311 = sphi 0, %s315
                %p312 = scmp.ge.s32.totalorder %s311, 1
                %s316 = sphi %s302, %s302
                %s317 = sphi %s298, %s298
              $region55: #{single_stream_block_forward.8} parent=51 // loop_header_branch
                %314 = sbr.rel (%p312) target = $region59
              $region56: #{single_stream_block_forward.8} parent=51 // loop_body
                %v318 = vld [vmem:[%s316] sm:$0xff]
                %319 = vst [vmem:[%s317] sm:$0xff] %v318
                %v320 = vld [vmem:[%s316 + $0x30] sm:$0xff]
                %321 = vst [vmem:[%s317 + $0x8] sm:$0xff] %v320
              $region57: #{single_stream_block_forward.8} parent=51 // loop_footer
                %s315 = sadd.s32 1, %s311
              $region58: #{single_stream_block_forward.8} parent=51 // loop_footer_branch
                %310 = sbr.rel target = $region54
              $region59: #{single_stream_block_forward.8} parent=51 // loop_exit
                _
            $region52: #{single_stream_block_forward.8} parent=43 // pred_fallthru
              _
          $region44: #{single_stream_block_forward.8} parent=39 // pred_fallthru
            _
          %338 = vnop
        $region40: #{single_stream_block_forward.8} parent=35 // pred_fallthru
          _
        // Predicated region
        $region75: #{single_stream_block_forward.8} parent=35 // pred_check
          %p339 = pneg %p87
        $region76: #{single_stream_block_forward.8} parent=35 // pred_check_branch
          %341 = sbr.rel (%p339) target = $region78
        $region77: #{single_stream_block_forward.8} parent=35 // pred_region
          %s342 = sand.u32 %s77, 1
          %s343 = sand.u32 %s77, 1
          %s344 = smul.addr %s343, 16
          %s345 = scalar_lea.vmem [#allocation7], %s344
          %s346 = sadd.s32 %s22, 2
          %s347 = smul.u32 2, %s23
          %s348 = smul.addr %s347, 6
          %s349 = sadd.s32 %s346, %s348
          %s350 = smul.addr %s21, 12
          %s351 = sadd.s32 %s349, %s350
          %s352 = smul.addr %s351, 8
          %s353 = scalar_lea.vmem %s1, %s352
          // Predicated region
          $region79: #{single_stream_block_forward.8} parent=77 // pred_check
            _
          $region80: #{single_stream_block_forward.8} parent=77 // pred_check_branch
            %355 = sbr.rel (0) target = $region82
          $region81: #{single_stream_block_forward.8} parent=77 // pred_region
            // Predicated region
            $region83: #{single_stream_block_forward.8} parent=81 // pred_check
              _
            $region84: #{single_stream_block_forward.8} parent=81 // pred_check_branch
              %357 = sbr.rel (0) target = $region86
            $region85: #{single_stream_block_forward.8} parent=81 // pred_region
              // Predicated region
              $region98: #{single_stream_block_forward.8} parent=85 // pred_check
                _
              $region99: #{single_stream_block_forward.8} parent=85 // pred_check_branch
                %374 = sbr.rel (0) target = $region101
              $region100: #{single_stream_block_forward.8} parent=85 // pred_region
                loop: start=0, step=1, limit=1
                $region102: #{single_stream_block_forward.8} parent=100 // loop_pre_header
                  _
                $region103: #{single_stream_block_forward.8} parent=100 // loop_header
                  %s376 = sphi 0, %s380
                  %p377 = scmp.ge.s32.totalorder %s376, 1
                  %s381 = sphi %s353, %s353
                  %s382 = sphi %s345, %s345
                $region104: #{single_stream_block_forward.8} parent=100 // loop_header_branch
                  %379 = sbr.rel (%p377) target = $region108
                $region105: #{single_stream_block_forward.8} parent=100 // loop_body
                  %v383 = vld [vmem:[%s381] sm:$0xff]
                  %384 = vst [vmem:[%s382] sm:$0xff] %v383
                  %v385 = vld [vmem:[%s381 + $0x30] sm:$0xff]
                  %386 = vst [vmem:[%s382 + $0x8] sm:$0xff] %v385
                $region106: #{single_stream_block_forward.8} parent=100 // loop_footer
                  %s380 = sadd.s32 1, %s376
                $region107: #{single_stream_block_forward.8} parent=100 // loop_footer_branch
                  %375 = sbr.rel target = $region103
                $region108: #{single_stream_block_forward.8} parent=100 // loop_exit
                  _
              $region101: #{single_stream_block_forward.8} parent=85 // pred_fallthru
                _
              // Predicated region
              $region109: #{single_stream_block_forward.8} parent=85 // pred_check
                _
              $region110: #{single_stream_block_forward.8} parent=85 // pred_check_branch
                %388 = sbr.rel target = $region112
              $region111: #{single_stream_block_forward.8} parent=85 // pred_region
                _
              $region112: #{single_stream_block_forward.8} parent=85 // pred_fallthru
                _
            $region86: #{single_stream_block_forward.8} parent=81 // pred_fallthru
              _
            // Predicated region
            $region87: #{single_stream_block_forward.8} parent=81 // pred_check
              _
            $region88: #{single_stream_block_forward.8} parent=81 // pred_check_branch
              %359 = sbr.rel target = $region90
            $region89: #{single_stream_block_forward.8} parent=81 // pred_region
              loop: start=0, step=1, limit=1
              $region91: #{single_stream_block_forward.8} parent=89 // loop_pre_header
                _
              $region92: #{single_stream_block_forward.8} parent=89 // loop_header
                %s362 = sphi 0, %s366
                %p363 = scmp.ge.s32.totalorder %s362, 1
                %s367 = sphi %s353, %s353
                %s368 = sphi %s345, %s345
              $region93: #{single_stream_block_forward.8} parent=89 // loop_header_branch
                %365 = sbr.rel (%p363) target = $region97
              $region94: #{single_stream_block_forward.8} parent=89 // loop_body
                %v369 = vld [vmem:[%s367] sm:$0xff]
                %370 = vst [vmem:[%s368] sm:$0xff] %v369
                %v371 = vld [vmem:[%s367 + $0x30] sm:$0xff]
                %372 = vst [vmem:[%s368 + $0x8] sm:$0xff] %v371
              $region95: #{single_stream_block_forward.8} parent=89 // loop_footer
                %s366 = sadd.s32 1, %s362
              $region96: #{single_stream_block_forward.8} parent=89 // loop_footer_branch
                %361 = sbr.rel target = $region92
              $region97: #{single_stream_block_forward.8} parent=89 // loop_exit
                _
            $region90: #{single_stream_block_forward.8} parent=81 // pred_fallthru
              _
          $region82: #{single_stream_block_forward.8} parent=77 // pred_fallthru
            _
          %389 = vnop
        $region78: #{single_stream_block_forward.8} parent=35 // pred_fallthru
          _
        // Predicated region
        $region113: #{single_stream_block_forward.8} parent=35 // pred_check
          %p390 = pneg %p119
        $region114: #{single_stream_block_forward.8} parent=35 // pred_check_branch
          %392 = sbr.rel (%p390) target = $region116
        $region115: #{single_stream_block_forward.8} parent=35 // pred_region
          %s393 = sand.u32 %s109, 1
          %s394 = sand.u32 %s109, 1
          %s395 = smul.addr %s394, 16
          %s396 = scalar_lea.vmem [#allocation8], %s395
          %s397 = sadd.s32 %s22, 4
          %s398 = smul.u32 2, %s23
          %s399 = smul.addr %s398, 6
          %s400 = sadd.s32 %s397, %s399
          %s401 = smul.addr %s21, 12
          %s402 = sadd.s32 %s400, %s401
          %s403 = smul.addr %s402, 8
          %s404 = scalar_lea.vmem %s2, %s403
          // Predicated region
          $region117: #{single_stream_block_forward.8} parent=115 // pred_check
            _
          $region118: #{single_stream_block_forward.8} parent=115 // pred_check_branch
            %406 = sbr.rel (0) target = $region120
          $region119: #{single_stream_block_forward.8} parent=115 // pred_region
            // Predicated region
            $region121: #{single_stream_block_forward.8} parent=119 // pred_check
              _
            $region122: #{single_stream_block_forward.8} parent=119 // pred_check_branch
              %408 = sbr.rel (0) target = $region124
            $region123: #{single_stream_block_forward.8} parent=119 // pred_region
              // Predicated region
              $region136: #{single_stream_block_forward.8} parent=123 // pred_check
                _
              $region137: #{single_stream_block_forward.8} parent=123 // pred_check_branch
                %425 = sbr.rel (0) target = $region139
              $region138: #{single_stream_block_forward.8} parent=123 // pred_region
                loop: start=0, step=1, limit=1
                $region140: #{single_stream_block_forward.8} parent=138 // loop_pre_header
                  _
                $region141: #{single_stream_block_forward.8} parent=138 // loop_header
                  %s427 = sphi 0, %s431
                  %p428 = scmp.ge.s32.totalorder %s427, 1
                  %s432 = sphi %s404, %s404
                  %s433 = sphi %s396, %s396
                $region142: #{single_stream_block_forward.8} parent=138 // loop_header_branch
                  %430 = sbr.rel (%p428) target = $region146
                $region143: #{single_stream_block_forward.8} parent=138 // loop_body
                  %v434 = vld [vmem:[%s432] sm:$0xff]
                  %435 = vst [vmem:[%s433] sm:$0xff] %v434
                  %v436 = vld [vmem:[%s432 + $0x30] sm:$0xff]
                  %437 = vst [vmem:[%s433 + $0x8] sm:$0xff] %v436
                $region144: #{single_stream_block_forward.8} parent=138 // loop_footer
                  %s431 = sadd.s32 1, %s427
                $region145: #{single_stream_block_forward.8} parent=138 // loop_footer_branch
                  %426 = sbr.rel target = $region141
                $region146: #{single_stream_block_forward.8} parent=138 // loop_exit
                  _
              $region139: #{single_stream_block_forward.8} parent=123 // pred_fallthru
                _
              // Predicated region
              $region147: #{single_stream_block_forward.8} parent=123 // pred_check
                _
              $region148: #{single_stream_block_forward.8} parent=123 // pred_check_branch
                %439 = sbr.rel target = $region150
              $region149: #{single_stream_block_forward.8} parent=123 // pred_region
                _
              $region150: #{single_stream_block_forward.8} parent=123 // pred_fallthru
                _
            $region124: #{single_stream_block_forward.8} parent=119 // pred_fallthru
              _
            // Predicated region
            $region125: #{single_stream_block_forward.8} parent=119 // pred_check
              _
            $region126: #{single_stream_block_forward.8} parent=119 // pred_check_branch
              %410 = sbr.rel target = $region128
            $region127: #{single_stream_block_forward.8} parent=119 // pred_region
              loop: start=0, step=1, limit=1
              $region129: #{single_stream_block_forward.8} parent=127 // loop_pre_header
                _
              $region130: #{single_stream_block_forward.8} parent=127 // loop_header
                %s413 = sphi 0, %s417
                %p414 = scmp.ge.s32.totalorder %s413, 1
                %s418 = sphi %s404, %s404
                %s419 = sphi %s396, %s396
              $region131: #{single_stream_block_forward.8} parent=127 // loop_header_branch
                %416 = sbr.rel (%p414) target = $region135
              $region132: #{single_stream_block_forward.8} parent=127 // loop_body
                %v420 = vld [vmem:[%s418] sm:$0xff]
                %421 = vst [vmem:[%s419] sm:$0xff] %v420
                %v422 = vld [vmem:[%s418 + $0x30] sm:$0xff]
                %423 = vst [vmem:[%s419 + $0x8] sm:$0xff] %v422
              $region133: #{single_stream_block_forward.8} parent=127 // loop_footer
                %s417 = sadd.s32 1, %s413
              $region134: #{single_stream_block_forward.8} parent=127 // loop_footer_branch
                %412 = sbr.rel target = $region130
              $region135: #{single_stream_block_forward.8} parent=127 // loop_exit
                _
            $region128: #{single_stream_block_forward.8} parent=119 // pred_fallthru
              _
          $region120: #{single_stream_block_forward.8} parent=115 // pred_fallthru
            _
          %440 = vnop
        $region116: #{single_stream_block_forward.8} parent=35 // pred_fallthru
          _
      $region36: #{single_stream_block_forward.8} parent=5 // pred_fallthru
        _
      %p441 = scmp.le.s32.totalorder 1, %s14
      %p442 = scmp.lt.s32.totalorder %s14, 5
      %p443 = pnand %p441, %p442
      %p444 = pneg %p443
      // Predicated region
      $region151: #{single_stream_block_forward.8} parent=5 // pred_check
        _
      $region152: #{single_stream_block_forward.8} parent=5 // pred_check_branch
        %446 = sbr.rel (%p443) target = $region154
      $region153: #{single_stream_block_forward.8} parent=5 // pred_region
        %s447 = ssub.s32 %s14, 1
        %s448 = sand.u32 %s48, 1
        %s449 = sand.u32 %s48, 1
        %s450 = smul.addr %s449, 16
        %s451 = scalar_lea.vmem [#allocation6], %s450
        // Predicated region
        $region155: #{single_stream_block_forward.8} parent=153 // pred_check
          %p452 = pneg %p61
        $region156: #{single_stream_block_forward.8} parent=153 // pred_check_branch
          %454 = sbr.rel (%p452) target = $region158
        $region157: #{single_stream_block_forward.8} parent=153 // pred_region
          _
        $region158: #{single_stream_block_forward.8} parent=153 // pred_fallthru
          _
        %s455 = sand.u32 %s80, 1
        %s456 = sand.u32 %s80, 1
        %s457 = smul.addr %s456, 16
        %s458 = scalar_lea.vmem [#allocation7], %s457
        // Predicated region
        $region159: #{single_stream_block_forward.8} parent=153 // pred_check
          %p459 = pneg %p93
        $region160: #{single_stream_block_forward.8} parent=153 // pred_check_branch
          %461 = sbr.rel (%p459) target = $region162
        $region161: #{single_stream_block_forward.8} parent=153 // pred_region
          _
        $region162: #{single_stream_block_forward.8} parent=153 // pred_fallthru
          _
        %s462 = sand.u32 %s112, 1
        %s463 = sand.u32 %s112, 1
        %s464 = smul.addr %s463, 16
        %s465 = scalar_lea.vmem [#allocation8], %s464
        // Predicated region
        $region163: #{single_stream_block_forward.8} parent=153 // pred_check
          %p466 = pneg %p125
        $region164: #{single_stream_block_forward.8} parent=153 // pred_check_branch
          %468 = sbr.rel (%p466) target = $region166
        $region165: #{single_stream_block_forward.8} parent=153 // pred_region
          _
        $region166: #{single_stream_block_forward.8} parent=153 // pred_fallthru
          _
        %s469 = sand.u32 %s48, 1
        %s470 = sand.u32 %s48, 1
        %s471 = smul.addr %s470, 16
        %s472 = scalar_lea.vmem [#allocation6], %s471
        %p473 = pneg %p61
        %p474 = pneg %p58
        %s475 = sand.u32 %s80, 1
        %s476 = sand.u32 %s80, 1
        %s477 = smul.addr %s476, 16
        %s478 = scalar_lea.vmem [#allocation7], %s477
        %p479 = pneg %p93
        %p480 = pneg %p90
        %s481 = sand.u32 %s112, 1
        %s482 = sand.u32 %s112, 1
        %s483 = smul.addr %s482, 16
        %s484 = scalar_lea.vmem [#allocation8], %s483
        %p485 = pneg %p125
        %p486 = pneg %p122
        %p487 = pneg %p146
        %p488 = pneg %p143
        %p489 = pneg %p167
        %p490 = pneg %p164
        %p491 = pneg %p188
        %p492 = pneg %p185
        %p493 = pneg %p209
        %p494 = pneg %p206
        %p495 = pneg %p230
        %p496 = pneg %p227
        %p497 = pneg %p258
        %p498 = pneg %p255
        %s499 = sand.u32 %s245, 1
        %s500 = sand.u32 %s245, 1
        %s501 = smul.addr %s500, 16
        %s502 = scalar_lea.vmem [#allocation9], %s501
        %s503 = sadd.s32 %s25, 2
        %s504 = smul.u32 2, %s26
        %s505 = sadd.s32 %s25, 4
        %s506 = smul.u32 2, %s26
        %p507 = scmp.eq.s32.totalorder %s26, 0
        // Predicated region
        $region167: #{single_stream_block_forward.8} parent=153 // pred_check
          %p508 = pneg %p507
        $region168: #{single_stream_block_forward.8} parent=153 // pred_check_branch
          %510 = sbr.rel (%p508) target = $region170
        $region169: #{single_stream_block_forward.8} parent=153 // pred_region
          %v511 = vld [vmem:[%s451] sm:$0xff]
          %v512 = vld [vmem:[%s451 + $0x8] sm:$0xff]
          %v513 = vld [vmem:[%s3] sm:$0x1]
          %v514 = vld [vmem:[%s5] sm:$0xff]
          %v515 = vld [vmem:[%s5 + $0x8] sm:$0xff]
          %v516 = vld [vmem:[%s6] sm:$0xff]
          %v517 = vld [vmem:[%s6 + $0x8] sm:$0xff]
          %v518 = vmul.f32 %v511, %v511
          %v519 = vmul.f32 %v512, %v512
          %520 = vadd.xlane.f32.xlu0 %v518
          %v521 = vpop.xlane.xlu0 %520
          %522 = vadd.xlane.f32.xlu0 %v519
          %v523 = vpop.xlane.xlu0 %522
          %v524 = vrcp.pop 128.0
          %v525 = vmul.f32 %v521, %v524
          %v526 = vmul.f32 %v523, %v524
          %v527 = vadd.f32 %v525, 1e-06
          %v528 = vadd.f32 %v526, 1e-06
          %v529 = vrsqrt.pop %v527
          %v530 = vrsqrt.pop %v528
          %v531 = vmul.f32 %v511, %v529
          %v532 = vmul.f32 %v512, %v530
          %v534 = vlaneseq
          %v535 = vshrl.u32 %v534, 7
          %v536 = vsub.s32 0, %v535
          %v537 = vrot.slane %v513, %v536
          %v539 = vmul.f32 %v531, %v537
          %v540 = vmul.f32 %v532, %v537
          %v541 = vld [vmem:[%s7] sm:$0xff]
          %v542 = vld [vmem:[%s7 + $0x8] sm:$0xff]
          %v543 = vld [vmem:[%s7 + $0x10] sm:$0xff]
          %v544 = vld [vmem:[%s7 + $0x18] sm:$0xff]
          %v545 = vld [vmem:[%s7 + $0x20] sm:$0xff]
          %v546 = vld [vmem:[%s7 + $0x28] sm:$0xff]
          %v547 = vld [vmem:[%s7 + $0x30] sm:$0xff]
          %v548 = vld [vmem:[%s7 + $0x38] sm:$0xff]
          %v549 = vld [vmem:[%s7 + $0x40] sm:$0xff]
          %v550 = vld [vmem:[%s7 + $0x48] sm:$0xff]
          %v551 = vld [vmem:[%s7 + $0x50] sm:$0xff]
          %v552 = vld [vmem:[%s7 + $0x58] sm:$0xff]
          %v553 = vld [vmem:[%s7 + $0x60] sm:$0xff]
          %v554 = vld [vmem:[%s7 + $0x68] sm:$0xff]
          %v555 = vld [vmem:[%s7 + $0x70] sm:$0xff]
          %v556 = vld [vmem:[%s7 + $0x78] sm:$0xff]
          %557 = vmatprep.subr.mxu0 0.0
          %558 = vmatpush1.msra.mxu0 %v541
          %559 = vmatprep.subr.mxu0 0.0
          %560 = vmatpush1.msra.mxu0 %v542
          %561 = vmatprep.subr.mxu0 0.0
          %562 = vmatpush1.msra.mxu0 %v543
          %563 = vmatprep.subr.mxu0 0.0
          %564 = vmatpush1.msra.mxu0 %v544
          %565 = vmatprep.subr.mxu0 0.0
          %566 = vmatpush1.msra.mxu0 %v545
          %567 = vmatprep.subr.mxu0 0.0
          %568 = vmatpush1.msra.mxu0 %v546
          %569 = vmatprep.subr.mxu0 0.0
          %570 = vmatpush1.msra.mxu0 %v547
          %571 = vmatprep.subr.mxu0 0.0
          %572 = vmatpush1.msra.mxu0 %v548
          %573 = vmatprep.subr.mxu0 0.0
          %574 = vmatpush1.msra.mxu0 %v549
          %575 = vmatprep.subr.mxu0 0.0
          %576 = vmatpush1.msra.mxu0 %v550
          %577 = vmatprep.subr.mxu0 0.0
          %578 = vmatpush1.msra.mxu0 %v551
          %579 = vmatprep.subr.mxu0 0.0
          %580 = vmatpush1.msra.mxu0 %v552
          %581 = vmatprep.subr.mxu0 0.0
          %582 = vmatpush1.msra.mxu0 %v553
          %583 = vmatprep.subr.mxu0 0.0
          %584 = vmatpush1.msra.mxu0 %v554
          %585 = vmatprep.subr.mxu0 0.0
          %586 = vmatpush1.msra.mxu0 %v555
          %587 = vmatprep.subr.mxu0 0.0
          %588 = vmatpush1.msra.mxu0 %v556
          %589 = vmatprep.subr.mxu0 0.0
          %590 = vmatpush1.msra.mxu0 0.0
          %591 = vmatprep.subr.mxu0 0.0
          %592 = vmatpush1.msra.mxu0 0.0
          %593 = vmatprep.subr.mxu0 0.0
          %594 = vmatpush1.msra.mxu0 0.0
          %595 = vmatprep.subr.mxu0 0.0
          %596 = vmatpush1.msra.mxu0 0.0
          %597 = vmatprep.subr.mxu0 0.0
          %598 = vmatpush1.msra.mxu0 0.0
          %599 = vmatprep.subr.mxu0 0.0
          %600 = vmatpush1.msra.mxu0 0.0
          %601 = vmatprep.subr.mxu0 0.0
          %602 = vmatpush1.msra.mxu0 0.0
          %603 = vmatprep.subr.mxu0 0.0
          %604 = vmatpush1.msra.mxu0 0.0
          %605 = vmatprep.subr.mxu0 0.0
          %606 = vmatpush1.msra.mxu0 0.0
          %607 = vmatprep.subr.mxu0 0.0
          %608 = vmatpush1.msra.mxu0 0.0
          %609 = vmatprep.subr.mxu0 0.0
          %610 = vmatpush1.msra.mxu0 0.0
          %611 = vmatprep.subr.mxu0 0.0
          %612 = vmatpush1.msra.mxu0 0.0
          %613 = vmatprep.subr.mxu0 0.0
          %614 = vmatpush1.msra.mxu0 0.0
          %615 = vmatprep.subr.mxu0 0.0
          %616 = vmatpush1.msra.mxu0 0.0
          %617 = vmatprep.subr.mxu0 0.0
          %618 = vmatpush1.msra.mxu0 0.0
          %619 = vmatprep.subr.mxu0 0.0
          %620 = vmatpush1.msra.mxu0 0.0
          %621 = vmatprep.mubr.f32.mxu0 0.0
          %622 = vmatmul.mubr.f32.gmra.mrb[0].mxu0 %v539
          %v623 = vpop.f32.mrb[0].mxu0
          %v624 = vadd.f32 0.0, %v623
          %v625 = vpop.f32.mrb[0].mxu0
          %626 = vmatprep.mubr.f32.mxu0 0.0
          %627 = vmatmul.mubr.f32.gmra.mrb[0].mxu0 %v540
          %v628 = vpop.f32.mrb[0].mxu0
          %v629 = vadd.f32 0.0, %v628
          %v630 = vpop.f32.mrb[0].mxu0
          %631 = vdwg.mxu0
          %v632 = vmul.f32 %v514, %v539
          %v633 = vmul.f32 %v515, %v540
          %v634 = vmul.f32 %v516, %v624
          %v635 = vmul.f32 %v517, %v629
          %v636 = vadd.f32 %v632, %v634
          %v637 = vadd.f32 %v633, %v635
          %v638 = vmul.f32 %v636, 0.088388346
          %v639 = vmul.f32 %v637, 0.088388346
          %640 = vst [vmem:[#allocation2] sm:$0xff] %v638
          %641 = vst [vmem:[#allocation2 + $0x8] sm:$0xff] %v639
          %vm642 = vcmask 7168
          %643 = vst.msk [vmem:[#allocation3] sm:$0xff] %vm642, -inf
          %644 = vst.msk [vmem:[#allocation3 + $0x8] sm:$0xff] %vm642, -inf
          %645 = vst.msk [vmem:[#allocation4] sm:$0xff] %vm642, 0.0
          %646 = vst.msk [vmem:[#allocation4 + $0x8] sm:$0xff] %vm642, 0.0
          %647 = vst [vmem:[#allocation5] sm:$0xff] 0.0
          %648 = vst [vmem:[#allocation5 + $0x8] sm:$0xff] 0.0
        $region170: #{single_stream_block_forward.8} parent=153 // pred_fallthru
          _
        %s649 = smul.u32 %s26, 16
        %s650 = scalar_lea.vmem %s5, %s649
        %v651 = vld [vmem:[%s650] sm:$0xff]
        %v652 = vld [vmem:[%s650 + $0x8] sm:$0xff]
        %s653 = scalar_lea.vmem %s6, %s649
        %v654 = vld [vmem:[%s653] sm:$0xff]
        %v655 = vld [vmem:[%s653 + $0x8] sm:$0xff]
        %v656 = vld [vmem:[%s458] sm:$0xff]
        %v657 = vld [vmem:[%s458 + $0x8] sm:$0xff]
        %v658 = vld [vmem:[%s4] sm:$0x1]
        %v659 = vmul.f32 %v656, %v656
        %v660 = vmul.f32 %v657, %v657
        %661 = vadd.xlane.f32.xlu0 %v659
        %v662 = vpop.xlane.xlu0 %661
        %663 = vadd.xlane.f32.xlu0 %v660
        %v664 = vpop.xlane.xlu0 %663
        %v665 = vrcp.pop 128.0
        %v666 = vmul.f32 %v662, %v665
        %v667 = vmul.f32 %v664, %v665
        %v668 = vadd.f32 %v666, 1e-06
        %v669 = vadd.f32 %v667, 1e-06
        %v670 = vrsqrt.pop %v668
        %v671 = vrsqrt.pop %v669
        %v672 = vmul.f32 %v656, %v670
        %v673 = vmul.f32 %v657, %v671
        %v675 = vlaneseq
        %v676 = vshrl.u32 %v675, 7
        %v677 = vsub.s32 0, %v676
        %v678 = vrot.slane %v658, %v677
        %v680 = vmul.f32 %v672, %v678
        %v681 = vmul.f32 %v673, %v678
        %v682 = vld [vmem:[%s7] sm:$0xff]
        %v683 = vld [vmem:[%s7 + $0x8] sm:$0xff]
        %v684 = vld [vmem:[%s7 + $0x10] sm:$0xff]
        %v685 = vld [vmem:[%s7 + $0x18] sm:$0xff]
        %v686 = vld [vmem:[%s7 + $0x20] sm:$0xff]
        %v687 = vld [vmem:[%s7 + $0x28] sm:$0xff]
        %v688 = vld [vmem:[%s7 + $0x30] sm:$0xff]
        %v689 = vld [vmem:[%s7 + $0x38] sm:$0xff]
        %v690 = vld [vmem:[%s7 + $0x40] sm:$0xff]
        %v691 = vld [vmem:[%s7 + $0x48] sm:$0xff]
        %v692 = vld [vmem:[%s7 + $0x50] sm:$0xff]
        %v693 = vld [vmem:[%s7 + $0x58] sm:$0xff]
        %v694 = vld [vmem:[%s7 + $0x60] sm:$0xff]
        %v695 = vld [vmem:[%s7 + $0x68] sm:$0xff]
        %v696 = vld [vmem:[%s7 + $0x70] sm:$0xff]
        %v697 = vld [vmem:[%s7 + $0x78] sm:$0xff]
        %698 = vmatprep.subr.mxu0 0.0
        %699 = vmatpush1.msra.mxu0 %v682
        %700 = vmatprep.subr.mxu0 0.0
        %701 = vmatpush1.msra.mxu0 %v683
        %702 = vmatprep.subr.mxu0 0.0
        %703 = vmatpush1.msra.mxu0 %v684
        %704 = vmatprep.subr.mxu0 0.0
        %705 = vmatpush1.msra.mxu0 %v685
        %706 = vmatprep.subr.mxu0 0.0
        %707 = vmatpush1.msra.mxu0 %v686
        %708 = vmatprep.subr.mxu0 0.0
        %709 = vmatpush1.msra.mxu0 %v687
        %710 = vmatprep.subr.mxu0 0.0
        %711 = vmatpush1.msra.mxu0 %v688
        %712 = vmatprep.subr.mxu0 0.0
        %713 = vmatpush1.msra.mxu0 %v689
        %714 = vmatprep.subr.mxu0 0.0
        %715 = vmatpush1.msra.mxu0 %v690
        %716 = vmatprep.subr.mxu0 0.0
        %717 = vmatpush1.msra.mxu0 %v691
        %718 = vmatprep.subr.mxu0 0.0
        %719 = vmatpush1.msra.mxu0 %v692
        %720 = vmatprep.subr.mxu0 0.0
        %721 = vmatpush1.msra.mxu0 %v693
        %722 = vmatprep.subr.mxu0 0.0
        %723 = vmatpush1.msra.mxu0 %v694
        %724 = vmatprep.subr.mxu0 0.0
        %725 = vmatpush1.msra.mxu0 %v695
        %726 = vmatprep.subr.mxu0 0.0
        %727 = vmatpush1.msra.mxu0 %v696
        %728 = vmatprep.subr.mxu0 0.0
        %729 = vmatpush1.msra.mxu0 %v697
        %730 = vmatprep.subr.mxu0 0.0
        %731 = vmatpush1.msra.mxu0 0.0
        %732 = vmatprep.subr.mxu0 0.0
        %733 = vmatpush1.msra.mxu0 0.0
        %734 = vmatprep.subr.mxu0 0.0
        %735 = vmatpush1.msra.mxu0 0.0
        %736 = vmatprep.subr.mxu0 0.0
        %737 = vmatpush1.msra.mxu0 0.0
        %738 = vmatprep.subr.mxu0 0.0
        %739 = vmatpush1.msra.mxu0 0.0
        %740 = vmatprep.subr.mxu0 0.0
        %741 = vmatpush1.msra.mxu0 0.0
        %742 = vmatprep.subr.mxu0 0.0
        %743 = vmatpush1.msra.mxu0 0.0
        %744 = vmatprep.subr.mxu0 0.0
        %745 = vmatpush1.msra.mxu0 0.0
        %746 = vmatprep.subr.mxu0 0.0
        %747 = vmatpush1.msra.mxu0 0.0
        %748 = vmatprep.subr.mxu0 0.0
        %749 = vmatpush1.msra.mxu0 0.0
        %750 = vmatprep.subr.mxu0 0.0
        %751 = vmatpush1.msra.mxu0 0.0
        %752 = vmatprep.subr.mxu0 0.0
        %753 = vmatpush1.msra.mxu0 0.0
        %754 = vmatprep.subr.mxu0 0.0
        %755 = vmatpush1.msra.mxu0 0.0
        %756 = vmatprep.subr.mxu0 0.0
        %757 = vmatpush1.msra.mxu0 0.0
        %758 = vmatprep.subr.mxu0 0.0
        %759 = vmatpush1.msra.mxu0 0.0
        %760 = vmatprep.subr.mxu0 0.0
        %761 = vmatpush1.msra.mxu0 0.0
        %762 = vmatprep.mubr.f32.mxu0 0.0
        %763 = vmatmul.mubr.f32.gmra.mrb[0].mxu0 %v680
        %v764 = vpop.f32.mrb[0].mxu0
        %v765 = vadd.f32 0.0, %v764
        %v766 = vpop.f32.mrb[0].mxu0
        %767 = vmatprep.mubr.f32.mxu0 0.0
        %768 = vmatmul.mubr.f32.gmra.mrb[0].mxu0 %v681
        %v769 = vpop.f32.mrb[0].mxu0
        %v770 = vadd.f32 0.0, %v769
        %v771 = vpop.f32.mrb[0].mxu0
        %772 = vdwg.mxu0
        %v773 = vmul.f32 %v651, %v680
        %v774 = vmul.f32 %v652, %v681
        %v775 = vmul.f32 %v654, %v765
        %v776 = vmul.f32 %v655, %v770
        %v777 = vadd.f32 %v773, %v775
        %v778 = vadd.f32 %v774, %v776
        %v779 = vld [vmem:[#allocation2] sm:$0xff]
        %v780 = vld [vmem:[#allocation2 + $0x8] sm:$0xff]
        %781 = vmatprep.subr.mxu0 0.0
        %782 = vmatpush1.xpose.msra.mxu0 %v777
        %783 = vmatprep.subr.mxu0 0.0
        %784 = vmatpush1.xpose.msra.mxu0 %v778
        %785 = vmatprep.subr.mxu0 0.0
        %786 = vmatpush1.xpose.msra.mxu0 0.0
        %787 = vmatprep.subr.mxu0 0.0
        %788 = vmatpush1.xpose.msra.mxu0 0.0
        %789 = vmatprep.subr.mxu0 0.0
        %790 = vmatpush1.xpose.msra.mxu0 0.0
        %791 = vmatprep.subr.mxu0 0.0
        %792 = vmatpush1.xpose.msra.mxu0 0.0
        %793 = vmatprep.subr.mxu0 0.0
        %794 = vmatpush1.xpose.msra.mxu0 0.0
        %795 = vmatprep.subr.mxu0 0.0
        %796 = vmatpush1.xpose.msra.mxu0 0.0
        %797 = vmatprep.subr.mxu0 0.0
        %798 = vmatpush1.xpose.msra.mxu0 0.0
        %799 = vmatprep.subr.mxu0 0.0
        %800 = vmatpush1.xpose.msra.mxu0 0.0
        %801 = vmatprep.subr.mxu0 0.0
        %802 = vmatpush1.xpose.msra.mxu0 0.0
        %803 = vmatprep.subr.mxu0 0.0
        %804 = vmatpush1.xpose.msra.mxu0 0.0
        %805 = vmatprep.subr.mxu0 0.0
        %806 = vmatpush1.xpose.msra.mxu0 0.0
        %807 = vmatprep.subr.mxu0 0.0
        %808 = vmatpush1.xpose.msra.mxu0 0.0
        %809 = vmatprep.subr.mxu0 0.0
        %810 = vmatpush1.xpose.msra.mxu0 0.0
        %811 = vmatprep.subr.mxu0 0.0
        %812 = vmatpush1.xpose.msra.mxu0 0.0
        %813 = vmatprep.subr.mxu0 0.0
        %814 = vmatpush1.xpose.msra.mxu0 0.0
        %815 = vmatprep.subr.mxu0 0.0
        %816 = vmatpush1.xpose.msra.mxu0 0.0
        %817 = vmatprep.subr.mxu0 0.0
        %818 = vmatpush1.xpose.msra.mxu0 0.0
        %819 = vmatprep.subr.mxu0 0.0
        %820 = vmatpush1.xpose.msra.mxu0 0.0
        %821 = vmatprep.subr.mxu0 0.0
        %822 = vmatpush1.xpose.msra.mxu0 0.0
        %823 = vmatprep.subr.mxu0 0.0
        %824 = vmatpush1.xpose.msra.mxu0 0.0
        %825 = vmatprep.subr.mxu0 0.0
        %826 = vmatpush1.xpose.msra.mxu0 0.0
        %827 = vmatprep.subr.mxu0 0.0
        %828 = vmatpush1.xpose.msra.mxu0 0.0
        %829 = vmatprep.subr.mxu0 0.0
        %830 = vmatpush1.xpose.msra.mxu0 0.0
        %831 = vmatprep.subr.mxu0 0.0
        %832 = vmatpush1.xpose.msra.mxu0 0.0
        %833 = vmatprep.subr.mxu0 0.0
        %834 = vmatpush1.xpose.msra.mxu0 0.0
        %835 = vmatprep.subr.mxu0 0.0
        %836 = vmatpush1.xpose.msra.mxu0 0.0
        %837 = vmatprep.subr.mxu0 0.0
        %838 = vmatpush1.xpose.msra.mxu0 0.0
        %839 = vmatprep.subr.mxu0 0.0
        %840 = vmatpush1.xpose.msra.mxu0 0.0
        %841 = vmatprep.subr.mxu0 0.0
        %842 = vmatpush1.xpose.msra.mxu0 0.0
        %843 = vmatprep.subr.mxu0 0.0
        %844 = vmatpush1.xpose.msra.mxu0 0.0
        %845 = vmatprep.mubr.f32.mxu0 0.0
        %846 = vmatmul.mubr.f32.gmra.mrb[0].mxu0 %v779
        %v847 = vpop.f32.mrb[0].mxu0
        %v848 = vadd.f32 0.0, %v847
        %v849 = vpop.f32.mrb[0].mxu0
        %850 = vmatprep.mubr.f32.mxu0 0.0
        %851 = vmatmul.mubr.f32.gmra.mrb[0].mxu0 %v780
        %v852 = vpop.f32.mrb[0].mxu0
        %v853 = vadd.f32 0.0, %v852
        %v854 = vpop.f32.mrb[0].mxu0
        %855 = vdwg.mxu0
        %v856 = vld [vmem:[#allocation3] sm:$0xff]
        %v857 = vld [vmem:[#allocation3 + $0x8] sm:$0xff]
        %vm858 = vcmask 130048
        %v859 = vsel %vm858, %v848, -inf
        %860 = vmax.xlane.f32.xlu0 %v859
        %v861 = vpop.xlane.xlu0 %860
        %v862 = vsel %vm858, %v853, -inf
        %863 = vmax.xlane.f32.xlu0 %v862
        %v864 = vpop.xlane.xlu0 %863
        %v865 = vmax.f32 %v856, %v861
        %v866 = vmax.f32 %v857, %v864
        %v867 = vsub.f32 %v856, %v865
        %v868 = vsub.f32 %v857, %v866
        %v869 = vmul.f32 %v867, 1.442695
        %v870 = vpow.pop %v869
        %v871 = vmul.f32 %v868, 1.442695
        %v872 = vpow.pop %v871
        %874 = vset.pattern.permute.xlu0 0
        %875 = vperm.xlu0 %874, %v865
        %v876 = vpop.permute.xlu0 %875
        %879 = vset.pattern.permute.xlu0 0
        %880 = vperm.xlu0 %879, %v866
        %v881 = vpop.permute.xlu0 %880
        %v883 = vsub.f32 %v848, %v876
        %v884 = vsub.f32 %v853, %v881
        %v885 = vmul.f32 %v883, 1.442695
        %v886 = vpow.pop %v885
        %v887 = vmul.f32 %v884, 1.442695
        %v888 = vpow.pop %v887
        %v889 = vld [vmem:[#allocation4] sm:$0xff]
        %v890 = vld [vmem:[#allocation4 + $0x8] sm:$0xff]
        %v891 = vmul.f32 %v870, %v889
        %v892 = vmul.f32 %v872, %v890
        %v893 = vsel %vm858, %v886, 0.0
        %894 = vadd.xlane.f32.xlu0 %v893
        %v895 = vpop.xlane.xlu0 %894
        %v896 = vsel %vm858, %v888, 0.0
        %897 = vadd.xlane.f32.xlu0 %v896
        %v898 = vpop.xlane.xlu0 %897
        %v899 = vadd.f32 %v891, %v895
        %v900 = vadd.f32 %v892, %v898
        %vm901 = vcmask 7168
        %902 = vst.msk [vmem:[#allocation4] sm:$0xff] %vm901, %v899
        %903 = vst.msk [vmem:[#allocation4 + $0x8] sm:$0xff] %vm901, %v900
        %v904 = vld [vmem:[#allocation5] sm:$0xff]
        %v905 = vld [vmem:[#allocation5 + $0x8] sm:$0xff]
        %907 = vset.pattern.permute.xlu0 0
        %908 = vperm.xlu0 %907, %v870
        %v909 = vpop.permute.xlu0 %908
        %912 = vset.pattern.permute.xlu0 0
        %913 = vperm.xlu0 %912, %v872
        %v914 = vpop.permute.xlu0 %913
        %v916 = vmul.f32 %v909, %v904
        %v917 = vmul.f32 %v914, %v905
        %v918 = vld [vmem:[%s465] sm:$0xff]
        %v919 = vld [vmem:[%s465 + $0x8] sm:$0xff]
        %v921 = vsel %vm858, %v886, 0
        %v924 = vsel %vm858, %v888, 0
        %926 = vmatprep.subr.mxu0 0.0
        %927 = vmatpush1.msra.mxu0 %v918
        %928 = vmatprep.subr.mxu0 0.0
        %929 = vmatpush1.msra.mxu0 %v919
        %930 = vmatprep.subr.mxu0 0.0
        %931 = vmatpush1.msra.mxu0 0.0
        %932 = vmatprep.subr.mxu0 0.0
        %933 = vmatpush1.msra.mxu0 0.0
        %934 = vmatprep.subr.mxu0 0.0
        %935 = vmatpush1.msra.mxu0 0.0
        %936 = vmatprep.subr.mxu0 0.0
        %937 = vmatpush1.msra.mxu0 0.0
        %938 = vmatprep.subr.mxu0 0.0
        %939 = vmatpush1.msra.mxu0 0.0
        %940 = vmatprep.subr.mxu0 0.0
        %941 = vmatpush1.msra.mxu0 0.0
        %942 = vmatprep.subr.mxu0 0.0
        %943 = vmatpush1.msra.mxu0 0.0
        %944 = vmatprep.subr.mxu0 0.0
        %945 = vmatpush1.msra.mxu0 0.0
        %946 = vmatprep.subr.mxu0 0.0
        %947 = vmatpush1.msra.mxu0 0.0
        %948 = vmatprep.subr.mxu0 0.0
        %949 = vmatpush1.msra.mxu0 0.0
        %950 = vmatprep.subr.mxu0 0.0
        %951 = vmatpush1.msra.mxu0 0.0
        %952 = vmatprep.subr.mxu0 0.0
        %953 = vmatpush1.msra.mxu0 0.0
        %954 = vmatprep.subr.mxu0 0.0
        %955 = vmatpush1.msra.mxu0 0.0
        %956 = vmatprep.subr.mxu0 0.0
        %957 = vmatpush1.msra.mxu0 0.0
        %958 = vmatprep.subr.mxu0 0.0
        %959 = vmatpush1.msra.mxu0 0.0
        %960 = vmatprep.subr.mxu0 0.0
        %961 = vmatpush1.msra.mxu0 0.0
        %962 = vmatprep.subr.mxu0 0.0
        %963 = vmatpush1.msra.mxu0 0.0
        %964 = vmatprep.subr.mxu0 0.0
        %965 = vmatpush1.msra.mxu0 0.0
        %966 = vmatprep.subr.mxu0 0.0
        %967 = vmatpush1.msra.mxu0 0.0
        %968 = vmatprep.subr.mxu0 0.0
        %969 = vmatpush1.msra.mxu0 0.0
        %970 = vmatprep.subr.mxu0 0.0
        %971 = vmatpush1.msra.mxu0 0.0
        %972 = vmatprep.subr.mxu0 0.0
        %973 = vmatpush1.msra.mxu0 0.0
        %974 = vmatprep.subr.mxu0 0.0
        %975 = vmatpush1.msra.mxu0 0.0
        %976 = vmatprep.subr.mxu0 0.0
        %977 = vmatpush1.msra.mxu0 0.0
        %978 = vmatprep.subr.mxu0 0.0
        %979 = vmatpush1.msra.mxu0 0.0
        %980 = vmatprep.subr.mxu0 0.0
        %981 = vmatpush1.msra.mxu0 0.0
        %982 = vmatprep.subr.mxu0 0.0
        %983 = vmatpush1.msra.mxu0 0.0
        %984 = vmatprep.subr.mxu0 0.0
        %985 = vmatpush1.msra.mxu0 0.0
        %986 = vmatprep.subr.mxu0 0.0
        %987 = vmatpush1.msra.mxu0 0.0
        %988 = vmatprep.subr.mxu0 0.0
        %989 = vmatpush1.msra.mxu0 0.0
        %990 = vmatprep.mubr.f32.mxu0 0.0
        %991 = vmatmul.mubr.f32.gmra.mrb[0].mxu0 %v921
        %v992 = vpop.f32.mrb[0].mxu0
        %v993 = vadd.f32 0.0, %v992
        %v994 = vpop.f32.mrb[0].mxu0
        %995 = vmatprep.mubr.f32.mxu0 0.0
        %996 = vmatmul.mubr.f32.gmra.mrb[0].mxu0 %v924
        %v997 = vpop.f32.mrb[0].mxu0
        %v998 = vadd.f32 0.0, %v997
        %v999 = vpop.f32.mrb[0].mxu0
        %1000 = vdwg.mxu0
        %v1001 = vadd.f32 %v916, %v993
        %v1002 = vadd.f32 %v917, %v998
        %1003 = vst [vmem:[#allocation5] sm:$0xff] %v1001
        %1004 = vst [vmem:[#allocation5 + $0x8] sm:$0xff] %v1002
        %1005 = vst.msk [vmem:[#allocation3] sm:$0xff] %vm901, %v865
        %1006 = vst.msk [vmem:[#allocation3 + $0x8] sm:$0xff] %vm901, %v866
        // Predicated region
        $region171: #{single_stream_block_forward.8} parent=153 // pred_check
          %p1007 = pneg %p507
        $region172: #{single_stream_block_forward.8} parent=153 // pred_check_branch
          %1009 = sbr.rel (%p1007) target = $region174
        $region173: #{single_stream_block_forward.8} parent=153 // pred_region
          %v1010 = vld [vmem:[#allocation4] sm:$0xff]
          %v1011 = vld [vmem:[#allocation4 + $0x8] sm:$0xff]
          %v1012 = vrcp.pop %v1010
          %v1013 = vrcp.pop %v1011
          %v1014 = vld [vmem:[#allocation5] sm:$0xff]
          %v1015 = vld [vmem:[#allocation5 + $0x8] sm:$0xff]
          %1017 = vset.pattern.permute.xlu0 0
          %1018 = vperm.xlu0 %1017, %v1012
          %v1019 = vpop.permute.xlu0 %1018
          %1022 = vset.pattern.permute.xlu0 0
          %1023 = vperm.xlu0 %1022, %v1013
          %v1024 = vpop.permute.xlu0 %1023
          %v1026 = vmul.f32 %v1014, %v1019
          %v1027 = vmul.f32 %v1015, %v1024
          %1028 = vst [vmem:[%s502] sm:$0xff] %v1026
          %1029 = vst [vmem:[%s502 + $0x8] sm:$0xff] %v1027
        $region174: #{single_stream_block_forward.8} parent=153 // pred_fallthru
          _
        %s1030 = sand.u32 %s245, 1
        %s1031 = sand.u32 %s245, 1
        %s1032 = smul.addr %s1031, 16
        %s1033 = scalar_lea.vmem [#allocation9], %s1032
        // Predicated region
        $region175: #{single_stream_block_forward.8} parent=153 // pred_check
          %p1034 = pneg %p255
        $region176: #{single_stream_block_forward.8} parent=153 // pred_check_branch
          %1036 = sbr.rel (%p1034) target = $region178
        $region177: #{single_stream_block_forward.8} parent=153 // pred_region
          %s1037 = smul.addr %s24, 4
          %s1038 = sadd.s32 %s25, %s1037
          %s1039 = smul.addr %s1038, 8
          %s1040 = scalar_lea.vmem %s8, %s1039
          // Predicated region
          $region179: #{single_stream_block_forward.8} parent=177 // pred_check
            _
          $region180: #{single_stream_block_forward.8} parent=177 // pred_check_branch
            %1042 = sbr.rel (0) target = $region182
          $region181: #{single_stream_block_forward.8} parent=177 // pred_region
            // Predicated region
            $region183: #{single_stream_block_forward.8} parent=181 // pred_check
              _
            $region184: #{single_stream_block_forward.8} parent=181 // pred_check_branch
              %1044 = sbr.rel (0) target = $region186
            $region185: #{single_stream_block_forward.8} parent=181 // pred_region
              // Predicated region
              $region198: #{single_stream_block_forward.8} parent=185 // pred_check
                _
              $region199: #{single_stream_block_forward.8} parent=185 // pred_check_branch
                %1061 = sbr.rel (0) target = $region201
              $region200: #{single_stream_block_forward.8} parent=185 // pred_region
                loop: start=0, step=1, limit=1
                $region202: #{single_stream_block_forward.8} parent=200 // loop_pre_header
                  _
                $region203: #{single_stream_block_forward.8} parent=200 // loop_header
                  %s1063 = sphi 0, %s1067
                  %p1064 = scmp.ge.s32.totalorder %s1063, 1
                  %s1068 = sphi %s1033, %s1033
                  %s1069 = sphi %s1040, %s1040
                $region204: #{single_stream_block_forward.8} parent=200 // loop_header_branch
                  %1066 = sbr.rel (%p1064) target = $region208
                $region205: #{single_stream_block_forward.8} parent=200 // loop_body
                  %v1070 = vld [vmem:[%s1068] sm:$0xff]
                  %1071 = vst [vmem:[%s1069] sm:$0xff] %v1070
                  %v1072 = vld [vmem:[%s1068 + $0x8] sm:$0xff]
                  %1073 = vst [vmem:[%s1069 + $0x10] sm:$0xff] %v1072
                $region206: #{single_stream_block_forward.8} parent=200 // loop_footer
                  %s1067 = sadd.s32 1, %s1063
                $region207: #{single_stream_block_forward.8} parent=200 // loop_footer_branch
                  %1062 = sbr.rel target = $region203
                $region208: #{single_stream_block_forward.8} parent=200 // loop_exit
                  _
              $region201: #{single_stream_block_forward.8} parent=185 // pred_fallthru
                _
              // Predicated region
              $region209: #{single_stream_block_forward.8} parent=185 // pred_check
                _
              $region210: #{single_stream_block_forward.8} parent=185 // pred_check_branch
                %1075 = sbr.rel target = $region212
              $region211: #{single_stream_block_forward.8} parent=185 // pred_region
                _
              $region212: #{single_stream_block_forward.8} parent=185 // pred_fallthru
                _
            $region186: #{single_stream_block_forward.8} parent=181 // pred_fallthru
              _
            // Predicated region
            $region187: #{single_stream_block_forward.8} parent=181 // pred_check
              _
            $region188: #{single_stream_block_forward.8} parent=181 // pred_check_branch
              %1046 = sbr.rel target = $region190
            $region189: #{single_stream_block_forward.8} parent=181 // pred_region
              loop: start=0, step=1, limit=1
              $region191: #{single_stream_block_forward.8} parent=189 // loop_pre_header
                _
              $region192: #{single_stream_block_forward.8} parent=189 // loop_header
                %s1049 = sphi 0, %s1053
                %p1050 = scmp.ge.s32.totalorder %s1049, 1
                %s1054 = sphi %s1033, %s1033
                %s1055 = sphi %s1040, %s1040
              $region193: #{single_stream_block_forward.8} parent=189 // loop_header_branch
                %1052 = sbr.rel (%p1050) target = $region197
              $region194: #{single_stream_block_forward.8} parent=189 // loop_body
                %v1056 = vld [vmem:[%s1054] sm:$0xff]
                %1057 = vst [vmem:[%s1055] sm:$0xff] %v1056
                %v1058 = vld [vmem:[%s1054 + $0x8] sm:$0xff]
                %1059 = vst [vmem:[%s1055 + $0x10] sm:$0xff] %v1058
              $region195: #{single_stream_block_forward.8} parent=189 // loop_footer
                %s1053 = sadd.s32 1, %s1049
              $region196: #{single_stream_block_forward.8} parent=189 // loop_footer_branch
                %1048 = sbr.rel target = $region192
              $region197: #{single_stream_block_forward.8} parent=189 // loop_exit
                _
            $region190: #{single_stream_block_forward.8} parent=181 // pred_fallthru
              _
          $region182: #{single_stream_block_forward.8} parent=177 // pred_fallthru
            _
          %1076 = vnop
        $region178: #{single_stream_block_forward.8} parent=153 // pred_fallthru
          _
      $region154: #{single_stream_block_forward.8} parent=5 // pred_fallthru
        _
      %p1077 = scmp.le.s32.totalorder 2, %s14
      // Predicated region
      $region213: #{single_stream_block_forward.8} parent=5 // pred_check
        %p1078 = pneg %p1077
      $region214: #{single_stream_block_forward.8} parent=5 // pred_check_branch
        %1080 = sbr.rel (%p1078) target = $region216
      $region215: #{single_stream_block_forward.8} parent=5 // pred_region
        %s1081 = ssub.s32 %s14, 2
        // Predicated region
        $region217: #{single_stream_block_forward.8} parent=215 // pred_check
          %p1082 = pneg %p261
        $region218: #{single_stream_block_forward.8} parent=215 // pred_check_branch
          %1084 = sbr.rel (%p1082) target = $region220
        $region219: #{single_stream_block_forward.8} parent=215 // pred_region
          %s1085 = sand.u32 %s246, 1
          %s1086 = sand.u32 %s246, 1
          %s1087 = smul.addr %s1086, 16
          %s1088 = scalar_lea.vmem [#allocation9], %s1087
        $region220: #{single_stream_block_forward.8} parent=215 // pred_fallthru
          _
      $region216: #{single_stream_block_forward.8} parent=5 // pred_fallthru
        _
    $region6: #{single_stream_block_forward.8} parent=1 // loop_footer
      %s18 = sadd.s32 1, %s14
    $region7: #{single_stream_block_forward.8} parent=1 // loop_footer_branch
      %13 = sbr.rel target = $region3
    $region8: #{single_stream_block_forward.8} parent=1 // loop_exit
      _

// kernel: single_stream_block_forward.7
$region0: #{single_stream_block_forward.7}
  #allocation0 [shape = 'u32[]', space=smem, size = 0x4, offset = 0x4, fixed_abs, tag = 'smem constant byte address 0x4 - core index']
  #allocation1 [shape = 'u32[144,128]{1,0:T(1,128)}', space=vmem, size = 0x12000, scoped, tag = 'internal scratch']
  #allocation2 [shape = 'f32[16,256]{1,0:T(8,128)}', space=vmem, size = 0x4000, scoped, tag = 'scratch operand']
  %s0 = inlined_call_operand.vmem [shape: f32[2,16,256], index: 0, kind: input, shape index: {}]
  %s1 = inlined_call_operand.vmem [shape: f32[2,1,256], index: 1, kind: input, shape index: {}]
  %s2 = inlined_call_operand.vmem [shape: f32[2,1,256], index: 2, kind: input, shape index: {}]
  %s3 = inlined_call_operand.vmem [shape: f32[256,1024], index: 3, kind: input, shape index: {}]
  %s4 = inlined_call_operand.vmem [shape: f32[1,1024], index: 4, kind: input, shape index: {}]
  %s5 = inlined_call_operand.vmem [shape: f32[2,16,1024], index: 5, kind: output, shape index: {}]
  %s6 = sld [smem:[#allocation0]]
  $region99: #{single_stream_block_forward.7} parent=0
    _
  %s8 = ssub.s32 1, %s6
  %s9 = scalar_select 0, %s8, %s6
  $region1: #{single_stream_block_forward.7} parent=0
    #allocation3 [shape = 'u8[1048576]{0}', space=vmem, size = 0x100000, scoped, tag = 'input window, operand 3']
    #allocation4 [shape = 'u8[65536]{0}', space=vmem, size = 0x10000, scoped, tag = 'output window, operand 0']
    loop: start=0, step=1, limit=6
    $region2: #{single_stream_block_forward.7} parent=1 // loop_pre_header
      _
    $region3: #{single_stream_block_forward.7} parent=1 // loop_header
      %s11 = sphi 0, %s15
      %p12 = scmp.ge.s32.totalorder %s11, 6
      %s18 = sphi 0, %s37
      %s19 = sphi 0, %s33
      %s20 = sphi 0, %s29
      %s21 = sphi 0, %s18
      %s22 = sphi 0, %s19
      %s23 = sphi 0, %s20
      %s24 = sphi 0, %s21
      %s25 = sphi 0, %s22
      %s26 = sphi 0, %s23
      %s42 = sphi 0, %s44
      %s45 = sphi 0, %s42
      %s46 = sphi 0, %s45
      %s62 = sphi 0, %s46
      %s68 = sphi 0, %s70
      %s71 = sphi 0, %s68
      %s72 = sphi 0, %s71
      %s88 = sphi 0, %s72
      %s94 = sphi 0, %s96
      %s97 = sphi 0, %s94
      %s98 = sphi 0, %s97
      %s114 = sphi 0, %s98
      %s120 = sphi 0, %s122
      %s123 = sphi 0, %s120
      %s124 = sphi 0, %s123
      %s140 = sphi 0, %s124
      %s146 = sphi 0, %s148
      %s149 = sphi 0, %s146
      %s150 = sphi 0, %s149
      %s166 = sphi 0, %s150
      %s176 = sphi 0, %s178
      %s179 = sphi 0, %s176
      %s180 = sphi 0, %s179
      %s196 = sphi 0, %s180
    $region4: #{single_stream_block_forward.7} parent=1 // loop_header_branch
      %14 = sbr.rel (%p12) target = $region8
    $region5: #{single_stream_block_forward.7} parent=1 // loop_body
      %s16 = ssub.s32 %s11, 1
      %s17 = ssub.s32 %s11, 2
      %s27 = sadd.s32 1, %s20
      %p28 = scmp.ge.s32.totalorder %s27, 2
      %s29 = scalar_select %p28, 0, %s27
      %s30 = sadd.s32 1, %s19
      %s31 = scalar_select %p28, %s30, %s19
      %p32 = scmp.ge.s32.totalorder %s31, 1
      %s33 = scalar_select %p32, 0, %s31
      %s34 = sadd.s32 1, %s18
      %s35 = scalar_select %p32, %s34, %s18
      %p36 = scmp.ge.s32.totalorder %s35, 2
      %s37 = scalar_select %p36, 0, %s35
      %s38 = ssub.s32 %s18, %s37
      %s39 = ssub.s32 %s19, %s33
      %s40 = sor.u32 %s38, %s39
      %p41 = scmp.eq.s32.totalorder %s40, 0
      %s43 = sadd.s32 %s42, 1
      %s44 = scalar_select %p41, %s42, %s43
      %p47 = pneg %p41
      %p48 = scmp.eq.s32.totalorder %s11, 3
      %p49 = por %p47, %p48
      %p50 = scmp.ne.s32.totalorder %s42, %s45
      %p51 = scmp.eq.s32.totalorder %s11, 0
      %p52 = por %p50, %p51
      %p53 = scmp.ne.s32.totalorder %s42, %s45
      %p54 = scmp.eq.s32.totalorder %s16, 3
      %p55 = por %p53, %p54
      %p56 = scmp.ne.s32.totalorder %s45, %s46
      %p57 = scmp.eq.s32.totalorder %s16, 0
      %p58 = por %p56, %p57
      %p59 = scmp.ne.s32.totalorder %s45, %s46
      %p60 = scmp.eq.s32.totalorder %s17, 3
      %p61 = por %p59, %p60
      %p63 = scmp.ne.s32.totalorder %s46, %s62
      %p64 = scmp.eq.s32.totalorder %s17, 0
      %p65 = por %p63, %p64
      %s66 = ssub.s32 %s18, %s37
      %p67 = scmp.eq.s32.totalorder %s66, 0
      %s69 = sadd.s32 %s68, 1
      %s70 = scalar_select %p67, %s68, %s69
      %p73 = pneg %p67
      %p74 = scmp.eq.s32.totalorder %s11, 3
      %p75 = por %p73, %p74
      %p76 = scmp.ne.s32.totalorder %s68, %s71
      %p77 = scmp.eq.s32.totalorder %s11, 0
      %p78 = por %p76, %p77
      %p79 = scmp.ne.s32.totalorder %s68, %s71
      %p80 = scmp.eq.s32.totalorder %s16, 3
      %p81 = por %p79, %p80
      %p82 = scmp.ne.s32.totalorder %s71, %s72
      %p83 = scmp.eq.s32.totalorder %s16, 0
      %p84 = por %p82, %p83
      %p85 = scmp.ne.s32.totalorder %s71, %s72
      %p86 = scmp.eq.s32.totalorder %s17, 3
      %p87 = por %p85, %p86
      %p89 = scmp.ne.s32.totalorder %s72, %s88
      %p90 = scmp.eq.s32.totalorder %s17, 0
      %p91 = por %p89, %p90
      %s92 = ssub.s32 %s18, %s37
      %p93 = scmp.eq.s32.totalorder %s92, 0
      %s95 = sadd.s32 %s94, 1
      %s96 = scalar_select %p93, %s94, %s95
      %p99 = pneg %p93
      %p100 = scmp.eq.s32.totalorder %s11, 3
      %p101 = por %p99, %p100
      %p102 = scmp.ne.s32.totalorder %s94, %s97
      %p103 = scmp.eq.s32.totalorder %s11, 0
      %p104 = por %p102, %p103
      %p105 = scmp.ne.s32.totalorder %s94, %s97
      %p106 = scmp.eq.s32.totalorder %s16, 3
      %p107 = por %p105, %p106
      %p108 = scmp.ne.s32.totalorder %s97, %s98
      %p109 = scmp.eq.s32.totalorder %s16, 0
      %p110 = por %p108, %p109
      %p111 = scmp.ne.s32.totalorder %s97, %s98
      %p112 = scmp.eq.s32.totalorder %s17, 3
      %p113 = por %p111, %p112
      %p115 = scmp.ne.s32.totalorder %s98, %s114
      %p116 = scmp.eq.s32.totalorder %s17, 0
      %p117 = por %p115, %p116
      %s118 = ssub.s32 %s20, %s29
      %p119 = scmp.eq.s32.totalorder %s118, 0
      %s121 = sadd.s32 %s120, 1
      %s122 = scalar_select %p119, %s120, %s121
      %p125 = pneg %p119
      %p126 = scmp.eq.s32.totalorder %s11, 3
      %p127 = por %p125, %p126
      %p128 = scmp.ne.s32.totalorder %s120, %s123
      %p129 = scmp.eq.s32.totalorder %s11, 0
      %p130 = por %p128, %p129
      %p131 = scmp.ne.s32.totalorder %s120, %s123
      %p132 = scmp.eq.s32.totalorder %s16, 3
      %p133 = por %p131, %p132
      %p134 = scmp.ne.s32.totalorder %s123, %s124
      %p135 = scmp.eq.s32.totalorder %s16, 0
      %p136 = por %p134, %p135
      %p137 = scmp.ne.s32.totalorder %s123, %s124
      %p138 = scmp.eq.s32.totalorder %s17, 3
      %p139 = por %p137, %p138
      %p141 = scmp.ne.s32.totalorder %s124, %s140
      %p142 = scmp.eq.s32.totalorder %s17, 0
      %p143 = por %p141, %p142
      %s144 = ssub.s32 %s20, %s29
      %p145 = scmp.eq.s32.totalorder %s144, 0
      %s147 = sadd.s32 %s146, 1
      %s148 = scalar_select %p145, %s146, %s147
      %p151 = pneg %p145
      %p152 = scmp.eq.s32.totalorder %s11, 3
      %p153 = por %p151, %p152
      %p154 = scmp.ne.s32.totalorder %s146, %s149
      %p155 = scmp.eq.s32.totalorder %s11, 0
      %p156 = por %p154, %p155
      %p157 = scmp.ne.s32.totalorder %s146, %s149
      %p158 = scmp.eq.s32.totalorder %s16, 3
      %p159 = por %p157, %p158
      %p160 = scmp.ne.s32.totalorder %s149, %s150
      %p161 = scmp.eq.s32.totalorder %s16, 0
      %p162 = por %p160, %p161
      %p163 = scmp.ne.s32.totalorder %s149, %s150
      %p164 = scmp.eq.s32.totalorder %s17, 3
      %p165 = por %p163, %p164
      %p167 = scmp.ne.s32.totalorder %s150, %s166
      %p168 = scmp.eq.s32.totalorder %s17, 0
      %p169 = por %p167, %p168
      %s170 = ssub.s32 %s18, %s37
      %s171 = ssub.s32 %s19, %s33
      %s172 = sor.u32 %s170, %s171
      %s173 = ssub.s32 %s20, %s29
      %s174 = sor.u32 %s172, %s173
      %p175 = scmp.eq.s32.totalorder %s174, 0
      %s177 = sadd.s32 %s176, 1
      %s178 = scalar_select %p175, %s176, %s177
      %p181 = pneg %p175
      %p182 = scmp.eq.s32.totalorder %s11, 3
      %p183 = por %p181, %p182
      %p184 = scmp.ne.s32.totalorder %s176, %s179
      %p185 = scmp.eq.s32.totalorder %s11, 0
      %p186 = por %p184, %p185
      %p187 = scmp.ne.s32.totalorder %s176, %s179
      %p188 = scmp.eq.s32.totalorder %s16, 3
      %p189 = por %p187, %p188
      %p190 = scmp.ne.s32.totalorder %s179, %s180
      %p191 = scmp.eq.s32.totalorder %s16, 0
      %p192 = por %p190, %p191
      %p193 = scmp.ne.s32.totalorder %s179, %s180
      %p194 = scmp.eq.s32.totalorder %s17, 3
      %p195 = por %p193, %p194
      %p197 = scmp.ne.s32.totalorder %s180, %s196
      %p198 = scmp.eq.s32.totalorder %s17, 0
      %p199 = por %p197, %p198
      %p200 = scmp.le.s32.totalorder 1, %s11
      %p201 = scmp.lt.s32.totalorder %s11, 5
      %p202 = pnand %p200, %p201
      %p203 = pneg %p202
      // Predicated region
      $region9: #{single_stream_block_forward.7} parent=5 // pred_check
        _
      $region10: #{single_stream_block_forward.7} parent=5 // pred_check_branch
        %205 = sbr.rel (%p202) target = $region12
      $region11: #{single_stream_block_forward.7} parent=5 // pred_region
        %s206 = ssub.s32 %s11, 1
      $region12: #{single_stream_block_forward.7} parent=5 // pred_fallthru
        _
      %p207 = scmp.lt.s32.totalorder %s11, 4
      // Predicated region
      $region13: #{single_stream_block_forward.7} parent=5 // pred_check
        %p208 = pneg %p207
      $region14: #{single_stream_block_forward.7} parent=5 // pred_check_branch
        %210 = sbr.rel (%p208) target = $region16
      $region15: #{single_stream_block_forward.7} parent=5 // pred_region
        // Predicated region
        $region17: #{single_stream_block_forward.7} parent=15 // pred_check
          %p211 = pneg %p52
        $region18: #{single_stream_block_forward.7} parent=15 // pred_check_branch
          %213 = sbr.rel (%p211) target = $region20
        $region19: #{single_stream_block_forward.7} parent=15 // pred_region
          %s214 = smul.u32 2, %s19
          %p215 = scmp.lt.s32.totalorder %s18, 1
          %s216 = scalar_select %p215, %s18, 1
          %p217 = scmp.lt.s32.totalorder %s214, 1
          %s218 = scalar_select %p217, %s214, 1
          %s219 = smul.addr %s218, 2
          %s220 = smul.addr %s216, 4
          %s221 = sadd.s32 %s219, %s220
          %s222 = smul.addr %s221, 8
          %s223 = scalar_lea.vmem %s0, %s222
          %s224 = smul.u32 2, %s19
        $region20: #{single_stream_block_forward.7} parent=15 // pred_fallthru
          _
        // Predicated region
        $region21: #{single_stream_block_forward.7} parent=15 // pred_check
          %p225 = pneg %p78
        $region22: #{single_stream_block_forward.7} parent=15 // pred_check_branch
          %227 = sbr.rel (%p225) target = $region24
        $region23: #{single_stream_block_forward.7} parent=15 // pred_region
          %p228 = scmp.lt.s32.totalorder %s18, 1
          %s229 = scalar_select %p228, %s18, 1
          %s230 = smul.addr %s229, 2
          %s231 = scalar_lea.vmem %s1, %s230
        $region24: #{single_stream_block_forward.7} parent=15 // pred_fallthru
          _
        // Predicated region
        $region25: #{single_stream_block_forward.7} parent=15 // pred_check
          %p232 = pneg %p104
        $region26: #{single_stream_block_forward.7} parent=15 // pred_check_branch
          %234 = sbr.rel (%p232) target = $region28
        $region27: #{single_stream_block_forward.7} parent=15 // pred_region
          %p235 = scmp.lt.s32.totalorder %s18, 1
          %s236 = scalar_select %p235, %s18, 1
          %s237 = smul.addr %s236, 2
          %s238 = scalar_lea.vmem %s2, %s237
        $region28: #{single_stream_block_forward.7} parent=15 // pred_fallthru
          _
        // Predicated region
        $region29: #{single_stream_block_forward.7} parent=15 // pred_check
          %p239 = pneg %p130
        $region30: #{single_stream_block_forward.7} parent=15 // pred_check_branch
          %241 = sbr.rel (%p239) target = $region32
        $region31: #{single_stream_block_forward.7} parent=15 // pred_region
          %s242 = sand.u32 %s120, 1
          %s243 = sand.u32 %s120, 1
          %s244 = smul.addr %s243, 1024
          %s245 = scalar_lea.vmem [#allocation3], %s244
          %s246 = smul.u32 4, %s20
          %s247 = smul.addr %s246, 8
          %s248 = scalar_lea.vmem %s3, %s247
          // Predicated region
          $region33: #{single_stream_block_forward.7} parent=31 // pred_check
            _
          $region34: #{single_stream_block_forward.7} parent=31 // pred_check_branch
            %250 = sbr.rel (0) target = $region36
          $region35: #{single_stream_block_forward.7} parent=31 // pred_region
            // Predicated region
            $region37: #{single_stream_block_forward.7} parent=35 // pred_check
              _
            $region38: #{single_stream_block_forward.7} parent=35 // pred_check_branch
              %252 = sbr.rel (0) target = $region40
            $region39: #{single_stream_block_forward.7} parent=35 // pred_region
              loop: start=0, step=1, limit=1
              $region41: #{single_stream_block_forward.7} parent=39 // loop_pre_header
                _
              $region42: #{single_stream_block_forward.7} parent=39 // loop_header
                %s254 = sphi 0, %s258
                %p255 = scmp.ge.s32.totalorder %s254, 1
                %s259 = sphi %s248, %s248
                %s260 = sphi %s245, %s245
              $region43: #{single_stream_block_forward.7} parent=39 // loop_header_branch
                %257 = sbr.rel (%p255) target = $region47
              $region44: #{single_stream_block_forward.7} parent=39 // loop_body
                %v261 = vld [vmem:[%s259] sm:$0xff]
                %262 = vst [vmem:[%s260] sm:$0xff] %v261
                %v263 = vld [vmem:[%s259 + $0x8] sm:$0xff]
                %264 = vst [vmem:[%s260 + $0x8] sm:$0xff] %v263
                %v265 = vld [vmem:[%s259 + $0x10] sm:$0xff]
                %266 = vst [vmem:[%s260 + $0x10] sm:$0xff] %v265
                %v267 = vld [vmem:[%s259 + $0x18] sm:$0xff]
                %268 = vst [vmem:[%s260 + $0x18] sm:$0xff] %v267
                %v269 = vld [vmem:[%s259 + $0x40] sm:$0xff]
                %270 = vst [vmem:[%s260 + $0x20] sm:$0xff] %v269
                %v271 = vld [vmem:[%s259 + $0x48] sm:$0xff]
                %272 = vst [vmem:[%s260 + $0x28] sm:$0xff] %v271
                %v273 = vld [vmem:[%s259 + $0x50] sm:$0xff]
                %274 = vst [vmem:[%s260 + $0x30] sm:$0xff] %v273
                %v275 = vld [vmem:[%s259 + $0x58] sm:$0xff]
                %276 = vst [vmem:[%s260 + $0x38] sm:$0xff] %v275
                %v277 = vld [vmem:[%s259 + $0x80] sm:$0xff]
                %278 = vst [vmem:[%s260 + $0x40] sm:$0xff] %v277
                %v279 = vld [vmem:[%s259 + $0x88] sm:$0xff]
                %280 = vst [vmem:[%s260 + $0x48] sm:$0xff] %v279
                %v281 = vld [vmem:[%s259 + $0x90] sm:$0xff]
                %282 = vst [vmem:[%s260 + $0x50] sm:$0xff] %v281
                %v283 = vld [vmem:[%s259 + $0x98] sm:$0xff]
                %284 = vst [vmem:[%s260 + $0x58] sm:$0xff] %v283
                %v285 = vld [vmem:[%s259 + $0xc0] sm:$0xff]
                %286 = vst [vmem:[%s260 + $0x60] sm:$0xff] %v285
                %v287 = vld [vmem:[%s259 + $0xc8] sm:$0xff]
                %288 = vst [vmem:[%s260 + $0x68] sm:$0xff] %v287
                %v289 = vld [vmem:[%s259 + $0xd0] sm:$0xff]
                %290 = vst [vmem:[%s260 + $0x70] sm:$0xff] %v289
                %v291 = vld [vmem:[%s259 + $0xd8] sm:$0xff]
                %292 = vst [vmem:[%s260 + $0x78] sm:$0xff] %v291
                %v293 = vld [vmem:[%s259 + $0x100] sm:$0xff]
                %294 = vst [vmem:[%s260 + $0x80] sm:$0xff] %v293
                %v295 = vld [vmem:[%s259 + $0x108] sm:$0xff]
                %296 = vst [vmem:[%s260 + $0x88] sm:$0xff] %v295
                %v297 = vld [vmem:[%s259 + $0x110] sm:$0xff]
                %298 = vst [vmem:[%s260 + $0x90] sm:$0xff] %v297
                %v299 = vld [vmem:[%s259 + $0x118] sm:$0xff]
                %300 = vst [vmem:[%s260 + $0x98] sm:$0xff] %v299
                %v301 = vld [vmem:[%s259 + $0x140] sm:$0xff]
                %302 = vst [vmem:[%s260 + $0xa0] sm:$0xff] %v301
                %v303 = vld [vmem:[%s259 + $0x148] sm:$0xff]
                %304 = vst [vmem:[%s260 + $0xa8] sm:$0xff] %v303
                %v305 = vld [vmem:[%s259 + $0x150] sm:$0xff]
                %306 = vst [vmem:[%s260 + $0xb0] sm:$0xff] %v305
                %v307 = vld [vmem:[%s259 + $0x158] sm:$0xff]
                %308 = vst [vmem:[%s260 + $0xb8] sm:$0xff] %v307
                %v309 = vld [vmem:[%s259 + $0x180] sm:$0xff]
                %310 = vst [vmem:[%s260 + $0xc0] sm:$0xff] %v309
                %v311 = vld [vmem:[%s259 + $0x188] sm:$0xff]
                %312 = vst [vmem:[%s260 + $0xc8] sm:$0xff] %v311
                %v313 = vld [vmem:[%s259 + $0x190] sm:$0xff]
                %314 = vst [vmem:[%s260 + $0xd0] sm:$0xff] %v313
                %v315 = vld [vmem:[%s259 + $0x198] sm:$0xff]
                %316 = vst [vmem:[%s260 + $0xd8] sm:$0xff] %v315
                %v317 = vld [vmem:[%s259 + $0x1c0] sm:$0xff]
                %318 = vst [vmem:[%s260 + $0xe0] sm:$0xff] %v317
                %v319 = vld [vmem:[%s259 + $0x1c8] sm:$0xff]
                %320 = vst [vmem:[%s260 + $0xe8] sm:$0xff] %v319
                %v321 = vld [vmem:[%s259 + $0x1d0] sm:$0xff]
                %322 = vst [vmem:[%s260 + $0xf0] sm:$0xff] %v321
                %v323 = vld [vmem:[%s259 + $0x1d8] sm:$0xff]
                %324 = vst [vmem:[%s260 + $0xf8] sm:$0xff] %v323
                %v325 = vld [vmem:[%s259 + $0x200] sm:$0xff]
                %326 = vst [vmem:[%s260 + $0x100] sm:$0xff] %v325
                %v327 = vld [vmem:[%s259 + $0x208] sm:$0xff]
                %328 = vst [vmem:[%s260 + $0x108] sm:$0xff] %v327
                %v329 = vld [vmem:[%s259 + $0x210] sm:$0xff]
                %330 = vst [vmem:[%s260 + $0x110] sm:$0xff] %v329
                %v331 = vld [vmem:[%s259 + $0x218] sm:$0xff]
                %332 = vst [vmem:[%s260 + $0x118] sm:$0xff] %v331
                %v333 = vld [vmem:[%s259 + $0x240] sm:$0xff]
                %334 = vst [vmem:[%s260 + $0x120] sm:$0xff] %v333
                %v335 = vld [vmem:[%s259 + $0x248] sm:$0xff]
                %336 = vst [vmem:[%s260 + $0x128] sm:$0xff] %v335
                %v337 = vld [vmem:[%s259 + $0x250] sm:$0xff]
                %338 = vst [vmem:[%s260 + $0x130] sm:$0xff] %v337
                %v339 = vld [vmem:[%s259 + $0x258] sm:$0xff]
                %340 = vst [vmem:[%s260 + $0x138] sm:$0xff] %v339
                %v341 = vld [vmem:[%s259 + $0x280] sm:$0xff]
                %342 = vst [vmem:[%s260 + $0x140] sm:$0xff] %v341
                %v343 = vld [vmem:[%s259 + $0x288] sm:$0xff]
                %344 = vst [vmem:[%s260 + $0x148] sm:$0xff] %v343
                %v345 = vld [vmem:[%s259 + $0x290] sm:$0xff]
                %346 = vst [vmem:[%s260 + $0x150] sm:$0xff] %v345
                %v347 = vld [vmem:[%s259 + $0x298] sm:$0xff]
                %348 = vst [vmem:[%s260 + $0x158] sm:$0xff] %v347
                %v349 = vld [vmem:[%s259 + $0x2c0] sm:$0xff]
                %350 = vst [vmem:[%s260 + $0x160] sm:$0xff] %v349
                %v351 = vld [vmem:[%s259 + $0x2c8] sm:$0xff]
                %352 = vst [vmem:[%s260 + $0x168] sm:$0xff] %v351
                %v353 = vld [vmem:[%s259 + $0x2d0] sm:$0xff]
                %354 = vst [vmem:[%s260 + $0x170] sm:$0xff] %v353
                %v355 = vld [vmem:[%s259 + $0x2d8] sm:$0xff]
                %356 = vst [vmem:[%s260 + $0x178] sm:$0xff] %v355
                %v357 = vld [vmem:[%s259 + $0x300] sm:$0xff]
                %358 = vst [vmem:[%s260 + $0x180] sm:$0xff] %v357
                %v359 = vld [vmem:[%s259 + $0x308] sm:$0xff]
                %360 = vst [vmem:[%s260 + $0x188] sm:$0xff] %v359
                %v361 = vld [vmem:[%s259 + $0x310] sm:$0xff]
                %362 = vst [vmem:[%s260 + $0x190] sm:$0xff] %v361
                %v363 = vld [vmem:[%s259 + $0x318] sm:$0xff]
                %364 = vst [vmem:[%s260 + $0x198] sm:$0xff] %v363
                %v365 = vld [vmem:[%s259 + $0x340] sm:$0xff]
                %366 = vst [vmem:[%s260 + $0x1a0] sm:$0xff] %v365
                %v367 = vld [vmem:[%s259 + $0x348] sm:$0xff]
                %368 = vst [vmem:[%s260 + $0x1a8] sm:$0xff] %v367
                %v369 = vld [vmem:[%s259 + $0x350] sm:$0xff]
                %370 = vst [vmem:[%s260 + $0x1b0] sm:$0xff] %v369
                %v371 = vld [vmem:[%s259 + $0x358] sm:$0xff]
                %372 = vst [vmem:[%s260 + $0x1b8] sm:$0xff] %v371
                %v373 = vld [vmem:[%s259 + $0x380] sm:$0xff]
                %374 = vst [vmem:[%s260 + $0x1c0] sm:$0xff] %v373
                %v375 = vld [vmem:[%s259 + $0x388] sm:$0xff]
                %376 = vst [vmem:[%s260 + $0x1c8] sm:$0xff] %v375
                %v377 = vld [vmem:[%s259 + $0x390] sm:$0xff]
                %378 = vst [vmem:[%s260 + $0x1d0] sm:$0xff] %v377
                %v379 = vld [vmem:[%s259 + $0x398] sm:$0xff]
                %380 = vst [vmem:[%s260 + $0x1d8] sm:$0xff] %v379
                %v381 = vld [vmem:[%s259 + $0x3c0] sm:$0xff]
                %382 = vst [vmem:[%s260 + $0x1e0] sm:$0xff] %v381
                %v383 = vld [vmem:[%s259 + $0x3c8] sm:$0xff]
                %384 = vst [vmem:[%s260 + $0x1e8] sm:$0xff] %v383
                %v385 = vld [vmem:[%s259 + $0x3d0] sm:$0xff]
                %386 = vst [vmem:[%s260 + $0x1f0] sm:$0xff] %v385
                %v387 = vld [vmem:[%s259 + $0x3d8] sm:$0xff]
                %388 = vst [vmem:[%s260 + $0x1f8] sm:$0xff] %v387
                %v389 = vld [vmem:[%s259 + $0x400] sm:$0xff]
                %390 = vst [vmem:[%s260 + $0x200] sm:$0xff] %v389
                %v391 = vld [vmem:[%s259 + $0x408] sm:$0xff]
                %392 = vst [vmem:[%s260 + $0x208] sm:$0xff] %v391
                %v393 = vld [vmem:[%s259 + $0x410] sm:$0xff]
                %394 = vst [vmem:[%s260 + $0x210] sm:$0xff] %v393
                %v395 = vld [vmem:[%s259 + $0x418] sm:$0xff]
                %396 = vst [vmem:[%s260 + $0x218] sm:$0xff] %v395
                %v397 = vld [vmem:[%s259 + $0x440] sm:$0xff]
                %398 = vst [vmem:[%s260 + $0x220] sm:$0xff] %v397
                %v399 = vld [vmem:[%s259 + $0x448] sm:$0xff]
                %400 = vst [vmem:[%s260 + $0x228] sm:$0xff] %v399
                %v401 = vld [vmem:[%s259 + $0x450] sm:$0xff]
                %402 = vst [vmem:[%s260 + $0x230] sm:$0xff] %v401
                %v403 = vld [vmem:[%s259 + $0x458] sm:$0xff]
                %404 = vst [vmem:[%s260 + $0x238] sm:$0xff] %v403
                %v405 = vld [vmem:[%s259 + $0x480] sm:$0xff]
                %406 = vst [vmem:[%s260 + $0x240] sm:$0xff] %v405
                %v407 = vld [vmem:[%s259 + $0x488] sm:$0xff]
                %408 = vst [vmem:[%s260 + $0x248] sm:$0xff] %v407
                %v409 = vld [vmem:[%s259 + $0x490] sm:$0xff]
                %410 = vst [vmem:[%s260 + $0x250] sm:$0xff] %v409
                %v411 = vld [vmem:[%s259 + $0x498] sm:$0xff]
                %412 = vst [vmem:[%s260 + $0x258] sm:$0xff] %v411
                %v413 = vld [vmem:[%s259 + $0x4c0] sm:$0xff]
                %414 = vst [vmem:[%s260 + $0x260] sm:$0xff] %v413
                %v415 = vld [vmem:[%s259 + $0x4c8] sm:$0xff]
                %416 = vst [vmem:[%s260 + $0x268] sm:$0xff] %v415
                %v417 = vld [vmem:[%s259 + $0x4d0] sm:$0xff]
                %418 = vst [vmem:[%s260 + $0x270] sm:$0xff] %v417
                %v419 = vld [vmem:[%s259 + $0x4d8] sm:$0xff]
                %420 = vst [vmem:[%s260 + $0x278] sm:$0xff] %v419
                %v421 = vld [vmem:[%s259 + $0x500] sm:$0xff]
                %422 = vst [vmem:[%s260 + $0x280] sm:$0xff] %v421
                %v423 = vld [vmem:[%s259 + $0x508] sm:$0xff]
                %424 = vst [vmem:[%s260 + $0x288] sm:$0xff] %v423
                %v425 = vld [vmem:[%s259 + $0x510] sm:$0xff]
                %426 = vst [vmem:[%s260 + $0x290] sm:$0xff] %v425
                %v427 = vld [vmem:[%s259 + $0x518] sm:$0xff]
                %428 = vst [vmem:[%s260 + $0x298] sm:$0xff] %v427
                %v429 = vld [vmem:[%s259 + $0x540] sm:$0xff]
                %430 = vst [vmem:[%s260 + $0x2a0] sm:$0xff] %v429
                %v431 = vld [vmem:[%s259 + $0x548] sm:$0xff]
                %432 = vst [vmem:[%s260 + $0x2a8] sm:$0xff] %v431
                %v433 = vld [vmem:[%s259 + $0x550] sm:$0xff]
                %434 = vst [vmem:[%s260 + $0x2b0] sm:$0xff] %v433
                %v435 = vld [vmem:[%s259 + $0x558] sm:$0xff]
                %436 = vst [vmem:[%s260 + $0x2b8] sm:$0xff] %v435
                %v437 = vld [vmem:[%s259 + $0x580] sm:$0xff]
                %438 = vst [vmem:[%s260 + $0x2c0] sm:$0xff] %v437
                %v439 = vld [vmem:[%s259 + $0x588] sm:$0xff]
                %440 = vst [vmem:[%s260 + $0x2c8] sm:$0xff] %v439
                %v441 = vld [vmem:[%s259 + $0x590] sm:$0xff]
                %442 = vst [vmem:[%s260 + $0x2d0] sm:$0xff] %v441
                %v443 = vld [vmem:[%s259 + $0x598] sm:$0xff]
                %444 = vst [vmem:[%s260 + $0x2d8] sm:$0xff] %v443
                %v445 = vld [vmem:[%s259 + $0x5c0] sm:$0xff]
                %446 = vst [vmem:[%s260 + $0x2e0] sm:$0xff] %v445
                %v447 = vld [vmem:[%s259 + $0x5c8] sm:$0xff]
                %448 = vst [vmem:[%s260 + $0x2e8] sm:$0xff] %v447
                %v449 = vld [vmem:[%s259 + $0x5d0] sm:$0xff]
                %450 = vst [vmem:[%s260 + $0x2f0] sm:$0xff] %v449
                %v451 = vld [vmem:[%s259 + $0x5d8] sm:$0xff]
                %452 = vst [vmem:[%s260 + $0x2f8] sm:$0xff] %v451
                %v453 = vld [vmem:[%s259 + $0x600] sm:$0xff]
                %454 = vst [vmem:[%s260 + $0x300] sm:$0xff] %v453
                %v455 = vld [vmem:[%s259 + $0x608] sm:$0xff]
                %456 = vst [vmem:[%s260 + $0x308] sm:$0xff] %v455
                %v457 = vld [vmem:[%s259 + $0x610] sm:$0xff]
                %458 = vst [vmem:[%s260 + $0x310] sm:$0xff] %v457
                %v459 = vld [vmem:[%s259 + $0x618] sm:$0xff]
                %460 = vst [vmem:[%s260 + $0x318] sm:$0xff] %v459
                %v461 = vld [vmem:[%s259 + $0x640] sm:$0xff]
                %462 = vst [vmem:[%s260 + $0x320] sm:$0xff] %v461
                %v463 = vld [vmem:[%s259 + $0x648] sm:$0xff]
                %464 = vst [vmem:[%s260 + $0x328] sm:$0xff] %v463
                %v465 = vld [vmem:[%s259 + $0x650] sm:$0xff]
                %466 = vst [vmem:[%s260 + $0x330] sm:$0xff] %v465
                %v467 = vld [vmem:[%s259 + $0x658] sm:$0xff]
                %468 = vst [vmem:[%s260 + $0x338] sm:$0xff] %v467
                %v469 = vld [vmem:[%s259 + $0x680] sm:$0xff]
                %470 = vst [vmem:[%s260 + $0x340] sm:$0xff] %v469
                %v471 = vld [vmem:[%s259 + $0x688] sm:$0xff]
                %472 = vst [vmem:[%s260 + $0x348] sm:$0xff] %v471
                %v473 = vld [vmem:[%s259 + $0x690] sm:$0xff]
                %474 = vst [vmem:[%s260 + $0x350] sm:$0xff] %v473
                %v475 = vld [vmem:[%s259 + $0x698] sm:$0xff]
                %476 = vst [vmem:[%s260 + $0x358] sm:$0xff] %v475
                %v477 = vld [vmem:[%s259 + $0x6c0] sm:$0xff]
                %478 = vst [vmem:[%s260 + $0x360] sm:$0xff] %v477
                %v479 = vld [vmem:[%s259 + $0x6c8] sm:$0xff]
                %480 = vst [vmem:[%s260 + $0x368] sm:$0xff] %v479
                %v481 = vld [vmem:[%s259 + $0x6d0] sm:$0xff]
                %482 = vst [vmem:[%s260 + $0x370] sm:$0xff] %v481
                %v483 = vld [vmem:[%s259 + $0x6d8] sm:$0xff]
                %484 = vst [vmem:[%s260 + $0x378] sm:$0xff] %v483
                %v485 = vld [vmem:[%s259 + $0x700] sm:$0xff]
                %486 = vst [vmem:[%s260 + $0x380] sm:$0xff] %v485
                %v487 = vld [vmem:[%s259 + $0x708] sm:$0xff]
                %488 = vst [vmem:[%s260 + $0x388] sm:$0xff] %v487
                %v489 = vld [vmem:[%s259 + $0x710] sm:$0xff]
                %490 = vst [vmem:[%s260 + $0x390] sm:$0xff] %v489
                %v491 = vld [vmem:[%s259 + $0x718] sm:$0xff]
                %492 = vst [vmem:[%s260 + $0x398] sm:$0xff] %v491
                %v493 = vld [vmem:[%s259 + $0x740] sm:$0xff]
                %494 = vst [vmem:[%s260 + $0x3a0] sm:$0xff] %v493
                %v495 = vld [vmem:[%s259 + $0x748] sm:$0xff]
                %496 = vst [vmem:[%s260 + $0x3a8] sm:$0xff] %v495
                %v497 = vld [vmem:[%s259 + $0x750] sm:$0xff]
                %498 = vst [vmem:[%s260 + $0x3b0] sm:$0xff] %v497
                %v499 = vld [vmem:[%s259 + $0x758] sm:$0xff]
                %500 = vst [vmem:[%s260 + $0x3b8] sm:$0xff] %v499
                %v501 = vld [vmem:[%s259 + $0x780] sm:$0xff]
                %502 = vst [vmem:[%s260 + $0x3c0] sm:$0xff] %v501
                %v503 = vld [vmem:[%s259 + $0x788] sm:$0xff]
                %504 = vst [vmem:[%s260 + $0x3c8] sm:$0xff] %v503
                %v505 = vld [vmem:[%s259 + $0x790] sm:$0xff]
                %506 = vst [vmem:[%s260 + $0x3d0] sm:$0xff] %v505
                %v507 = vld [vmem:[%s259 + $0x798] sm:$0xff]
                %508 = vst [vmem:[%s260 + $0x3d8] sm:$0xff] %v507
                %v509 = vld [vmem:[%s259 + $0x7c0] sm:$0xff]
                %510 = vst [vmem:[%s260 + $0x3e0] sm:$0xff] %v509
                %v511 = vld [vmem:[%s259 + $0x7c8] sm:$0xff]
                %512 = vst [vmem:[%s260 + $0x3e8] sm:$0xff] %v511
                %v513 = vld [vmem:[%s259 + $0x7d0] sm:$0xff]
                %514 = vst [vmem:[%s260 + $0x3f0] sm:$0xff] %v513
                %v515 = vld [vmem:[%s259 + $0x7d8] sm:$0xff]
                %516 = vst [vmem:[%s260 + $0x3f8] sm:$0xff] %v515
              $region45: #{single_stream_block_forward.7} parent=39 // loop_footer
                %s258 = sadd.s32 1, %s254
              $region46: #{single_stream_block_forward.7} parent=39 // loop_footer_branch
                %253 = sbr.rel target = $region42
              $region47: #{single_stream_block_forward.7} parent=39 // loop_exit
                _
            $region40: #{single_stream_block_forward.7} parent=35 // pred_fallthru
              _
            // Predicated region
            $region48: #{single_stream_block_forward.7} parent=35 // pred_check
              _
            $region49: #{single_stream_block_forward.7} parent=35 // pred_check_branch
              %518 = sbr.rel target = $region51
            $region50: #{single_stream_block_forward.7} parent=35 // pred_region
              _
            $region51: #{single_stream_block_forward.7} parent=35 // pred_fallthru
              _
          $region36: #{single_stream_block_forward.7} parent=31 // pred_fallthru
            _
          %519 = vnop
        $region32: #{single_stream_block_forward.7} parent=15 // pred_fallthru
          _
        // Predicated region
        $region52: #{single_stream_block_forward.7} parent=15 // pred_check
          %p520 = pneg %p156
        $region53: #{single_stream_block_forward.7} parent=15 // pred_check_branch
          %522 = sbr.rel (%p520) target = $region55
        $region54: #{single_stream_block_forward.7} parent=15 // pred_region
          %s523 = smul.u32 4, %s20
          %p524 = scmp.lt.s32.totalorder %s523, 7
          %s525 = scalar_select %p524, %s523, 7
          %s526 = scalar_lea.vmem %s4, %s525
          %s527 = smul.u32 4, %s20
        $region55: #{single_stream_block_forward.7} parent=15 // pred_fallthru
          _
      $region16: #{single_stream_block_forward.7} parent=5 // pred_fallthru
        _
      %p528 = scmp.le.s32.totalorder 1, %s11
      %p529 = scmp.lt.s32.totalorder %s11, 5
      %p530 = pnand %p528, %p529
      %p531 = pneg %p530
      // Predicated region
      $region56: #{single_stream_block_forward.7} parent=5 // pred_check
        _
      $region57: #{single_stream_block_forward.7} parent=5 // pred_check_branch
        %533 = sbr.rel (%p530) target = $region59
      $region58: #{single_stream_block_forward.7} parent=5 // pred_region
        %s534 = ssub.s32 %s11, 1
        %s535 = sand.u32 %s123, 1
        %s536 = sand.u32 %s123, 1
        %s537 = smul.addr %s536, 1024
        %s538 = scalar_lea.vmem [#allocation3], %s537
        // Predicated region
        $region60: #{single_stream_block_forward.7} parent=58 // pred_check
          %p539 = pneg %p136
        $region61: #{single_stream_block_forward.7} parent=58 // pred_check_branch
          %541 = sbr.rel (%p539) target = $region63
        $region62: #{single_stream_block_forward.7} parent=58 // pred_region
          _
        $region63: #{single_stream_block_forward.7} parent=58 // pred_fallthru
          _
        %s542 = smul.u32 2, %s22
        %p543 = scmp.lt.s32.totalorder %s21, 1
        %s544 = scalar_select %p543, %s21, 1
        %p545 = scmp.lt.s32.totalorder %s542, 1
        %s546 = scalar_select %p545, %s542, 1
        %s547 = smul.addr %s546, 2
        %s548 = smul.addr %s544, 4
        %s549 = sadd.s32 %s547, %s548
        %s550 = smul.addr %s549, 8
        %s551 = scalar_lea.vmem %s0, %s550
        %p552 = pneg %p58
        %p553 = pneg %p55
        %p554 = scmp.lt.s32.totalorder %s21, 1
        %s555 = scalar_select %p554, %s21, 1
        %s556 = smul.addr %s555, 2
        %s557 = scalar_lea.vmem %s1, %s556
        %p558 = pneg %p84
        %p559 = pneg %p81
        %p560 = scmp.lt.s32.totalorder %s21, 1
        %s561 = scalar_select %p560, %s21, 1
        %s562 = smul.addr %s561, 2
        %s563 = scalar_lea.vmem %s2, %s562
        %p564 = pneg %p110
        %p565 = pneg %p107
        %s566 = sand.u32 %s123, 1
        %s567 = sand.u32 %s123, 1
        %s568 = smul.addr %s567, 1024
        %s569 = scalar_lea.vmem [#allocation3], %s568
        %p570 = pneg %p136
        %p571 = pneg %p133
        %s572 = smul.u32 4, %s23
        %p573 = scmp.lt.s32.totalorder %s572, 7
        %s574 = scalar_select %p573, %s572, 7
        %s575 = scalar_lea.vmem %s4, %s574
        %p576 = pneg %p162
        %p577 = pneg %p159
        %p578 = pneg %p192
        %p579 = pneg %p189
        %s580 = sand.u32 %s179, 1
        %s581 = sand.u32 %s179, 1
        %s582 = smul.addr %s581, 64
        %s583 = scalar_lea.vmem [#allocation4], %s582
        %s584 = smul.u32 2, %s22
        %p585 = scmp.lt.s32.totalorder %s21, 1
        %s586 = scalar_select %p585, %s21, 1
        %p587 = scmp.lt.s32.totalorder %s584, 1
        %s588 = scalar_select %p587, %s584, 1
        %s589 = smul.addr %s588, 2
        %s590 = smul.addr %s586, 4
        %s591 = sadd.s32 %s589, %s590
        %s592 = smul.addr %s591, 8
        %s593 = scalar_lea.vmem %s0, %s592
        %s594 = smul.u32 2, %s22
        %p595 = scmp.lt.s32.totalorder %s21, 1
        %s596 = scalar_select %p595, %s21, 1
        %s597 = smul.addr %s596, 2
        %s598 = scalar_lea.vmem %s1, %s597
        %p599 = scmp.lt.s32.totalorder %s21, 1
        %s600 = scalar_select %p599, %s21, 1
        %s601 = smul.addr %s600, 2
        %s602 = scalar_lea.vmem %s2, %s601
        %s603 = smul.u32 4, %s23
        %s604 = smul.u32 4, %s23
        %p605 = scmp.lt.s32.totalorder %s604, 7
        %s606 = scalar_select %p605, %s604, 7
        %s607 = scalar_lea.vmem %s4, %s606
        %s608 = smul.u32 4, %s23
        %s609 = smul.u32 2, %s22
        %s610 = smul.u32 4, %s23
        %p611 = scmp.eq.s32.totalorder %s23, 0
        // Predicated region
        $region64: #{single_stream_block_forward.7} parent=58 // pred_check
          %p612 = pneg %p611
        $region65: #{single_stream_block_forward.7} parent=58 // pred_check_branch
          %614 = sbr.rel (%p612) target = $region67
        $region66: #{single_stream_block_forward.7} parent=58 // pred_region
          %v615 = vld [vmem:[%s593] sm:$0xff]
          %v616 = vld [vmem:[%s593 + $0x8] sm:$0xff]
          %v617 = vld [vmem:[%s593 + $0x10] sm:$0xff]
          %v618 = vld [vmem:[%s593 + $0x18] sm:$0xff]
          %v619 = vadd.f32 %v615, %v616
          %620 = vadd.xlane.f32.xlu0 %v619
          %v621 = vpop.xlane.xlu0 %620
          %v622 = vadd.f32 %v617, %v618
          %623 = vadd.xlane.f32.xlu0 %v622
          %v624 = vpop.xlane.xlu0 %623
          %v625 = vrcp.pop 256.0
          %v626 = vmul.f32 %v621, %v625
          %v627 = vmul.f32 %v624, %v625
          %v628 = vsub.f32 %v615, %v626
          %v629 = vsub.f32 %v616, %v626
          %v630 = vsub.f32 %v617, %v627
          %v631 = vsub.f32 %v618, %v627
          %v632 = vmul.f32 %v628, %v628
          %v633 = vmul.f32 %v629, %v629
          %v634 = vmul.f32 %v630, %v630
          %v635 = vmul.f32 %v631, %v631
          %v636 = vadd.f32 %v632, %v633
          %637 = vadd.xlane.f32.xlu0 %v636
          %v638 = vpop.xlane.xlu0 %637
          %v639 = vadd.f32 %v634, %v635
          %640 = vadd.xlane.f32.xlu0 %v639
          %v641 = vpop.xlane.xlu0 %640
          %v642 = vmul.f32 %v638, %v625
          %v643 = vmul.f32 %v641, %v625
          %v644 = vadd.f32 %v642, 1e-06
          %v645 = vadd.f32 %v643, 1e-06
          %v646 = vrsqrt.pop %v644
          %v647 = vrsqrt.pop %v645
          %v648 = vmul.f32 %v628, %v646
          %v649 = vmul.f32 %v629, %v646
          %v650 = vmul.f32 %v630, %v647
          %v651 = vmul.f32 %v631, %v647
          %v652 = vld [vmem:[%s598] sm:$0x3]
          %v653 = vld [vmem:[%s602] sm:$0x3]
          %v654 = vadd.f32 %v652, 1.0
          %v656 = vlaneseq
          %v657 = vshrl.u32 %v656, 7
          %v658 = vsub.s32 0, %v657
          %v659 = vrot.slane %v654, %v658
          %v660 = vlaneseq
          %v661 = vshrl.u32 %v660, 7
          %v662 = vsub.s32 1, %v661
          %v663 = vrot.slane %v654, %v662
          %v666 = vmul.f32 %v659, %v648
          %v667 = vmul.f32 %v663, %v649
          %v668 = vmul.f32 %v659, %v650
          %v669 = vmul.f32 %v663, %v651
          %v671 = vlaneseq
          %v672 = vshrl.u32 %v671, 7
          %v673 = vsub.s32 0, %v672
          %v674 = vrot.slane %v653, %v673
          %v675 = vlaneseq
          %v676 = vshrl.u32 %v675, 7
          %v677 = vsub.s32 1, %v676
          %v678 = vrot.slane %v653, %v677
          %v681 = vadd.f32 %v666, %v674
          %v682 = vadd.f32 %v667, %v678
          %v683 = vadd.f32 %v668, %v674
          %v684 = vadd.f32 %v669, %v678
          %685 = vst [vmem:[#allocation2] sm:$0xff] %v681
          %686 = vst [vmem:[#allocation2 + $0x8] sm:$0xff] %v682
          %687 = vst [vmem:[#allocation2 + $0x10] sm:$0xff] %v683
          %688 = vst [vmem:[#allocation2 + $0x18] sm:$0xff] %v684
        $region67: #{single_stream_block_forward.7} parent=58 // pred_fallthru
          _
        %v689 = vld [vmem:[#allocation2] sm:$0xff]
        %v690 = vld [vmem:[#allocation2 + $0x8] sm:$0xff]
        %v691 = vld [vmem:[#allocation2 + $0x10] sm:$0xff]
        %v692 = vld [vmem:[#allocation2 + $0x18] sm:$0xff]
        %v693 = vld [vmem:[%s538] sm:$0xff]
        %v694 = vld [vmem:[%s538 + $0x8] sm:$0xff]
        %v695 = vld [vmem:[%s538 + $0x10] sm:$0xff]
        %v696 = vld [vmem:[%s538 + $0x18] sm:$0xff]
        %v697 = vld [vmem:[%s538 + $0x20] sm:$0xff]
        %v698 = vld [vmem:[%s538 + $0x28] sm:$0xff]
        %v699 = vld [vmem:[%s538 + $0x30] sm:$0xff]
        %v700 = vld [vmem:[%s538 + $0x38] sm:$0xff]
        %v701 = vld [vmem:[%s538 + $0x40] sm:$0xff]
        %v702 = vld [vmem:[%s538 + $0x48] sm:$0xff]
        %v703 = vld [vmem:[%s538 + $0x50] sm:$0xff]
        %v704 = vld [vmem:[%s538 + $0x58] sm:$0xff]
        %v705 = vld [vmem:[%s538 + $0x60] sm:$0xff]
        %v706 = vld [vmem:[%s538 + $0x68] sm:$0xff]
        %v707 = vld [vmem:[%s538 + $0x70] sm:$0xff]
        %v708 = vld [vmem:[%s538 + $0x78] sm:$0xff]
        %v709 = vld [vmem:[%s538 + $0x80] sm:$0xff]
        %v710 = vld [vmem:[%s538 + $0x88] sm:$0xff]
        %v711 = vld [vmem:[%s538 + $0x90] sm:$0xff]
        %v712 = vld [vmem:[%s538 + $0x98] sm:$0xff]
        %v713 = vld [vmem:[%s538 + $0xa0] sm:$0xff]
        %v714 = vld [vmem:[%s538 + $0xa8] sm:$0xff]
        %v715 = vld [vmem:[%s538 + $0xb0] sm:$0xff]
        %v716 = vld [vmem:[%s538 + $0xb8] sm:$0xff]
        %v717 = vld [vmem:[%s538 + $0xc0] sm:$0xff]
        %v718 = vld [vmem:[%s538 + $0xc8] sm:$0xff]
        %v719 = vld [vmem:[%s538 + $0xd0] sm:$0xff]
        %v720 = vld [vmem:[%s538 + $0xd8] sm:$0xff]
        %v721 = vld [vmem:[%s538 + $0xe0] sm:$0xff]
        %v722 = vld [vmem:[%s538 + $0xe8] sm:$0xff]
        %v723 = vld [vmem:[%s538 + $0xf0] sm:$0xff]
        %v724 = vld [vmem:[%s538 + $0xf8] sm:$0xff]
        %v725 = vld [vmem:[%s538 + $0x100] sm:$0xff]
        %v726 = vld [vmem:[%s538 + $0x108] sm:$0xff]
        %v727 = vld [vmem:[%s538 + $0x110] sm:$0xff]
        %v728 = vld [vmem:[%s538 + $0x118] sm:$0xff]
        %v729 = vld [vmem:[%s538 + $0x120] sm:$0xff]
        %v730 = vld [vmem:[%s538 + $0x128] sm:$0xff]
        %v731 = vld [vmem:[%s538 + $0x130] sm:$0xff]
        %v732 = vld [vmem:[%s538 + $0x138] sm:$0xff]
        %v733 = vld [vmem:[%s538 + $0x140] sm:$0xff]
        %v734 = vld [vmem:[%s538 + $0x148] sm:$0xff]
        %v735 = vld [vmem:[%s538 + $0x150] sm:$0xff]
        %v736 = vld [vmem:[%s538 + $0x158] sm:$0xff]
        %v737 = vld [vmem:[%s538 + $0x160] sm:$0xff]
        %v738 = vld [vmem:[%s538 + $0x168] sm:$0xff]
        %v739 = vld [vmem:[%s538 + $0x170] sm:$0xff]
        %v740 = vld [vmem:[%s538 + $0x178] sm:$0xff]
        %v741 = vld [vmem:[%s538 + $0x180] sm:$0xff]
        %v742 = vld [vmem:[%s538 + $0x188] sm:$0xff]
        %v743 = vld [vmem:[%s538 + $0x190] sm:$0xff]
        %v744 = vld [vmem:[%s538 + $0x198] sm:$0xff]
        %v745 = vld [vmem:[%s538 + $0x1a0] sm:$0xff]
        %v746 = vld [vmem:[%s538 + $0x1a8] sm:$0xff]
        %v747 = vld [vmem:[%s538 + $0x1b0] sm:$0xff]
        %v748 = vld [vmem:[%s538 + $0x1b8] sm:$0xff]
        %v749 = vld [vmem:[%s538 + $0x1c0] sm:$0xff]
        %v750 = vld [vmem:[%s538 + $0x1c8] sm:$0xff]
        %v751 = vld [vmem:[%s538 + $0x1d0] sm:$0xff]
        %v752 = vld [vmem:[%s538 + $0x1d8] sm:$0xff]
        %v753 = vld [vmem:[%s538 + $0x1e0] sm:$0xff]
        %v754 = vld [vmem:[%s538 + $0x1e8] sm:$0xff]
        %v755 = vld [vmem:[%s538 + $0x1f0] sm:$0xff]
        %v756 = vld [vmem:[%s538 + $0x1f8] sm:$0xff]
        %v757 = vld [vmem:[%s538 + $0x200] sm:$0xff]
        %v758 = vld [vmem:[%s538 + $0x208] sm:$0xff]
        %v759 = vld [vmem:[%s538 + $0x210] sm:$0xff]
        %v760 = vld [vmem:[%s538 + $0x218] sm:$0xff]
        %v761 = vld [vmem:[%s538 + $0x220] sm:$0xff]
        %v762 = vld [vmem:[%s538 + $0x228] sm:$0xff]
        %v763 = vld [vmem:[%s538 + $0x230] sm:$0xff]
        %v764 = vld [vmem:[%s538 + $0x238] sm:$0xff]
        %v765 = vld [vmem:[%s538 + $0x240] sm:$0xff]
        %v766 = vld [vmem:[%s538 + $0x248] sm:$0xff]
        %v767 = vld [vmem:[%s538 + $0x250] sm:$0xff]
        %v768 = vld [vmem:[%s538 + $0x258] sm:$0xff]
        %v769 = vld [vmem:[%s538 + $0x260] sm:$0xff]
        %v770 = vld [vmem:[%s538 + $0x268] sm:$0xff]
        %v771 = vld [vmem:[%s538 + $0x270] sm:$0xff]
        %v772 = vld [vmem:[%s538 + $0x278] sm:$0xff]
        %v773 = vld [vmem:[%s538 + $0x280] sm:$0xff]
        %v774 = vld [vmem:[%s538 + $0x288] sm:$0xff]
        %v775 = vld [vmem:[%s538 + $0x290] sm:$0xff]
        %v776 = vld [vmem:[%s538 + $0x298] sm:$0xff]
        %v777 = vld [vmem:[%s538 + $0x2a0] sm:$0xff]
        %v778 = vld [vmem:[%s538 + $0x2a8] sm:$0xff]
        %v779 = vld [vmem:[%s538 + $0x2b0] sm:$0xff]
        %v780 = vld [vmem:[%s538 + $0x2b8] sm:$0xff]
        %v781 = vld [vmem:[%s538 + $0x2c0] sm:$0xff]
        %v782 = vld [vmem:[%s538 + $0x2c8] sm:$0xff]
        %v783 = vld [vmem:[%s538 + $0x2d0] sm:$0xff]
        %v784 = vld [vmem:[%s538 + $0x2d8] sm:$0xff]
        %v785 = vld [vmem:[%s538 + $0x2e0] sm:$0xff]
        %v786 = vld [vmem:[%s538 + $0x2e8] sm:$0xff]
        %v787 = vld [vmem:[%s538 + $0x2f0] sm:$0xff]
        %v788 = vld [vmem:[%s538 + $0x2f8] sm:$0xff]
        %v789 = vld [vmem:[%s538 + $0x300] sm:$0xff]
        %v790 = vld [vmem:[%s538 + $0x308] sm:$0xff]
        %v791 = vld [vmem:[%s538 + $0x310] sm:$0xff]
        %v792 = vld [vmem:[%s538 + $0x318] sm:$0xff]
        %v793 = vld [vmem:[%s538 + $0x320] sm:$0xff]
        %v794 = vld [vmem:[%s538 + $0x328] sm:$0xff]
        %v795 = vld [vmem:[%s538 + $0x330] sm:$0xff]
        %v796 = vld [vmem:[%s538 + $0x338] sm:$0xff]
        %v797 = vld [vmem:[%s538 + $0x340] sm:$0xff]
        %v798 = vld [vmem:[%s538 + $0x348] sm:$0xff]
        %v799 = vld [vmem:[%s538 + $0x350] sm:$0xff]
        %v800 = vld [vmem:[%s538 + $0x358] sm:$0xff]
        %v801 = vld [vmem:[%s538 + $0x360] sm:$0xff]
        %v802 = vld [vmem:[%s538 + $0x368] sm:$0xff]
        %v803 = vld [vmem:[%s538 + $0x370] sm:$0xff]
        %v804 = vld [vmem:[%s538 + $0x378] sm:$0xff]
        %v805 = vld [vmem:[%s538 + $0x380] sm:$0xff]
        %v806 = vld [vmem:[%s538 + $0x388] sm:$0xff]
        %v807 = vld [vmem:[%s538 + $0x390] sm:$0xff]
        %v808 = vld [vmem:[%s538 + $0x398] sm:$0xff]
        %v809 = vld [vmem:[%s538 + $0x3a0] sm:$0xff]
        %v810 = vld [vmem:[%s538 + $0x3a8] sm:$0xff]
        %v811 = vld [vmem:[%s538 + $0x3b0] sm:$0xff]
        %v812 = vld [vmem:[%s538 + $0x3b8] sm:$0xff]
        %v813 = vld [vmem:[%s538 + $0x3c0] sm:$0xff]
        %v814 = vld [vmem:[%s538 + $0x3c8] sm:$0xff]
        %v815 = vld [vmem:[%s538 + $0x3d0] sm:$0xff]
        %v816 = vld [vmem:[%s538 + $0x3d8] sm:$0xff]
        %v817 = vld [vmem:[%s538 + $0x3e0] sm:$0xff]
        %v818 = vld [vmem:[%s538 + $0x3e8] sm:$0xff]
        %v819 = vld [vmem:[%s538 + $0x3f0] sm:$0xff]
        %v820 = vld [vmem:[%s538 + $0x3f8] sm:$0xff]
        %v821 = vld [vmem:[%s607] sm:$0xf]
        %v823 = vlaneseq
        %v824 = vshrl.u32 %v823, 7
        %v825 = vsub.s32 0, %v824
        %v826 = vrot.slane %v821, %v825
        %v827 = vlaneseq
        %v828 = vshrl.u32 %v827, 7
        %v829 = vsub.s32 1, %v828
        %v830 = vrot.slane %v821, %v829
        %v831 = vlaneseq
        %v832 = vshrl.u32 %v831, 7
        %v833 = vsub.s32 2, %v832
        %v834 = vrot.slane %v821, %v833
        %v835 = vlaneseq
        %v836 = vshrl.u32 %v835, 7
        %v837 = vsub.s32 3, %v836
        %v838 = vrot.slane %v821, %v837
        %843 = vmatprep.subr.mxu0 %v694
        %844 = vmatpush1.msra.mxu0 %v693
        %845 = vmatprep.subr.mxu0 %v698
        %846 = vmatpush1.msra.mxu0 %v697
        %847 = vmatprep.subr.mxu0 %v702
        %848 = vmatpush1.msra.mxu0 %v701
        %849 = vmatprep.subr.mxu0 %v706
        %850 = vmatpush1.msra.mxu0 %v705
        %851 = vmatprep.subr.mxu0 %v710
        %852 = vmatpush1.msra.mxu0 %v709
        %853 = vmatprep.subr.mxu0 %v714
        %854 = vmatpush1.msra.mxu0 %v713
        %855 = vmatprep.subr.mxu0 %v718
        %856 = vmatpush1.msra.mxu0 %v717
        %857 = vmatprep.subr.mxu0 %v722
        %858 = vmatpush1.msra.mxu0 %v721
        %859 = vmatprep.subr.mxu0 %v726
        %860 = vmatpush1.msra.mxu0 %v725
        %861 = vmatprep.subr.mxu0 %v730
        %862 = vmatpush1.msra.mxu0 %v729
        %863 = vmatprep.subr.mxu0 %v734
        %864 = vmatpush1.msra.mxu0 %v733
        %865 = vmatprep.subr.mxu0 %v738
        %866 = vmatpush1.msra.mxu0 %v737
        %867 = vmatprep.subr.mxu0 %v742
        %868 = vmatpush1.msra.mxu0 %v741
        %869 = vmatprep.subr.mxu0 %v746
        %870 = vmatpush1.msra.mxu0 %v745
        %871 = vmatprep.subr.mxu0 %v750
        %872 = vmatpush1.msra.mxu0 %v749
        %873 = vmatprep.subr.mxu0 %v754
        %874 = vmatpush1.msra.mxu0 %v753
        %875 = vmatprep.subr.mxu0 %v758
        %876 = vmatpush1.msra.mxu0 %v757
        %877 = vmatprep.subr.mxu0 %v762
        %878 = vmatpush1.msra.mxu0 %v761
        %879 = vmatprep.subr.mxu0 %v766
        %880 = vmatpush1.msra.mxu0 %v765
        %881 = vmatprep.subr.mxu0 %v770
        %882 = vmatpush1.msra.mxu0 %v769
        %883 = vmatprep.subr.mxu0 %v774
        %884 = vmatpush1.msra.mxu0 %v773
        %885 = vmatprep.subr.mxu0 %v778
        %886 = vmatpush1.msra.mxu0 %v777
        %887 = vmatprep.subr.mxu0 %v782
        %888 = vmatpush1.msra.mxu0 %v781
        %889 = vmatprep.subr.mxu0 %v786
        %890 = vmatpush1.msra.mxu0 %v785
        %891 = vmatprep.subr.mxu0 %v790
        %892 = vmatpush1.msra.mxu0 %v789
        %893 = vmatprep.subr.mxu0 %v794
        %894 = vmatpush1.msra.mxu0 %v793
        %895 = vmatprep.subr.mxu0 %v798
        %896 = vmatpush1.msra.mxu0 %v797
        %897 = vmatprep.subr.mxu0 %v802
        %898 = vmatpush1.msra.mxu0 %v801
        %899 = vmatprep.subr.mxu0 %v806
        %900 = vmatpush1.msra.mxu0 %v805
        %901 = vmatprep.subr.mxu0 %v810
        %902 = vmatpush1.msra.mxu0 %v809
        %903 = vmatprep.subr.mxu0 %v814
        %904 = vmatpush1.msra.mxu0 %v813
        %905 = vmatprep.subr.mxu0 %v818
        %906 = vmatpush1.msra.mxu0 %v817
        %907 = vmatprep.mubr.f32.mxu0 %v690
        %908 = vmatmul.mubr.f32.gmra.mrb[0].mxu0 %v689
        %v909 = vpop.f32.mrb[0].mxu0
        %v910 = vadd.f32 %v826, %v909
        %v911 = vpop.f32.mrb[0].mxu0
        %v912 = vadd.f32 %v830, %v911
        %913 = vmatprep.mubr.f32.mxu0 %v692
        %914 = vmatmul.mubr.f32.gmra.mrb[0].mxu0 %v691
        %v915 = vpop.f32.mrb[0].mxu0
        %v916 = vadd.f32 %v826, %v915
        %v917 = vpop.f32.mrb[0].mxu0
        %v918 = vadd.f32 %v830, %v917
        %919 = vdwg.mxu0
        %920 = vmatprep.subr.mxu0 %v696
        %921 = vmatpush1.msra.mxu0 %v695
        %922 = vmatprep.subr.mxu0 %v700
        %923 = vmatpush1.msra.mxu0 %v699
        %924 = vmatprep.subr.mxu0 %v704
        %925 = vmatpush1.msra.mxu0 %v703
        %926 = vmatprep.subr.mxu0 %v708
        %927 = vmatpush1.msra.mxu0 %v707
        %928 = vmatprep.subr.mxu0 %v712
        %929 = vmatpush1.msra.mxu0 %v711
        %930 = vmatprep.subr.mxu0 %v716
        %931 = vmatpush1.msra.mxu0 %v715
        %932 = vmatprep.subr.mxu0 %v720
        %933 = vmatpush1.msra.mxu0 %v719
        %934 = vmatprep.subr.mxu0 %v724
        %935 = vmatpush1.msra.mxu0 %v723
        %936 = vmatprep.subr.mxu0 %v728
        %937 = vmatpush1.msra.mxu0 %v727
        %938 = vmatprep.subr.mxu0 %v732
        %939 = vmatpush1.msra.mxu0 %v731
        %940 = vmatprep.subr.mxu0 %v736
        %941 = vmatpush1.msra.mxu0 %v735
        %942 = vmatprep.subr.mxu0 %v740
        %943 = vmatpush1.msra.mxu0 %v739
        %944 = vmatprep.subr.mxu0 %v744
        %945 = vmatpush1.msra.mxu0 %v743
        %946 = vmatprep.subr.mxu0 %v748
        %947 = vmatpush1.msra.mxu0 %v747
        %948 = vmatprep.subr.mxu0 %v752
        %949 = vmatpush1.msra.mxu0 %v751
        %950 = vmatprep.subr.mxu0 %v756
        %951 = vmatpush1.msra.mxu0 %v755
        %952 = vmatprep.subr.mxu0 %v760
        %953 = vmatpush1.msra.mxu0 %v759
        %954 = vmatprep.subr.mxu0 %v764
        %955 = vmatpush1.msra.mxu0 %v763
        %956 = vmatprep.subr.mxu0 %v768
        %957 = vmatpush1.msra.mxu0 %v767
        %958 = vmatprep.subr.mxu0 %v772
        %959 = vmatpush1.msra.mxu0 %v771
        %960 = vmatprep.subr.mxu0 %v776
        %961 = vmatpush1.msra.mxu0 %v775
        %962 = vmatprep.subr.mxu0 %v780
        %963 = vmatpush1.msra.mxu0 %v779
        %964 = vmatprep.subr.mxu0 %v784
        %965 = vmatpush1.msra.mxu0 %v783
        %966 = vmatprep.subr.mxu0 %v788
        %967 = vmatpush1.msra.mxu0 %v787
        %968 = vmatprep.subr.mxu0 %v792
        %969 = vmatpush1.msra.mxu0 %v791
        %970 = vmatprep.subr.mxu0 %v796
        %971 = vmatpush1.msra.mxu0 %v795
        %972 = vmatprep.subr.mxu0 %v800
        %973 = vmatpush1.msra.mxu0 %v799
        %974 = vmatprep.subr.mxu0 %v804
        %975 = vmatpush1.msra.mxu0 %v803
        %976 = vmatprep.subr.mxu0 %v808
        %977 = vmatpush1.msra.mxu0 %v807
        %978 = vmatprep.subr.mxu0 %v812
        %979 = vmatpush1.msra.mxu0 %v811
        %980 = vmatprep.subr.mxu0 %v816
        %981 = vmatpush1.msra.mxu0 %v815
        %982 = vmatprep.subr.mxu0 %v820
        %983 = vmatpush1.msra.mxu0 %v819
        %984 = vmatprep.mubr.f32.mxu0 %v690
        %985 = vmatmul.mubr.f32.gmra.mrb[0].mxu0 %v689
        %v986 = vpop.f32.mrb[0].mxu0
        %v987 = vadd.f32 %v834, %v986
        %v988 = vpop.f32.mrb[0].mxu0
        %v989 = vadd.f32 %v838, %v988
        %990 = vmatprep.mubr.f32.mxu0 %v692
        %991 = vmatmul.mubr.f32.gmra.mrb[0].mxu0 %v691
        %v992 = vpop.f32.mrb[0].mxu0
        %v993 = vadd.f32 %v834, %v992
        %v994 = vpop.f32.mrb[0].mxu0
        %v995 = vadd.f32 %v838, %v994
        %996 = vdwg.mxu0
        %997 = vst [vmem:[%s583] sm:$0xff] %v910
        %998 = vst [vmem:[%s583 + $0x8] sm:$0xff] %v912
        %999 = vst [vmem:[%s583 + $0x10] sm:$0xff] %v987
        %1000 = vst [vmem:[%s583 + $0x18] sm:$0xff] %v989
        %1001 = vst [vmem:[%s583 + $0x20] sm:$0xff] %v916
        %1002 = vst [vmem:[%s583 + $0x28] sm:$0xff] %v918
        %1003 = vst [vmem:[%s583 + $0x30] sm:$0xff] %v993
        %1004 = vst [vmem:[%s583 + $0x38] sm:$0xff] %v995
        %s1005 = sand.u32 %s179, 1
        %s1006 = sand.u32 %s179, 1
        %s1007 = smul.addr %s1006, 64
        %s1008 = scalar_lea.vmem [#allocation4], %s1007
        // Predicated region
        $region68: #{single_stream_block_forward.7} parent=58 // pred_check
          %p1009 = pneg %p189
        $region69: #{single_stream_block_forward.7} parent=58 // pred_check_branch
          %1011 = sbr.rel (%p1009) target = $region71
        $region70: #{single_stream_block_forward.7} parent=58 // pred_region
          %s1012 = smul.u32 2, %s22
          %s1013 = smul.u32 4, %s23
          %s1014 = smul.addr %s1012, 8
          %s1015 = sadd.s32 %s1013, %s1014
          %s1016 = smul.addr %s21, 16
          %s1017 = sadd.s32 %s1015, %s1016
          %s1018 = smul.addr %s1017, 8
          %s1019 = scalar_lea.vmem %s5, %s1018
          // Predicated region
          $region72: #{single_stream_block_forward.7} parent=70 // pred_check
            _
          $region73: #{single_stream_block_forward.7} parent=70 // pred_check_branch
            %1021 = sbr.rel (0) target = $region75
          $region74: #{single_stream_block_forward.7} parent=70 // pred_region
            // Predicated region
            $region76: #{single_stream_block_forward.7} parent=74 // pred_check
              _
            $region77: #{single_stream_block_forward.7} parent=74 // pred_check_branch
              %1023 = sbr.rel (0) target = $region79
            $region78: #{single_stream_block_forward.7} parent=74 // pred_region
              loop: start=0, step=1, limit=1
              $region80: #{single_stream_block_forward.7} parent=78 // loop_pre_header
                _
              $region81: #{single_stream_block_forward.7} parent=78 // loop_header
                %s1025 = sphi 0, %s1029
                %p1026 = scmp.ge.s32.totalorder %s1025, 1
                %s1030 = sphi %s1008, %s1008
                %s1031 = sphi %s1019, %s1019
              $region82: #{single_stream_block_forward.7} parent=78 // loop_header_branch
                %1028 = sbr.rel (%p1026) target = $region86
              $region83: #{single_stream_block_forward.7} parent=78 // loop_body
                %v1032 = vld [vmem:[%s1030] sm:$0xff]
                %1033 = vst [vmem:[%s1031] sm:$0xff] %v1032
                %v1034 = vld [vmem:[%s1030 + $0x8] sm:$0xff]
                %1035 = vst [vmem:[%s1031 + $0x8] sm:$0xff] %v1034
                %v1036 = vld [vmem:[%s1030 + $0x10] sm:$0xff]
                %1037 = vst [vmem:[%s1031 + $0x10] sm:$0xff] %v1036
                %v1038 = vld [vmem:[%s1030 + $0x18] sm:$0xff]
                %1039 = vst [vmem:[%s1031 + $0x18] sm:$0xff] %v1038
                %v1040 = vld [vmem:[%s1030 + $0x20] sm:$0xff]
                %1041 = vst [vmem:[%s1031 + $0x40] sm:$0xff] %v1040
                %v1042 = vld [vmem:[%s1030 + $0x28] sm:$0xff]
                %1043 = vst [vmem:[%s1031 + $0x48] sm:$0xff] %v1042
                %v1044 = vld [vmem:[%s1030 + $0x30] sm:$0xff]
                %1045 = vst [vmem:[%s1031 + $0x50] sm:$0xff] %v1044
                %v1046 = vld [vmem:[%s1030 + $0x38] sm:$0xff]
                %1047 = vst [vmem:[%s1031 + $0x58] sm:$0xff] %v1046
              $region84: #{single_stream_block_forward.7} parent=78 // loop_footer
                %s1029 = sadd.s32 1, %s1025
              $region85: #{single_stream_block_forward.7} parent=78 // loop_footer_branch
                %1024 = sbr.rel target = $region81
              $region86: #{single_stream_block_forward.7} parent=78 // loop_exit
                _
            $region79: #{single_stream_block_forward.7} parent=74 // pred_fallthru
              _
            // Predicated region
            $region87: #{single_stream_block_forward.7} parent=74 // pred_check
              _
            $region88: #{single_stream_block_forward.7} parent=74 // pred_check_branch
              %1049 = sbr.rel target = $region90
            $region89: #{single_stream_block_forward.7} parent=74 // pred_region
              _
            $region90: #{single_stream_block_forward.7} parent=74 // pred_fallthru
              _
          $region75: #{single_stream_block_forward.7} parent=70 // pred_fallthru
            _
          %1050 = vnop
        $region71: #{single_stream_block_forward.7} parent=58 // pred_fallthru
          _
      $region59: #{single_stream_block_forward.7} parent=5 // pred_fallthru
        _
      %p1051 = scmp.le.s32.totalorder 2, %s11
      // Predicated region
      $region91: #{single_stream_block_forward.7} parent=5 // pred_check
        %p1052 = pneg %p1051
      $region92: #{single_stream_block_forward.7} parent=5 // pred_check_branch
        %1054 = sbr.rel (%p1052) target = $region94
      $region93: #{single_stream_block_forward.7} parent=5 // pred_region
        %s1055 = ssub.s32 %s11, 2
        // Predicated region
        $region95: #{single_stream_block_forward.7} parent=93 // pred_check
          %p1056 = pneg %p195
        $region96: #{single_stream_block_forward.7} parent=93 // pred_check_branch
          %1058 = sbr.rel (%p1056) target = $region98
        $region97: #{single_stream_block_forward.7} parent=93 // pred_region
          %s1059 = sand.u32 %s180, 1
          %s1060 = sand.u32 %s180, 1
          %s1061 = smul.addr %s1060, 64
          %s1062 = scalar_lea.vmem [#allocation4], %s1061
        $region98: #{single_stream_block_forward.7} parent=93 // pred_fallthru
          _
      $region94: #{single_stream_block_forward.7} parent=5 // pred_fallthru
        _
    $region6: #{single_stream_block_forward.7} parent=1 // loop_footer
      %s15 = sadd.s32 1, %s11
    $region7: #{single_stream_block_forward.7} parent=1 // loop_footer_branch
      %10 = sbr.rel target = $region3
    $region8: #{single_stream_block_forward.7} parent=1 // loop_exit
      _

// kernel: single_stream_block_forward.9
$region0: #{single_stream_block_forward.9}
  #allocation0 [shape = 'u32[]', space=smem, size = 0x4, offset = 0x4, fixed_abs, tag = 'smem constant byte address 0x4 - core index']
  #allocation1 [shape = 'u32[144,128]{1,0:T(1,128)}', space=vmem, size = 0x12000, scoped, tag = 'internal scratch']
  #allocation2 [shape = 'f32[16,1024]{1,0:T(8,128)}', space=vmem, size = 0x10000, scoped, tag = 'scratch operand']
  %s0 = inlined_call_operand.vmem [shape: f32[2,16,256], index: 0, kind: input, shape index: {}]
  %s1 = inlined_call_operand.vmem [shape: f32[2,16,1024], index: 1, kind: input, shape index: {}]
  %s2 = inlined_call_operand.vmem [shape: f32[2,16,256], index: 2, kind: input, shape index: {}]
  %s3 = inlined_call_operand.vmem [shape: f32[2,1,256], index: 3, kind: input, shape index: {}]
  %s4 = inlined_call_operand.vmem [shape: f32[256,256], index: 4, kind: input, shape index: {}]
  %s5 = inlined_call_operand.vmem [shape: f32[1024,256], index: 5, kind: input, shape index: {}]
  %s6 = inlined_call_operand.vmem [shape: f32[1,256], index: 6, kind: input, shape index: {}]
  %s7 = inlined_call_operand.hbm [shape: f32[2,16,256], index: 7, kind: output, shape index: {}]
  %s8 = sld [smem:[#allocation0]]
  $region65: #{single_stream_block_forward.9} parent=0
    _
  %s10 = ssub.s32 1, %s8
  %s11 = scalar_select 0, %s10, %s8
  $region1: #{single_stream_block_forward.9} parent=0
    #allocation3 [shape = 'u8[32768]{0}', space=vmem, size = 0x8000, scoped, tag = 'output window, operand 0']
    #allocation4 [shape = 's32[2]{0}', space=sflag, size = 0x8, scoped, tag = 'scoped memory for single_stream_block_forward.9']
    %12 = vsyncpa [#allocation4], 0
    %s13 = scalar_lea.sflag [#allocation4], 1
    %14 = vsyncpa %s13, 0
    loop: start=0, step=1, limit=4
    $region2: #{single_stream_block_forward.9} parent=1 // loop_pre_header
      _
    $region3: #{single_stream_block_forward.9} parent=1 // loop_header
      %s16 = sphi 0, %s20
      %p17 = scmp.ge.s32.totalorder %s16, 4
      %s23 = sphi 0, %s42
      %s24 = sphi 0, %s38
      %s25 = sphi 0, %s34
      %s26 = sphi 0, %s23
      %s27 = sphi 0, %s24
      %s28 = sphi 0, %s25
      %s29 = sphi 0, %s26
      %s30 = sphi 0, %s27
      %s31 = sphi 0, %s28
      %s47 = sphi 0, %s49
      %s50 = sphi 0, %s47
      %s51 = sphi 0, %s50
      %s67 = sphi 0, %s51
      %s75 = sphi 0, %s77
      %s78 = sphi 0, %s75
      %s79 = sphi 0, %s78
      %s95 = sphi 0, %s79
      %s105 = sphi 0, %s107
      %s108 = sphi 0, %s105
      %s109 = sphi 0, %s108
      %s125 = sphi 0, %s109
      %s133 = sphi 0, %s135
      %s136 = sphi 0, %s133
      %s137 = sphi 0, %s136
      %s153 = sphi 0, %s137
      %s159 = sphi 0, %s161
      %s162 = sphi 0, %s159
      %s163 = sphi 0, %s162
      %s179 = sphi 0, %s163
      %s185 = sphi 0, %s187
      %s188 = sphi 0, %s185
      %s189 = sphi 0, %s188
      %s205 = sphi 0, %s189
      %s211 = sphi 0, %s213
      %s214 = sphi 0, %s211
      %s215 = sphi 0, %s214
      %s231 = sphi 0, %s215
      %s241 = sphi 0, %s243
      %s244 = sphi 0, %s241
      %s245 = sphi 0, %s244
      %s261 = sphi 0, %s245
    $region4: #{single_stream_block_forward.9} parent=1 // loop_header_branch
      %19 = sbr.rel (%p17) target = $region8
    $region5: #{single_stream_block_forward.9} parent=1 // loop_body
      %s21 = ssub.s32 %s16, 1
      %s22 = ssub.s32 %s16, 2
      %s32 = sadd.s32 1, %s25
      %p33 = scmp.ge.s32.totalorder %s32, 1
      %s34 = scalar_select %p33, 0, %s32
      %s35 = sadd.s32 1, %s24
      %s36 = scalar_select %p33, %s35, %s24
      %p37 = scmp.ge.s32.totalorder %s36, 1
      %s38 = scalar_select %p37, 0, %s36
      %s39 = sadd.s32 1, %s23
      %s40 = scalar_select %p37, %s39, %s23
      %p41 = scmp.ge.s32.totalorder %s40, 2
      %s42 = scalar_select %p41, 0, %s40
      %s43 = ssub.s32 %s23, %s42
      %s44 = ssub.s32 %s24, %s38
      %s45 = sor.u32 %s43, %s44
      %p46 = scmp.eq.s32.totalorder %s45, 0
      %s48 = sadd.s32 %s47, 1
      %s49 = scalar_select %p46, %s47, %s48
      %p52 = pneg %p46
      %p53 = scmp.eq.s32.totalorder %s16, 1
      %p54 = por %p52, %p53
      %p55 = scmp.ne.s32.totalorder %s47, %s50
      %p56 = scmp.eq.s32.totalorder %s16, 0
      %p57 = por %p55, %p56
      %p58 = scmp.ne.s32.totalorder %s47, %s50
      %p59 = scmp.eq.s32.totalorder %s21, 1
      %p60 = por %p58, %p59
      %p61 = scmp.ne.s32.totalorder %s50, %s51
      %p62 = scmp.eq.s32.totalorder %s21, 0
      %p63 = por %p61, %p62
      %p64 = scmp.ne.s32.totalorder %s50, %s51
      %p65 = scmp.eq.s32.totalorder %s22, 1
      %p66 = por %p64, %p65
      %p68 = scmp.ne.s32.totalorder %s51, %s67
      %p69 = scmp.eq.s32.totalorder %s22, 0
      %p70 = por %p68, %p69
      %s71 = ssub.s32 %s23, %s42
      %s72 = ssub.s32 %s24, %s38
      %s73 = sor.u32 %s71, %s72
      %p74 = scmp.eq.s32.totalorder %s73, 0
      %s76 = sadd.s32 %s75, 1
      %s77 = scalar_select %p74, %s75, %s76
      %p80 = pneg %p74
      %p81 = scmp.eq.s32.totalorder %s16, 1
      %p82 = por %p80, %p81
      %p83 = scmp.ne.s32.totalorder %s75, %s78
      %p84 = scmp.eq.s32.totalorder %s16, 0
      %p85 = por %p83, %p84
      %p86 = scmp.ne.s32.totalorder %s75, %s78
      %p87 = scmp.eq.s32.totalorder %s21, 1
      %p88 = por %p86, %p87
      %p89 = scmp.ne.s32.totalorder %s78, %s79
      %p90 = scmp.eq.s32.totalorder %s21, 0
      %p91 = por %p89, %p90
      %p92 = scmp.ne.s32.totalorder %s78, %s79
      %p93 = scmp.eq.s32.totalorder %s22, 1
      %p94 = por %p92, %p93
      %p96 = scmp.ne.s32.totalorder %s79, %s95
      %p97 = scmp.eq.s32.totalorder %s22, 0
      %p98 = por %p96, %p97
      %s99 = ssub.s32 %s23, %s42
      %s100 = ssub.s32 %s24, %s38
      %s101 = sor.u32 %s99, %s100
      %s102 = ssub.s32 %s25, %s34
      %s103 = sor.u32 %s101, %s102
      %p104 = scmp.eq.s32.totalorder %s103, 0
      %s106 = sadd.s32 %s105, 1
      %s107 = scalar_select %p104, %s105, %s106
      %p110 = pneg %p104
      %p111 = scmp.eq.s32.totalorder %s16, 1
      %p112 = por %p110, %p111
      %p113 = scmp.ne.s32.totalorder %s105, %s108
      %p114 = scmp.eq.s32.totalorder %s16, 0
      %p115 = por %p113, %p114
      %p116 = scmp.ne.s32.totalorder %s105, %s108
      %p117 = scmp.eq.s32.totalorder %s21, 1
      %p118 = por %p116, %p117
      %p119 = scmp.ne.s32.totalorder %s108, %s109
      %p120 = scmp.eq.s32.totalorder %s21, 0
      %p121 = por %p119, %p120
      %p122 = scmp.ne.s32.totalorder %s108, %s109
      %p123 = scmp.eq.s32.totalorder %s22, 1
      %p124 = por %p122, %p123
      %p126 = scmp.ne.s32.totalorder %s109, %s125
      %p127 = scmp.eq.s32.totalorder %s22, 0
      %p128 = por %p126, %p127
      %s129 = ssub.s32 %s23, %s42
      %s130 = ssub.s32 %s25, %s34
      %s131 = sor.u32 %s129, %s130
      %p132 = scmp.eq.s32.totalorder %s131, 0
      %s134 = sadd.s32 %s133, 1
      %s135 = scalar_select %p132, %s133, %s134
      %p138 = pneg %p132
      %p139 = scmp.eq.s32.totalorder %s16, 1
      %p140 = por %p138, %p139
      %p141 = scmp.ne.s32.totalorder %s133, %s136
      %p142 = scmp.eq.s32.totalorder %s16, 0
      %p143 = por %p141, %p142
      %p144 = scmp.ne.s32.totalorder %s133, %s136
      %p145 = scmp.eq.s32.totalorder %s21, 1
      %p146 = por %p144, %p145
      %p147 = scmp.ne.s32.totalorder %s136, %s137
      %p148 = scmp.eq.s32.totalorder %s21, 0
      %p149 = por %p147, %p148
      %p150 = scmp.ne.s32.totalorder %s136, %s137
      %p151 = scmp.eq.s32.totalorder %s22, 1
      %p152 = por %p150, %p151
      %p154 = scmp.ne.s32.totalorder %s137, %s153
      %p155 = scmp.eq.s32.totalorder %s22, 0
      %p156 = por %p154, %p155
      %s157 = ssub.s32 %s25, %s34
      %p158 = scmp.eq.s32.totalorder %s157, 0
      %s160 = sadd.s32 %s159, 1
      %s161 = scalar_select %p158, %s159, %s160
      %p164 = pneg %p158
      %p165 = scmp.eq.s32.totalorder %s16, 1
      %p166 = por %p164, %p165
      %p167 = scmp.ne.s32.totalorder %s159, %s162
      %p168 = scmp.eq.s32.totalorder %s16, 0
      %p169 = por %p167, %p168
      %p170 = scmp.ne.s32.totalorder %s159, %s162
      %p171 = scmp.eq.s32.totalorder %s21, 1
      %p172 = por %p170, %p171
      %p173 = scmp.ne.s32.totalorder %s162, %s163
      %p174 = scmp.eq.s32.totalorder %s21, 0
      %p175 = por %p173, %p174
      %p176 = scmp.ne.s32.totalorder %s162, %s163
      %p177 = scmp.eq.s32.totalorder %s22, 1
      %p178 = por %p176, %p177
      %p180 = scmp.ne.s32.totalorder %s163, %s179
      %p181 = scmp.eq.s32.totalorder %s22, 0
      %p182 = por %p180, %p181
      %s183 = ssub.s32 %s25, %s34
      %p184 = scmp.eq.s32.totalorder %s183, 0
      %s186 = sadd.s32 %s185, 1
      %s187 = scalar_select %p184, %s185, %s186
      %p190 = pneg %p184
      %p191 = scmp.eq.s32.totalorder %s16, 1
      %p192 = por %p190, %p191
      %p193 = scmp.ne.s32.totalorder %s185, %s188
      %p194 = scmp.eq.s32.totalorder %s16, 0
      %p195 = por %p193, %p194
      %p196 = scmp.ne.s32.totalorder %s185, %s188
      %p197 = scmp.eq.s32.totalorder %s21, 1
      %p198 = por %p196, %p197
      %p199 = scmp.ne.s32.totalorder %s188, %s189
      %p200 = scmp.eq.s32.totalorder %s21, 0
      %p201 = por %p199, %p200
      %p202 = scmp.ne.s32.totalorder %s188, %s189
      %p203 = scmp.eq.s32.totalorder %s22, 1
      %p204 = por %p202, %p203
      %p206 = scmp.ne.s32.totalorder %s189, %s205
      %p207 = scmp.eq.s32.totalorder %s22, 0
      %p208 = por %p206, %p207
      %s209 = ssub.s32 %s25, %s34
      %p210 = scmp.eq.s32.totalorder %s209, 0
      %s212 = sadd.s32 %s211, 1
      %s213 = scalar_select %p210, %s211, %s212
      %p216 = pneg %p210
      %p217 = scmp.eq.s32.totalorder %s16, 1
      %p218 = por %p216, %p217
      %p219 = scmp.ne.s32.totalorder %s211, %s214
      %p220 = scmp.eq.s32.totalorder %s16, 0
      %p221 = por %p219, %p220
      %p222 = scmp.ne.s32.totalorder %s211, %s214
      %p223 = scmp.eq.s32.totalorder %s21, 1
      %p224 = por %p222, %p223
      %p225 = scmp.ne.s32.totalorder %s214, %s215
      %p226 = scmp.eq.s32.totalorder %s21, 0
      %p227 = por %p225, %p226
      %p228 = scmp.ne.s32.totalorder %s214, %s215
      %p229 = scmp.eq.s32.totalorder %s22, 1
      %p230 = por %p228, %p229
      %p232 = scmp.ne.s32.totalorder %s215, %s231
      %p233 = scmp.eq.s32.totalorder %s22, 0
      %p234 = por %p232, %p233
      %s235 = ssub.s32 %s23, %s42
      %s236 = ssub.s32 %s24, %s38
      %s237 = sor.u32 %s235, %s236
      %s238 = ssub.s32 %s25, %s34
      %s239 = sor.u32 %s237, %s238
      %p240 = scmp.eq.s32.totalorder %s239, 0
      %s242 = sadd.s32 %s241, 1
      %s243 = scalar_select %p240, %s241, %s242
      %p246 = pneg %p240
      %p247 = scmp.eq.s32.totalorder %s16, 1
      %p248 = por %p246, %p247
      %p249 = scmp.ne.s32.totalorder %s241, %s244
      %p250 = scmp.eq.s32.totalorder %s16, 0
      %p251 = por %p249, %p250
      %p252 = scmp.ne.s32.totalorder %s241, %s244
      %p253 = scmp.eq.s32.totalorder %s21, 1
      %p254 = por %p252, %p253
      %p255 = scmp.ne.s32.totalorder %s244, %s245
      %p256 = scmp.eq.s32.totalorder %s21, 0
      %p257 = por %p255, %p256
      %p258 = scmp.ne.s32.totalorder %s244, %s245
      %p259 = scmp.eq.s32.totalorder %s22, 1
      %p260 = por %p258, %p259
      %p262 = scmp.ne.s32.totalorder %s245, %s261
      %p263 = scmp.eq.s32.totalorder %s22, 0
      %p264 = por %p262, %p263
      %p265 = scmp.le.s32.totalorder 1, %s16
      %p266 = scmp.lt.s32.totalorder %s16, 3
      %p267 = pnand %p265, %p266
      %p268 = pneg %p267
      // Predicated region
      $region9: #{single_stream_block_forward.9} parent=5 // pred_check
        _
      $region10: #{single_stream_block_forward.9} parent=5 // pred_check_branch
        %270 = sbr.rel (%p267) target = $region12
      $region11: #{single_stream_block_forward.9} parent=5 // pred_region
        %s271 = ssub.s32 %s16, 1
        // Predicated region
        $region13: #{single_stream_block_forward.9} parent=11 // pred_check
          %p272 = pneg %p175
        $region14: #{single_stream_block_forward.9} parent=11 // pred_check_branch
          %274 = sbr.rel (%p272) target = $region16
        $region15: #{single_stream_block_forward.9} parent=11 // pred_region
          %s275 = smul.u32 2, %s28
          %p276 = scmp.lt.s32.totalorder %s275, 1
          %s277 = scalar_select %p276, %s275, 1
          %s278 = smul.addr %s277, 8
          %s279 = scalar_lea.vmem %s4, %s278
          %s280 = smul.u32 2, %s28
        $region16: #{single_stream_block_forward.9} parent=11 // pred_fallthru
          _
        // Predicated region
        $region17: #{single_stream_block_forward.9} parent=11 // pred_check
          %p281 = pneg %p201
        $region18: #{single_stream_block_forward.9} parent=11 // pred_check_branch
          %283 = sbr.rel (%p281) target = $region20
        $region19: #{single_stream_block_forward.9} parent=11 // pred_region
          %s284 = smul.u32 2, %s28
          %p285 = scmp.lt.s32.totalorder %s284, 1
          %s286 = scalar_select %p285, %s284, 1
          %s287 = smul.addr %s286, 8
          %s288 = scalar_lea.vmem %s5, %s287
          %s289 = smul.u32 2, %s28
        $region20: #{single_stream_block_forward.9} parent=11 // pred_fallthru
          _
        // Predicated region
        $region21: #{single_stream_block_forward.9} parent=11 // pred_check
          %p290 = pneg %p227
        $region22: #{single_stream_block_forward.9} parent=11 // pred_check_branch
          %292 = sbr.rel (%p290) target = $region24
        $region23: #{single_stream_block_forward.9} parent=11 // pred_region
          %s293 = smul.u32 2, %s28
          %p294 = scmp.lt.s32.totalorder %s293, 1
          %s295 = scalar_select %p294, %s293, 1
          %s296 = scalar_lea.vmem %s6, %s295
          %s297 = smul.u32 2, %s28
        $region24: #{single_stream_block_forward.9} parent=11 // pred_fallthru
          _
      $region12: #{single_stream_block_forward.9} parent=5 // pred_fallthru
        _
      %p298 = scmp.lt.s32.totalorder %s16, 2
      // Predicated region
      $region25: #{single_stream_block_forward.9} parent=5 // pred_check
        %p299 = pneg %p298
      $region26: #{single_stream_block_forward.9} parent=5 // pred_check_branch
        %301 = sbr.rel (%p299) target = $region28
      $region27: #{single_stream_block_forward.9} parent=5 // pred_region
        // Predicated region
        $region29: #{single_stream_block_forward.9} parent=27 // pred_check
          %p302 = pneg %p57
        $region30: #{single_stream_block_forward.9} parent=27 // pred_check_branch
          %304 = sbr.rel (%p302) target = $region32
        $region31: #{single_stream_block_forward.9} parent=27 // pred_region
          %s305 = smul.u32 2, %s24
          %p306 = scmp.lt.s32.totalorder %s23, 1
          %s307 = scalar_select %p306, %s23, 1
          %p308 = scmp.lt.s32.totalorder %s305, 1
          %s309 = scalar_select %p308, %s305, 1
          %s310 = smul.addr %s309, 2
          %s311 = smul.addr %s307, 4
          %s312 = sadd.s32 %s310, %s311
          %s313 = smul.addr %s312, 8
          %s314 = scalar_lea.vmem %s0, %s313
          %s315 = smul.u32 2, %s24
        $region32: #{single_stream_block_forward.9} parent=27 // pred_fallthru
          _
        // Predicated region
        $region33: #{single_stream_block_forward.9} parent=27 // pred_check
          %p316 = pneg %p85
        $region34: #{single_stream_block_forward.9} parent=27 // pred_check_branch
          %318 = sbr.rel (%p316) target = $region36
        $region35: #{single_stream_block_forward.9} parent=27 // pred_region
          %s319 = smul.u32 2, %s24
          %p320 = scmp.lt.s32.totalorder %s23, 1
          %s321 = scalar_select %p320, %s23, 1
          %p322 = scmp.lt.s32.totalorder %s319, 1
          %s323 = scalar_select %p322, %s319, 1
          %s324 = smul.addr %s323, 8
          %s325 = smul.addr %s321, 16
          %s326 = sadd.s32 %s324, %s325
          %s327 = smul.addr %s326, 8
          %s328 = scalar_lea.vmem %s1, %s327
          %s329 = smul.u32 2, %s24
        $region36: #{single_stream_block_forward.9} parent=27 // pred_fallthru
          _
        // Predicated region
        $region37: #{single_stream_block_forward.9} parent=27 // pred_check
          %p330 = pneg %p115
        $region38: #{single_stream_block_forward.9} parent=27 // pred_check_branch
          %332 = sbr.rel (%p330) target = $region40
        $region39: #{single_stream_block_forward.9} parent=27 // pred_region
          %s333 = smul.u32 2, %s24
          %s334 = smul.u32 2, %s25
          %p335 = scmp.lt.s32.totalorder %s23, 1
          %s336 = scalar_select %p335, %s23, 1
          %p337 = scmp.lt.s32.totalorder %s333, 1
          %s338 = scalar_select %p337, %s333, 1
          %p339 = scmp.lt.s32.totalorder %s334, 1
          %s340 = scalar_select %p339, %s334, 1
          %s341 = smul.addr %s338, 2
          %s342 = sadd.s32 %s340, %s341
          %s343 = smul.addr %s336, 4
          %s344 = sadd.s32 %s342, %s343
          %s345 = smul.addr %s344, 8
          %s346 = scalar_lea.vmem %s2, %s345
          %s347 = smul.u32 2, %s24
          %s348 = smul.u32 2, %s25
        $region40: #{single_stream_block_forward.9} parent=27 // pred_fallthru
          _
        // Predicated region
        $region41: #{single_stream_block_forward.9} parent=27 // pred_check
          %p349 = pneg %p143
        $region42: #{single_stream_block_forward.9} parent=27 // pred_check_branch
          %351 = sbr.rel (%p349) target = $region44
        $region43: #{single_stream_block_forward.9} parent=27 // pred_region
          %s352 = smul.u32 2, %s25
          %p353 = scmp.lt.s32.totalorder %s23, 1
          %s354 = scalar_select %p353, %s23, 1
          %p355 = scmp.lt.s32.totalorder %s352, 1
          %s356 = scalar_select %p355, %s352, 1
          %s357 = smul.addr %s354, 2
          %s358 = sadd.s32 %s356, %s357
          %s359 = scalar_lea.vmem %s3, %s358
          %s360 = smul.u32 2, %s25
        $region44: #{single_stream_block_forward.9} parent=27 // pred_fallthru
          _
      $region28: #{single_stream_block_forward.9} parent=5 // pred_fallthru
        _
      %p361 = scmp.le.s32.totalorder 1, %s16
      %p362 = scmp.lt.s32.totalorder %s16, 3
      %p363 = pnand %p361, %p362
      %p364 = pneg %p363
      // Predicated region
      $region45: #{single_stream_block_forward.9} parent=5 // pred_check
        _
      $region46: #{single_stream_block_forward.9} parent=5 // pred_check_branch
        %366 = sbr.rel (%p363) target = $region48
      $region47: #{single_stream_block_forward.9} parent=5 // pred_region
        %s367 = ssub.s32 %s16, 1
        %s368 = smul.u32 2, %s27
        %p369 = scmp.lt.s32.totalorder %s26, 1
        %s370 = scalar_select %p369, %s26, 1
        %p371 = scmp.lt.s32.totalorder %s368, 1
        %s372 = scalar_select %p371, %s368, 1
        %s373 = smul.addr %s372, 2
        %s374 = smul.addr %s370, 4
        %s375 = sadd.s32 %s373, %s374
        %s376 = smul.addr %s375, 8
        %s377 = scalar_lea.vmem %s0, %s376
        %p378 = pneg %p63
        %p379 = pneg %p60
        %s380 = smul.u32 2, %s27
        %p381 = scmp.lt.s32.totalorder %s26, 1
        %s382 = scalar_select %p381, %s26, 1
        %p383 = scmp.lt.s32.totalorder %s380, 1
        %s384 = scalar_select %p383, %s380, 1
        %s385 = smul.addr %s384, 8
        %s386 = smul.addr %s382, 16
        %s387 = sadd.s32 %s385, %s386
        %s388 = smul.addr %s387, 8
        %s389 = scalar_lea.vmem %s1, %s388
        %p390 = pneg %p91
        %p391 = pneg %p88
        %s392 = smul.u32 2, %s27
        %s393 = smul.u32 2, %s28
        %p394 = scmp.lt.s32.totalorder %s26, 1
        %s395 = scalar_select %p394, %s26, 1
        %p396 = scmp.lt.s32.totalorder %s392, 1
        %s397 = scalar_select %p396, %s392, 1
        %p398 = scmp.lt.s32.totalorder %s393, 1
        %s399 = scalar_select %p398, %s393, 1
        %s400 = smul.addr %s397, 2
        %s401 = sadd.s32 %s399, %s400
        %s402 = smul.addr %s395, 4
        %s403 = sadd.s32 %s401, %s402
        %s404 = smul.addr %s403, 8
        %s405 = scalar_lea.vmem %s2, %s404
        %p406 = pneg %p121
        %p407 = pneg %p118
        %s408 = smul.u32 2, %s28
        %p409 = scmp.lt.s32.totalorder %s26, 1
        %s410 = scalar_select %p409, %s26, 1
        %p411 = scmp.lt.s32.totalorder %s408, 1
        %s412 = scalar_select %p411, %s408, 1
        %s413 = smul.addr %s410, 2
        %s414 = sadd.s32 %s412, %s413
        %s415 = scalar_lea.vmem %s3, %s414
        %p416 = pneg %p149
        %p417 = pneg %p146
        %s418 = smul.u32 2, %s28
        %p419 = scmp.lt.s32.totalorder %s418, 1
        %s420 = scalar_select %p419, %s418, 1
        %s421 = smul.addr %s420, 8
        %s422 = scalar_lea.vmem %s4, %s421
        %p423 = pneg %p175
        %p424 = pneg %p172
        %s425 = smul.u32 2, %s28
        %p426 = scmp.lt.s32.totalorder %s425, 1
        %s427 = scalar_select %p426, %s425, 1
        %s428 = smul.addr %s427, 8
        %s429 = scalar_lea.vmem %s5, %s428
        %p430 = pneg %p201
        %p431 = pneg %p198
        %s432 = smul.u32 2, %s28
        %p433 = scmp.lt.s32.totalorder %s432, 1
        %s434 = scalar_select %p433, %s432, 1
        %s435 = scalar_lea.vmem %s6, %s434
        %p436 = pneg %p227
        %p437 = pneg %p224
        %p438 = pneg %p257
        %p439 = pneg %p254
        %s440 = sand.u32 %s244, 1
        %s441 = scalar_lea.sflag [#allocation4], %s440
        %s442 = sand.u32 %s244, 1
        %s443 = smul.addr %s442, 32
        %s444 = scalar_lea.vmem [#allocation3], %s443
        %s445 = smul.u32 2, %s27
        %p446 = scmp.lt.s32.totalorder %s26, 1
        %s447 = scalar_select %p446, %s26, 1
        %p448 = scmp.lt.s32.totalorder %s445, 1
        %s449 = scalar_select %p448, %s445, 1
        %s450 = smul.addr %s449, 2
        %s451 = smul.addr %s447, 4
        %s452 = sadd.s32 %s450, %s451
        %s453 = smul.addr %s452, 8
        %s454 = scalar_lea.vmem %s0, %s453
        %s455 = smul.u32 2, %s27
        %s456 = smul.u32 2, %s27
        %p457 = scmp.lt.s32.totalorder %s26, 1
        %s458 = scalar_select %p457, %s26, 1
        %p459 = scmp.lt.s32.totalorder %s456, 1
        %s460 = scalar_select %p459, %s456, 1
        %s461 = smul.addr %s460, 8
        %s462 = smul.addr %s458, 16
        %s463 = sadd.s32 %s461, %s462
        %s464 = smul.addr %s463, 8
        %s465 = scalar_lea.vmem %s1, %s464
        %s466 = smul.u32 2, %s27
        %s467 = smul.u32 2, %s27
        %s468 = smul.u32 2, %s28
        %p469 = scmp.lt.s32.totalorder %s26, 1
        %s470 = scalar_select %p469, %s26, 1
        %p471 = scmp.lt.s32.totalorder %s467, 1
        %s472 = scalar_select %p471, %s467, 1
        %p473 = scmp.lt.s32.totalorder %s468, 1
        %s474 = scalar_select %p473, %s468, 1
        %s475 = smul.addr %s472, 2
        %s476 = sadd.s32 %s474, %s475
        %s477 = smul.addr %s470, 4
        %s478 = sadd.s32 %s476, %s477
        %s479 = smul.addr %s478, 8
        %s480 = scalar_lea.vmem %s2, %s479
        %s481 = smul.u32 2, %s27
        %s482 = smul.u32 2, %s28
        %s483 = smul.u32 2, %s28
        %p484 = scmp.lt.s32.totalorder %s26, 1
        %s485 = scalar_select %p484, %s26, 1
        %p486 = scmp.lt.s32.totalorder %s483, 1
        %s487 = scalar_select %p486, %s483, 1
        %s488 = smul.addr %s485, 2
        %s489 = sadd.s32 %s487, %s488
        %s490 = scalar_lea.vmem %s3, %s489
        %s491 = smul.u32 2, %s28
        %s492 = smul.u32 2, %s28
        %p493 = scmp.lt.s32.totalorder %s492, 1
        %s494 = scalar_select %p493, %s492, 1
        %s495 = smul.addr %s494, 8
        %s496 = scalar_lea.vmem %s4, %s495
        %s497 = smul.u32 2, %s28
        %s498 = smul.u32 2, %s28
        %p499 = scmp.lt.s32.totalorder %s498, 1
        %s500 = scalar_select %p499, %s498, 1
        %s501 = smul.addr %s500, 8
        %s502 = scalar_lea.vmem %s5, %s501
        %s503 = smul.u32 2, %s28
        %s504 = smul.u32 2, %s28
        %p505 = scmp.lt.s32.totalorder %s504, 1
        %s506 = scalar_select %p505, %s504, 1
        %s507 = scalar_lea.vmem %s6, %s506
        %s508 = smul.u32 2, %s28
        %s509 = smul.u32 2, %s27
        %s510 = smul.u32 2, %s28
        %p511 = scmp.eq.s32.totalorder %s28, 0
        // Predicated region
        $region49: #{single_stream_block_forward.9} parent=47 // pred_check
          %p512 = pneg %p511
        $region50: #{single_stream_block_forward.9} parent=47 // pred_check_branch
          %514 = sbr.rel (%p512) target = $region52
        $region51: #{single_stream_block_forward.9} parent=47 // pred_region
          %v515 = vld [vmem:[%s465] sm:$0xff]
          %v516 = vld [vmem:[%s465 + $0x8] sm:$0xff]
          %v517 = vld [vmem:[%s465 + $0x10] sm:$0xff]
          %v518 = vld [vmem:[%s465 + $0x18] sm:$0xff]
          %v519 = vld [vmem:[%s465 + $0x20] sm:$0xff]
          %v520 = vld [vmem:[%s465 + $0x28] sm:$0xff]
          %v521 = vld [vmem:[%s465 + $0x30] sm:$0xff]
          %v522 = vld [vmem:[%s465 + $0x38] sm:$0xff]
          %v523 = vld [vmem:[%s465 + $0x40] sm:$0xff]
          %v524 = vld [vmem:[%s465 + $0x48] sm:$0xff]
          %v525 = vld [vmem:[%s465 + $0x50] sm:$0xff]
          %v526 = vld [vmem:[%s465 + $0x58] sm:$0xff]
          %v527 = vld [vmem:[%s465 + $0x60] sm:$0xff]
          %v528 = vld [vmem:[%s465 + $0x68] sm:$0xff]
          %v529 = vld [vmem:[%s465 + $0x70] sm:$0xff]
          %v530 = vld [vmem:[%s465 + $0x78] sm:$0xff]
          %v531 = vmul.f32 %v515, 0.5
          %v532 = vmul.f32 %v516, 0.5
          %v533 = vmul.f32 %v517, 0.5
          %v534 = vmul.f32 %v518, 0.5
          %v535 = vmul.f32 %v519, 0.5
          %v536 = vmul.f32 %v520, 0.5
          %v537 = vmul.f32 %v521, 0.5
          %v538 = vmul.f32 %v522, 0.5
          %v539 = vmul.f32 %v523, 0.5
          %v540 = vmul.f32 %v524, 0.5
          %v541 = vmul.f32 %v525, 0.5
          %v542 = vmul.f32 %v526, 0.5
          %v543 = vmul.f32 %v527, 0.5
          %v544 = vmul.f32 %v528, 0.5
          %v545 = vmul.f32 %v529, 0.5
          %v546 = vmul.f32 %v530, 0.5
          %v547 = vmul.f32 %v515, 0.044715
          %v548 = vmul.f32 %v516, 0.044715
          %v549 = vmul.f32 %v517, 0.044715
          %v550 = vmul.f32 %v518, 0.044715
          %v551 = vmul.f32 %v519, 0.044715
          %v552 = vmul.f32 %v520, 0.044715
          %v553 = vmul.f32 %v521, 0.044715
          %v554 = vmul.f32 %v522, 0.044715
          %v555 = vmul.f32 %v523, 0.044715
          %v556 = vmul.f32 %v524, 0.044715
          %v557 = vmul.f32 %v525, 0.044715
          %v558 = vmul.f32 %v526, 0.044715
          %v559 = vmul.f32 %v527, 0.044715
          %v560 = vmul.f32 %v528, 0.044715
          %v561 = vmul.f32 %v529, 0.044715
          %v562 = vmul.f32 %v530, 0.044715
          %v563 = vmul.f32 %v547, %v515
          %v564 = vmul.f32 %v548, %v516
          %v565 = vmul.f32 %v549, %v517
          %v566 = vmul.f32 %v550, %v518
          %v567 = vmul.f32 %v551, %v519
          %v568 = vmul.f32 %v552, %v520
          %v569 = vmul.f32 %v553, %v521
          %v570 = vmul.f32 %v554, %v522
          %v571 = vmul.f32 %v555, %v523
          %v572 = vmul.f32 %v556, %v524
          %v573 = vmul.f32 %v557, %v525
          %v574 = vmul.f32 %v558, %v526
          %v575 = vmul.f32 %v559, %v527
          %v576 = vmul.f32 %v560, %v528
          %v577 = vmul.f32 %v561, %v529
          %v578 = vmul.f32 %v562, %v530
          %v579 = vmul.f32 %v563, %v515
          %v580 = vmul.f32 %v564, %v516
          %v581 = vmul.f32 %v565, %v517
          %v582 = vmul.f32 %v566, %v518
          %v583 = vmul.f32 %v567, %v519
          %v584 = vmul.f32 %v568, %v520
          %v585 = vmul.f32 %v569, %v521
          %v586 = vmul.f32 %v570, %v522
          %v587 = vmul.f32 %v571, %v523
          %v588 = vmul.f32 %v572, %v524
          %v589 = vmul.f32 %v573, %v525
          %v590 = vmul.f32 %v574, %v526
          %v591 = vmul.f32 %v575, %v527
          %v592 = vmul.f32 %v576, %v528
          %v593 = vmul.f32 %v577, %v529
          %v594 = vmul.f32 %v578, %v530
          %v595 = vadd.f32 %v515, %v579
          %v596 = vadd.f32 %v516, %v580
          %v597 = vadd.f32 %v517, %v581
          %v598 = vadd.f32 %v518, %v582
          %v599 = vadd.f32 %v519, %v583
          %v600 = vadd.f32 %v520, %v584
          %v601 = vadd.f32 %v521, %v585
          %v602 = vadd.f32 %v522, %v586
          %v603 = vadd.f32 %v523, %v587
          %v604 = vadd.f32 %v524, %v588
          %v605 = vadd.f32 %v525, %v589
          %v606 = vadd.f32 %v526, %v590
          %v607 = vadd.f32 %v527, %v591
          %v608 = vadd.f32 %v528, %v592
          %v609 = vadd.f32 %v529, %v593
          %v610 = vadd.f32 %v530, %v594
          %v611 = vmul.f32 %v595, 0.7978846
          %v612 = vmul.f32 %v596, 0.7978846
          %v613 = vmul.f32 %v597, 0.7978846
          %v614 = vmul.f32 %v598, 0.7978846
          %v615 = vmul.f32 %v599, 0.7978846
          %v616 = vmul.f32 %v600, 0.7978846
          %v617 = vmul.f32 %v601, 0.7978846
          %v618 = vmul.f32 %v602, 0.7978846
          %v619 = vmul.f32 %v603, 0.7978846
          %v620 = vmul.f32 %v604, 0.7978846
          %v621 = vmul.f32 %v605, 0.7978846
          %v622 = vmul.f32 %v606, 0.7978846
          %v623 = vmul.f32 %v607, 0.7978846
          %v624 = vmul.f32 %v608, 0.7978846
          %v625 = vmul.f32 %v609, 0.7978846
          %v626 = vmul.f32 %v610, 0.7978846
          %v627 = vtanh.pop %v611
          %v628 = vtanh.pop %v612
          %v629 = vtanh.pop %v613
          %v630 = vtanh.pop %v614
          %v631 = vtanh.pop %v615
          %v632 = vtanh.pop %v616
          %v633 = vtanh.pop %v617
          %v634 = vtanh.pop %v618
          %v635 = vtanh.pop %v619
          %v636 = vtanh.pop %v620
          %v637 = vtanh.pop %v621
          %v638 = vtanh.pop %v622
          %v639 = vtanh.pop %v623
          %v640 = vtanh.pop %v624
          %v641 = vtanh.pop %v625
          %v642 = vtanh.pop %v626
          %v643 = vadd.f32 %v627, 1.0
          %v644 = vadd.f32 %v628, 1.0
          %v645 = vadd.f32 %v629, 1.0
          %v646 = vadd.f32 %v630, 1.0
          %v647 = vadd.f32 %v631, 1.0
          %v648 = vadd.f32 %v632, 1.0
          %v649 = vadd.f32 %v633, 1.0
          %v650 = vadd.f32 %v634, 1.0
          %v651 = vadd.f32 %v635, 1.0
          %v652 = vadd.f32 %v636, 1.0
          %v653 = vadd.f32 %v637, 1.0
          %v654 = vadd.f32 %v638, 1.0
          %v655 = vadd.f32 %v639, 1.0
          %v656 = vadd.f32 %v640, 1.0
          %v657 = vadd.f32 %v641, 1.0
          %v658 = vadd.f32 %v642, 1.0
          %v659 = vmul.f32 %v531, %v643
          %v660 = vmul.f32 %v532, %v644
          %v661 = vmul.f32 %v533, %v645
          %v662 = vmul.f32 %v534, %v646
          %v663 = vmul.f32 %v535, %v647
          %v664 = vmul.f32 %v536, %v648
          %v665 = vmul.f32 %v537, %v649
          %v666 = vmul.f32 %v538, %v650
          %v667 = vmul.f32 %v539, %v651
          %v668 = vmul.f32 %v540, %v652
          %v669 = vmul.f32 %v541, %v653
          %v670 = vmul.f32 %v542, %v654
          %v671 = vmul.f32 %v543, %v655
          %v672 = vmul.f32 %v544, %v656
          %v673 = vmul.f32 %v545, %v657
          %v674 = vmul.f32 %v546, %v658
          %675 = vst [vmem:[#allocation2] sm:$0xff] %v659
          %676 = vst [vmem:[#allocation2 + $0x8] sm:$0xff] %v660
          %677 = vst [vmem:[#allocation2 + $0x10] sm:$0xff] %v661
          %678 = vst [vmem:[#allocation2 + $0x18] sm:$0xff] %v662
          %679 = vst [vmem:[#allocation2 + $0x20] sm:$0xff] %v663
          %680 = vst [vmem:[#allocation2 + $0x28] sm:$0xff] %v664
          %681 = vst [vmem:[#allocation2 + $0x30] sm:$0xff] %v665
          %682 = vst [vmem:[#allocation2 + $0x38] sm:$0xff] %v666
          %683 = vst [vmem:[#allocation2 + $0x40] sm:$0xff] %v667
          %684 = vst [vmem:[#allocation2 + $0x48] sm:$0xff] %v668
          %685 = vst [vmem:[#allocation2 + $0x50] sm:$0xff] %v669
          %686 = vst [vmem:[#allocation2 + $0x58] sm:$0xff] %v670
          %687 = vst [vmem:[#allocation2 + $0x60] sm:$0xff] %v671
          %688 = vst [vmem:[#allocation2 + $0x68] sm:$0xff] %v672
          %689 = vst [vmem:[#allocation2 + $0x70] sm:$0xff] %v673
          %690 = vst [vmem:[#allocation2 + $0x78] sm:$0xff] %v674
        $region52: #{single_stream_block_forward.9} parent=47 // pred_fallthru
          _
        %v691 = vld [vmem:[%s454] sm:$0xff]
        %v692 = vld [vmem:[%s454 + $0x8] sm:$0xff]
        %v693 = vld [vmem:[%s454 + $0x10] sm:$0xff]
        %v694 = vld [vmem:[%s454 + $0x18] sm:$0xff]
        %v695 = vld [vmem:[%s496] sm:$0xff]
        %v696 = vld [vmem:[%s496 + $0x8] sm:$0xff]
        %v697 = vld [vmem:[%s496 + $0x10] sm:$0xff]
        %v698 = vld [vmem:[%s496 + $0x18] sm:$0xff]
        %v699 = vld [vmem:[%s496 + $0x20] sm:$0xff]
        %v700 = vld [vmem:[%s496 + $0x28] sm:$0xff]
        %v701 = vld [vmem:[%s496 + $0x30] sm:$0xff]
        %v702 = vld [vmem:[%s496 + $0x38] sm:$0xff]
        %v703 = vld [vmem:[%s496 + $0x40] sm:$0xff]
        %v704 = vld [vmem:[%s496 + $0x48] sm:$0xff]
        %v705 = vld [vmem:[%s496 + $0x50] sm:$0xff]
        %v706 = vld [vmem:[%s496 + $0x58] sm:$0xff]
        %v707 = vld [vmem:[%s496 + $0x60] sm:$0xff]
        %v708 = vld [vmem:[%s496 + $0x68] sm:$0xff]
        %v709 = vld [vmem:[%s496 + $0x70] sm:$0xff]
        %v710 = vld [vmem:[%s496 + $0x78] sm:$0xff]
        %v711 = vld [vmem:[%s496 + $0x80] sm:$0xff]
        %v712 = vld [vmem:[%s496 + $0x88] sm:$0xff]
        %v713 = vld [vmem:[%s496 + $0x90] sm:$0xff]
        %v714 = vld [vmem:[%s496 + $0x98] sm:$0xff]
        %v715 = vld [vmem:[%s496 + $0xa0] sm:$0xff]
        %v716 = vld [vmem:[%s496 + $0xa8] sm:$0xff]
        %v717 = vld [vmem:[%s496 + $0xb0] sm:$0xff]
        %v718 = vld [vmem:[%s496 + $0xb8] sm:$0xff]
        %v719 = vld [vmem:[%s496 + $0xc0] sm:$0xff]
        %v720 = vld [vmem:[%s496 + $0xc8] sm:$0xff]
        %v721 = vld [vmem:[%s496 + $0xd0] sm:$0xff]
        %v722 = vld [vmem:[%s496 + $0xd8] sm:$0xff]
        %v723 = vld [vmem:[%s496 + $0xe0] sm:$0xff]
        %v724 = vld [vmem:[%s496 + $0xe8] sm:$0xff]
        %v725 = vld [vmem:[%s496 + $0xf0] sm:$0xff]
        %v726 = vld [vmem:[%s496 + $0xf8] sm:$0xff]
        %v727 = vld [vmem:[%s496 + $0x100] sm:$0xff]
        %v728 = vld [vmem:[%s496 + $0x108] sm:$0xff]
        %v729 = vld [vmem:[%s496 + $0x110] sm:$0xff]
        %v730 = vld [vmem:[%s496 + $0x118] sm:$0xff]
        %v731 = vld [vmem:[%s496 + $0x120] sm:$0xff]
        %v732 = vld [vmem:[%s496 + $0x128] sm:$0xff]
        %v733 = vld [vmem:[%s496 + $0x130] sm:$0xff]
        %v734 = vld [vmem:[%s496 + $0x138] sm:$0xff]
        %v735 = vld [vmem:[%s496 + $0x140] sm:$0xff]
        %v736 = vld [vmem:[%s496 + $0x148] sm:$0xff]
        %v737 = vld [vmem:[%s496 + $0x150] sm:$0xff]
        %v738 = vld [vmem:[%s496 + $0x158] sm:$0xff]
        %v739 = vld [vmem:[%s496 + $0x160] sm:$0xff]
        %v740 = vld [vmem:[%s496 + $0x168] sm:$0xff]
        %v741 = vld [vmem:[%s496 + $0x170] sm:$0xff]
        %v742 = vld [vmem:[%s496 + $0x178] sm:$0xff]
        %v743 = vld [vmem:[%s496 + $0x180] sm:$0xff]
        %v744 = vld [vmem:[%s496 + $0x188] sm:$0xff]
        %v745 = vld [vmem:[%s496 + $0x190] sm:$0xff]
        %v746 = vld [vmem:[%s496 + $0x198] sm:$0xff]
        %v747 = vld [vmem:[%s496 + $0x1a0] sm:$0xff]
        %v748 = vld [vmem:[%s496 + $0x1a8] sm:$0xff]
        %v749 = vld [vmem:[%s496 + $0x1b0] sm:$0xff]
        %v750 = vld [vmem:[%s496 + $0x1b8] sm:$0xff]
        %v751 = vld [vmem:[%s496 + $0x1c0] sm:$0xff]
        %v752 = vld [vmem:[%s496 + $0x1c8] sm:$0xff]
        %v753 = vld [vmem:[%s496 + $0x1d0] sm:$0xff]
        %v754 = vld [vmem:[%s496 + $0x1d8] sm:$0xff]
        %v755 = vld [vmem:[%s496 + $0x1e0] sm:$0xff]
        %v756 = vld [vmem:[%s496 + $0x1e8] sm:$0xff]
        %v757 = vld [vmem:[%s496 + $0x1f0] sm:$0xff]
        %v758 = vld [vmem:[%s496 + $0x1f8] sm:$0xff]
        %v759 = vld [vmem:[#allocation2] sm:$0xff]
        %v760 = vld [vmem:[#allocation2 + $0x8] sm:$0xff]
        %v761 = vld [vmem:[#allocation2 + $0x10] sm:$0xff]
        %v762 = vld [vmem:[#allocation2 + $0x18] sm:$0xff]
        %v763 = vld [vmem:[#allocation2 + $0x20] sm:$0xff]
        %v764 = vld [vmem:[#allocation2 + $0x28] sm:$0xff]
        %v765 = vld [vmem:[#allocation2 + $0x30] sm:$0xff]
        %v766 = vld [vmem:[#allocation2 + $0x38] sm:$0xff]
        %v767 = vld [vmem:[#allocation2 + $0x40] sm:$0xff]
        %v768 = vld [vmem:[#allocation2 + $0x48] sm:$0xff]
        %v769 = vld [vmem:[#allocation2 + $0x50] sm:$0xff]
        %v770 = vld [vmem:[#allocation2 + $0x58] sm:$0xff]
        %v771 = vld [vmem:[#allocation2 + $0x60] sm:$0xff]
        %v772 = vld [vmem:[#allocation2 + $0x68] sm:$0xff]
        %v773 = vld [vmem:[#allocation2 + $0x70] sm:$0xff]
        %v774 = vld [vmem:[#allocation2 + $0x78] sm:$0xff]
        %v775 = vld [vmem:[%s502] sm:$0xff]
        %v776 = vld [vmem:[%s502 + $0x8] sm:$0xff]
        %v777 = vld [vmem:[%s502 + $0x10] sm:$0xff]
        %v778 = vld [vmem:[%s502 + $0x18] sm:$0xff]
        %v779 = vld [vmem:[%s502 + $0x20] sm:$0xff]
        %v780 = vld [vmem:[%s502 + $0x28] sm:$0xff]
        %v781 = vld [vmem:[%s502 + $0x30] sm:$0xff]
        %v782 = vld [vmem:[%s502 + $0x38] sm:$0xff]
        %v783 = vld [vmem:[%s502 + $0x40] sm:$0xff]
        %v784 = vld [vmem:[%s502 + $0x48] sm:$0xff]
        %v785 = vld [vmem:[%s502 + $0x50] sm:$0xff]
        %v786 = vld [vmem:[%s502 + $0x58] sm:$0xff]
        %v787 = vld [vmem:[%s502 + $0x60] sm:$0xff]
        %v788 = vld [vmem:[%s502 + $0x68] sm:$0xff]
        %v789 = vld [vmem:[%s502 + $0x70] sm:$0xff]
        %v790 = vld [vmem:[%s502 + $0x78] sm:$0xff]
        %v791 = vld [vmem:[%s502 + $0x80] sm:$0xff]
        %v792 = vld [vmem:[%s502 + $0x88] sm:$0xff]
        %v793 = vld [vmem:[%s502 + $0x90] sm:$0xff]
        %v794 = vld [vmem:[%s502 + $0x98] sm:$0xff]
        %v795 = vld [vmem:[%s502 + $0xa0] sm:$0xff]
        %v796 = vld [vmem:[%s502 + $0xa8] sm:$0xff]
        %v797 = vld [vmem:[%s502 + $0xb0] sm:$0xff]
        %v798 = vld [vmem:[%s502 + $0xb8] sm:$0xff]
        %v799 = vld [vmem:[%s502 + $0xc0] sm:$0xff]
        %v800 = vld [vmem:[%s502 + $0xc8] sm:$0xff]
        %v801 = vld [vmem:[%s502 + $0xd0] sm:$0xff]
        %v802 = vld [vmem:[%s502 + $0xd8] sm:$0xff]
        %v803 = vld [vmem:[%s502 + $0xe0] sm:$0xff]
        %v804 = vld [vmem:[%s502 + $0xe8] sm:$0xff]
        %v805 = vld [vmem:[%s502 + $0xf0] sm:$0xff]
        %v806 = vld [vmem:[%s502 + $0xf8] sm:$0xff]
        %v807 = vld [vmem:[%s502 + $0x100] sm:$0xff]
        %v808 = vld [vmem:[%s502 + $0x108] sm:$0xff]
        %v809 = vld [vmem:[%s502 + $0x110] sm:$0xff]
        %v810 = vld [vmem:[%s502 + $0x118] sm:$0xff]
        %v811 = vld [vmem:[%s502 + $0x120] sm:$0xff]
        %v812 = vld [vmem:[%s502 + $0x128] sm:$0xff]
        %v813 = vld [vmem:[%s502 + $0x130] sm:$0xff]
        %v814 = vld [vmem:[%s502 + $0x138] sm:$0xff]
        %v815 = vld [vmem:[%s502 + $0x140] sm:$0xff]
        %v816 = vld [vmem:[%s502 + $0x148] sm:$0xff]
        %v817 = vld [vmem:[%s502 + $0x150] sm:$0xff]
        %v818 = vld [vmem:[%s502 + $0x158] sm:$0xff]
        %v819 = vld [vmem:[%s502 + $0x160] sm:$0xff]
        %v820 = vld [vmem:[%s502 + $0x168] sm:$0xff]
        %v821 = vld [vmem:[%s502 + $0x170] sm:$0xff]
        %v822 = vld [vmem:[%s502 + $0x178] sm:$0xff]
        %v823 = vld [vmem:[%s502 + $0x180] sm:$0xff]
        %v824 = vld [vmem:[%s502 + $0x188] sm:$0xff]
        %v825 = vld [vmem:[%s502 + $0x190] sm:$0xff]
        %v826 = vld [vmem:[%s502 + $0x198] sm:$0xff]
        %v827 = vld [vmem:[%s502 + $0x1a0] sm:$0xff]
        %v828 = vld [vmem:[%s502 + $0x1a8] sm:$0xff]
        %v829 = vld [vmem:[%s502 + $0x1b0] sm:$0xff]
        %v830 = vld [vmem:[%s502 + $0x1b8] sm:$0xff]
        %v831 = vld [vmem:[%s502 + $0x1c0] sm:$0xff]
        %v832 = vld [vmem:[%s502 + $0x1c8] sm:$0xff]
        %v833 = vld [vmem:[%s502 + $0x1d0] sm:$0xff]
        %v834 = vld [vmem:[%s502 + $0x1d8] sm:$0xff]
        %v835 = vld [vmem:[%s502 + $0x1e0] sm:$0xff]
        %v836 = vld [vmem:[%s502 + $0x1e8] sm:$0xff]
        %v837 = vld [vmem:[%s502 + $0x1f0] sm:$0xff]
        %v838 = vld [vmem:[%s502 + $0x1f8] sm:$0xff]
        %v839 = vld [vmem:[%s502 + $0x200] sm:$0xff]
        %v840 = vld [vmem:[%s502 + $0x208] sm:$0xff]
        %v841 = vld [vmem:[%s502 + $0x210] sm:$0xff]
        %v842 = vld [vmem:[%s502 + $0x218] sm:$0xff]
        %v843 = vld [vmem:[%s502 + $0x220] sm:$0xff]
        %v844 = vld [vmem:[%s502 + $0x228] sm:$0xff]
        %v845 = vld [vmem:[%s502 + $0x230] sm:$0xff]
        %v846 = vld [vmem:[%s502 + $0x238] sm:$0xff]
        %v847 = vld [vmem:[%s502 + $0x240] sm:$0xff]
        %v848 = vld [vmem:[%s502 + $0x248] sm:$0xff]
        %v849 = vld [vmem:[%s502 + $0x250] sm:$0xff]
        %v850 = vld [vmem:[%s502 + $0x258] sm:$0xff]
        %v851 = vld [vmem:[%s502 + $0x260] sm:$0xff]
        %v852 = vld [vmem:[%s502 + $0x268] sm:$0xff]
        %v853 = vld [vmem:[%s502 + $0x270] sm:$0xff]
        %v854 = vld [vmem:[%s502 + $0x278] sm:$0xff]
        %v855 = vld [vmem:[%s502 + $0x280] sm:$0xff]
        %v856 = vld [vmem:[%s502 + $0x288] sm:$0xff]
        %v857 = vld [vmem:[%s502 + $0x290] sm:$0xff]
        %v858 = vld [vmem:[%s502 + $0x298] sm:$0xff]
        %v859 = vld [vmem:[%s502 + $0x2a0] sm:$0xff]
        %v860 = vld [vmem:[%s502 + $0x2a8] sm:$0xff]
        %v861 = vld [vmem:[%s502 + $0x2b0] sm:$0xff]
        %v862 = vld [vmem:[%s502 + $0x2b8] sm:$0xff]
        %v863 = vld [vmem:[%s502 + $0x2c0] sm:$0xff]
        %v864 = vld [vmem:[%s502 + $0x2c8] sm:$0xff]
        %v865 = vld [vmem:[%s502 + $0x2d0] sm:$0xff]
        %v866 = vld [vmem:[%s502 + $0x2d8] sm:$0xff]
        %v867 = vld [vmem:[%s502 + $0x2e0] sm:$0xff]
        %v868 = vld [vmem:[%s502 + $0x2e8] sm:$0xff]
        %v869 = vld [vmem:[%s502 + $0x2f0] sm:$0xff]
        %v870 = vld [vmem:[%s502 + $0x2f8] sm:$0xff]
        %v871 = vld [vmem:[%s502 + $0x300] sm:$0xff]
        %v872 = vld [vmem:[%s502 + $0x308] sm:$0xff]
        %v873 = vld [vmem:[%s502 + $0x310] sm:$0xff]
        %v874 = vld [vmem:[%s502 + $0x318] sm:$0xff]
        %v875 = vld [vmem:[%s502 + $0x320] sm:$0xff]
        %v876 = vld [vmem:[%s502 + $0x328] sm:$0xff]
        %v877 = vld [vmem:[%s502 + $0x330] sm:$0xff]
        %v878 = vld [vmem:[%s502 + $0x338] sm:$0xff]
        %v879 = vld [vmem:[%s502 + $0x340] sm:$0xff]
        %v880 = vld [vmem:[%s502 + $0x348] sm:$0xff]
        %v881 = vld [vmem:[%s502 + $0x350] sm:$0xff]
        %v882 = vld [vmem:[%s502 + $0x358] sm:$0xff]
        %v883 = vld [vmem:[%s502 + $0x360] sm:$0xff]
        %v884 = vld [vmem:[%s502 + $0x368] sm:$0xff]
        %v885 = vld [vmem:[%s502 + $0x370] sm:$0xff]
        %v886 = vld [vmem:[%s502 + $0x378] sm:$0xff]
        %v887 = vld [vmem:[%s502 + $0x380] sm:$0xff]
        %v888 = vld [vmem:[%s502 + $0x388] sm:$0xff]
        %v889 = vld [vmem:[%s502 + $0x390] sm:$0xff]
        %v890 = vld [vmem:[%s502 + $0x398] sm:$0xff]
        %v891 = vld [vmem:[%s502 + $0x3a0] sm:$0xff]
        %v892 = vld [vmem:[%s502 + $0x3a8] sm:$0xff]
        %v893 = vld [vmem:[%s502 + $0x3b0] sm:$0xff]
        %v894 = vld [vmem:[%s502 + $0x3b8] sm:$0xff]
        %v895 = vld [vmem:[%s502 + $0x3c0] sm:$0xff]
        %v896 = vld [vmem:[%s502 + $0x3c8] sm:$0xff]
        %v897 = vld [vmem:[%s502 + $0x3d0] sm:$0xff]
        %v898 = vld [vmem:[%s502 + $0x3d8] sm:$0xff]
        %v899 = vld [vmem:[%s502 + $0x3e0] sm:$0xff]
        %v900 = vld [vmem:[%s502 + $0x3e8] sm:$0xff]
        %v901 = vld [vmem:[%s502 + $0x3f0] sm:$0xff]
        %v902 = vld [vmem:[%s502 + $0x3f8] sm:$0xff]
        %v903 = vld [vmem:[%s502 + $0x400] sm:$0xff]
        %v904 = vld [vmem:[%s502 + $0x408] sm:$0xff]
        %v905 = vld [vmem:[%s502 + $0x410] sm:$0xff]
        %v906 = vld [vmem:[%s502 + $0x418] sm:$0xff]
        %v907 = vld [vmem:[%s502 + $0x420] sm:$0xff]
        %v908 = vld [vmem:[%s502 + $0x428] sm:$0xff]
        %v909 = vld [vmem:[%s502 + $0x430] sm:$0xff]
        %v910 = vld [vmem:[%s502 + $0x438] sm:$0xff]
        %v911 = vld [vmem:[%s502 + $0x440] sm:$0xff]
        %v912 = vld [vmem:[%s502 + $0x448] sm:$0xff]
        %v913 = vld [vmem:[%s502 + $0x450] sm:$0xff]
        %v914 = vld [vmem:[%s502 + $0x458] sm:$0xff]
        %v915 = vld [vmem:[%s502 + $0x460] sm:$0xff]
        %v916 = vld [vmem:[%s502 + $0x468] sm:$0xff]
        %v917 = vld [vmem:[%s502 + $0x470] sm:$0xff]
        %v918 = vld [vmem:[%s502 + $0x478] sm:$0xff]
        %v919 = vld [vmem:[%s502 + $0x480] sm:$0xff]
        %v920 = vld [vmem:[%s502 + $0x488] sm:$0xff]
        %v921 = vld [vmem:[%s502 + $0x490] sm:$0xff]
        %v922 = vld [vmem:[%s502 + $0x498] sm:$0xff]
        %v923 = vld [vmem:[%s502 + $0x4a0] sm:$0xff]
        %v924 = vld [vmem:[%s502 + $0x4a8] sm:$0xff]
        %v925 = vld [vmem:[%s502 + $0x4b0] sm:$0xff]
        %v926 = vld [vmem:[%s502 + $0x4b8] sm:$0xff]
        %v927 = vld [vmem:[%s502 + $0x4c0] sm:$0xff]
        %v928 = vld [vmem:[%s502 + $0x4c8] sm:$0xff]
        %v929 = vld [vmem:[%s502 + $0x4d0] sm:$0xff]
        %v930 = vld [vmem:[%s502 + $0x4d8] sm:$0xff]
        %v931 = vld [vmem:[%s502 + $0x4e0] sm:$0xff]
        %v932 = vld [vmem:[%s502 + $0x4e8] sm:$0xff]
        %v933 = vld [vmem:[%s502 + $0x4f0] sm:$0xff]
        %v934 = vld [vmem:[%s502 + $0x4f8] sm:$0xff]
        %v935 = vld [vmem:[%s502 + $0x500] sm:$0xff]
        %v936 = vld [vmem:[%s502 + $0x508] sm:$0xff]
        %v937 = vld [vmem:[%s502 + $0x510] sm:$0xff]
        %v938 = vld [vmem:[%s502 + $0x518] sm:$0xff]
        %v939 = vld [vmem:[%s502 + $0x520] sm:$0xff]
        %v940 = vld [vmem:[%s502 + $0x528] sm:$0xff]
        %v941 = vld [vmem:[%s502 + $0x530] sm:$0xff]
        %v942 = vld [vmem:[%s502 + $0x538] sm:$0xff]
        %v943 = vld [vmem:[%s502 + $0x540] sm:$0xff]
        %v944 = vld [vmem:[%s502 + $0x548] sm:$0xff]
        %v945 = vld [vmem:[%s502 + $0x550] sm:$0xff]
        %v946 = vld [vmem:[%s502 + $0x558] sm:$0xff]
        %v947 = vld [vmem:[%s502 + $0x560] sm:$0xff]
        %v948 = vld [vmem:[%s502 + $0x568] sm:$0xff]
        %v949 = vld [vmem:[%s502 + $0x570] sm:$0xff]
        %v950 = vld [vmem:[%s502 + $0x578] sm:$0xff]
        %v951 = vld [vmem:[%s502 + $0x580] sm:$0xff]
        %v952 = vld [vmem:[%s502 + $0x588] sm:$0xff]
        %v953 = vld [vmem:[%s502 + $0x590] sm:$0xff]
        %v954 = vld [vmem:[%s502 + $0x598] sm:$0xff]
        %v955 = vld [vmem:[%s502 + $0x5a0] sm:$0xff]
        %v956 = vld [vmem:[%s502 + $0x5a8] sm:$0xff]
        %v957 = vld [vmem:[%s502 + $0x5b0] sm:$0xff]
        %v958 = vld [vmem:[%s502 + $0x5b8] sm:$0xff]
        %v959 = vld [vmem:[%s502 + $0x5c0] sm:$0xff]
        %v960 = vld [vmem:[%s502 + $0x5c8] sm:$0xff]
        %v961 = vld [vmem:[%s502 + $0x5d0] sm:$0xff]
        %v962 = vld [vmem:[%s502 + $0x5d8] sm:$0xff]
        %v963 = vld [vmem:[%s502 + $0x5e0] sm:$0xff]
        %v964 = vld [vmem:[%s502 + $0x5e8] sm:$0xff]
        %v965 = vld [vmem:[%s502 + $0x5f0] sm:$0xff]
        %v966 = vld [vmem:[%s502 + $0x5f8] sm:$0xff]
        %v967 = vld [vmem:[%s502 + $0x600] sm:$0xff]
        %v968 = vld [vmem:[%s502 + $0x608] sm:$0xff]
        %v969 = vld [vmem:[%s502 + $0x610] sm:$0xff]
        %v970 = vld [vmem:[%s502 + $0x618] sm:$0xff]
        %v971 = vld [vmem:[%s502 + $0x620] sm:$0xff]
        %v972 = vld [vmem:[%s502 + $0x628] sm:$0xff]
        %v973 = vld [vmem:[%s502 + $0x630] sm:$0xff]
        %v974 = vld [vmem:[%s502 + $0x638] sm:$0xff]
        %v975 = vld [vmem:[%s502 + $0x640] sm:$0xff]
        %v976 = vld [vmem:[%s502 + $0x648] sm:$0xff]
        %v977 = vld [vmem:[%s502 + $0x650] sm:$0xff]
        %v978 = vld [vmem:[%s502 + $0x658] sm:$0xff]
        %v979 = vld [vmem:[%s502 + $0x660] sm:$0xff]
        %v980 = vld [vmem:[%s502 + $0x668] sm:$0xff]
        %v981 = vld [vmem:[%s502 + $0x670] sm:$0xff]
        %v982 = vld [vmem:[%s502 + $0x678] sm:$0xff]
        %v983 = vld [vmem:[%s502 + $0x680] sm:$0xff]
        %v984 = vld [vmem:[%s502 + $0x688] sm:$0xff]
        %v985 = vld [vmem:[%s502 + $0x690] sm:$0xff]
        %v986 = vld [vmem:[%s502 + $0x698] sm:$0xff]
        %v987 = vld [vmem:[%s502 + $0x6a0] sm:$0xff]
        %v988 = vld [vmem:[%s502 + $0x6a8] sm:$0xff]
        %v989 = vld [vmem:[%s502 + $0x6b0] sm:$0xff]
        %v990 = vld [vmem:[%s502 + $0x6b8] sm:$0xff]
        %v991 = vld [vmem:[%s502 + $0x6c0] sm:$0xff]
        %v992 = vld [vmem:[%s502 + $0x6c8] sm:$0xff]
        %v993 = vld [vmem:[%s502 + $0x6d0] sm:$0xff]
        %v994 = vld [vmem:[%s502 + $0x6d8] sm:$0xff]
        %v995 = vld [vmem:[%s502 + $0x6e0] sm:$0xff]
        %v996 = vld [vmem:[%s502 + $0x6e8] sm:$0xff]
        %v997 = vld [vmem:[%s502 + $0x6f0] sm:$0xff]
        %v998 = vld [vmem:[%s502 + $0x6f8] sm:$0xff]
        %v999 = vld [vmem:[%s502 + $0x700] sm:$0xff]
        %v1000 = vld [vmem:[%s502 + $0x708] sm:$0xff]
        %v1001 = vld [vmem:[%s502 + $0x710] sm:$0xff]
        %v1002 = vld [vmem:[%s502 + $0x718] sm:$0xff]
        %v1003 = vld [vmem:[%s502 + $0x720] sm:$0xff]
        %v1004 = vld [vmem:[%s502 + $0x728] sm:$0xff]
        %v1005 = vld [vmem:[%s502 + $0x730] sm:$0xff]
        %v1006 = vld [vmem:[%s502 + $0x738] sm:$0xff]
        %v1007 = vld [vmem:[%s502 + $0x740] sm:$0xff]
        %v1008 = vld [vmem:[%s502 + $0x748] sm:$0xff]
        %v1009 = vld [vmem:[%s502 + $0x750] sm:$0xff]
        %v1010 = vld [vmem:[%s502 + $0x758] sm:$0xff]
        %v1011 = vld [vmem:[%s502 + $0x760] sm:$0xff]
        %v1012 = vld [vmem:[%s502 + $0x768] sm:$0xff]
        %v1013 = vld [vmem:[%s502 + $0x770] sm:$0xff]
        %v1014 = vld [vmem:[%s502 + $0x778] sm:$0xff]
        %v1015 = vld [vmem:[%s502 + $0x780] sm:$0xff]
        %v1016 = vld [vmem:[%s502 + $0x788] sm:$0xff]
        %v1017 = vld [vmem:[%s502 + $0x790] sm:$0xff]
        %v1018 = vld [vmem:[%s502 + $0x798] sm:$0xff]
        %v1019 = vld [vmem:[%s502 + $0x7a0] sm:$0xff]
        %v1020 = vld [vmem:[%s502 + $0x7a8] sm:$0xff]
        %v1021 = vld [vmem:[%s502 + $0x7b0] sm:$0xff]
        %v1022 = vld [vmem:[%s502 + $0x7b8] sm:$0xff]
        %v1023 = vld [vmem:[%s502 + $0x7c0] sm:$0xff]
        %v1024 = vld [vmem:[%s502 + $0x7c8] sm:$0xff]
        %v1025 = vld [vmem:[%s502 + $0x7d0] sm:$0xff]
        %v1026 = vld [vmem:[%s502 + $0x7d8] sm:$0xff]
        %v1027 = vld [vmem:[%s502 + $0x7e0] sm:$0xff]
        %v1028 = vld [vmem:[%s502 + $0x7e8] sm:$0xff]
        %v1029 = vld [vmem:[%s502 + $0x7f0] sm:$0xff]
        %v1030 = vld [vmem:[%s502 + $0x7f8] sm:$0xff]
        %1031 = vmatprep.subr.mxu0 %v776
        %1032 = vmatpush1.msra.mxu0 %v775
        %1033 = vmatprep.subr.mxu0 %v778
        %1034 = vmatpush1.msra.mxu0 %v777
        %1035 = vmatprep.subr.mxu0 %v780
        %1036 = vmatpush1.msra.mxu0 %v779
        %1037 = vmatprep.subr.mxu0 %v782
        %1038 = vmatpush1.msra.mxu0 %v781
        %1039 = vmatprep.subr.mxu0 %v784
        %1040 = vmatpush1.msra.mxu0 %v783
        %1041 = vmatprep.subr.mxu0 %v786
        %1042 = vmatpush1.msra.mxu0 %v785
        %1043 = vmatprep.subr.mxu0 %v788
        %1044 = vmatpush1.msra.mxu0 %v787
        %1045 = vmatprep.subr.mxu0 %v790
        %1046 = vmatpush1.msra.mxu0 %v789
        %1047 = vmatprep.subr.mxu0 %v792
        %1048 = vmatpush1.msra.mxu0 %v791
        %1049 = vmatprep.subr.mxu0 %v794
        %1050 = vmatpush1.msra.mxu0 %v793
        %1051 = vmatprep.subr.mxu0 %v796
        %1052 = vmatpush1.msra.mxu0 %v795
        %1053 = vmatprep.subr.mxu0 %v798
        %1054 = vmatpush1.msra.mxu0 %v797
        %1055 = vmatprep.subr.mxu0 %v800
        %1056 = vmatpush1.msra.mxu0 %v799
        %1057 = vmatprep.subr.mxu0 %v802
        %1058 = vmatpush1.msra.mxu0 %v801
        %1059 = vmatprep.subr.mxu0 %v804
        %1060 = vmatpush1.msra.mxu0 %v803
        %1061 = vmatprep.subr.mxu0 %v806
        %1062 = vmatpush1.msra.mxu0 %v805
        %1063 = vmatprep.subr.mxu0 %v808
        %1064 = vmatpush1.msra.mxu0 %v807
        %1065 = vmatprep.subr.mxu0 %v810
        %1066 = vmatpush1.msra.mxu0 %v809
        %1067 = vmatprep.subr.mxu0 %v812
        %1068 = vmatpush1.msra.mxu0 %v811
        %1069 = vmatprep.subr.mxu0 %v814
        %1070 = vmatpush1.msra.mxu0 %v813
        %1071 = vmatprep.subr.mxu0 %v816
        %1072 = vmatpush1.msra.mxu0 %v815
        %1073 = vmatprep.subr.mxu0 %v818
        %1074 = vmatpush1.msra.mxu0 %v817
        %1075 = vmatprep.subr.mxu0 %v820
        %1076 = vmatpush1.msra.mxu0 %v819
        %1077 = vmatprep.subr.mxu0 %v822
        %1078 = vmatpush1.msra.mxu0 %v821
        %1079 = vmatprep.subr.mxu0 %v824
        %1080 = vmatpush1.msra.mxu0 %v823
        %1081 = vmatprep.subr.mxu0 %v826
        %1082 = vmatpush1.msra.mxu0 %v825
        %1083 = vmatprep.subr.mxu0 %v828
        %1084 = vmatpush1.msra.mxu0 %v827
        %1085 = vmatprep.subr.mxu0 %v830
        %1086 = vmatpush1.msra.mxu0 %v829
        %1087 = vmatprep.subr.mxu0 %v832
        %1088 = vmatpush1.msra.mxu0 %v831
        %1089 = vmatprep.subr.mxu0 %v834
        %1090 = vmatpush1.msra.mxu0 %v833
        %1091 = vmatprep.subr.mxu0 %v836
        %1092 = vmatpush1.msra.mxu0 %v835
        %1093 = vmatprep.subr.mxu0 %v838
        %1094 = vmatpush1.msra.mxu0 %v837
        %1095 = vmatprep.mubr.f32.mxu0 %v760
        %1096 = vmatmul.mubr.f32.gmra.mrb[0].mxu0 %v759
        %v1097 = vpop.f32.mrb[0].mxu0
        %v1098 = vadd.f32 0.0, %v1097
        %v1099 = vpop.f32.mrb[0].mxu0
        %v1100 = vadd.f32 0.0, %v1099
        %1101 = vmatprep.mubr.f32.mxu0 %v768
        %1102 = vmatmul.mubr.f32.gmra.mrb[0].mxu0 %v767
        %v1103 = vpop.f32.mrb[0].mxu0
        %v1104 = vadd.f32 0.0, %v1103
        %v1105 = vpop.f32.mrb[0].mxu0
        %v1106 = vadd.f32 0.0, %v1105
        %1107 = vdwg.mxu0
        %1108 = vmatprep.subr.mxu0 %v840
        %1109 = vmatpush1.msra.mxu0 %v839
        %1110 = vmatprep.subr.mxu0 %v842
        %1111 = vmatpush1.msra.mxu0 %v841
        %1112 = vmatprep.subr.mxu0 %v844
        %1113 = vmatpush1.msra.mxu0 %v843
        %1114 = vmatprep.subr.mxu0 %v846
        %1115 = vmatpush1.msra.mxu0 %v845
        %1116 = vmatprep.subr.mxu0 %v848
        %1117 = vmatpush1.msra.mxu0 %v847
        %1118 = vmatprep.subr.mxu0 %v850
        %1119 = vmatpush1.msra.mxu0 %v849
        %1120 = vmatprep.subr.mxu0 %v852
        %1121 = vmatpush1.msra.mxu0 %v851
        %1122 = vmatprep.subr.mxu0 %v854
        %1123 = vmatpush1.msra.mxu0 %v853
        %1124 = vmatprep.subr.mxu0 %v856
        %1125 = vmatpush1.msra.mxu0 %v855
        %1126 = vmatprep.subr.mxu0 %v858
        %1127 = vmatpush1.msra.mxu0 %v857
        %1128 = vmatprep.subr.mxu0 %v860
        %1129 = vmatpush1.msra.mxu0 %v859
        %1130 = vmatprep.subr.mxu0 %v862
        %1131 = vmatpush1.msra.mxu0 %v861
        %1132 = vmatprep.subr.mxu0 %v864
        %1133 = vmatpush1.msra.mxu0 %v863
        %1134 = vmatprep.subr.mxu0 %v866
        %1135 = vmatpush1.msra.mxu0 %v865
        %1136 = vmatprep.subr.mxu0 %v868
        %1137 = vmatpush1.msra.mxu0 %v867
        %1138 = vmatprep.subr.mxu0 %v870
        %1139 = vmatpush1.msra.mxu0 %v869
        %1140 = vmatprep.subr.mxu0 %v872
        %1141 = vmatpush1.msra.mxu0 %v871
        %1142 = vmatprep.subr.mxu0 %v874
        %1143 = vmatpush1.msra.mxu0 %v873
        %1144 = vmatprep.subr.mxu0 %v876
        %1145 = vmatpush1.msra.mxu0 %v875
        %1146 = vmatprep.subr.mxu0 %v878
        %1147 = vmatpush1.msra.mxu0 %v877
        %1148 = vmatprep.subr.mxu0 %v880
        %1149 = vmatpush1.msra.mxu0 %v879
        %1150 = vmatprep.subr.mxu0 %v882
        %1151 = vmatpush1.msra.mxu0 %v881
        %1152 = vmatprep.subr.mxu0 %v884
        %1153 = vmatpush1.msra.mxu0 %v883
        %1154 = vmatprep.subr.mxu0 %v886
        %1155 = vmatpush1.msra.mxu0 %v885
        %1156 = vmatprep.subr.mxu0 %v888
        %1157 = vmatpush1.msra.mxu0 %v887
        %1158 = vmatprep.subr.mxu0 %v890
        %1159 = vmatpush1.msra.mxu0 %v889
        %1160 = vmatprep.subr.mxu0 %v892
        %1161 = vmatpush1.msra.mxu0 %v891
        %1162 = vmatprep.subr.mxu0 %v894
        %1163 = vmatpush1.msra.mxu0 %v893
        %1164 = vmatprep.subr.mxu0 %v896
        %1165 = vmatpush1.msra.mxu0 %v895
        %1166 = vmatprep.subr.mxu0 %v898
        %1167 = vmatpush1.msra.mxu0 %v897
        %1168 = vmatprep.subr.mxu0 %v900
        %1169 = vmatpush1.msra.mxu0 %v899
        %1170 = vmatprep.subr.mxu0 %v902
        %1171 = vmatpush1.msra.mxu0 %v901
        %1172 = vmatprep.mubr.f32.mxu0 %v762
        %1173 = vmatmul.mubr.f32.gmra.mrb[0].mxu0 %v761
        %v1174 = vpop.f32.mrb[0].mxu0
        %v1175 = vadd.f32 %v1098, %v1174
        %v1176 = vpop.f32.mrb[0].mxu0
        %v1177 = vadd.f32 %v1100, %v1176
        %1178 = vmatprep.mubr.f32.mxu0 %v770
        %1179 = vmatmul.mubr.f32.gmra.mrb[0].mxu0 %v769
        %v1180 = vpop.f32.mrb[0].mxu0
        %v1181 = vadd.f32 %v1104, %v1180
        %v1182 = vpop.f32.mrb[0].mxu0
        %v1183 = vadd.f32 %v1106, %v1182
        %1184 = vdwg.mxu0
        %1185 = vmatprep.subr.mxu0 %v904
        %1186 = vmatpush1.msra.mxu0 %v903
        %1187 = vmatprep.subr.mxu0 %v906
        %1188 = vmatpush1.msra.mxu0 %v905
        %1189 = vmatprep.subr.mxu0 %v908
        %1190 = vmatpush1.msra.mxu0 %v907
        %1191 = vmatprep.subr.mxu0 %v910
        %1192 = vmatpush1.msra.mxu0 %v909
        %1193 = vmatprep.subr.mxu0 %v912
        %1194 = vmatpush1.msra.mxu0 %v911
        %1195 = vmatprep.subr.mxu0 %v914
        %1196 = vmatpush1.msra.mxu0 %v913
        %1197 = vmatprep.subr.mxu0 %v916
        %1198 = vmatpush1.msra.mxu0 %v915
        %1199 = vmatprep.subr.mxu0 %v918
        %1200 = vmatpush1.msra.mxu0 %v917
        %1201 = vmatprep.subr.mxu0 %v920
        %1202 = vmatpush1.msra.mxu0 %v919
        %1203 = vmatprep.subr.mxu0 %v922
        %1204 = vmatpush1.msra.mxu0 %v921
        %1205 = vmatprep.subr.mxu0 %v924
        %1206 = vmatpush1.msra.mxu0 %v923
        %1207 = vmatprep.subr.mxu0 %v926
        %1208 = vmatpush1.msra.mxu0 %v925
        %1209 = vmatprep.subr.mxu0 %v928
        %1210 = vmatpush1.msra.mxu0 %v927
        %1211 = vmatprep.subr.mxu0 %v930
        %1212 = vmatpush1.msra.mxu0 %v929
        %1213 = vmatprep.subr.mxu0 %v932
        %1214 = vmatpush1.msra.mxu0 %v931
        %1215 = vmatprep.subr.mxu0 %v934
        %1216 = vmatpush1.msra.mxu0 %v933
        %1217 = vmatprep.subr.mxu0 %v936
        %1218 = vmatpush1.msra.mxu0 %v935
        %1219 = vmatprep.subr.mxu0 %v938
        %1220 = vmatpush1.msra.mxu0 %v937
        %1221 = vmatprep.subr.mxu0 %v940
        %1222 = vmatpush1.msra.mxu0 %v939
        %1223 = vmatprep.subr.mxu0 %v942
        %1224 = vmatpush1.msra.mxu0 %v941
        %1225 = vmatprep.subr.mxu0 %v944
        %1226 = vmatpush1.msra.mxu0 %v943
        %1227 = vmatprep.subr.mxu0 %v946
        %1228 = vmatpush1.msra.mxu0 %v945
        %1229 = vmatprep.subr.mxu0 %v948
        %1230 = vmatpush1.msra.mxu0 %v947
        %1231 = vmatprep.subr.mxu0 %v950
        %1232 = vmatpush1.msra.mxu0 %v949
        %1233 = vmatprep.subr.mxu0 %v952
        %1234 = vmatpush1.msra.mxu0 %v951
        %1235 = vmatprep.subr.mxu0 %v954
        %1236 = vmatpush1.msra.mxu0 %v953
        %1237 = vmatprep.subr.mxu0 %v956
        %1238 = vmatpush1.msra.mxu0 %v955
        %1239 = vmatprep.subr.mxu0 %v958
        %1240 = vmatpush1.msra.mxu0 %v957
        %1241 = vmatprep.subr.mxu0 %v960
        %1242 = vmatpush1.msra.mxu0 %v959
        %1243 = vmatprep.subr.mxu0 %v962
        %1244 = vmatpush1.msra.mxu0 %v961
        %1245 = vmatprep.subr.mxu0 %v964
        %1246 = vmatpush1.msra.mxu0 %v963
        %1247 = vmatprep.subr.mxu0 %v966
        %1248 = vmatpush1.msra.mxu0 %v965
        %1249 = vmatprep.mubr.f32.mxu0 %v764
        %1250 = vmatmul.mubr.f32.gmra.mrb[0].mxu0 %v763
        %v1251 = vpop.f32.mrb[0].mxu0
        %v1252 = vadd.f32 %v1175, %v1251
        %v1253 = vpop.f32.mrb[0].mxu0
        %v1254 = vadd.f32 %v1177, %v1253
        %1255 = vmatprep.mubr.f32.mxu0 %v772
        %1256 = vmatmul.mubr.f32.gmra.mrb[0].mxu0 %v771
        %v1257 = vpop.f32.mrb[0].mxu0
        %v1258 = vadd.f32 %v1181, %v1257
        %v1259 = vpop.f32.mrb[0].mxu0
        %v1260 = vadd.f32 %v1183, %v1259
        %1261 = vdwg.mxu0
        %1262 = vmatprep.subr.mxu0 %v968
        %1263 = vmatpush1.msra.mxu0 %v967
        %1264 = vmatprep.subr.mxu0 %v970
        %1265 = vmatpush1.msra.mxu0 %v969
        %1266 = vmatprep.subr.mxu0 %v972
        %1267 = vmatpush1.msra.mxu0 %v971
        %1268 = vmatprep.subr.mxu0 %v974
        %1269 = vmatpush1.msra.mxu0 %v973
        %1270 = vmatprep.subr.mxu0 %v976
        %1271 = vmatpush1.msra.mxu0 %v975
        %1272 = vmatprep.subr.mxu0 %v978
        %1273 = vmatpush1.msra.mxu0 %v977
        %1274 = vmatprep.subr.mxu0 %v980
        %1275 = vmatpush1.msra.mxu0 %v979
        %1276 = vmatprep.subr.mxu0 %v982
        %1277 = vmatpush1.msra.mxu0 %v981
        %1278 = vmatprep.subr.mxu0 %v984
        %1279 = vmatpush1.msra.mxu0 %v983
        %1280 = vmatprep.subr.mxu0 %v986
        %1281 = vmatpush1.msra.mxu0 %v985
        %1282 = vmatprep.subr.mxu0 %v988
        %1283 = vmatpush1.msra.mxu0 %v987
        %1284 = vmatprep.subr.mxu0 %v990
        %1285 = vmatpush1.msra.mxu0 %v989
        %1286 = vmatprep.subr.mxu0 %v992
        %1287 = vmatpush1.msra.mxu0 %v991
        %1288 = vmatprep.subr.mxu0 %v994
        %1289 = vmatpush1.msra.mxu0 %v993
        %1290 = vmatprep.subr.mxu0 %v996
        %1291 = vmatpush1.msra.mxu0 %v995
        %1292 = vmatprep.subr.mxu0 %v998
        %1293 = vmatpush1.msra.mxu0 %v997
        %1294 = vmatprep.subr.mxu0 %v1000
        %1295 = vmatpush1.msra.mxu0 %v999
        %1296 = vmatprep.subr.mxu0 %v1002
        %1297 = vmatpush1.msra.mxu0 %v1001
        %1298 = vmatprep.subr.mxu0 %v1004
        %1299 = vmatpush1.msra.mxu0 %v1003
        %1300 = vmatprep.subr.mxu0 %v1006
        %1301 = vmatpush1.msra.mxu0 %v1005
        %1302 = vmatprep.subr.mxu0 %v1008
        %1303 = vmatpush1.msra.mxu0 %v1007
        %1304 = vmatprep.subr.mxu0 %v1010
        %1305 = vmatpush1.msra.mxu0 %v1009
        %1306 = vmatprep.subr.mxu0 %v1012
        %1307 = vmatpush1.msra.mxu0 %v1011
        %1308 = vmatprep.subr.mxu0 %v1014
        %1309 = vmatpush1.msra.mxu0 %v1013
        %1310 = vmatprep.subr.mxu0 %v1016
        %1311 = vmatpush1.msra.mxu0 %v1015
        %1312 = vmatprep.subr.mxu0 %v1018
        %1313 = vmatpush1.msra.mxu0 %v1017
        %1314 = vmatprep.subr.mxu0 %v1020
        %1315 = vmatpush1.msra.mxu0 %v1019
        %1316 = vmatprep.subr.mxu0 %v1022
        %1317 = vmatpush1.msra.mxu0 %v1021
        %1318 = vmatprep.subr.mxu0 %v1024
        %1319 = vmatpush1.msra.mxu0 %v1023
        %1320 = vmatprep.subr.mxu0 %v1026
        %1321 = vmatpush1.msra.mxu0 %v1025
        %1322 = vmatprep.subr.mxu0 %v1028
        %1323 = vmatpush1.msra.mxu0 %v1027
        %1324 = vmatprep.subr.mxu0 %v1030
        %1325 = vmatpush1.msra.mxu0 %v1029
        %1326 = vmatprep.mubr.f32.mxu0 %v766
        %1327 = vmatmul.mubr.f32.gmra.mrb[0].mxu0 %v765
        %v1328 = vpop.f32.mrb[0].mxu0
        %v1329 = vadd.f32 %v1252, %v1328
        %v1330 = vpop.f32.mrb[0].mxu0
        %v1331 = vadd.f32 %v1254, %v1330
        %1332 = vmatprep.mubr.f32.mxu0 %v774
        %1333 = vmatmul.mubr.f32.gmra.mrb[0].mxu0 %v773
        %v1334 = vpop.f32.mrb[0].mxu0
        %v1335 = vadd.f32 %v1258, %v1334
        %v1336 = vpop.f32.mrb[0].mxu0
        %v1337 = vadd.f32 %v1260, %v1336
        %1338 = vdwg.mxu0
        %1339 = vmatprep.subr.mxu0 %v696
        %1340 = vmatpush1.msra.mxu0 %v695
        %1341 = vmatprep.subr.mxu0 %v698
        %1342 = vmatpush1.msra.mxu0 %v697
        %1343 = vmatprep.subr.mxu0 %v700
        %1344 = vmatpush1.msra.mxu0 %v699
        %1345 = vmatprep.subr.mxu0 %v702
        %1346 = vmatpush1.msra.mxu0 %v701
        %1347 = vmatprep.subr.mxu0 %v704
        %1348 = vmatpush1.msra.mxu0 %v703
        %1349 = vmatprep.subr.mxu0 %v706
        %1350 = vmatpush1.msra.mxu0 %v705
        %1351 = vmatprep.subr.mxu0 %v708
        %1352 = vmatpush1.msra.mxu0 %v707
        %1353 = vmatprep.subr.mxu0 %v710
        %1354 = vmatpush1.msra.mxu0 %v709
        %1355 = vmatprep.subr.mxu0 %v712
        %1356 = vmatpush1.msra.mxu0 %v711
        %1357 = vmatprep.subr.mxu0 %v714
        %1358 = vmatpush1.msra.mxu0 %v713
        %1359 = vmatprep.subr.mxu0 %v716
        %1360 = vmatpush1.msra.mxu0 %v715
        %1361 = vmatprep.subr.mxu0 %v718
        %1362 = vmatpush1.msra.mxu0 %v717
        %1363 = vmatprep.subr.mxu0 %v720
        %1364 = vmatpush1.msra.mxu0 %v719
        %1365 = vmatprep.subr.mxu0 %v722
        %1366 = vmatpush1.msra.mxu0 %v721
        %1367 = vmatprep.subr.mxu0 %v724
        %1368 = vmatpush1.msra.mxu0 %v723
        %1369 = vmatprep.subr.mxu0 %v726
        %1370 = vmatpush1.msra.mxu0 %v725
        %1371 = vmatprep.subr.mxu0 %v728
        %1372 = vmatpush1.msra.mxu0 %v727
        %1373 = vmatprep.subr.mxu0 %v730
        %1374 = vmatpush1.msra.mxu0 %v729
        %1375 = vmatprep.subr.mxu0 %v732
        %1376 = vmatpush1.msra.mxu0 %v731
        %1377 = vmatprep.subr.mxu0 %v734
        %1378 = vmatpush1.msra.mxu0 %v733
        %1379 = vmatprep.subr.mxu0 %v736
        %1380 = vmatpush1.msra.mxu0 %v735
        %1381 = vmatprep.subr.mxu0 %v738
        %1382 = vmatpush1.msra.mxu0 %v737
        %1383 = vmatprep.subr.mxu0 %v740
        %1384 = vmatpush1.msra.mxu0 %v739
        %1385 = vmatprep.subr.mxu0 %v742
        %1386 = vmatpush1.msra.mxu0 %v741
        %1387 = vmatprep.subr.mxu0 %v744
        %1388 = vmatpush1.msra.mxu0 %v743
        %1389 = vmatprep.subr.mxu0 %v746
        %1390 = vmatpush1.msra.mxu0 %v745
        %1391 = vmatprep.subr.mxu0 %v748
        %1392 = vmatpush1.msra.mxu0 %v747
        %1393 = vmatprep.subr.mxu0 %v750
        %1394 = vmatpush1.msra.mxu0 %v749
        %1395 = vmatprep.subr.mxu0 %v752
        %1396 = vmatpush1.msra.mxu0 %v751
        %1397 = vmatprep.subr.mxu0 %v754
        %1398 = vmatpush1.msra.mxu0 %v753
        %1399 = vmatprep.subr.mxu0 %v756
        %1400 = vmatpush1.msra.mxu0 %v755
        %1401 = vmatprep.subr.mxu0 %v758
        %1402 = vmatpush1.msra.mxu0 %v757
        %1403 = vmatprep.mubr.f32.mxu0 %v692
        %1404 = vmatmul.mubr.f32.gmra.mrb[0].mxu0 %v691
        %v1405 = vpop.f32.mrb[0].mxu0
        %v1406 = vadd.f32 %v1329, %v1405
        %v1407 = vpop.f32.mrb[0].mxu0
        %v1408 = vadd.f32 %v1331, %v1407
        %1409 = vmatprep.mubr.f32.mxu0 %v694
        %1410 = vmatmul.mubr.f32.gmra.mrb[0].mxu0 %v693
        %v1411 = vpop.f32.mrb[0].mxu0
        %v1412 = vadd.f32 %v1335, %v1411
        %v1413 = vpop.f32.mrb[0].mxu0
        %v1414 = vadd.f32 %v1337, %v1413
        %1415 = vdwg.mxu0
        %v1416 = vld [vmem:[%s507] sm:$0x3]
        %v1418 = vlaneseq
        %v1419 = vshrl.u32 %v1418, 7
        %v1420 = vsub.s32 0, %v1419
        %v1421 = vrot.slane %v1416, %v1420
        %v1422 = vlaneseq
        %v1423 = vshrl.u32 %v1422, 7
        %v1424 = vsub.s32 1, %v1423
        %v1425 = vrot.slane %v1416, %v1424
        %v1428 = vadd.f32 %v1406, %v1421
        %v1429 = vadd.f32 %v1408, %v1425
        %v1430 = vadd.f32 %v1412, %v1421
        %v1431 = vadd.f32 %v1414, %v1425
        %v1432 = vld [vmem:[%s490] sm:$0x3]
        %v1433 = vld [vmem:[%s480] sm:$0xff]
        %v1434 = vld [vmem:[%s480 + $0x8] sm:$0xff]
        %v1435 = vld [vmem:[%s480 + $0x10] sm:$0xff]
        %v1436 = vld [vmem:[%s480 + $0x18] sm:$0xff]
        %v1438 = vlaneseq
        %v1439 = vshrl.u32 %v1438, 7
        %v1440 = vsub.s32 0, %v1439
        %v1441 = vrot.slane %v1432, %v1440
        %v1442 = vlaneseq
        %v1443 = vshrl.u32 %v1442, 7
        %v1444 = vsub.s32 1, %v1443
        %v1445 = vrot.slane %v1432, %v1444
        %v1448 = vmul.f32 %v1441, %v1428
        %v1449 = vmul.f32 %v1445, %v1429
        %v1450 = vmul.f32 %v1441, %v1430
        %v1451 = vmul.f32 %v1445, %v1431
        %v1452 = vadd.f32 %v1433, %v1448
        %v1453 = vadd.f32 %v1434, %v1449
        %v1454 = vadd.f32 %v1435, %v1450
        %v1455 = vadd.f32 %v1436, %v1451
        %1456 = vst [vmem:[%s444] sm:$0xff] %v1452
        %1457 = vst [vmem:[%s444 + $0x8] sm:$0xff] %v1453
        %1458 = vst [vmem:[%s444 + $0x10] sm:$0xff] %v1454
        %1459 = vst [vmem:[%s444 + $0x18] sm:$0xff] %v1455
        %s1460 = sand.u32 %s244, 1
        %s1461 = scalar_lea.sflag [#allocation4], %s1460
        %s1462 = sand.u32 %s244, 1
        %s1463 = smul.addr %s1462, 32
        %s1464 = scalar_lea.vmem [#allocation3], %s1463
        // Predicated region
        $region53: #{single_stream_block_forward.9} parent=47 // pred_check
          %p1465 = pneg %p254
        $region54: #{single_stream_block_forward.9} parent=47 // pred_check_branch
          %1467 = sbr.rel (%p1465) target = $region56
        $region55: #{single_stream_block_forward.9} parent=47 // pred_region
          %s1468 = smul.u32 2, %s27
          %s1469 = smul.u32 2, %s28
          %s1471 = ssub.s32 512, 512
          %1472 = vsyncadd %s1461, %s1471
          %s1473 = smul.addr %s1468, 2
          %s1474 = sadd.s32 %s1469, %s1473
          %s1475 = smul.addr %s26, 4
          %s1476 = sadd.s32 %s1474, %s1475
          %s1477 = smul.addr %s1476, 128
          %s1478 = scalar_lea.hbm %s7, %s1477
          %s1479 = sshll.u32 %s1464, 4
          %s1480 = int_to_ptr.vmem [resolvable:$true] %s1479
          %1485 = dma.vmem_to_hbm [thread:$0]  %s1480, 512, %s1478, %s1461, 256, 256, 16
        $region56: #{single_stream_block_forward.9} parent=47 // pred_fallthru
          _
      $region48: #{single_stream_block_forward.9} parent=5 // pred_fallthru
        _
      %p1486 = scmp.le.s32.totalorder 2, %s16
      // Predicated region
      $region57: #{single_stream_block_forward.9} parent=5 // pred_check
        %p1487 = pneg %p1486
      $region58: #{single_stream_block_forward.9} parent=5 // pred_check_branch
        %1489 = sbr.rel (%p1487) target = $region60
      $region59: #{single_stream_block_forward.9} parent=5 // pred_region
        %s1490 = ssub.s32 %s16, 2
        // Predicated region
        $region61: #{single_stream_block_forward.9} parent=59 // pred_check
          %p1491 = pneg %p260
        $region62: #{single_stream_block_forward.9} parent=59 // pred_check_branch
          %1493 = sbr.rel (%p1491) target = $region64
        $region63: #{single_stream_block_forward.9} parent=59 // pred_region
          %s1494 = sand.u32 %s245, 1
          %s1495 = scalar_lea.sflag [#allocation4], %s1494
          %s1496 = sand.u32 %s245, 1
          %s1497 = smul.addr %s1496, 32
          %s1498 = scalar_lea.vmem [#allocation3], %s1497
          %1499 = dma.done %s1495, 512
        $region64: #{single_stream_block_forward.9} parent=59 // pred_fallthru
          _
      $region60: #{single_stream_block_forward.9} parent=5 // pred_fallthru
        _
    $region6: #{single_stream_block_forward.9} parent=1 // loop_footer
      %s20 = sadd.s32 1, %s16
    $region7: #{single_stream_block_forward.9} parent=1 // loop_footer_branch
      %15 = sbr.rel target = $region3
    $region8: #{single_stream_block_forward.9} parent=1 // loop_exit
      _
    %1500 = vsyncpa [#allocation4], 1
    %s1501 = scalar_lea.sflag [#allocation4], 1
    %1502 = vsyncpa %s1501, 1

</llo_original>
